<compile_context>
chip_gen: v5e
topology: v5e:2x2
jax: 0.10.0
libtpu: 0.0.40
codegen_flags: <defaults>
</compile_context>

<pallas_src>
import functools

import jax
import jax.numpy as jnp
from jax import lax
from jax.experimental import pallas as pl
from jax.experimental.pallas import tpu as pltpu


# ----------------------------------------------------------------------------
# Kernel 1: fused 3x3 conv (padding=1) + bias + Hardtanh(0,20) + BN(eval).
# Grid over batch; in-kernel row loop of 9 shifted matmuls (bf16 MXU, f32 acc).
# ----------------------------------------------------------------------------
def _conv_row_kernel(x_ref, w_ref, b_ref, s_ref, t_ref, o_ref, *, H, W, Cin, Cout):
    # x_ref: (H+2, W+2, Cin) padded input for one batch element (batch squeezed)
    # w_ref: (9, Cin, Cout) tap-major weights (bf16 when Cin > 1)
    # b_ref / s_ref / t_ref: (1, Cout) conv bias / BN scale / BN shift (f32)
    # o_ref: (H, W, Cout)
    b = b_ref[...]
    s = s_ref[...]
    t = t_ref[...]
    if Cin == 1:
        w_all = w_ref[...].astype(jnp.float32)          # (9, 1, Cout) — tiny

    def row(h, carry):
        acc = jnp.zeros((W, Cout), jnp.float32)
        for dy in range(3):
            xrow = x_ref[h + dy]                        # (W+2, Cin) dynamic row
            for dx in range(3):
                xs = xrow[dx:dx + W, :]                 # (W, Cin) static shift
                k = dy * 3 + dx
                if Cin == 1:
                    acc = acc + xs * w_all[k]           # VPU: (W,1)*(1,Cout)
                else:
                    acc = acc + jnp.dot(xs.astype(jnp.bfloat16), w_ref[k],
                                        preferred_element_type=jnp.float32)
        acc = jnp.clip(acc + b, 0.0, 20.0)              # bias + Hardtanh(0, 20)
        o_ref[h] = acc * s + t                          # BN (eval) affine
        return carry

    lax.fori_loop(0, H, row, 0)


def conv3x3_htanh_bn(x, wmat, bias, scale, shift):
    """x: (B, H, W, Cin) NHWC.  wmat: (9, Cin, Cout).  Returns (B, H, W, Cout)."""
    B, H, W, Cin = x.shape
    Cout = wmat.shape[-1]
    xp = jnp.pad(x, ((0, 0), (1, 1), (1, 1), (0, 0)))
    kern = functools.partial(_conv_row_kernel, H=H, W=W, Cin=Cin, Cout=Cout)
    return pl.pallas_call(
        kern,
        out_shape=jax.ShapeDtypeStruct((B, H, W, Cout), jnp.float32),
        grid=(B,),
        in_specs=[
            pl.BlockSpec((None, H + 2, W + 2, Cin), lambda b: (b, 0, 0, 0)),
            pl.BlockSpec((9, Cin, Cout), lambda b: (0, 0, 0)),
            pl.BlockSpec((1, Cout), lambda b: (0, 0)),
            pl.BlockSpec((1, Cout), lambda b: (0, 0)),
            pl.BlockSpec((1, Cout), lambda b: (0, 0)),
        ],
        out_specs=pl.BlockSpec((None, H, W, Cout), lambda b: (b, 0, 0, 0)),
        compiler_params=pltpu.CompilerParams(
            dimension_semantics=("parallel",)),
    )(xp, wmat, bias, scale, shift)


# ----------------------------------------------------------------------------
# Kernel 2: GRU input projection gi = x @ Wih + bih, both directions, fused
# [r|z|n] gate weights.  One big matmul per direction, hoisted out of the
# recurrence.  bf16 operands / f32 accumulation.
# ----------------------------------------------------------------------------
def _proj_kernel(x_ref, w_ref, b_ref, o_ref):
    o_ref[...] = jnp.dot(x_ref[...].astype(jnp.bfloat16), w_ref[...],
                         preferred_element_type=jnp.float32) + b_ref[...]


def _pick_rows(n):
    for r in (512, 256, 128, 64, 32, 16, 8):
        if n % r == 0:
            return r
    return n


def gru_input_proj(x_tm, wih, bih):
    """x_tm: (T, B, D); wih: (2, D, 3H) bf16; bih: (2, 1, 3H) -> (2, T, B, 3H)."""
    T, B, D = x_tm.shape
    H3 = wih.shape[-1]
    N = T * B
    RT = _pick_rows(N)
    xf = x_tm.reshape(N, D)
    gi = pl.pallas_call(
        _proj_kernel,
        out_shape=jax.ShapeDtypeStruct((2, N, H3), jnp.float32),
        grid=(2, N // RT),
        in_specs=[
            pl.BlockSpec((RT, D), lambda d, r: (r, 0)),
            pl.BlockSpec((None, D, H3), lambda d, r: (d, 0, 0)),
            pl.BlockSpec((None, 1, H3), lambda d, r: (d, 0, 0)),
        ],
        out_specs=pl.BlockSpec((None, RT, H3), lambda d, r: (d, r, 0)),
        compiler_params=pltpu.CompilerParams(
            dimension_semantics=("parallel", "parallel")),
    )(xf, wih, bih)
    return gi.reshape(2, T, B, H3)


# ----------------------------------------------------------------------------
# Kernel 3: bidirectional GRU recurrence.  Both directions in one call, time
# axis chunked through the grid (h carried in VMEM scratch, init guarded by
# pl.when).  One (B,H)@(H,3H) dot per direction per step; weights hoisted out
# of the unrolled time loop.
# ----------------------------------------------------------------------------
def _bigru_rec_kernel(gif_ref, gib_ref, whh_ref, bhh_ref, of_ref, ob_ref, h_ref,
                      *, hidden):
    # gif_ref/gib_ref: (Tc, B, 3H) gate pre-activations (fwd chunk / reversed
    #   bwd chunk); whh_ref: (2, H, 3H); bhh_ref: (2, 1, 3H);
    # of_ref/ob_ref: (Tc, B, H); h_ref: (2, B, H) scratch hidden state.
    H = hidden
    Tc = gif_ref.shape[0]

    @pl.when(pl.program_id(0) == 0)
    def _():
        h_ref[...] = jnp.zeros_like(h_ref)

    whh_f = whh_ref[0]
    whh_b = whh_ref[1]
    bhh_f = bhh_ref[0]
    bhh_b = bhh_ref[1]

    def cell(gi, h_prev, whh, bhh):
        gh = jnp.dot(h_prev, whh, preferred_element_type=jnp.float32) + bhh
        r = jax.nn.sigmoid(gi[:, :H] + gh[:, :H])
        z = jax.nn.sigmoid(gi[:, H:2 * H] + gh[:, H:2 * H])
        n = jnp.tanh(gi[:, 2 * H:] + r * gh[:, 2 * H:])
        return (1.0 - z) * n + z * h_prev

    def step(t, carry):
        rt = Tc - 1 - t
        h_f = cell(gif_ref[t], h_ref[0], whh_f, bhh_f)
        h_b = cell(gib_ref[rt], h_ref[1], whh_b, bhh_b)
        h_ref[0] = h_f
        h_ref[1] = h_b
        of_ref[t] = h_f
        ob_ref[rt] = h_b
        return carry

    lax.fori_loop(0, Tc, step, 0, unroll=True)


def _pick_chunk(t, cap=32):
    c = min(t, cap)
    while t % c:
        c -= 1
    return c


def bi_gru_layer(x_tm, wih, whh, bih, bhh):
    """One bidirectional GRU layer, time-major in/out (h0 = 0)."""
    T, B, D = x_tm.shape
    H = whh.shape[1]
    gi = gru_input_proj(x_tm, wih, bih)                 # (2, T, B, 3H)
    Tc = _pick_chunk(T)
    nch = T // Tc
    kern = functools.partial(_bigru_rec_kernel, hidden=H)
    out_f, out_b = pl.pallas_call(
        kern,
        out_shape=(jax.ShapeDtypeStruct((T, B, H), jnp.float32),
                   jax.ShapeDtypeStruct((T, B, H), jnp.float32)),
        grid=(nch,),
        in_specs=[
            pl.BlockSpec((None, Tc, B, 3 * H), lambda i: (0, i, 0, 0)),
            pl.BlockSpec((None, Tc, B, 3 * H),
                         lambda i, n=nch: (1, n - 1 - i, 0, 0)),
            pl.BlockSpec((2, H, 3 * H), lambda i: (0, 0, 0)),
            pl.BlockSpec((2, 1, 3 * H), lambda i: (0, 0, 0)),
        ],
        out_specs=(
            pl.BlockSpec((Tc, B, H), lambda i: (i, 0, 0)),
            pl.BlockSpec((Tc, B, H), lambda i, n=nch: (n - 1 - i, 0, 0)),
        ),
        scratch_shapes=[pltpu.VMEM((2, B, H), jnp.float32)],
        compiler_params=pltpu.CompilerParams(
            dimension_semantics=("arbitrary",)),
    )(gi, gi, whh, bhh)
    return jnp.concatenate([out_f, out_b], axis=-1)     # (T, B, 2H)


def bi_gru_stack(x_tm, layers):
    h = x_tm
    for wih, whh, bih, bhh in layers:
        h = bi_gru_layer(h, wih, whh, bih, bhh)
    return h


def pyramidal_rnn(x_tm, layers):
    """PyramidalRNN.forward: pad time to even, halve time, double features, bi-GRU."""
    T, B, D = x_tm.shape
    if T % 2:
        x_tm = jnp.concatenate([x_tm, jnp.zeros((1, B, D), x_tm.dtype)], axis=0)
        T += 1
    x_tm = x_tm.reshape(T // 2, 2, B, D).transpose(0, 2, 1, 3).reshape(T // 2, B, 2 * D)
    return bi_gru_stack(x_tm, layers)


# ----------------------------------------------------------------------------
# Glue (not the hot path)
# ----------------------------------------------------------------------------
def maxpool2(x):
    """MaxPool2d(kernel=2, stride=2) on NHWC."""
    B, H, W, C = x.shape
    x = x[:, :(H // 2) * 2, :(W // 2) * 2, :]
    return x.reshape(B, H // 2, 2, W // 2, 2, C).max(axis=(2, 4))


# ----------------------------------------------------------------------------
# Deterministic parameter initialization
# ----------------------------------------------------------------------------
def init_conv_bn(key, cin, cout):
    key, k1, k2, k3, k4 = jax.random.split(key, 5)
    wscale = float((cin * 9) ** -0.5)
    w = jax.random.normal(k1, (cout, cin, 3, 3), jnp.float32) * wscale  # torch layout
    b = jax.random.normal(k2, (cout,), jnp.float32) * 0.1
    gamma = 1.0 + 0.1 * jax.random.normal(k3, (cout,), jnp.float32)
    beta = 0.1 * jax.random.normal(k4, (cout,), jnp.float32)
    mean = jnp.zeros((cout,), jnp.float32)      # fresh running stats (eval)
    var = jnp.ones((cout,), jnp.float32)
    eps = 1e-5
    scale = gamma / jnp.sqrt(var + eps)
    shift = beta - mean * scale
    # kernel layout: (9, Cin, Cout) with k = dy*3 + dx; bf16 MXU operands when Cin>1
    wmat = jnp.transpose(w, (2, 3, 1, 0)).reshape(9, cin, cout)
    if cin > 1:
        wmat = wmat.astype(jnp.bfloat16)
    return key, dict(w=wmat, b=b.reshape(1, cout),
                     s=scale.reshape(1, cout), t=shift.reshape(1, cout))


def init_gru_layers(key, num_layers, input_size, hidden):
    layers = []
    bound = float(hidden ** -0.5)
    din = input_size
    for _ in range(num_layers):
        key, k1, k2, k3, k4 = jax.random.split(key, 5)
        # gate order along the fused 3H axis: [r | z | n] (PyTorch convention)
        wih = jax.random.uniform(k1, (2, din, 3 * hidden), jnp.float32, -bound, bound)
        whh = jax.random.uniform(k2, (2, hidden, 3 * hidden), jnp.float32, -bound, bound)
        bih = jax.random.uniform(k3, (2, 1, 3 * hidden), jnp.float32, -bound, bound)
        bhh = jax.random.uniform(k4, (2, 1, 3 * hidden), jnp.float32, -bound, bound)
        layers.append((wih.astype(jnp.bfloat16), whh, bih, bhh))
        din = 2 * hidden
    return key, layers


def init_listener_params(key, feat_size, hidden_size, layer_size=5):
    params = {}
    key, params['conv1'] = init_conv_bn(key, 1, 64)
    key, params['conv2'] = init_conv_bn(key, 64, 64)    # its BN applied after pool
    key, params['conv3'] = init_conv_bn(key, 64, 128)
    key, params['conv4'] = init_conv_bn(key, 128, 128)
    key, params['conv5'] = init_conv_bn(key, 128, 128)
    rnn_feat = (feat_size - 1) << 5 if feat_size % 2 else feat_size << 5
    key, params['bottom'] = init_gru_layers(key, layer_size - 4, rnn_feat, hidden_size)
    # PyramidalRNN: input_size = hidden<<1 (bidirectional), its GRU eats input*2
    key, params['middle'] = init_gru_layers(key, 2, (hidden_size << 1) * 2, hidden_size)
    key, params['top'] = init_gru_layers(key, 2, (hidden_size << 1) * 2, hidden_size)
    return params, key


# ----------------------------------------------------------------------------
# Listener forward
# ----------------------------------------------------------------------------
def listener_forward(inputs, params):
    # inputs: (B, seq_len, feat) -> torch unsqueeze(1) NCHW == NHWC (B, T, F, 1)
    x = inputs[:, :, :, None].astype(jnp.float32)

    c = params['conv1']                                  # Conv -> Htanh -> BN1
    x = conv3x3_htanh_bn(x, c['w'], c['b'], c['s'], c['t'])

    c = params['conv2']                                  # Conv -> Htanh
    ones = jnp.ones_like(c['s'])
    zeros = jnp.zeros_like(c['t'])
    x = conv3x3_htanh_bn(x, c['w'], c['b'], ones, zeros)
    # MaxPool2x2 then BN2 (eval affine) fused into the same elementwise pass
    x = maxpool2(x) * c['s'][0] + c['t'][0]

    for name in ('conv3', 'conv4', 'conv5'):             # Conv -> Htanh -> BN
        c = params[name]
        x = conv3x3_htanh_bn(x, c['w'], c['b'], c['s'], c['t'])
    x = maxpool2(x)                                      # final MaxPool2x2

    # (B, T/4, F/4, 128): torch does NCHW.transpose(1,2).flatten(channel, freq)
    B, H, W, C = x.shape
    x_tm = jnp.transpose(x, (1, 0, 3, 2)).reshape(H, B, C * W)   # time-major once

    x_tm = bi_gru_stack(x_tm, params['bottom'])          # bottom bi-GRU
    x_tm = pyramidal_rnn(x_tm, params['middle'])         # middle pyramidal bi-GRU
    x_tm = pyramidal_rnn(x_tm, params['top'])            # top pyramidal bi-GRU
    return jnp.transpose(x_tm, (1, 0, 2))                # back to batch-first


# ----------------------------------------------------------------------------
if __name__ == "__main__":
    key = jax.random.PRNGKey(0)
    B, T, F = 2, 16, 16          # batch=2, seq_len=16, feat_size=16
    hidden_size = 32

    params, key = init_listener_params(key, F, hidden_size, layer_size=5)
    key, kx = jax.random.split(key)
    inputs = jax.random.normal(kx, (B, T, F), jnp.float32)

    fwd = jax.jit(listener_forward)
    out = jax.block_until_ready(fwd(inputs, params))

    expected = (B, T // 16, 2 * hidden_size)   # (2, 1, 64)
    assert out.shape == expected, (out.shape, expected)
    assert bool(jnp.all(jnp.isfinite(out)))
    print("KERNEL_OK")
</pallas_src>

<mosaic_0001>
module attributes {stable_mosaic.version = 11 : i64} {
  func.func @_conv_row_kernel(%arg0: i32, %arg1: memref<1x18x18x1xf32, #tpu.memory_space<vmem>>, %arg2: memref<9x1x64xf32, #tpu.memory_space<vmem>>, %arg3: memref<1x64xf32, #tpu.memory_space<vmem>>, %arg4: memref<1x64xf32, #tpu.memory_space<vmem>>, %arg5: memref<1x64xf32, #tpu.memory_space<vmem>>, %arg6: memref<1x16x16x64xf32, #tpu.memory_space<vmem>>) attributes {dimension_semantics = [#tpu.dimension_semantics<parallel>], iteration_bounds = array<i64: 2>, scalar_prefetch = 0 : i64, scratch_operands = 0 : i64, tpu.core_type = #tpu.core_type<tc>, window_params = [{transform_indices = @transform_0, window_bounds = array<i64: 1, 18, 18, 1>}, {pipeline_mode = #tpu.pipeline_mode<synchronous>, transform_indices = @transform_1, window_bounds = array<i64: 9, 1, 64>}, {pipeline_mode = #tpu.pipeline_mode<synchronous>, transform_indices = @transform_2, window_bounds = array<i64: 1, 64>}, {pipeline_mode = #tpu.pipeline_mode<synchronous>, transform_indices = @transform_3, window_bounds = array<i64: 1, 64>}, {pipeline_mode = #tpu.pipeline_mode<synchronous>, transform_indices = @transform_4, window_bounds = array<i64: 1, 64>}, {transform_indices = @transform_5, window_bounds = array<i64: 1, 16, 16, 64>}]} {
    %c0 = arith.constant 0 : index
    %c0_0 = arith.constant 0 : index
    %0 = vector.load %arg3[%c0, %c0_0] : memref<1x64xf32, #tpu.memory_space<vmem>>, vector<1x64xf32>
    %c0_1 = arith.constant 0 : index
    %c0_2 = arith.constant 0 : index
    %1 = vector.load %arg4[%c0_1, %c0_2] : memref<1x64xf32, #tpu.memory_space<vmem>>, vector<1x64xf32>
    %c0_3 = arith.constant 0 : index
    %c0_4 = arith.constant 0 : index
    %2 = vector.load %arg5[%c0_3, %c0_4] : memref<1x64xf32, #tpu.memory_space<vmem>>, vector<1x64xf32>
    %c0_5 = arith.constant 0 : index
    %c0_6 = arith.constant 0 : index
    %c0_7 = arith.constant 0 : index
    %3 = vector.load %arg2[%c0_5, %c0_6, %c0_7] : memref<9x1x64xf32, #tpu.memory_space<vmem>>, vector<9x1x64xf32>
    %c0_i32 = arith.constant 0 : i32
    %c16_i32 = arith.constant 16 : i32
    %4 = arith.addi %c0_i32, %c16_i32 : i32
    %c1_i32 = arith.constant 1 : i32
    scf.for %arg7 = %c0_i32 to %4 step %c1_i32  : i32 {
      %cst = arith.constant 0.000000e+00 : f32
      %5 = vector.broadcast %cst : f32 to vector<16x64xf32>
      %c0_i32_9 = arith.constant 0 : i32
      %6 = arith.addi %arg7, %c0_i32_9 : i32
      %c0_10 = arith.constant 0 : index
      %7 = arith.index_cast %6 : i32 to index
      %c0_11 = arith.constant 0 : index
      %c0_12 = arith.constant 0 : index
      %8 = vector.load %arg1[%c0_10, %7, %c0_11, %c0_12] : memref<1x18x18x1xf32, #tpu.memory_space<vmem>>, vector<1x1x18x1xf32>
      %9 = vector.shape_cast %8 : vector<1x1x18x1xf32> to vector<18x1xf32>
      %10 = vector.extract_strided_slice %9 {offsets = [0, 0], sizes = [16, 1], strides = [1, 1]} : vector<18x1xf32> to vector<16x1xf32>
      %11 = vector.extract_strided_slice %3 {offsets = [0, 0, 0], sizes = [1, 1, 64], strides = [1, 1, 1]} : vector<9x1x64xf32> to vector<1x1x64xf32>
      %12 = vector.shape_cast %11 : vector<1x1x64xf32> to vector<1x64xf32>
      %13 = vector.broadcast %10 : vector<16x1xf32> to vector<16x64xf32>
      %14 = vector.broadcast %12 : vector<1x64xf32> to vector<16x64xf32>
      %15 = arith.mulf %13, %14 : vector<16x64xf32>
      %16 = arith.addf %5, %15 : vector<16x64xf32>
      %17 = vector.extract_strided_slice %9 {offsets = [1, 0], sizes = [16, 1], strides = [1, 1]} : vector<18x1xf32> to vector<16x1xf32>
      %18 = vector.extract_strided_slice %3 {offsets = [1, 0, 0], sizes = [1, 1, 64], strides = [1, 1, 1]} : vector<9x1x64xf32> to vector<1x1x64xf32>
      %19 = vector.shape_cast %18 : vector<1x1x64xf32> to vector<1x64xf32>
      %20 = vector.broadcast %17 : vector<16x1xf32> to vector<16x64xf32>
      %21 = vector.broadcast %19 : vector<1x64xf32> to vector<16x64xf32>
      %22 = arith.mulf %20, %21 : vector<16x64xf32>
      %23 = arith.addf %16, %22 : vector<16x64xf32>
      %24 = vector.extract_strided_slice %9 {offsets = [2, 0], sizes = [16, 1], strides = [1, 1]} : vector<18x1xf32> to vector<16x1xf32>
      %25 = vector.extract_strided_slice %3 {offsets = [2, 0, 0], sizes = [1, 1, 64], strides = [1, 1, 1]} : vector<9x1x64xf32> to vector<1x1x64xf32>
      %26 = vector.shape_cast %25 : vector<1x1x64xf32> to vector<1x64xf32>
      %27 = vector.broadcast %24 : vector<16x1xf32> to vector<16x64xf32>
      %28 = vector.broadcast %26 : vector<1x64xf32> to vector<16x64xf32>
      %29 = arith.mulf %27, %28 : vector<16x64xf32>
      %30 = arith.addf %23, %29 : vector<16x64xf32>
      %c1_i32_13 = arith.constant 1 : i32
      %31 = arith.addi %arg7, %c1_i32_13 : i32
      %c0_14 = arith.constant 0 : index
      %32 = arith.index_cast %31 : i32 to index
      %c0_15 = arith.constant 0 : index
      %c0_16 = arith.constant 0 : index
      %33 = vector.load %arg1[%c0_14, %32, %c0_15, %c0_16] : memref<1x18x18x1xf32, #tpu.memory_space<vmem>>, vector<1x1x18x1xf32>
      %34 = vector.shape_cast %33 : vector<1x1x18x1xf32> to vector<18x1xf32>
      %35 = vector.extract_strided_slice %34 {offsets = [0, 0], sizes = [16, 1], strides = [1, 1]} : vector<18x1xf32> to vector<16x1xf32>
      %36 = vector.extract_strided_slice %3 {offsets = [3, 0, 0], sizes = [1, 1, 64], strides = [1, 1, 1]} : vector<9x1x64xf32> to vector<1x1x64xf32>
      %37 = vector.shape_cast %36 : vector<1x1x64xf32> to vector<1x64xf32>
      %38 = vector.broadcast %35 : vector<16x1xf32> to vector<16x64xf32>
      %39 = vector.broadcast %37 : vector<1x64xf32> to vector<16x64xf32>
      %40 = arith.mulf %38, %39 : vector<16x64xf32>
      %41 = arith.addf %30, %40 : vector<16x64xf32>
      %42 = vector.extract_strided_slice %34 {offsets = [1, 0], sizes = [16, 1], strides = [1, 1]} : vector<18x1xf32> to vector<16x1xf32>
      %43 = vector.extract_strided_slice %3 {offsets = [4, 0, 0], sizes = [1, 1, 64], strides = [1, 1, 1]} : vector<9x1x64xf32> to vector<1x1x64xf32>
      %44 = vector.shape_cast %43 : vector<1x1x64xf32> to vector<1x64xf32>
      %45 = vector.broadcast %42 : vector<16x1xf32> to vector<16x64xf32>
      %46 = vector.broadcast %44 : vector<1x64xf32> to vector<16x64xf32>
      %47 = arith.mulf %45, %46 : vector<16x64xf32>
      %48 = arith.addf %41, %47 : vector<16x64xf32>
      %49 = vector.extract_strided_slice %34 {offsets = [2, 0], sizes = [16, 1], strides = [1, 1]} : vector<18x1xf32> to vector<16x1xf32>
      %50 = vector.extract_strided_slice %3 {offsets = [5, 0, 0], sizes = [1, 1, 64], strides = [1, 1, 1]} : vector<9x1x64xf32> to vector<1x1x64xf32>
      %51 = vector.shape_cast %50 : vector<1x1x64xf32> to vector<1x64xf32>
      %52 = vector.broadcast %49 : vector<16x1xf32> to vector<16x64xf32>
      %53 = vector.broadcast %51 : vector<1x64xf32> to vector<16x64xf32>
      %54 = arith.mulf %52, %53 : vector<16x64xf32>
      %55 = arith.addf %48, %54 : vector<16x64xf32>
      %c2_i32 = arith.constant 2 : i32
      %56 = arith.addi %arg7, %c2_i32 : i32
      %c0_17 = arith.constant 0 : index
      %57 = arith.index_cast %56 : i32 to index
      %c0_18 = arith.constant 0 : index
      %c0_19 = arith.constant 0 : index
      %58 = vector.load %arg1[%c0_17, %57, %c0_18, %c0_19] : memref<1x18x18x1xf32, #tpu.memory_space<vmem>>, vector<1x1x18x1xf32>
      %59 = vector.shape_cast %58 : vector<1x1x18x1xf32> to vector<18x1xf32>
      %60 = vector.extract_strided_slice %59 {offsets = [0, 0], sizes = [16, 1], strides = [1, 1]} : vector<18x1xf32> to vector<16x1xf32>
      %61 = vector.extract_strided_slice %3 {offsets = [6, 0, 0], sizes = [1, 1, 64], strides = [1, 1, 1]} : vector<9x1x64xf32> to vector<1x1x64xf32>
      %62 = vector.shape_cast %61 : vector<1x1x64xf32> to vector<1x64xf32>
      %63 = vector.broadcast %60 : vector<16x1xf32> to vector<16x64xf32>
      %64 = vector.broadcast %62 : vector<1x64xf32> to vector<16x64xf32>
      %65 = arith.mulf %63, %64 : vector<16x64xf32>
      %66 = arith.addf %55, %65 : vector<16x64xf32>
      %67 = vector.extract_strided_slice %59 {offsets = [1, 0], sizes = [16, 1], strides = [1, 1]} : vector<18x1xf32> to vector<16x1xf32>
      %68 = vector.extract_strided_slice %3 {offsets = [7, 0, 0], sizes = [1, 1, 64], strides = [1, 1, 1]} : vector<9x1x64xf32> to vector<1x1x64xf32>
      %69 = vector.shape_cast %68 : vector<1x1x64xf32> to vector<1x64xf32>
      %70 = vector.broadcast %67 : vector<16x1xf32> to vector<16x64xf32>
      %71 = vector.broadcast %69 : vector<1x64xf32> to vector<16x64xf32>
      %72 = arith.mulf %70, %71 : vector<16x64xf32>
      %73 = arith.addf %66, %72 : vector<16x64xf32>
      %74 = vector.extract_strided_slice %59 {offsets = [2, 0], sizes = [16, 1], strides = [1, 1]} : vector<18x1xf32> to vector<16x1xf32>
      %75 = vector.extract_strided_slice %3 {offsets = [8, 0, 0], sizes = [1, 1, 64], strides = [1, 1, 1]} : vector<9x1x64xf32> to vector<1x1x64xf32>
      %76 = vector.shape_cast %75 : vector<1x1x64xf32> to vector<1x64xf32>
      %77 = vector.broadcast %74 : vector<16x1xf32> to vector<16x64xf32>
      %78 = vector.broadcast %76 : vector<1x64xf32> to vector<16x64xf32>
      %79 = arith.mulf %77, %78 : vector<16x64xf32>
      %80 = arith.addf %73, %79 : vector<16x64xf32>
      %81 = vector.broadcast %0 : vector<1x64xf32> to vector<16x64xf32>
      %82 = arith.addf %80, %81 : vector<16x64xf32>
      %cst_20 = arith.constant 0.000000e+00 : f32
      %cst_21 = arith.constant 2.000000e+01 : f32
      %83 = vector.broadcast %cst_20 : f32 to vector<16x64xf32>
      %84 = arith.maximumf %83, %82 : vector<16x64xf32>
      %85 = vector.broadcast %cst_21 : f32 to vector<16x64xf32>
      %86 = arith.minimumf %85, %84 : vector<16x64xf32>
      %87 = vector.broadcast %1 : vector<1x64xf32> to vector<16x64xf32>
      %88 = arith.mulf %86, %87 : vector<16x64xf32>
      %89 = vector.broadcast %2 : vector<1x64xf32> to vector<16x64xf32>
      %90 = arith.addf %88, %89 : vector<16x64xf32>
      %c0_22 = arith.constant 0 : index
      %91 = arith.index_cast %arg7 : i32 to index
      %c0_23 = arith.constant 0 : index
      %c0_24 = arith.constant 0 : index
      %92 = vector.load %arg6[%c0_22, %91, %c0_23, %c0_24] : memref<1x16x16x64xf32, #tpu.memory_space<vmem>>, vector<1x1x16x64xf32>
      %93 = vector.shape_cast %92 : vector<1x1x16x64xf32> to vector<16x64xf32>
      %94 = vector.shape_cast %90 : vector<16x64xf32> to vector<1x1x16x64xf32>
      tpu.vector_store %arg6[%c0_22, %91, %c0_23, %c0_24], %94 {strides = array<i32>} : memref<1x16x16x64xf32, #tpu.memory_space<vmem>>, vector<1x1x16x64xf32>,
    }
    %c16_i32_8 = arith.constant 16 : i32
    return
  }
  func.func @transform_0(%arg0: i32) -> (i32, i32, i32, i32) {
    %c0_i32 = arith.constant 0 : i32
    %c0_i32_0 = arith.constant 0 : i32
    %c0_i32_1 = arith.constant 0 : i32
    %c0_i32_2 = arith.constant 0 : i32
    return %arg0, %c0_i32, %c0_i32_0, %c0_i32_1 : i32, i32, i32, i32
  }
  func.func @transform_1(%arg0: i32) -> (i32, i32, i32) {
    %c0_i32 = arith.constant 0 : i32
    %c0_i32_0 = arith.constant 0 : i32
    %c0_i32_1 = arith.constant 0 : i32
    %c0_i32_2 = arith.constant 0 : i32
    return %c0_i32, %c0_i32_0, %c0_i32_1 : i32, i32, i32
  }
  func.func @transform_2(%arg0: i32) -> (i32, i32) {
    %c0_i32 = arith.constant 0 : i32
    %c0_i32_0 = arith.constant 0 : i32
    %c0_i32_1 = arith.constant 0 : i32
    return %c0_i32, %c0_i32_0 : i32, i32
  }
  func.func @transform_3(%arg0: i32) -> (i32, i32) {
    %c0_i32 = arith.constant 0 : i32
    %c0_i32_0 = arith.constant 0 : i32
    %c0_i32_1 = arith.constant 0 : i32
    return %c0_i32, %c0_i32_0 : i32, i32
  }
  func.func @transform_4(%arg0: i32) -> (i32, i32) {
    %c0_i32 = arith.constant 0 : i32
    %c0_i32_0 = arith.constant 0 : i32
    %c0_i32_1 = arith.constant 0 : i32
    return %c0_i32, %c0_i32_0 : i32, i32
  }
  func.func @transform_5(%arg0: i32) -> (i32, i32, i32, i32) {
    %c0_i32 = arith.constant 0 : i32
    %c0_i32_0 = arith.constant 0 : i32
    %c0_i32_1 = arith.constant 0 : i32
    %c0_i32_2 = arith.constant 0 : i32
    return %arg0, %c0_i32, %c0_i32_0, %c0_i32_1 : i32, i32, i32, i32
  }
}

module attributes {stable_mosaic.version = 11 : i64} {
  func.func @_conv_row_kernel(%arg0: i32, %arg1: memref<1x18x18x64xf32, #tpu.memory_space<vmem>>, %arg2: memref<9x64x64xbf16, #tpu.memory_space<vmem>>, %arg3: memref<1x64xf32, #tpu.memory_space<vmem>>, %arg4: memref<1x64xf32, #tpu.memory_space<vmem>>, %arg5: memref<1x64xf32, #tpu.memory_space<vmem>>, %arg6: memref<1x16x16x64xf32, #tpu.memory_space<vmem>>) attributes {dimension_semantics = [#tpu.dimension_semantics<parallel>], iteration_bounds = array<i64: 2>, scalar_prefetch = 0 : i64, scratch_operands = 0 : i64, tpu.core_type = #tpu.core_type<tc>, window_params = [{transform_indices = @transform_0, window_bounds = array<i64: 1, 18, 18, 64>}, {pipeline_mode = #tpu.pipeline_mode<synchronous>, transform_indices = @transform_1, window_bounds = array<i64: 9, 64, 64>}, {pipeline_mode = #tpu.pipeline_mode<synchronous>, transform_indices = @transform_2, window_bounds = array<i64: 1, 64>}, {pipeline_mode = #tpu.pipeline_mode<synchronous>, transform_indices = @transform_3, window_bounds = array<i64: 1, 64>}, {pipeline_mode = #tpu.pipeline_mode<synchronous>, transform_indices = @transform_4, window_bounds = array<i64: 1, 64>}, {transform_indices = @transform_5, window_bounds = array<i64: 1, 16, 16, 64>}]} {
    %c0 = arith.constant 0 : index
    %c0_0 = arith.constant 0 : index
    %0 = vector.load %arg3[%c0, %c0_0] : memref<1x64xf32, #tpu.memory_space<vmem>>, vector<1x64xf32>
    %c0_1 = arith.constant 0 : index
    %c0_2 = arith.constant 0 : index
    %1 = vector.load %arg4[%c0_1, %c0_2] : memref<1x64xf32, #tpu.memory_space<vmem>>, vector<1x64xf32>
    %c0_3 = arith.constant 0 : index
    %c0_4 = arith.constant 0 : index
    %2 = vector.load %arg5[%c0_3, %c0_4] : memref<1x64xf32, #tpu.memory_space<vmem>>, vector<1x64xf32>
    %c0_i32 = arith.constant 0 : i32
    %c16_i32 = arith.constant 16 : i32
    %3 = arith.addi %c0_i32, %c16_i32 : i32
    %c1_i32 = arith.constant 1 : i32
    scf.for %arg7 = %c0_i32 to %3 step %c1_i32  : i32 {
      %cst = arith.constant 0.000000e+00 : f32
      %4 = vector.broadcast %cst : f32 to vector<16x64xf32>
      %c0_i32_6 = arith.constant 0 : i32
      %5 = arith.addi %arg7, %c0_i32_6 : i32
      %c0_7 = arith.constant 0 : index
      %6 = arith.index_cast %5 : i32 to index
      %c0_8 = arith.constant 0 : index
      %c0_9 = arith.constant 0 : index
      %7 = vector.load %arg1[%c0_7, %6, %c0_8, %c0_9] : memref<1x18x18x64xf32, #tpu.memory_space<vmem>>, vector<1x1x18x64xf32>
      %8 = vector.shape_cast %7 : vector<1x1x18x64xf32> to vector<18x64xf32>
      %9 = vector.extract_strided_slice %8 {offsets = [0, 0], sizes = [16, 64], strides = [1, 1]} : vector<18x64xf32> to vector<16x64xf32>
      %10 = arith.truncf %9 : vector<16x64xf32> to vector<16x64xbf16>
      %c0_10 = arith.constant 0 : index
      %c0_11 = arith.constant 0 : index
      %c0_12 = arith.constant 0 : index
      %11 = vector.load %arg2[%c0_10, %c0_11, %c0_12] : memref<9x64x64xbf16, #tpu.memory_space<vmem>>, vector<1x64x64xbf16>
      %12 = vector.shape_cast %11 : vector<1x64x64xbf16> to vector<64x64xbf16>
      %cst_13 = arith.constant dense<0.000000e+00> : vector<16x64xf32>
      %13 = tpu.matmul %10, %12, %cst_13 {dimension_numbers = #tpu.dot_dimension_numbers<[1], [0], [0], [1], [0, 0, 1, 1], [], []>} : vector<16x64xbf16>, vector<64x64xbf16>, vector<16x64xf32> -> vector<16x64xf32>
      %14 = arith.addf %4, %13 : vector<16x64xf32>
      %15 = vector.extract_strided_slice %8 {offsets = [1, 0], sizes = [16, 64], strides = [1, 1]} : vector<18x64xf32> to vector<16x64xf32>
      %16 = arith.truncf %15 : vector<16x64xf32> to vector<16x64xbf16>
      %c1 = arith.constant 1 : index
      %c0_14 = arith.constant 0 : index
      %c0_15 = arith.constant 0 : index
      %17 = vector.load %arg2[%c1, %c0_14, %c0_15] : memref<9x64x64xbf16, #tpu.memory_space<vmem>>, vector<1x64x64xbf16>
      %18 = vector.shape_cast %17 : vector<1x64x64xbf16> to vector<64x64xbf16>
      %cst_16 = arith.constant dense<0.000000e+00> : vector<16x64xf32>
      %19 = tpu.matmul %16, %18, %cst_16 {dimension_numbers = #tpu.dot_dimension_numbers<[1], [0], [0], [1], [0, 0, 1, 1], [], []>} : vector<16x64xbf16>, vector<64x64xbf16>, vector<16x64xf32> -> vector<16x64xf32>
      %20 = arith.addf %14, %19 : vector<16x64xf32>
      %21 = vector.extract_strided_slice %8 {offsets = [2, 0], sizes = [16, 64], strides = [1, 1]} : vector<18x64xf32> to vector<16x64xf32>
      %22 = arith.truncf %21 : vector<16x64xf32> to vector<16x64xbf16>
      %c2 = arith.constant 2 : index
      %c0_17 = arith.constant 0 : index
      %c0_18 = arith.constant 0 : index
      %23 = vector.load %arg2[%c2, %c0_17, %c0_18] : memref<9x64x64xbf16, #tpu.memory_space<vmem>>, vector<1x64x64xbf16>
      %24 = vector.shape_cast %23 : vector<1x64x64xbf16> to vector<64x64xbf16>
      %cst_19 = arith.constant dense<0.000000e+00> : vector<16x64xf32>
      %25 = tpu.matmul %22, %24, %cst_19 {dimension_numbers = #tpu.dot_dimension_numbers<[1], [0], [0], [1], [0, 0, 1, 1], [], []>} : vector<16x64xbf16>, vector<64x64xbf16>, vector<16x64xf32> -> vector<16x64xf32>
      %26 = arith.addf %20, %25 : vector<16x64xf32>
      %c1_i32_20 = arith.constant 1 : i32
      %27 = arith.addi %arg7, %c1_i32_20 : i32
      %c0_21 = arith.constant 0 : index
      %28 = arith.index_cast %27 : i32 to index
      %c0_22 = arith.constant 0 : index
      %c0_23 = arith.constant 0 : index
      %29 = vector.load %arg1[%c0_21, %28, %c0_22, %c0_23] : memref<1x18x18x64xf32, #tpu.memory_space<vmem>>, vector<1x1x18x64xf32>
      %30 = vector.shape_cast %29 : vector<1x1x18x64xf32> to vector<18x64xf32>
      %31 = vector.extract_strided_slice %30 {offsets = [0, 0], sizes = [16, 64], strides = [1, 1]} : vector<18x64xf32> to vector<16x64xf32>
      %32 = arith.truncf %31 : vector<16x64xf32> to vector<16x64xbf16>
      %c3 = arith.constant 3 : index
      %c0_24 = arith.constant 0 : index
      %c0_25 = arith.constant 0 : index
      %33 = vector.load %arg2[%c3, %c0_24, %c0_25] : memref<9x64x64xbf16, #tpu.memory_space<vmem>>, vector<1x64x64xbf16>
      %34 = vector.shape_cast %33 : vector<1x64x64xbf16> to vector<64x64xbf16>
      %cst_26 = arith.constant dense<0.000000e+00> : vector<16x64xf32>
      %35 = tpu.matmul %32, %34, %cst_26 {dimension_numbers = #tpu.dot_dimension_numbers<[1], [0], [0], [1], [0, 0, 1, 1], [], []>} : vector<16x64xbf16>, vector<64x64xbf16>, vector<16x64xf32> -> vector<16x64xf32>
      %36 = arith.addf %26, %35 : vector<16x64xf32>
      %37 = vector.extract_strided_slice %30 {offsets = [1, 0], sizes = [16, 64], strides = [1, 1]} : vector<18x64xf32> to vector<16x64xf32>
      %38 = arith.truncf %37 : vector<16x64xf32> to vector<16x64xbf16>
      %c4 = arith.constant 4 : index
      %c0_27 = arith.constant 0 : index
      %c0_28 = arith.constant 0 : index
      %39 = vector.load %arg2[%c4, %c0_27, %c0_28] : memref<9x64x64xbf16, #tpu.memory_space<vmem>>, vector<1x64x64xbf16>
      %40 = vector.shape_cast %39 : vector<1x64x64xbf16> to vector<64x64xbf16>
      %cst_29 = arith.constant dense<0.000000e+00> : vector<16x64xf32>
      %41 = tpu.matmul %38, %40, %cst_29 {dimension_numbers = #tpu.dot_dimension_numbers<[1], [0], [0], [1], [0, 0, 1, 1], [], []>} : vector<16x64xbf16>, vector<64x64xbf16>, vector<16x64xf32> -> vector<16x64xf32>
      %42 = arith.addf %36, %41 : vector<16x64xf32>
      %43 = vector.extract_strided_slice %30 {offsets = [2, 0], sizes = [16, 64], strides = [1, 1]} : vector<18x64xf32> to vector<16x64xf32>
      %44 = arith.truncf %43 : vector<16x64xf32> to vector<16x64xbf16>
      %c5 = arith.constant 5 : index
      %c0_30 = arith.constant 0 : index
      %c0_31 = arith.constant 0 : index
      %45 = vector.load %arg2[%c5, %c0_30, %c0_31] : memref<9x64x64xbf16, #tpu.memory_space<vmem>>, vector<1x64x64xbf16>
      %46 = vector.shape_cast %45 : vector<1x64x64xbf16> to vector<64x64xbf16>
      %cst_32 = arith.constant dense<0.000000e+00> : vector<16x64xf32>
      %47 = tpu.matmul %44, %46, %cst_32 {dimension_numbers = #tpu.dot_dimension_numbers<[1], [0], [0], [1], [0, 0, 1, 1], [], []>} : vector<16x64xbf16>, vector<64x64xbf16>, vector<16x64xf32> -> vector<16x64xf32>
      %48 = arith.addf %42, %47 : vector<16x64xf32>
      %c2_i32 = arith.constant 2 : i32
      %49 = arith.addi %arg7, %c2_i32 : i32
      %c0_33 = arith.constant 0 : index
      %50 = arith.index_cast %49 : i32 to index
      %c0_34 = arith.constant 0 : index
      %c0_35 = arith.constant 0 : index
      %51 = vector.load %arg1[%c0_33, %50, %c0_34, %c0_35] : memref<1x18x18x64xf32, #tpu.memory_space<vmem>>, vector<1x1x18x64xf32>
      %52 = vector.shape_cast %51 : vector<1x1x18x64xf32> to vector<18x64xf32>
      %53 = vector.extract_strided_slice %52 {offsets = [0, 0], sizes = [16, 64], strides = [1, 1]} : vector<18x64xf32> to vector<16x64xf32>
      %54 = arith.truncf %53 : vector<16x64xf32> to vector<16x64xbf16>
      %c6 = arith.constant 6 : index
      %c0_36 = arith.constant 0 : index
      %c0_37 = arith.constant 0 : index
      %55 = vector.load %arg2[%c6, %c0_36, %c0_37] : memref<9x64x64xbf16, #tpu.memory_space<vmem>>, vector<1x64x64xbf16>
      %56 = vector.shape_cast %55 : vector<1x64x64xbf16> to vector<64x64xbf16>
      %cst_38 = arith.constant dense<0.000000e+00> : vector<16x64xf32>
      %57 = tpu.matmul %54, %56, %cst_38 {dimension_numbers = #tpu.dot_dimension_numbers<[1], [0], [0], [1], [0, 0, 1, 1], [], []>} : vector<16x64xbf16>, vector<64x64xbf16>, vector<16x64xf32> -> vector<16x64xf32>
      %58 = arith.addf %48, %57 : vector<16x64xf32>
      %59 = vector.extract_strided_slice %52 {offsets = [1, 0], sizes = [16, 64], strides = [1, 1]} : vector<18x64xf32> to vector<16x64xf32>
      %60 = arith.truncf %59 : vector<16x64xf32> to vector<16x64xbf16>
      %c7 = arith.constant 7 : index
      %c0_39 = arith.constant 0 : index
      %c0_40 = arith.constant 0 : index
      %61 = vector.load %arg2[%c7, %c0_39, %c0_40] : memref<9x64x64xbf16, #tpu.memory_space<vmem>>, vector<1x64x64xbf16>
      %62 = vector.shape_cast %61 : vector<1x64x64xbf16> to vector<64x64xbf16>
      %cst_41 = arith.constant dense<0.000000e+00> : vector<16x64xf32>
      %63 = tpu.matmul %60, %62, %cst_41 {dimension_numbers = #tpu.dot_dimension_numbers<[1], [0], [0], [1], [0, 0, 1, 1], [], []>} : vector<16x64xbf16>, vector<64x64xbf16>, vector<16x64xf32> -> vector<16x64xf32>
      %64 = arith.addf %58, %63 : vector<16x64xf32>
      %65 = vector.extract_strided_slice %52 {offsets = [2, 0], sizes = [16, 64], strides = [1, 1]} : vector<18x64xf32> to vector<16x64xf32>
      %66 = arith.truncf %65 : vector<16x64xf32> to vector<16x64xbf16>
      %c8 = arith.constant 8 : index
      %c0_42 = arith.constant 0 : index
      %c0_43 = arith.constant 0 : index
      %67 = vector.load %arg2[%c8, %c0_42, %c0_43] : memref<9x64x64xbf16, #tpu.memory_space<vmem>>, vector<1x64x64xbf16>
      %68 = vector.shape_cast %67 : vector<1x64x64xbf16> to vector<64x64xbf16>
      %cst_44 = arith.constant dense<0.000000e+00> : vector<16x64xf32>
      %69 = tpu.matmul %66, %68, %cst_44 {dimension_numbers = #tpu.dot_dimension_numbers<[1], [0], [0], [1], [0, 0, 1, 1], [], []>} : vector<16x64xbf16>, vector<64x64xbf16>, vector<16x64xf32> -> vector<16x64xf32>
      %70 = arith.addf %64, %69 : vector<16x64xf32>
      %71 = vector.broadcast %0 : vector<1x64xf32> to vector<16x64xf32>
      %72 = arith.addf %70, %71 : vector<16x64xf32>
      %cst_45 = arith.constant 0.000000e+00 : f32
      %cst_46 = arith.constant 2.000000e+01 : f32
      %73 = vector.broadcast %cst_45 : f32 to vector<16x64xf32>
      %74 = arith.maximumf %73, %72 : vector<16x64xf32>
      %75 = vector.broadcast %cst_46 : f32 to vector<16x64xf32>
      %76 = arith.minimumf %75, %74 : vector<16x64xf32>
      %77 = vector.broadcast %1 : vector<1x64xf32> to vector<16x64xf32>
      %78 = arith.mulf %76, %77 : vector<16x64xf32>
      %79 = vector.broadcast %2 : vector<1x64xf32> to vector<16x64xf32>
      %80 = arith.addf %78, %79 : vector<16x64xf32>
      %c0_47 = arith.constant 0 : index
      %81 = arith.index_cast %arg7 : i32 to index
      %c0_48 = arith.constant 0 : index
      %c0_49 = arith.constant 0 : index
      %82 = vector.load %arg6[%c0_47, %81, %c0_48, %c0_49] : memref<1x16x16x64xf32, #tpu.memory_space<vmem>>, vector<1x1x16x64xf32>
      %83 = vector.shape_cast %82 : vector<1x1x16x64xf32> to vector<16x64xf32>
      %84 = vector.shape_cast %80 : vector<16x64xf32> to vector<1x1x16x64xf32>
      tpu.vector_store %arg6[%c0_47, %81, %c0_48, %c0_49], %84 {strides = array<i32>} : memref<1x16x16x64xf32, #tpu.memory_space<vmem>>, vector<1x1x16x64xf32>,
    }
    %c16_i32_5 = arith.constant 16 : i32
    return
  }
  func.func @transform_0(%arg0: i32) -> (i32, i32, i32, i32) {
    %c0_i32 = arith.constant 0 : i32
    %c0_i32_0 = arith.constant 0 : i32
    %c0_i32_1 = arith.constant 0 : i32
    %c0_i32_2 = arith.constant 0 : i32
    return %arg0, %c0_i32, %c0_i32_0, %c0_i32_1 : i32, i32, i32, i32
  }
  func.func @transform_1(%arg0: i32) -> (i32, i32, i32) {
    %c0_i32 = arith.constant 0 : i32
    %c0_i32_0 = arith.constant 0 : i32
    %c0_i32_1 = arith.constant 0 : i32
    %c0_i32_2 = arith.constant 0 : i32
    return %c0_i32, %c0_i32_0, %c0_i32_1 : i32, i32, i32
  }
  func.func @transform_2(%arg0: i32) -> (i32, i32) {
    %c0_i32 = arith.constant 0 : i32
    %c0_i32_0 = arith.constant 0 : i32
    %c0_i32_1 = arith.constant 0 : i32
    return %c0_i32, %c0_i32_0 : i32, i32
  }
  func.func @transform_3(%arg0: i32) -> (i32, i32) {
    %c0_i32 = arith.constant 0 : i32
    %c0_i32_0 = arith.constant 0 : i32
    %c0_i32_1 = arith.constant 0 : i32
    return %c0_i32, %c0_i32_0 : i32, i32
  }
  func.func @transform_4(%arg0: i32) -> (i32, i32) {
    %c0_i32 = arith.constant 0 : i32
    %c0_i32_0 = arith.constant 0 : i32
    %c0_i32_1 = arith.constant 0 : i32
    return %c0_i32, %c0_i32_0 : i32, i32
  }
  func.func @transform_5(%arg0: i32) -> (i32, i32, i32, i32) {
    %c0_i32 = arith.constant 0 : i32
    %c0_i32_0 = arith.constant 0 : i32
    %c0_i32_1 = arith.constant 0 : i32
    %c0_i32_2 = arith.constant 0 : i32
    return %arg0, %c0_i32, %c0_i32_0, %c0_i32_1 : i32, i32, i32, i32
  }
}

module attributes {stable_mosaic.version = 11 : i64} {
  func.func @_conv_row_kernel(%arg0: i32, %arg1: memref<1x10x10x64xf32, #tpu.memory_space<vmem>>, %arg2: memref<9x64x128xbf16, #tpu.memory_space<vmem>>, %arg3: memref<1x128xf32, #tpu.memory_space<vmem>>, %arg4: memref<1x128xf32, #tpu.memory_space<vmem>>, %arg5: memref<1x128xf32, #tpu.memory_space<vmem>>, %arg6: memref<1x8x8x128xf32, #tpu.memory_space<vmem>>) attributes {dimension_semantics = [#tpu.dimension_semantics<parallel>], iteration_bounds = array<i64: 2>, scalar_prefetch = 0 : i64, scratch_operands = 0 : i64, tpu.core_type = #tpu.core_type<tc>, window_params = [{transform_indices = @transform_0, window_bounds = array<i64: 1, 10, 10, 64>}, {pipeline_mode = #tpu.pipeline_mode<synchronous>, transform_indices = @transform_1, window_bounds = array<i64: 9, 64, 128>}, {pipeline_mode = #tpu.pipeline_mode<synchronous>, transform_indices = @transform_2, window_bounds = array<i64: 1, 128>}, {pipeline_mode = #tpu.pipeline_mode<synchronous>, transform_indices = @transform_3, window_bounds = array<i64: 1, 128>}, {pipeline_mode = #tpu.pipeline_mode<synchronous>, transform_indices = @transform_4, window_bounds = array<i64: 1, 128>}, {transform_indices = @transform_5, window_bounds = array<i64: 1, 8, 8, 128>}]} {
    %c0 = arith.constant 0 : index
    %c0_0 = arith.constant 0 : index
    %0 = vector.load %arg3[%c0, %c0_0] : memref<1x128xf32, #tpu.memory_space<vmem>>, vector<1x128xf32>
    %c0_1 = arith.constant 0 : index
    %c0_2 = arith.constant 0 : index
    %1 = vector.load %arg4[%c0_1, %c0_2] : memref<1x128xf32, #tpu.memory_space<vmem>>, vector<1x128xf32>
    %c0_3 = arith.constant 0 : index
    %c0_4 = arith.constant 0 : index
    %2 = vector.load %arg5[%c0_3, %c0_4] : memref<1x128xf32, #tpu.memory_space<vmem>>, vector<1x128xf32>
    %c0_i32 = arith.constant 0 : i32
    %c8_i32 = arith.constant 8 : i32
    %3 = arith.addi %c0_i32, %c8_i32 : i32
    %c1_i32 = arith.constant 1 : i32
    scf.for %arg7 = %c0_i32 to %3 step %c1_i32  : i32 {
      %cst = arith.constant 0.000000e+00 : f32
      %4 = vector.broadcast %cst : f32 to vector<8x128xf32>
      %c0_i32_6 = arith.constant 0 : i32
      %5 = arith.addi %arg7, %c0_i32_6 : i32
      %c0_7 = arith.constant 0 : index
      %6 = arith.index_cast %5 : i32 to index
      %c0_8 = arith.constant 0 : index
      %c0_9 = arith.constant 0 : index
      %7 = vector.load %arg1[%c0_7, %6, %c0_8, %c0_9] : memref<1x10x10x64xf32, #tpu.memory_space<vmem>>, vector<1x1x10x64xf32>
      %8 = vector.shape_cast %7 : vector<1x1x10x64xf32> to vector<10x64xf32>
      %9 = vector.extract_strided_slice %8 {offsets = [0, 0], sizes = [8, 64], strides = [1, 1]} : vector<10x64xf32> to vector<8x64xf32>
      %10 = arith.truncf %9 : vector<8x64xf32> to vector<8x64xbf16>
      %c0_10 = arith.constant 0 : index
      %c0_11 = arith.constant 0 : index
      %c0_12 = arith.constant 0 : index
      %11 = vector.load %arg2[%c0_10, %c0_11, %c0_12] : memref<9x64x128xbf16, #tpu.memory_space<vmem>>, vector<1x64x128xbf16>
      %12 = vector.shape_cast %11 : vector<1x64x128xbf16> to vector<64x128xbf16>
      %cst_13 = arith.constant dense<0.000000e+00> : vector<8x128xf32>
      %13 = tpu.matmul %10, %12, %cst_13 {dimension_numbers = #tpu.dot_dimension_numbers<[1], [0], [0], [1], [0, 0, 1, 1], [], []>} : vector<8x64xbf16>, vector<64x128xbf16>, vector<8x128xf32> -> vector<8x128xf32>
      %14 = arith.addf %4, %13 : vector<8x128xf32>
      %15 = vector.extract_strided_slice %8 {offsets = [1, 0], sizes = [8, 64], strides = [1, 1]} : vector<10x64xf32> to vector<8x64xf32>
      %16 = arith.truncf %15 : vector<8x64xf32> to vector<8x64xbf16>
      %c1 = arith.constant 1 : index
      %c0_14 = arith.constant 0 : index
      %c0_15 = arith.constant 0 : index
      %17 = vector.load %arg2[%c1, %c0_14, %c0_15] : memref<9x64x128xbf16, #tpu.memory_space<vmem>>, vector<1x64x128xbf16>
      %18 = vector.shape_cast %17 : vector<1x64x128xbf16> to vector<64x128xbf16>
      %cst_16 = arith.constant dense<0.000000e+00> : vector<8x128xf32>
      %19 = tpu.matmul %16, %18, %cst_16 {dimension_numbers = #tpu.dot_dimension_numbers<[1], [0], [0], [1], [0, 0, 1, 1], [], []>} : vector<8x64xbf16>, vector<64x128xbf16>, vector<8x128xf32> -> vector<8x128xf32>
      %20 = arith.addf %14, %19 : vector<8x128xf32>
      %21 = vector.extract_strided_slice %8 {offsets = [2, 0], sizes = [8, 64], strides = [1, 1]} : vector<10x64xf32> to vector<8x64xf32>
      %22 = arith.truncf %21 : vector<8x64xf32> to vector<8x64xbf16>
      %c2 = arith.constant 2 : index
      %c0_17 = arith.constant 0 : index
      %c0_18 = arith.constant 0 : index
      %23 = vector.load %arg2[%c2, %c0_17, %c0_18] : memref<9x64x128xbf16, #tpu.memory_space<vmem>>, vector<1x64x128xbf16>
      %24 = vector.shape_cast %23 : vector<1x64x128xbf16> to vector<64x128xbf16>
      %cst_19 = arith.constant dense<0.000000e+00> : vector<8x128xf32>
      %25 = tpu.matmul %22, %24, %cst_19 {dimension_numbers = #tpu.dot_dimension_numbers<[1], [0], [0], [1], [0, 0, 1, 1], [], []>} : vector<8x64xbf16>, vector<64x128xbf16>, vector<8x128xf32> -> vector<8x128xf32>
      %26 = arith.addf %20, %25 : vector<8x128xf32>
      %c1_i32_20 = arith.constant 1 : i32
      %27 = arith.addi %arg7, %c1_i32_20 : i32
      %c0_21 = arith.constant 0 : index
      %28 = arith.index_cast %27 : i32 to index
      %c0_22 = arith.constant 0 : index
      %c0_23 = arith.constant 0 : index
      %29 = vector.load %arg1[%c0_21, %28, %c0_22, %c0_23] : memref<1x10x10x64xf32, #tpu.memory_space<vmem>>, vector<1x1x10x64xf32>
      %30 = vector.shape_cast %29 : vector<1x1x10x64xf32> to vector<10x64xf32>
      %31 = vector.extract_strided_slice %30 {offsets = [0, 0], sizes = [8, 64], strides = [1, 1]} : vector<10x64xf32> to vector<8x64xf32>
      %32 = arith.truncf %31 : vector<8x64xf32> to vector<8x64xbf16>
      %c3 = arith.constant 3 : index
      %c0_24 = arith.constant 0 : index
      %c0_25 = arith.constant 0 : index
      %33 = vector.load %arg2[%c3, %c0_24, %c0_25] : memref<9x64x128xbf16, #tpu.memory_space<vmem>>, vector<1x64x128xbf16>
      %34 = vector.shape_cast %33 : vector<1x64x128xbf16> to vector<64x128xbf16>
      %cst_26 = arith.constant dense<0.000000e+00> : vector<8x128xf32>
      %35 = tpu.matmul %32, %34, %cst_26 {dimension_numbers = #tpu.dot_dimension_numbers<[1], [0], [0], [1], [0, 0, 1, 1], [], []>} : vector<8x64xbf16>, vector<64x128xbf16>, vector<8x128xf32> -> vector<8x128xf32>
      %36 = arith.addf %26, %35 : vector<8x128xf32>
      %37 = vector.extract_strided_slice %30 {offsets = [1, 0], sizes = [8, 64], strides = [1, 1]} : vector<10x64xf32> to vector<8x64xf32>
      %38 = arith.truncf %37 : vector<8x64xf32> to vector<8x64xbf16>
      %c4 = arith.constant 4 : index
      %c0_27 = arith.constant 0 : index
      %c0_28 = arith.constant 0 : index
      %39 = vector.load %arg2[%c4, %c0_27, %c0_28] : memref<9x64x128xbf16, #tpu.memory_space<vmem>>, vector<1x64x128xbf16>
      %40 = vector.shape_cast %39 : vector<1x64x128xbf16> to vector<64x128xbf16>
      %cst_29 = arith.constant dense<0.000000e+00> : vector<8x128xf32>
      %41 = tpu.matmul %38, %40, %cst_29 {dimension_numbers = #tpu.dot_dimension_numbers<[1], [0], [0], [1], [0, 0, 1, 1], [], []>} : vector<8x64xbf16>, vector<64x128xbf16>, vector<8x128xf32> -> vector<8x128xf32>
      %42 = arith.addf %36, %41 : vector<8x128xf32>
      %43 = vector.extract_strided_slice %30 {offsets = [2, 0], sizes = [8, 64], strides = [1, 1]} : vector<10x64xf32> to vector<8x64xf32>
      %44 = arith.truncf %43 : vector<8x64xf32> to vector<8x64xbf16>
      %c5 = arith.constant 5 : index
      %c0_30 = arith.constant 0 : index
      %c0_31 = arith.constant 0 : index
      %45 = vector.load %arg2[%c5, %c0_30, %c0_31] : memref<9x64x128xbf16, #tpu.memory_space<vmem>>, vector<1x64x128xbf16>
      %46 = vector.shape_cast %45 : vector<1x64x128xbf16> to vector<64x128xbf16>
      %cst_32 = arith.constant dense<0.000000e+00> : vector<8x128xf32>
      %47 = tpu.matmul %44, %46, %cst_32 {dimension_numbers = #tpu.dot_dimension_numbers<[1], [0], [0], [1], [0, 0, 1, 1], [], []>} : vector<8x64xbf16>, vector<64x128xbf16>, vector<8x128xf32> -> vector<8x128xf32>
      %48 = arith.addf %42, %47 : vector<8x128xf32>
      %c2_i32 = arith.constant 2 : i32
      %49 = arith.addi %arg7, %c2_i32 : i32
      %c0_33 = arith.constant 0 : index
      %50 = arith.index_cast %49 : i32 to index
      %c0_34 = arith.constant 0 : index
      %c0_35 = arith.constant 0 : index
      %51 = vector.load %arg1[%c0_33, %50, %c0_34, %c0_35] : memref<1x10x10x64xf32, #tpu.memory_space<vmem>>, vector<1x1x10x64xf32>
      %52 = vector.shape_cast %51 : vector<1x1x10x64xf32> to vector<10x64xf32>
      %53 = vector.extract_strided_slice %52 {offsets = [0, 0], sizes = [8, 64], strides = [1, 1]} : vector<10x64xf32> to vector<8x64xf32>
      %54 = arith.truncf %53 : vector<8x64xf32> to vector<8x64xbf16>
      %c6 = arith.constant 6 : index
      %c0_36 = arith.constant 0 : index
      %c0_37 = arith.constant 0 : index
      %55 = vector.load %arg2[%c6, %c0_36, %c0_37] : memref<9x64x128xbf16, #tpu.memory_space<vmem>>, vector<1x64x128xbf16>
      %56 = vector.shape_cast %55 : vector<1x64x128xbf16> to vector<64x128xbf16>
      %cst_38 = arith.constant dense<0.000000e+00> : vector<8x128xf32>
      %57 = tpu.matmul %54, %56, %cst_38 {dimension_numbers = #tpu.dot_dimension_numbers<[1], [0], [0], [1], [0, 0, 1, 1], [], []>} : vector<8x64xbf16>, vector<64x128xbf16>, vector<8x128xf32> -> vector<8x128xf32>
      %58 = arith.addf %48, %57 : vector<8x128xf32>
      %59 = vector.extract_strided_slice %52 {offsets = [1, 0], sizes = [8, 64], strides = [1, 1]} : vector<10x64xf32> to vector<8x64xf32>
      %60 = arith.truncf %59 : vector<8x64xf32> to vector<8x64xbf16>
      %c7 = arith.constant 7 : index
      %c0_39 = arith.constant 0 : index
      %c0_40 = arith.constant 0 : index
      %61 = vector.load %arg2[%c7, %c0_39, %c0_40] : memref<9x64x128xbf16, #tpu.memory_space<vmem>>, vector<1x64x128xbf16>
      %62 = vector.shape_cast %61 : vector<1x64x128xbf16> to vector<64x128xbf16>
      %cst_41 = arith.constant dense<0.000000e+00> : vector<8x128xf32>
      %63 = tpu.matmul %60, %62, %cst_41 {dimension_numbers = #tpu.dot_dimension_numbers<[1], [0], [0], [1], [0, 0, 1, 1], [], []>} : vector<8x64xbf16>, vector<64x128xbf16>, vector<8x128xf32> -> vector<8x128xf32>
      %64 = arith.addf %58, %63 : vector<8x128xf32>
      %65 = vector.extract_strided_slice %52 {offsets = [2, 0], sizes = [8, 64], strides = [1, 1]} : vector<10x64xf32> to vector<8x64xf32>
      %66 = arith.truncf %65 : vector<8x64xf32> to vector<8x64xbf16>
      %c8 = arith.constant 8 : index
      %c0_42 = arith.constant 0 : index
      %c0_43 = arith.constant 0 : index
      %67 = vector.load %arg2[%c8, %c0_42, %c0_43] : memref<9x64x128xbf16, #tpu.memory_space<vmem>>, vector<1x64x128xbf16>
      %68 = vector.shape_cast %67 : vector<1x64x128xbf16> to vector<64x128xbf16>
      %cst_44 = arith.constant dense<0.000000e+00> : vector<8x128xf32>
      %69 = tpu.matmul %66, %68, %cst_44 {dimension_numbers = #tpu.dot_dimension_numbers<[1], [0], [0], [1], [0, 0, 1, 1], [], []>} : vector<8x64xbf16>, vector<64x128xbf16>, vector<8x128xf32> -> vector<8x128xf32>
      %70 = arith.addf %64, %69 : vector<8x128xf32>
      %71 = vector.broadcast %0 : vector<1x128xf32> to vector<8x128xf32>
      %72 = arith.addf %70, %71 : vector<8x128xf32>
      %cst_45 = arith.constant 0.000000e+00 : f32
      %cst_46 = arith.constant 2.000000e+01 : f32
      %73 = vector.broadcast %cst_45 : f32 to vector<8x128xf32>
      %74 = arith.maximumf %73, %72 : vector<8x128xf32>
      %75 = vector.broadcast %cst_46 : f32 to vector<8x128xf32>
      %76 = arith.minimumf %75, %74 : vector<8x128xf32>
      %77 = vector.broadcast %1 : vector<1x128xf32> to vector<8x128xf32>
      %78 = arith.mulf %76, %77 : vector<8x128xf32>
      %79 = vector.broadcast %2 : vector<1x128xf32> to vector<8x128xf32>
      %80 = arith.addf %78, %79 : vector<8x128xf32>
      %c0_47 = arith.constant 0 : index
      %81 = arith.index_cast %arg7 : i32 to index
      %c0_48 = arith.constant 0 : index
      %c0_49 = arith.constant 0 : index
      %82 = vector.load %arg6[%c0_47, %81, %c0_48, %c0_49] : memref<1x8x8x128xf32, #tpu.memory_space<vmem>>, vector<1x1x8x128xf32>
      %83 = vector.shape_cast %82 : vector<1x1x8x128xf32> to vector<8x128xf32>
      %84 = vector.shape_cast %80 : vector<8x128xf32> to vector<1x1x8x128xf32>
      tpu.vector_store %arg6[%c0_47, %81, %c0_48, %c0_49], %84 {strides = array<i32>} : memref<1x8x8x128xf32, #tpu.memory_space<vmem>>, vector<1x1x8x128xf32>,
    }
    %c8_i32_5 = arith.constant 8 : i32
    return
  }
  func.func @transform_0(%arg0: i32) -> (i32, i32, i32, i32) {
    %c0_i32 = arith.constant 0 : i32
    %c0_i32_0 = arith.constant 0 : i32
    %c0_i32_1 = arith.constant 0 : i32
    %c0_i32_2 = arith.constant 0 : i32
    return %arg0, %c0_i32, %c0_i32_0, %c0_i32_1 : i32, i32, i32, i32
  }
  func.func @transform_1(%arg0: i32) -> (i32, i32, i32) {
    %c0_i32 = arith.constant 0 : i32
    %c0_i32_0 = arith.constant 0 : i32
    %c0_i32_1 = arith.constant 0 : i32
    %c0_i32_2 = arith.constant 0 : i32
    return %c0_i32, %c0_i32_0, %c0_i32_1 : i32, i32, i32
  }
  func.func @transform_2(%arg0: i32) -> (i32, i32) {
    %c0_i32 = arith.constant 0 : i32
    %c0_i32_0 = arith.constant 0 : i32
    %c0_i32_1 = arith.constant 0 : i32
    return %c0_i32, %c0_i32_0 : i32, i32
  }
  func.func @transform_3(%arg0: i32) -> (i32, i32) {
    %c0_i32 = arith.constant 0 : i32
    %c0_i32_0 = arith.constant 0 : i32
    %c0_i32_1 = arith.constant 0 : i32
    return %c0_i32, %c0_i32_0 : i32, i32
  }
  func.func @transform_4(%arg0: i32) -> (i32, i32) {
    %c0_i32 = arith.constant 0 : i32
    %c0_i32_0 = arith.constant 0 : i32
    %c0_i32_1 = arith.constant 0 : i32
    return %c0_i32, %c0_i32_0 : i32, i32
  }
  func.func @transform_5(%arg0: i32) -> (i32, i32, i32, i32) {
    %c0_i32 = arith.constant 0 : i32
    %c0_i32_0 = arith.constant 0 : i32
    %c0_i32_1 = arith.constant 0 : i32
    %c0_i32_2 = arith.constant 0 : i32
    return %arg0, %c0_i32, %c0_i32_0, %c0_i32_1 : i32, i32, i32, i32
  }
}

module attributes {stable_mosaic.version = 11 : i64} {
  func.func @_conv_row_kernel(%arg0: i32, %arg1: memref<1x10x10x128xf32, #tpu.memory_space<vmem>>, %arg2: memref<9x128x128xbf16, #tpu.memory_space<vmem>>, %arg3: memref<1x128xf32, #tpu.memory_space<vmem>>, %arg4: memref<1x128xf32, #tpu.memory_space<vmem>>, %arg5: memref<1x128xf32, #tpu.memory_space<vmem>>, %arg6: memref<1x8x8x128xf32, #tpu.memory_space<vmem>>) attributes {dimension_semantics = [#tpu.dimension_semantics<parallel>], iteration_bounds = array<i64: 2>, scalar_prefetch = 0 : i64, scratch_operands = 0 : i64, tpu.core_type = #tpu.core_type<tc>, window_params = [{transform_indices = @transform_0, window_bounds = array<i64: 1, 10, 10, 128>}, {pipeline_mode = #tpu.pipeline_mode<synchronous>, transform_indices = @transform_1, window_bounds = array<i64: 9, 128, 128>}, {pipeline_mode = #tpu.pipeline_mode<synchronous>, transform_indices = @transform_2, window_bounds = array<i64: 1, 128>}, {pipeline_mode = #tpu.pipeline_mode<synchronous>, transform_indices = @transform_3, window_bounds = array<i64: 1, 128>}, {pipeline_mode = #tpu.pipeline_mode<synchronous>, transform_indices = @transform_4, window_bounds = array<i64: 1, 128>}, {transform_indices = @transform_5, window_bounds = array<i64: 1, 8, 8, 128>}]} {
    %c0 = arith.constant 0 : index
    %c0_0 = arith.constant 0 : index
    %0 = vector.load %arg3[%c0, %c0_0] : memref<1x128xf32, #tpu.memory_space<vmem>>, vector<1x128xf32>
    %c0_1 = arith.constant 0 : index
    %c0_2 = arith.constant 0 : index
    %1 = vector.load %arg4[%c0_1, %c0_2] : memref<1x128xf32, #tpu.memory_space<vmem>>, vector<1x128xf32>
    %c0_3 = arith.constant 0 : index
    %c0_4 = arith.constant 0 : index
    %2 = vector.load %arg5[%c0_3, %c0_4] : memref<1x128xf32, #tpu.memory_space<vmem>>, vector<1x128xf32>
    %c0_i32 = arith.constant 0 : i32
    %c8_i32 = arith.constant 8 : i32
    %3 = arith.addi %c0_i32, %c8_i32 : i32
    %c1_i32 = arith.constant 1 : i32
    scf.for %arg7 = %c0_i32 to %3 step %c1_i32  : i32 {
      %cst = arith.constant 0.000000e+00 : f32
      %4 = vector.broadcast %cst : f32 to vector<8x128xf32>
      %c0_i32_6 = arith.constant 0 : i32
      %5 = arith.addi %arg7, %c0_i32_6 : i32
      %c0_7 = arith.constant 0 : index
      %6 = arith.index_cast %5 : i32 to index
      %c0_8 = arith.constant 0 : index
      %c0_9 = arith.constant 0 : index
      %7 = vector.load %arg1[%c0_7, %6, %c0_8, %c0_9] : memref<1x10x10x128xf32, #tpu.memory_space<vmem>>, vector<1x1x10x128xf32>
      %8 = vector.shape_cast %7 : vector<1x1x10x128xf32> to vector<10x128xf32>
      %9 = vector.extract_strided_slice %8 {offsets = [0, 0], sizes = [8, 128], strides = [1, 1]} : vector<10x128xf32> to vector<8x128xf32>
      %10 = arith.truncf %9 : vector<8x128xf32> to vector<8x128xbf16>
      %c0_10 = arith.constant 0 : index
      %c0_11 = arith.constant 0 : index
      %c0_12 = arith.constant 0 : index
      %11 = vector.load %arg2[%c0_10, %c0_11, %c0_12] : memref<9x128x128xbf16, #tpu.memory_space<vmem>>, vector<1x128x128xbf16>
      %12 = vector.shape_cast %11 : vector<1x128x128xbf16> to vector<128x128xbf16>
      %cst_13 = arith.constant dense<0.000000e+00> : vector<8x128xf32>
      %13 = tpu.matmul %10, %12, %cst_13 {dimension_numbers = #tpu.dot_dimension_numbers<[1], [0], [0], [1], [0, 0, 1, 1], [], []>} : vector<8x128xbf16>, vector<128x128xbf16>, vector<8x128xf32> -> vector<8x128xf32>
      %14 = arith.addf %4, %13 : vector<8x128xf32>
      %15 = vector.extract_strided_slice %8 {offsets = [1, 0], sizes = [8, 128], strides = [1, 1]} : vector<10x128xf32> to vector<8x128xf32>
      %16 = arith.truncf %15 : vector<8x128xf32> to vector<8x128xbf16>
      %c1 = arith.constant 1 : index
      %c0_14 = arith.constant 0 : index
      %c0_15 = arith.constant 0 : index
      %17 = vector.load %arg2[%c1, %c0_14, %c0_15] : memref<9x128x128xbf16, #tpu.memory_space<vmem>>, vector<1x128x128xbf16>
      %18 = vector.shape_cast %17 : vector<1x128x128xbf16> to vector<128x128xbf16>
      %cst_16 = arith.constant dense<0.000000e+00> : vector<8x128xf32>
      %19 = tpu.matmul %16, %18, %cst_16 {dimension_numbers = #tpu.dot_dimension_numbers<[1], [0], [0], [1], [0, 0, 1, 1], [], []>} : vector<8x128xbf16>, vector<128x128xbf16>, vector<8x128xf32> -> vector<8x128xf32>
      %20 = arith.addf %14, %19 : vector<8x128xf32>
      %21 = vector.extract_strided_slice %8 {offsets = [2, 0], sizes = [8, 128], strides = [1, 1]} : vector<10x128xf32> to vector<8x128xf32>
      %22 = arith.truncf %21 : vector<8x128xf32> to vector<8x128xbf16>
      %c2 = arith.constant 2 : index
      %c0_17 = arith.constant 0 : index
      %c0_18 = arith.constant 0 : index
      %23 = vector.load %arg2[%c2, %c0_17, %c0_18] : memref<9x128x128xbf16, #tpu.memory_space<vmem>>, vector<1x128x128xbf16>
      %24 = vector.shape_cast %23 : vector<1x128x128xbf16> to vector<128x128xbf16>
      %cst_19 = arith.constant dense<0.000000e+00> : vector<8x128xf32>
      %25 = tpu.matmul %22, %24, %cst_19 {dimension_numbers = #tpu.dot_dimension_numbers<[1], [0], [0], [1], [0, 0, 1, 1], [], []>} : vector<8x128xbf16>, vector<128x128xbf16>, vector<8x128xf32> -> vector<8x128xf32>
      %26 = arith.addf %20, %25 : vector<8x128xf32>
      %c1_i32_20 = arith.constant 1 : i32
      %27 = arith.addi %arg7, %c1_i32_20 : i32
      %c0_21 = arith.constant 0 : index
      %28 = arith.index_cast %27 : i32 to index
      %c0_22 = arith.constant 0 : index
      %c0_23 = arith.constant 0 : index
      %29 = vector.load %arg1[%c0_21, %28, %c0_22, %c0_23] : memref<1x10x10x128xf32, #tpu.memory_space<vmem>>, vector<1x1x10x128xf32>
      %30 = vector.shape_cast %29 : vector<1x1x10x128xf32> to vector<10x128xf32>
      %31 = vector.extract_strided_slice %30 {offsets = [0, 0], sizes = [8, 128], strides = [1, 1]} : vector<10x128xf32> to vector<8x128xf32>
      %32 = arith.truncf %31 : vector<8x128xf32> to vector<8x128xbf16>
      %c3 = arith.constant 3 : index
      %c0_24 = arith.constant 0 : index
      %c0_25 = arith.constant 0 : index
      %33 = vector.load %arg2[%c3, %c0_24, %c0_25] : memref<9x128x128xbf16, #tpu.memory_space<vmem>>, vector<1x128x128xbf16>
      %34 = vector.shape_cast %33 : vector<1x128x128xbf16> to vector<128x128xbf16>
      %cst_26 = arith.constant dense<0.000000e+00> : vector<8x128xf32>
      %35 = tpu.matmul %32, %34, %cst_26 {dimension_numbers = #tpu.dot_dimension_numbers<[1], [0], [0], [1], [0, 0, 1, 1], [], []>} : vector<8x128xbf16>, vector<128x128xbf16>, vector<8x128xf32> -> vector<8x128xf32>
      %36 = arith.addf %26, %35 : vector<8x128xf32>
      %37 = vector.extract_strided_slice %30 {offsets = [1, 0], sizes = [8, 128], strides = [1, 1]} : vector<10x128xf32> to vector<8x128xf32>
      %38 = arith.truncf %37 : vector<8x128xf32> to vector<8x128xbf16>
      %c4 = arith.constant 4 : index
      %c0_27 = arith.constant 0 : index
      %c0_28 = arith.constant 0 : index
      %39 = vector.load %arg2[%c4, %c0_27, %c0_28] : memref<9x128x128xbf16, #tpu.memory_space<vmem>>, vector<1x128x128xbf16>
      %40 = vector.shape_cast %39 : vector<1x128x128xbf16> to vector<128x128xbf16>
      %cst_29 = arith.constant dense<0.000000e+00> : vector<8x128xf32>
      %41 = tpu.matmul %38, %40, %cst_29 {dimension_numbers = #tpu.dot_dimension_numbers<[1], [0], [0], [1], [0, 0, 1, 1], [], []>} : vector<8x128xbf16>, vector<128x128xbf16>, vector<8x128xf32> -> vector<8x128xf32>
      %42 = arith.addf %36, %41 : vector<8x128xf32>
      %43 = vector.extract_strided_slice %30 {offsets = [2, 0], sizes = [8, 128], strides = [1, 1]} : vector<10x128xf32> to vector<8x128xf32>
      %44 = arith.truncf %43 : vector<8x128xf32> to vector<8x128xbf16>
      %c5 = arith.constant 5 : index
      %c0_30 = arith.constant 0 : index
      %c0_31 = arith.constant 0 : index
      %45 = vector.load %arg2[%c5, %c0_30, %c0_31] : memref<9x128x128xbf16, #tpu.memory_space<vmem>>, vector<1x128x128xbf16>
      %46 = vector.shape_cast %45 : vector<1x128x128xbf16> to vector<128x128xbf16>
      %cst_32 = arith.constant dense<0.000000e+00> : vector<8x128xf32>
      %47 = tpu.matmul %44, %46, %cst_32 {dimension_numbers = #tpu.dot_dimension_numbers<[1], [0], [0], [1], [0, 0, 1, 1], [], []>} : vector<8x128xbf16>, vector<128x128xbf16>, vector<8x128xf32> -> vector<8x128xf32>
      %48 = arith.addf %42, %47 : vector<8x128xf32>
      %c2_i32 = arith.constant 2 : i32
      %49 = arith.addi %arg7, %c2_i32 : i32
      %c0_33 = arith.constant 0 : index
      %50 = arith.index_cast %49 : i32 to index
      %c0_34 = arith.constant 0 : index
      %c0_35 = arith.constant 0 : index
      %51 = vector.load %arg1[%c0_33, %50, %c0_34, %c0_35] : memref<1x10x10x128xf32, #tpu.memory_space<vmem>>, vector<1x1x10x128xf32>
      %52 = vector.shape_cast %51 : vector<1x1x10x128xf32> to vector<10x128xf32>
      %53 = vector.extract_strided_slice %52 {offsets = [0, 0], sizes = [8, 128], strides = [1, 1]} : vector<10x128xf32> to vector<8x128xf32>
      %54 = arith.truncf %53 : vector<8x128xf32> to vector<8x128xbf16>
      %c6 = arith.constant 6 : index
      %c0_36 = arith.constant 0 : index
      %c0_37 = arith.constant 0 : index
      %55 = vector.load %arg2[%c6, %c0_36, %c0_37] : memref<9x128x128xbf16, #tpu.memory_space<vmem>>, vector<1x128x128xbf16>
      %56 = vector.shape_cast %55 : vector<1x128x128xbf16> to vector<128x128xbf16>
      %cst_38 = arith.constant dense<0.000000e+00> : vector<8x128xf32>
      %57 = tpu.matmul %54, %56, %cst_38 {dimension_numbers = #tpu.dot_dimension_numbers<[1], [0], [0], [1], [0, 0, 1, 1], [], []>} : vector<8x128xbf16>, vector<128x128xbf16>, vector<8x128xf32> -> vector<8x128xf32>
      %58 = arith.addf %48, %57 : vector<8x128xf32>
      %59 = vector.extract_strided_slice %52 {offsets = [1, 0], sizes = [8, 128], strides = [1, 1]} : vector<10x128xf32> to vector<8x128xf32>
      %60 = arith.truncf %59 : vector<8x128xf32> to vector<8x128xbf16>
      %c7 = arith.constant 7 : index
      %c0_39 = arith.constant 0 : index
      %c0_40 = arith.constant 0 : index
      %61 = vector.load %arg2[%c7, %c0_39, %c0_40] : memref<9x128x128xbf16, #tpu.memory_space<vmem>>, vector<1x128x128xbf16>
      %62 = vector.shape_cast %61 : vector<1x128x128xbf16> to vector<128x128xbf16>
      %cst_41 = arith.constant dense<0.000000e+00> : vector<8x128xf32>
      %63 = tpu.matmul %60, %62, %cst_41 {dimension_numbers = #tpu.dot_dimension_numbers<[1], [0], [0], [1], [0, 0, 1, 1], [], []>} : vector<8x128xbf16>, vector<128x128xbf16>, vector<8x128xf32> -> vector<8x128xf32>
      %64 = arith.addf %58, %63 : vector<8x128xf32>
      %65 = vector.extract_strided_slice %52 {offsets = [2, 0], sizes = [8, 128], strides = [1, 1]} : vector<10x128xf32> to vector<8x128xf32>
      %66 = arith.truncf %65 : vector<8x128xf32> to vector<8x128xbf16>
      %c8 = arith.constant 8 : index
      %c0_42 = arith.constant 0 : index
      %c0_43 = arith.constant 0 : index
      %67 = vector.load %arg2[%c8, %c0_42, %c0_43] : memref<9x128x128xbf16, #tpu.memory_space<vmem>>, vector<1x128x128xbf16>
      %68 = vector.shape_cast %67 : vector<1x128x128xbf16> to vector<128x128xbf16>
      %cst_44 = arith.constant dense<0.000000e+00> : vector<8x128xf32>
      %69 = tpu.matmul %66, %68, %cst_44 {dimension_numbers = #tpu.dot_dimension_numbers<[1], [0], [0], [1], [0, 0, 1, 1], [], []>} : vector<8x128xbf16>, vector<128x128xbf16>, vector<8x128xf32> -> vector<8x128xf32>
      %70 = arith.addf %64, %69 : vector<8x128xf32>
      %71 = vector.broadcast %0 : vector<1x128xf32> to vector<8x128xf32>
      %72 = arith.addf %70, %71 : vector<8x128xf32>
      %cst_45 = arith.constant 0.000000e+00 : f32
      %cst_46 = arith.constant 2.000000e+01 : f32
      %73 = vector.broadcast %cst_45 : f32 to vector<8x128xf32>
      %74 = arith.maximumf %73, %72 : vector<8x128xf32>
      %75 = vector.broadcast %cst_46 : f32 to vector<8x128xf32>
      %76 = arith.minimumf %75, %74 : vector<8x128xf32>
      %77 = vector.broadcast %1 : vector<1x128xf32> to vector<8x128xf32>
      %78 = arith.mulf %76, %77 : vector<8x128xf32>
      %79 = vector.broadcast %2 : vector<1x128xf32> to vector<8x128xf32>
      %80 = arith.addf %78, %79 : vector<8x128xf32>
      %c0_47 = arith.constant 0 : index
      %81 = arith.index_cast %arg7 : i32 to index
      %c0_48 = arith.constant 0 : index
      %c0_49 = arith.constant 0 : index
      %82 = vector.load %arg6[%c0_47, %81, %c0_48, %c0_49] : memref<1x8x8x128xf32, #tpu.memory_space<vmem>>, vector<1x1x8x128xf32>
      %83 = vector.shape_cast %82 : vector<1x1x8x128xf32> to vector<8x128xf32>
      %84 = vector.shape_cast %80 : vector<8x128xf32> to vector<1x1x8x128xf32>
      tpu.vector_store %arg6[%c0_47, %81, %c0_48, %c0_49], %84 {strides = array<i32>} : memref<1x8x8x128xf32, #tpu.memory_space<vmem>>, vector<1x1x8x128xf32>,
    }
    %c8_i32_5 = arith.constant 8 : i32
    return
  }
  func.func @transform_0(%arg0: i32) -> (i32, i32, i32, i32) {
    %c0_i32 = arith.constant 0 : i32
    %c0_i32_0 = arith.constant 0 : i32
    %c0_i32_1 = arith.constant 0 : i32
    %c0_i32_2 = arith.constant 0 : i32
    return %arg0, %c0_i32, %c0_i32_0, %c0_i32_1 : i32, i32, i32, i32
  }
  func.func @transform_1(%arg0: i32) -> (i32, i32, i32) {
    %c0_i32 = arith.constant 0 : i32
    %c0_i32_0 = arith.constant 0 : i32
    %c0_i32_1 = arith.constant 0 : i32
    %c0_i32_2 = arith.constant 0 : i32
    return %c0_i32, %c0_i32_0, %c0_i32_1 : i32, i32, i32
  }
  func.func @transform_2(%arg0: i32) -> (i32, i32) {
    %c0_i32 = arith.constant 0 : i32
    %c0_i32_0 = arith.constant 0 : i32
    %c0_i32_1 = arith.constant 0 : i32
    return %c0_i32, %c0_i32_0 : i32, i32
  }
  func.func @transform_3(%arg0: i32) -> (i32, i32) {
    %c0_i32 = arith.constant 0 : i32
    %c0_i32_0 = arith.constant 0 : i32
    %c0_i32_1 = arith.constant 0 : i32
    return %c0_i32, %c0_i32_0 : i32, i32
  }
  func.func @transform_4(%arg0: i32) -> (i32, i32) {
    %c0_i32 = arith.constant 0 : i32
    %c0_i32_0 = arith.constant 0 : i32
    %c0_i32_1 = arith.constant 0 : i32
    return %c0_i32, %c0_i32_0 : i32, i32
  }
  func.func @transform_5(%arg0: i32) -> (i32, i32, i32, i32) {
    %c0_i32 = arith.constant 0 : i32
    %c0_i32_0 = arith.constant 0 : i32
    %c0_i32_1 = arith.constant 0 : i32
    %c0_i32_2 = arith.constant 0 : i32
    return %arg0, %c0_i32, %c0_i32_0, %c0_i32_1 : i32, i32, i32, i32
  }
}

module attributes {stable_mosaic.version = 11 : i64} {
  func.func @_proj_kernel(%arg0: i32, %arg1: i32, %arg2: memref<8x512xf32, #tpu.memory_space<vmem>>, %arg3: memref<1x512x96xbf16, #tpu.memory_space<vmem>>, %arg4: memref<1x1x96xf32, #tpu.memory_space<vmem>>, %arg5: memref<1x8x96xf32, #tpu.memory_space<vmem>>) attributes {dimension_semantics = [#tpu.dimension_semantics<parallel>, #tpu.dimension_semantics<parallel>], iteration_bounds = array<i64: 2, 1>, scalar_prefetch = 0 : i64, scratch_operands = 0 : i64, tpu.core_type = #tpu.core_type<tc>, window_params = [{transform_indices = @transform_0, window_bounds = array<i64: 8, 512>}, {transform_indices = @transform_1, window_bounds = array<i64: 1, 512, 96>}, {transform_indices = @transform_2, window_bounds = array<i64: 1, 1, 96>}, {transform_indices = @transform_3, window_bounds = array<i64: 1, 8, 96>}]} {
    %c0 = arith.constant 0 : index
    %c0_0 = arith.constant 0 : index
    %0 = vector.load %arg2[%c0, %c0_0] : memref<8x512xf32, #tpu.memory_space<vmem>>, vector<8x512xf32>
    %1 = arith.truncf %0 : vector<8x512xf32> to vector<8x512xbf16>
    %c0_1 = arith.constant 0 : index
    %c0_2 = arith.constant 0 : index
    %c0_3 = arith.constant 0 : index
    %2 = vector.load %arg3[%c0_1, %c0_2, %c0_3] : memref<1x512x96xbf16, #tpu.memory_space<vmem>>, vector<1x512x96xbf16>
    %3 = vector.shape_cast %2 : vector<1x512x96xbf16> to vector<512x96xbf16>
    %cst = arith.constant dense<0.000000e+00> : vector<8x96xf32>
    %4 = tpu.matmul %1, %3, %cst {dimension_numbers = #tpu.dot_dimension_numbers<[1], [0], [0], [1], [0, 0, 1, 1], [], []>} : vector<8x512xbf16>, vector<512x96xbf16>, vector<8x96xf32> -> vector<8x96xf32>
    %c0_4 = arith.constant 0 : index
    %c0_5 = arith.constant 0 : index
    %c0_6 = arith.constant 0 : index
    %5 = vector.load %arg4[%c0_4, %c0_5, %c0_6] : memref<1x1x96xf32, #tpu.memory_space<vmem>>, vector<1x1x96xf32>
    %6 = vector.shape_cast %5 : vector<1x1x96xf32> to vector<1x96xf32>
    %7 = vector.broadcast %6 : vector<1x96xf32> to vector<8x96xf32>
    %8 = arith.addf %4, %7 : vector<8x96xf32>
    %c0_7 = arith.constant 0 : index
    %c0_8 = arith.constant 0 : index
    %c0_9 = arith.constant 0 : index
    %9 = vector.load %arg5[%c0_7, %c0_8, %c0_9] : memref<1x8x96xf32, #tpu.memory_space<vmem>>, vector<1x8x96xf32>
    %10 = vector.shape_cast %9 : vector<1x8x96xf32> to vector<8x96xf32>
    %11 = vector.shape_cast %8 : vector<8x96xf32> to vector<1x8x96xf32>
    tpu.vector_store %arg5[%c0_7, %c0_8, %c0_9], %11 {strides = array<i32>} : memref<1x8x96xf32, #tpu.memory_space<vmem>>, vector<1x8x96xf32>,
    return
  }
  func.func @transform_0(%arg0: i32, %arg1: i32) -> (i32, i32) {
    %c0_i32 = arith.constant 0 : i32
    %c0_i32_0 = arith.constant 0 : i32
    return %arg1, %c0_i32 : i32, i32
  }
  func.func @transform_1(%arg0: i32, %arg1: i32) -> (i32, i32, i32) {
    %c0_i32 = arith.constant 0 : i32
    %c0_i32_0 = arith.constant 0 : i32
    %c0_i32_1 = arith.constant 0 : i32
    return %arg0, %c0_i32, %c0_i32_0 : i32, i32, i32
  }
  func.func @transform_2(%arg0: i32, %arg1: i32) -> (i32, i32, i32) {
    %c0_i32 = arith.constant 0 : i32
    %c0_i32_0 = arith.constant 0 : i32
    %c0_i32_1 = arith.constant 0 : i32
    return %arg0, %c0_i32, %c0_i32_0 : i32, i32, i32
  }
  func.func @transform_3(%arg0: i32, %arg1: i32) -> (i32, i32, i32) {
    %c0_i32 = arith.constant 0 : i32
    %c0_i32_0 = arith.constant 0 : i32
    return %arg0, %arg1, %c0_i32 : i32, i32, i32
  }
}

module attributes {stable_mosaic.version = 11 : i64} {
  func.func @_bigru_rec_kernel(%arg0: i32, %arg1: memref<1x4x2x96xf32, #tpu.memory_space<vmem>>, %arg2: memref<1x4x2x96xf32, #tpu.memory_space<vmem>>, %arg3: memref<2x32x96xf32, #tpu.memory_space<vmem>>, %arg4: memref<2x1x96xf32, #tpu.memory_space<vmem>>, %arg5: memref<4x2x32xf32, #tpu.memory_space<vmem>>, %arg6: memref<4x2x32xf32, #tpu.memory_space<vmem>>, %arg7: memref<2x2x32xf32, #tpu.memory_space<vmem>>) attributes {dimension_semantics = [#tpu.dimension_semantics<arbitrary>], iteration_bounds = array<i64: 1>, scalar_prefetch = 0 : i64, scratch_operands = 1 : i64, tpu.core_type = #tpu.core_type<tc>, window_params = [{transform_indices = @transform_0, window_bounds = array<i64: 1, 4, 2, 96>}, {transform_indices = @transform_1, window_bounds = array<i64: 1, 4, 2, 96>}, {pipeline_mode = #tpu.pipeline_mode<synchronous>, transform_indices = @transform_2, window_bounds = array<i64: 2, 32, 96>}, {pipeline_mode = #tpu.pipeline_mode<synchronous>, transform_indices = @transform_3, window_bounds = array<i64: 2, 1, 96>}, {transform_indices = @transform_4, window_bounds = array<i64: 4, 2, 32>}, {transform_indices = @transform_5, window_bounds = array<i64: 4, 2, 32>}]} {
    %c0_i32 = arith.constant 0 : i32
    %0 = arith.cmpi eq, %arg0, %c0_i32 : i32
    %1 = arith.extui %0 : i1 to i32
    %c0_i32_0 = arith.constant 0 : i32
    %2 = arith.cmpi ne, %1, %c0_i32_0 : i32
    scf.if %2 {
      %cst_135 = arith.constant 0.000000e+00 : f32
      %343 = vector.broadcast %cst_135 : f32 to vector<2x2x32xf32>
      %c0_136 = arith.constant 0 : index
      %c0_137 = arith.constant 0 : index
      %c0_138 = arith.constant 0 : index
      %344 = vector.load %arg7[%c0_136, %c0_137, %c0_138] : memref<2x2x32xf32, #tpu.memory_space<vmem>>, vector<2x2x32xf32>
      tpu.vector_store %arg7[%c0_136, %c0_137, %c0_138], %343 {strides = array<i32>} : memref<2x2x32xf32, #tpu.memory_space<vmem>>, vector<2x2x32xf32>,
    } else {
    }
    %c0 = arith.constant 0 : index
    %c0_1 = arith.constant 0 : index
    %c0_2 = arith.constant 0 : index
    %3 = vector.load %arg3[%c0, %c0_1, %c0_2] : memref<2x32x96xf32, #tpu.memory_space<vmem>>, vector<1x32x96xf32>
    %4 = vector.shape_cast %3 : vector<1x32x96xf32> to vector<32x96xf32>
    %c1 = arith.constant 1 : index
    %c0_3 = arith.constant 0 : index
    %c0_4 = arith.constant 0 : index
    %5 = vector.load %arg3[%c1, %c0_3, %c0_4] : memref<2x32x96xf32, #tpu.memory_space<vmem>>, vector<1x32x96xf32>
    %6 = vector.shape_cast %5 : vector<1x32x96xf32> to vector<32x96xf32>
    %c0_5 = arith.constant 0 : index
    %c0_6 = arith.constant 0 : index
    %c0_7 = arith.constant 0 : index
    %7 = vector.load %arg4[%c0_5, %c0_6, %c0_7] : memref<2x1x96xf32, #tpu.memory_space<vmem>>, vector<1x1x96xf32>
    %8 = vector.shape_cast %7 : vector<1x1x96xf32> to vector<1x96xf32>
    %c1_8 = arith.constant 1 : index
    %c0_9 = arith.constant 0 : index
    %c0_10 = arith.constant 0 : index
    %9 = vector.load %arg4[%c1_8, %c0_9, %c0_10] : memref<2x1x96xf32, #tpu.memory_space<vmem>>, vector<1x1x96xf32>
    %10 = vector.shape_cast %9 : vector<1x1x96xf32> to vector<1x96xf32>
    %c0_i32_11 = arith.constant 0 : i32
    %c3_i32 = arith.constant 3 : i32
    %11 = arith.subi %c3_i32, %c0_i32_11 : i32
    %c0_12 = arith.constant 0 : index
    %12 = arith.index_cast %c0_i32_11 : i32 to index
    %c0_13 = arith.constant 0 : index
    %c0_14 = arith.constant 0 : index
    %13 = vector.load %arg1[%c0_12, %12, %c0_13, %c0_14] : memref<1x4x2x96xf32, #tpu.memory_space<vmem>>, vector<1x1x2x96xf32>
    %14 = vector.shape_cast %13 : vector<1x1x2x96xf32> to vector<2x96xf32>
    %c0_15 = arith.constant 0 : index
    %c0_16 = arith.constant 0 : index
    %c0_17 = arith.constant 0 : index
    %15 = vector.load %arg7[%c0_15, %c0_16, %c0_17] : memref<2x2x32xf32, #tpu.memory_space<vmem>>, vector<1x2x32xf32>
    %16 = vector.shape_cast %15 : vector<1x2x32xf32> to vector<2x32xf32>
    %cst = arith.constant dense<0.000000e+00> : vector<2x96xf32>
    %17 = tpu.matmul %16, %4, %cst {dimension_numbers = #tpu.dot_dimension_numbers<[1], [0], [0], [1], [0, 0, 1, 1], [], []>} : vector<2x32xf32>, vector<32x96xf32>, vector<2x96xf32> -> vector<2x96xf32>
    %18 = vector.broadcast %8 : vector<1x96xf32> to vector<2x96xf32>
    %19 = arith.addf %17, %18 : vector<2x96xf32>
    %20 = vector.extract_strided_slice %14 {offsets = [0, 0], sizes = [2, 32], strides = [1, 1]} : vector<2x96xf32> to vector<2x32xf32>
    %21 = vector.extract_strided_slice %19 {offsets = [0, 0], sizes = [2, 32], strides = [1, 1]} : vector<2x96xf32> to vector<2x32xf32>
    %22 = arith.addf %20, %21 : vector<2x32xf32>
    %23 = arith.negf %22 : vector<2x32xf32>
    %24 = math.exp %23 : vector<2x32xf32>
    %cst_18 = arith.constant 1.000000e+00 : f32
    %25 = vector.broadcast %cst_18 : f32 to vector<2x32xf32>
    %26 = arith.addf %25, %24 : vector<2x32xf32>
    %27 = arith.divf %25, %26 : vector<2x32xf32>
    %28 = vector.extract_strided_slice %14 {offsets = [0, 32], sizes = [2, 32], strides = [1, 1]} : vector<2x96xf32> to vector<2x32xf32>
    %29 = vector.extract_strided_slice %19 {offsets = [0, 32], sizes = [2, 32], strides = [1, 1]} : vector<2x96xf32> to vector<2x32xf32>
    %30 = arith.addf %28, %29 : vector<2x32xf32>
    %31 = arith.negf %30 : vector<2x32xf32>
    %32 = math.exp %31 : vector<2x32xf32>
    %cst_19 = arith.constant 1.000000e+00 : f32
    %33 = vector.broadcast %cst_19 : f32 to vector<2x32xf32>
    %34 = arith.addf %33, %32 : vector<2x32xf32>
    %35 = arith.divf %33, %34 : vector<2x32xf32>
    %36 = vector.extract_strided_slice %14 {offsets = [0, 64], sizes = [2, 32], strides = [1, 1]} : vector<2x96xf32> to vector<2x32xf32>
    %37 = vector.extract_strided_slice %19 {offsets = [0, 64], sizes = [2, 32], strides = [1, 1]} : vector<2x96xf32> to vector<2x32xf32>
    %38 = arith.mulf %27, %37 : vector<2x32xf32>
    %39 = arith.addf %36, %38 : vector<2x32xf32>
    %40 = math.tanh %39 : vector<2x32xf32>
    %cst_20 = arith.constant 1.000000e+00 : f32
    %41 = vector.broadcast %cst_20 : f32 to vector<2x32xf32>
    %42 = arith.subf %41, %35 : vector<2x32xf32>
    %43 = arith.mulf %42, %40 : vector<2x32xf32>
    %44 = arith.mulf %35, %16 : vector<2x32xf32>
    %45 = arith.addf %43, %44 : vector<2x32xf32>
    %c0_21 = arith.constant 0 : index
    %46 = arith.index_cast %11 : i32 to index
    %c0_22 = arith.constant 0 : index
    %c0_23 = arith.constant 0 : index
    %47 = vector.load %arg2[%c0_21, %46, %c0_22, %c0_23] : memref<1x4x2x96xf32, #tpu.memory_space<vmem>>, vector<1x1x2x96xf32>
    %48 = vector.shape_cast %47 : vector<1x1x2x96xf32> to vector<2x96xf32>
    %c1_24 = arith.constant 1 : index
    %c0_25 = arith.constant 0 : index
    %c0_26 = arith.constant 0 : index
    %49 = vector.load %arg7[%c1_24, %c0_25, %c0_26] : memref<2x2x32xf32, #tpu.memory_space<vmem>>, vector<1x2x32xf32>
    %50 = vector.shape_cast %49 : vector<1x2x32xf32> to vector<2x32xf32>
    %cst_27 = arith.constant dense<0.000000e+00> : vector<2x96xf32>
    %51 = tpu.matmul %50, %6, %cst_27 {dimension_numbers = #tpu.dot_dimension_numbers<[1], [0], [0], [1], [0, 0, 1, 1], [], []>} : vector<2x32xf32>, vector<32x96xf32>, vector<2x96xf32> -> vector<2x96xf32>
    %52 = vector.broadcast %10 : vector<1x96xf32> to vector<2x96xf32>
    %53 = arith.addf %51, %52 : vector<2x96xf32>
    %54 = vector.extract_strided_slice %48 {offsets = [0, 0], sizes = [2, 32], strides = [1, 1]} : vector<2x96xf32> to vector<2x32xf32>
    %55 = vector.extract_strided_slice %53 {offsets = [0, 0], sizes = [2, 32], strides = [1, 1]} : vector<2x96xf32> to vector<2x32xf32>
    %56 = arith.addf %54, %55 : vector<2x32xf32>
    %57 = arith.negf %56 : vector<2x32xf32>
    %58 = math.exp %57 : vector<2x32xf32>
    %cst_28 = arith.constant 1.000000e+00 : f32
    %59 = vector.broadcast %cst_28 : f32 to vector<2x32xf32>
    %60 = arith.addf %59, %58 : vector<2x32xf32>
    %61 = arith.divf %59, %60 : vector<2x32xf32>
    %62 = vector.extract_strided_slice %48 {offsets = [0, 32], sizes = [2, 32], strides = [1, 1]} : vector<2x96xf32> to vector<2x32xf32>
    %63 = vector.extract_strided_slice %53 {offsets = [0, 32], sizes = [2, 32], strides = [1, 1]} : vector<2x96xf32> to vector<2x32xf32>
    %64 = arith.addf %62, %63 : vector<2x32xf32>
    %65 = arith.negf %64 : vector<2x32xf32>
    %66 = math.exp %65 : vector<2x32xf32>
    %cst_29 = arith.constant 1.000000e+00 : f32
    %67 = vector.broadcast %cst_29 : f32 to vector<2x32xf32>
    %68 = arith.addf %67, %66 : vector<2x32xf32>
    %69 = arith.divf %67, %68 : vector<2x32xf32>
    %70 = vector.extract_strided_slice %48 {offsets = [0, 64], sizes = [2, 32], strides = [1, 1]} : vector<2x96xf32> to vector<2x32xf32>
    %71 = vector.extract_strided_slice %53 {offsets = [0, 64], sizes = [2, 32], strides = [1, 1]} : vector<2x96xf32> to vector<2x32xf32>
    %72 = arith.mulf %61, %71 : vector<2x32xf32>
    %73 = arith.addf %70, %72 : vector<2x32xf32>
    %74 = math.tanh %73 : vector<2x32xf32>
    %cst_30 = arith.constant 1.000000e+00 : f32
    %75 = vector.broadcast %cst_30 : f32 to vector<2x32xf32>
    %76 = arith.subf %75, %69 : vector<2x32xf32>
    %77 = arith.mulf %76, %74 : vector<2x32xf32>
    %78 = arith.mulf %69, %50 : vector<2x32xf32>
    %79 = arith.addf %77, %78 : vector<2x32xf32>
    %c0_31 = arith.constant 0 : index
    %c0_32 = arith.constant 0 : index
    %c0_33 = arith.constant 0 : index
    %80 = vector.load %arg7[%c0_31, %c0_32, %c0_33] : memref<2x2x32xf32, #tpu.memory_space<vmem>>, vector<1x2x32xf32>
    %81 = vector.shape_cast %80 : vector<1x2x32xf32> to vector<2x32xf32>
    %82 = vector.shape_cast %45 : vector<2x32xf32> to vector<1x2x32xf32>
    tpu.vector_store %arg7[%c0_31, %c0_32, %c0_33], %82 {strides = array<i32>} : memref<2x2x32xf32, #tpu.memory_space<vmem>>, vector<1x2x32xf32>,
    %c1_34 = arith.constant 1 : index
    %c0_35 = arith.constant 0 : index
    %c0_36 = arith.constant 0 : index
    %83 = vector.load %arg7[%c1_34, %c0_35, %c0_36] : memref<2x2x32xf32, #tpu.memory_space<vmem>>, vector<1x2x32xf32>
    %84 = vector.shape_cast %83 : vector<1x2x32xf32> to vector<2x32xf32>
    %85 = vector.shape_cast %79 : vector<2x32xf32> to vector<1x2x32xf32>
    tpu.vector_store %arg7[%c1_34, %c0_35, %c0_36], %85 {strides = array<i32>} : memref<2x2x32xf32, #tpu.memory_space<vmem>>, vector<1x2x32xf32>,
    %86 = arith.index_cast %c0_i32_11 : i32 to index
    %c0_37 = arith.constant 0 : index
    %c0_38 = arith.constant 0 : index
    %87 = vector.load %arg5[%86, %c0_37, %c0_38] : memref<4x2x32xf32, #tpu.memory_space<vmem>>, vector<1x2x32xf32>
    %88 = vector.shape_cast %87 : vector<1x2x32xf32> to vector<2x32xf32>
    %89 = vector.shape_cast %45 : vector<2x32xf32> to vector<1x2x32xf32>
    tpu.vector_store %arg5[%86, %c0_37, %c0_38], %89 {strides = array<i32>} : memref<4x2x32xf32, #tpu.memory_space<vmem>>, vector<1x2x32xf32>,
    %90 = arith.index_cast %11 : i32 to index
    %c0_39 = arith.constant 0 : index
    %c0_40 = arith.constant 0 : index
    %91 = vector.load %arg6[%90, %c0_39, %c0_40] : memref<4x2x32xf32, #tpu.memory_space<vmem>>, vector<1x2x32xf32>
    %92 = vector.shape_cast %91 : vector<1x2x32xf32> to vector<2x32xf32>
    %93 = vector.shape_cast %79 : vector<2x32xf32> to vector<1x2x32xf32>
    tpu.vector_store %arg6[%90, %c0_39, %c0_40], %93 {strides = array<i32>} : memref<4x2x32xf32, #tpu.memory_space<vmem>>, vector<1x2x32xf32>,
    %c1_i32 = arith.constant 1 : i32
    %c3_i32_41 = arith.constant 3 : i32
    %94 = arith.subi %c3_i32_41, %c1_i32 : i32
    %c0_42 = arith.constant 0 : index
    %95 = arith.index_cast %c1_i32 : i32 to index
    %c0_43 = arith.constant 0 : index
    %c0_44 = arith.constant 0 : index
    %96 = vector.load %arg1[%c0_42, %95, %c0_43, %c0_44] : memref<1x4x2x96xf32, #tpu.memory_space<vmem>>, vector<1x1x2x96xf32>
    %97 = vector.shape_cast %96 : vector<1x1x2x96xf32> to vector<2x96xf32>
    %c0_45 = arith.constant 0 : index
    %c0_46 = arith.constant 0 : index
    %c0_47 = arith.constant 0 : index
    %98 = vector.load %arg7[%c0_45, %c0_46, %c0_47] : memref<2x2x32xf32, #tpu.memory_space<vmem>>, vector<1x2x32xf32>
    %99 = vector.shape_cast %98 : vector<1x2x32xf32> to vector<2x32xf32>
    %cst_48 = arith.constant dense<0.000000e+00> : vector<2x96xf32>
    %100 = tpu.matmul %99, %4, %cst_48 {dimension_numbers = #tpu.dot_dimension_numbers<[1], [0], [0], [1], [0, 0, 1, 1], [], []>} : vector<2x32xf32>, vector<32x96xf32>, vector<2x96xf32> -> vector<2x96xf32>
    %101 = vector.broadcast %8 : vector<1x96xf32> to vector<2x96xf32>
    %102 = arith.addf %100, %101 : vector<2x96xf32>
    %103 = vector.extract_strided_slice %97 {offsets = [0, 0], sizes = [2, 32], strides = [1, 1]} : vector<2x96xf32> to vector<2x32xf32>
    %104 = vector.extract_strided_slice %102 {offsets = [0, 0], sizes = [2, 32], strides = [1, 1]} : vector<2x96xf32> to vector<2x32xf32>
    %105 = arith.addf %103, %104 : vector<2x32xf32>
    %106 = arith.negf %105 : vector<2x32xf32>
    %107 = math.exp %106 : vector<2x32xf32>
    %cst_49 = arith.constant 1.000000e+00 : f32
    %108 = vector.broadcast %cst_49 : f32 to vector<2x32xf32>
    %109 = arith.addf %108, %107 : vector<2x32xf32>
    %110 = arith.divf %108, %109 : vector<2x32xf32>
    %111 = vector.extract_strided_slice %97 {offsets = [0, 32], sizes = [2, 32], strides = [1, 1]} : vector<2x96xf32> to vector<2x32xf32>
    %112 = vector.extract_strided_slice %102 {offsets = [0, 32], sizes = [2, 32], strides = [1, 1]} : vector<2x96xf32> to vector<2x32xf32>
    %113 = arith.addf %111, %112 : vector<2x32xf32>
    %114 = arith.negf %113 : vector<2x32xf32>
    %115 = math.exp %114 : vector<2x32xf32>
    %cst_50 = arith.constant 1.000000e+00 : f32
    %116 = vector.broadcast %cst_50 : f32 to vector<2x32xf32>
    %117 = arith.addf %116, %115 : vector<2x32xf32>
    %118 = arith.divf %116, %117 : vector<2x32xf32>
    %119 = vector.extract_strided_slice %97 {offsets = [0, 64], sizes = [2, 32], strides = [1, 1]} : vector<2x96xf32> to vector<2x32xf32>
    %120 = vector.extract_strided_slice %102 {offsets = [0, 64], sizes = [2, 32], strides = [1, 1]} : vector<2x96xf32> to vector<2x32xf32>
    %121 = arith.mulf %110, %120 : vector<2x32xf32>
    %122 = arith.addf %119, %121 : vector<2x32xf32>
    %123 = math.tanh %122 : vector<2x32xf32>
    %cst_51 = arith.constant 1.000000e+00 : f32
    %124 = vector.broadcast %cst_51 : f32 to vector<2x32xf32>
    %125 = arith.subf %124, %118 : vector<2x32xf32>
    %126 = arith.mulf %125, %123 : vector<2x32xf32>
    %127 = arith.mulf %118, %99 : vector<2x32xf32>
    %128 = arith.addf %126, %127 : vector<2x32xf32>
    %c0_52 = arith.constant 0 : index
    %129 = arith.index_cast %94 : i32 to index
    %c0_53 = arith.constant 0 : index
    %c0_54 = arith.constant 0 : index
    %130 = vector.load %arg2[%c0_52, %129, %c0_53, %c0_54] : memref<1x4x2x96xf32, #tpu.memory_space<vmem>>, vector<1x1x2x96xf32>
    %131 = vector.shape_cast %130 : vector<1x1x2x96xf32> to vector<2x96xf32>
    %c1_55 = arith.constant 1 : index
    %c0_56 = arith.constant 0 : index
    %c0_57 = arith.constant 0 : index
    %132 = vector.load %arg7[%c1_55, %c0_56, %c0_57] : memref<2x2x32xf32, #tpu.memory_space<vmem>>, vector<1x2x32xf32>
    %133 = vector.shape_cast %132 : vector<1x2x32xf32> to vector<2x32xf32>
    %cst_58 = arith.constant dense<0.000000e+00> : vector<2x96xf32>
    %134 = tpu.matmul %133, %6, %cst_58 {dimension_numbers = #tpu.dot_dimension_numbers<[1], [0], [0], [1], [0, 0, 1, 1], [], []>} : vector<2x32xf32>, vector<32x96xf32>, vector<2x96xf32> -> vector<2x96xf32>
    %135 = vector.broadcast %10 : vector<1x96xf32> to vector<2x96xf32>
    %136 = arith.addf %134, %135 : vector<2x96xf32>
    %137 = vector.extract_strided_slice %131 {offsets = [0, 0], sizes = [2, 32], strides = [1, 1]} : vector<2x96xf32> to vector<2x32xf32>
    %138 = vector.extract_strided_slice %136 {offsets = [0, 0], sizes = [2, 32], strides = [1, 1]} : vector<2x96xf32> to vector<2x32xf32>
    %139 = arith.addf %137, %138 : vector<2x32xf32>
    %140 = arith.negf %139 : vector<2x32xf32>
    %141 = math.exp %140 : vector<2x32xf32>
    %cst_59 = arith.constant 1.000000e+00 : f32
    %142 = vector.broadcast %cst_59 : f32 to vector<2x32xf32>
    %143 = arith.addf %142, %141 : vector<2x32xf32>
    %144 = arith.divf %142, %143 : vector<2x32xf32>
    %145 = vector.extract_strided_slice %131 {offsets = [0, 32], sizes = [2, 32], strides = [1, 1]} : vector<2x96xf32> to vector<2x32xf32>
    %146 = vector.extract_strided_slice %136 {offsets = [0, 32], sizes = [2, 32], strides = [1, 1]} : vector<2x96xf32> to vector<2x32xf32>
    %147 = arith.addf %145, %146 : vector<2x32xf32>
    %148 = arith.negf %147 : vector<2x32xf32>
    %149 = math.exp %148 : vector<2x32xf32>
    %cst_60 = arith.constant 1.000000e+00 : f32
    %150 = vector.broadcast %cst_60 : f32 to vector<2x32xf32>
    %151 = arith.addf %150, %149 : vector<2x32xf32>
    %152 = arith.divf %150, %151 : vector<2x32xf32>
    %153 = vector.extract_strided_slice %131 {offsets = [0, 64], sizes = [2, 32], strides = [1, 1]} : vector<2x96xf32> to vector<2x32xf32>
    %154 = vector.extract_strided_slice %136 {offsets = [0, 64], sizes = [2, 32], strides = [1, 1]} : vector<2x96xf32> to vector<2x32xf32>
    %155 = arith.mulf %144, %154 : vector<2x32xf32>
    %156 = arith.addf %153, %155 : vector<2x32xf32>
    %157 = math.tanh %156 : vector<2x32xf32>
    %cst_61 = arith.constant 1.000000e+00 : f32
    %158 = vector.broadcast %cst_61 : f32 to vector<2x32xf32>
    %159 = arith.subf %158, %152 : vector<2x32xf32>
    %160 = arith.mulf %159, %157 : vector<2x32xf32>
    %161 = arith.mulf %152, %133 : vector<2x32xf32>
    %162 = arith.addf %160, %161 : vector<2x32xf32>
    %c0_62 = arith.constant 0 : index
    %c0_63 = arith.constant 0 : index
    %c0_64 = arith.constant 0 : index
    %163 = vector.load %arg7[%c0_62, %c0_63, %c0_64] : memref<2x2x32xf32, #tpu.memory_space<vmem>>, vector<1x2x32xf32>
    %164 = vector.shape_cast %163 : vector<1x2x32xf32> to vector<2x32xf32>
    %165 = vector.shape_cast %128 : vector<2x32xf32> to vector<1x2x32xf32>
    tpu.vector_store %arg7[%c0_62, %c0_63, %c0_64], %165 {strides = array<i32>} : memref<2x2x32xf32, #tpu.memory_space<vmem>>, vector<1x2x32xf32>,
    %c1_65 = arith.constant 1 : index
    %c0_66 = arith.constant 0 : index
    %c0_67 = arith.constant 0 : index
    %166 = vector.load %arg7[%c1_65, %c0_66, %c0_67] : memref<2x2x32xf32, #tpu.memory_space<vmem>>, vector<1x2x32xf32>
    %167 = vector.shape_cast %166 : vector<1x2x32xf32> to vector<2x32xf32>
    %168 = vector.shape_cast %162 : vector<2x32xf32> to vector<1x2x32xf32>
    tpu.vector_store %arg7[%c1_65, %c0_66, %c0_67], %168 {strides = array<i32>} : memref<2x2x32xf32, #tpu.memory_space<vmem>>, vector<1x2x32xf32>,
    %169 = arith.index_cast %c1_i32 : i32 to index
    %c0_68 = arith.constant 0 : index
    %c0_69 = arith.constant 0 : index
    %170 = vector.load %arg5[%169, %c0_68, %c0_69] : memref<4x2x32xf32, #tpu.memory_space<vmem>>, vector<1x2x32xf32>
    %171 = vector.shape_cast %170 : vector<1x2x32xf32> to vector<2x32xf32>
    %172 = vector.shape_cast %128 : vector<2x32xf32> to vector<1x2x32xf32>
    tpu.vector_store %arg5[%169, %c0_68, %c0_69], %172 {strides = array<i32>} : memref<4x2x32xf32, #tpu.memory_space<vmem>>, vector<1x2x32xf32>,
    %173 = arith.index_cast %94 : i32 to index
    %c0_70 = arith.constant 0 : index
    %c0_71 = arith.constant 0 : index
    %174 = vector.load %arg6[%173, %c0_70, %c0_71] : memref<4x2x32xf32, #tpu.memory_space<vmem>>, vector<1x2x32xf32>
    %175 = vector.shape_cast %174 : vector<1x2x32xf32> to vector<2x32xf32>
    %176 = vector.shape_cast %162 : vector<2x32xf32> to vector<1x2x32xf32>
    tpu.vector_store %arg6[%173, %c0_70, %c0_71], %176 {strides = array<i32>} : memref<4x2x32xf32, #tpu.memory_space<vmem>>, vector<1x2x32xf32>,
    %c2_i32 = arith.constant 2 : i32
    %c3_i32_72 = arith.constant 3 : i32
    %177 = arith.subi %c3_i32_72, %c2_i32 : i32
    %c0_73 = arith.constant 0 : index
    %178 = arith.index_cast %c2_i32 : i32 to index
    %c0_74 = arith.constant 0 : index
    %c0_75 = arith.constant 0 : index
    %179 = vector.load %arg1[%c0_73, %178, %c0_74, %c0_75] : memref<1x4x2x96xf32, #tpu.memory_space<vmem>>, vector<1x1x2x96xf32>
    %180 = vector.shape_cast %179 : vector<1x1x2x96xf32> to vector<2x96xf32>
    %c0_76 = arith.constant 0 : index
    %c0_77 = arith.constant 0 : index
    %c0_78 = arith.constant 0 : index
    %181 = vector.load %arg7[%c0_76, %c0_77, %c0_78] : memref<2x2x32xf32, #tpu.memory_space<vmem>>, vector<1x2x32xf32>
    %182 = vector.shape_cast %181 : vector<1x2x32xf32> to vector<2x32xf32>
    %cst_79 = arith.constant dense<0.000000e+00> : vector<2x96xf32>
    %183 = tpu.matmul %182, %4, %cst_79 {dimension_numbers = #tpu.dot_dimension_numbers<[1], [0], [0], [1], [0, 0, 1, 1], [], []>} : vector<2x32xf32>, vector<32x96xf32>, vector<2x96xf32> -> vector<2x96xf32>
    %184 = vector.broadcast %8 : vector<1x96xf32> to vector<2x96xf32>
    %185 = arith.addf %183, %184 : vector<2x96xf32>
    %186 = vector.extract_strided_slice %180 {offsets = [0, 0], sizes = [2, 32], strides = [1, 1]} : vector<2x96xf32> to vector<2x32xf32>
    %187 = vector.extract_strided_slice %185 {offsets = [0, 0], sizes = [2, 32], strides = [1, 1]} : vector<2x96xf32> to vector<2x32xf32>
    %188 = arith.addf %186, %187 : vector<2x32xf32>
    %189 = arith.negf %188 : vector<2x32xf32>
    %190 = math.exp %189 : vector<2x32xf32>
    %cst_80 = arith.constant 1.000000e+00 : f32
    %191 = vector.broadcast %cst_80 : f32 to vector<2x32xf32>
    %192 = arith.addf %191, %190 : vector<2x32xf32>
    %193 = arith.divf %191, %192 : vector<2x32xf32>
    %194 = vector.extract_strided_slice %180 {offsets = [0, 32], sizes = [2, 32], strides = [1, 1]} : vector<2x96xf32> to vector<2x32xf32>
    %195 = vector.extract_strided_slice %185 {offsets = [0, 32], sizes = [2, 32], strides = [1, 1]} : vector<2x96xf32> to vector<2x32xf32>
    %196 = arith.addf %194, %195 : vector<2x32xf32>
    %197 = arith.negf %196 : vector<2x32xf32>
    %198 = math.exp %197 : vector<2x32xf32>
    %cst_81 = arith.constant 1.000000e+00 : f32
    %199 = vector.broadcast %cst_81 : f32 to vector<2x32xf32>
    %200 = arith.addf %199, %198 : vector<2x32xf32>
    %201 = arith.divf %199, %200 : vector<2x32xf32>
    %202 = vector.extract_strided_slice %180 {offsets = [0, 64], sizes = [2, 32], strides = [1, 1]} : vector<2x96xf32> to vector<2x32xf32>
    %203 = vector.extract_strided_slice %185 {offsets = [0, 64], sizes = [2, 32], strides = [1, 1]} : vector<2x96xf32> to vector<2x32xf32>
    %204 = arith.mulf %193, %203 : vector<2x32xf32>
    %205 = arith.addf %202, %204 : vector<2x32xf32>
    %206 = math.tanh %205 : vector<2x32xf32>
    %cst_82 = arith.constant 1.000000e+00 : f32
    %207 = vector.broadcast %cst_82 : f32 to vector<2x32xf32>
    %208 = arith.subf %207, %201 : vector<2x32xf32>
    %209 = arith.mulf %208, %206 : vector<2x32xf32>
    %210 = arith.mulf %201, %182 : vector<2x32xf32>
    %211 = arith.addf %209, %210 : vector<2x32xf32>
    %c0_83 = arith.constant 0 : index
    %212 = arith.index_cast %177 : i32 to index
    %c0_84 = arith.constant 0 : index
    %c0_85 = arith.constant 0 : index
    %213 = vector.load %arg2[%c0_83, %212, %c0_84, %c0_85] : memref<1x4x2x96xf32, #tpu.memory_space<vmem>>, vector<1x1x2x96xf32>
    %214 = vector.shape_cast %213 : vector<1x1x2x96xf32> to vector<2x96xf32>
    %c1_86 = arith.constant 1 : index
    %c0_87 = arith.constant 0 : index
    %c0_88 = arith.constant 0 : index
    %215 = vector.load %arg7[%c1_86, %c0_87, %c0_88] : memref<2x2x32xf32, #tpu.memory_space<vmem>>, vector<1x2x32xf32>
    %216 = vector.shape_cast %215 : vector<1x2x32xf32> to vector<2x32xf32>
    %cst_89 = arith.constant dense<0.000000e+00> : vector<2x96xf32>
    %217 = tpu.matmul %216, %6, %cst_89 {dimension_numbers = #tpu.dot_dimension_numbers<[1], [0], [0], [1], [0, 0, 1, 1], [], []>} : vector<2x32xf32>, vector<32x96xf32>, vector<2x96xf32> -> vector<2x96xf32>
    %218 = vector.broadcast %10 : vector<1x96xf32> to vector<2x96xf32>
    %219 = arith.addf %217, %218 : vector<2x96xf32>
    %220 = vector.extract_strided_slice %214 {offsets = [0, 0], sizes = [2, 32], strides = [1, 1]} : vector<2x96xf32> to vector<2x32xf32>
    %221 = vector.extract_strided_slice %219 {offsets = [0, 0], sizes = [2, 32], strides = [1, 1]} : vector<2x96xf32> to vector<2x32xf32>
    %222 = arith.addf %220, %221 : vector<2x32xf32>
    %223 = arith.negf %222 : vector<2x32xf32>
    %224 = math.exp %223 : vector<2x32xf32>
    %cst_90 = arith.constant 1.000000e+00 : f32
    %225 = vector.broadcast %cst_90 : f32 to vector<2x32xf32>
    %226 = arith.addf %225, %224 : vector<2x32xf32>
    %227 = arith.divf %225, %226 : vector<2x32xf32>
    %228 = vector.extract_strided_slice %214 {offsets = [0, 32], sizes = [2, 32], strides = [1, 1]} : vector<2x96xf32> to vector<2x32xf32>
    %229 = vector.extract_strided_slice %219 {offsets = [0, 32], sizes = [2, 32], strides = [1, 1]} : vector<2x96xf32> to vector<2x32xf32>
    %230 = arith.addf %228, %229 : vector<2x32xf32>
    %231 = arith.negf %230 : vector<2x32xf32>
    %232 = math.exp %231 : vector<2x32xf32>
    %cst_91 = arith.constant 1.000000e+00 : f32
    %233 = vector.broadcast %cst_91 : f32 to vector<2x32xf32>
    %234 = arith.addf %233, %232 : vector<2x32xf32>
    %235 = arith.divf %233, %234 : vector<2x32xf32>
    %236 = vector.extract_strided_slice %214 {offsets = [0, 64], sizes = [2, 32], strides = [1, 1]} : vector<2x96xf32> to vector<2x32xf32>
    %237 = vector.extract_strided_slice %219 {offsets = [0, 64], sizes = [2, 32], strides = [1, 1]} : vector<2x96xf32> to vector<2x32xf32>
    %238 = arith.mulf %227, %237 : vector<2x32xf32>
    %239 = arith.addf %236, %238 : vector<2x32xf32>
    %240 = math.tanh %239 : vector<2x32xf32>
    %cst_92 = arith.constant 1.000000e+00 : f32
    %241 = vector.broadcast %cst_92 : f32 to vector<2x32xf32>
    %242 = arith.subf %241, %235 : vector<2x32xf32>
    %243 = arith.mulf %242, %240 : vector<2x32xf32>
    %244 = arith.mulf %235, %216 : vector<2x32xf32>
    %245 = arith.addf %243, %244 : vector<2x32xf32>
    %c0_93 = arith.constant 0 : index
    %c0_94 = arith.constant 0 : index
    %c0_95 = arith.constant 0 : index
    %246 = vector.load %arg7[%c0_93, %c0_94, %c0_95] : memref<2x2x32xf32, #tpu.memory_space<vmem>>, vector<1x2x32xf32>
    %247 = vector.shape_cast %246 : vector<1x2x32xf32> to vector<2x32xf32>
    %248 = vector.shape_cast %211 : vector<2x32xf32> to vector<1x2x32xf32>
    tpu.vector_store %arg7[%c0_93, %c0_94, %c0_95], %248 {strides = array<i32>} : memref<2x2x32xf32, #tpu.memory_space<vmem>>, vector<1x2x32xf32>,
    %c1_96 = arith.constant 1 : index
    %c0_97 = arith.constant 0 : index
    %c0_98 = arith.constant 0 : index
    %249 = vector.load %arg7[%c1_96, %c0_97, %c0_98] : memref<2x2x32xf32, #tpu.memory_space<vmem>>, vector<1x2x32xf32>
    %250 = vector.shape_cast %249 : vector<1x2x32xf32> to vector<2x32xf32>
    %251 = vector.shape_cast %245 : vector<2x32xf32> to vector<1x2x32xf32>
    tpu.vector_store %arg7[%c1_96, %c0_97, %c0_98], %251 {strides = array<i32>} : memref<2x2x32xf32, #tpu.memory_space<vmem>>, vector<1x2x32xf32>,
    %252 = arith.index_cast %c2_i32 : i32 to index
    %c0_99 = arith.constant 0 : index
    %c0_100 = arith.constant 0 : index
    %253 = vector.load %arg5[%252, %c0_99, %c0_100] : memref<4x2x32xf32, #tpu.memory_space<vmem>>, vector<1x2x32xf32>
    %254 = vector.shape_cast %253 : vector<1x2x32xf32> to vector<2x32xf32>
    %255 = vector.shape_cast %211 : vector<2x32xf32> to vector<1x2x32xf32>
    tpu.vector_store %arg5[%252, %c0_99, %c0_100], %255 {strides = array<i32>} : memref<4x2x32xf32, #tpu.memory_space<vmem>>, vector<1x2x32xf32>,
    %256 = arith.index_cast %177 : i32 to index
    %c0_101 = arith.constant 0 : index
    %c0_102 = arith.constant 0 : index
    %257 = vector.load %arg6[%256, %c0_101, %c0_102] : memref<4x2x32xf32, #tpu.memory_space<vmem>>, vector<1x2x32xf32>
    %258 = vector.shape_cast %257 : vector<1x2x32xf32> to vector<2x32xf32>
    %259 = vector.shape_cast %245 : vector<2x32xf32> to vector<1x2x32xf32>
    tpu.vector_store %arg6[%256, %c0_101, %c0_102], %259 {strides = array<i32>} : memref<4x2x32xf32, #tpu.memory_space<vmem>>, vector<1x2x32xf32>,
    %c3_i32_103 = arith.constant 3 : i32
    %c3_i32_104 = arith.constant 3 : i32
    %260 = arith.subi %c3_i32_104, %c3_i32_103 : i32
    %c0_105 = arith.constant 0 : index
    %261 = arith.index_cast %c3_i32_103 : i32 to index
    %c0_106 = arith.constant 0 : index
    %c0_107 = arith.constant 0 : index
    %262 = vector.load %arg1[%c0_105, %261, %c0_106, %c0_107] : memref<1x4x2x96xf32, #tpu.memory_space<vmem>>, vector<1x1x2x96xf32>
    %263 = vector.shape_cast %262 : vector<1x1x2x96xf32> to vector<2x96xf32>
    %c0_108 = arith.constant 0 : index
    %c0_109 = arith.constant 0 : index
    %c0_110 = arith.constant 0 : index
    %264 = vector.load %arg7[%c0_108, %c0_109, %c0_110] : memref<2x2x32xf32, #tpu.memory_space<vmem>>, vector<1x2x32xf32>
    %265 = vector.shape_cast %264 : vector<1x2x32xf32> to vector<2x32xf32>
    %cst_111 = arith.constant dense<0.000000e+00> : vector<2x96xf32>
    %266 = tpu.matmul %265, %4, %cst_111 {dimension_numbers = #tpu.dot_dimension_numbers<[1], [0], [0], [1], [0, 0, 1, 1], [], []>} : vector<2x32xf32>, vector<32x96xf32>, vector<2x96xf32> -> vector<2x96xf32>
    %267 = vector.broadcast %8 : vector<1x96xf32> to vector<2x96xf32>
    %268 = arith.addf %266, %267 : vector<2x96xf32>
    %269 = vector.extract_strided_slice %263 {offsets = [0, 0], sizes = [2, 32], strides = [1, 1]} : vector<2x96xf32> to vector<2x32xf32>
    %270 = vector.extract_strided_slice %268 {offsets = [0, 0], sizes = [2, 32], strides = [1, 1]} : vector<2x96xf32> to vector<2x32xf32>
    %271 = arith.addf %269, %270 : vector<2x32xf32>
    %272 = arith.negf %271 : vector<2x32xf32>
    %273 = math.exp %272 : vector<2x32xf32>
    %cst_112 = arith.constant 1.000000e+00 : f32
    %274 = vector.broadcast %cst_112 : f32 to vector<2x32xf32>
    %275 = arith.addf %274, %273 : vector<2x32xf32>
    %276 = arith.divf %274, %275 : vector<2x32xf32>
    %277 = vector.extract_strided_slice %263 {offsets = [0, 32], sizes = [2, 32], strides = [1, 1]} : vector<2x96xf32> to vector<2x32xf32>
    %278 = vector.extract_strided_slice %268 {offsets = [0, 32], sizes = [2, 32], strides = [1, 1]} : vector<2x96xf32> to vector<2x32xf32>
    %279 = arith.addf %277, %278 : vector<2x32xf32>
    %280 = arith.negf %279 : vector<2x32xf32>
    %281 = math.exp %280 : vector<2x32xf32>
    %cst_113 = arith.constant 1.000000e+00 : f32
    %282 = vector.broadcast %cst_113 : f32 to vector<2x32xf32>
    %283 = arith.addf %282, %281 : vector<2x32xf32>
    %284 = arith.divf %282, %283 : vector<2x32xf32>
    %285 = vector.extract_strided_slice %263 {offsets = [0, 64], sizes = [2, 32], strides = [1, 1]} : vector<2x96xf32> to vector<2x32xf32>
    %286 = vector.extract_strided_slice %268 {offsets = [0, 64], sizes = [2, 32], strides = [1, 1]} : vector<2x96xf32> to vector<2x32xf32>
    %287 = arith.mulf %276, %286 : vector<2x32xf32>
    %288 = arith.addf %285, %287 : vector<2x32xf32>
    %289 = math.tanh %288 : vector<2x32xf32>
    %cst_114 = arith.constant 1.000000e+00 : f32
    %290 = vector.broadcast %cst_114 : f32 to vector<2x32xf32>
    %291 = arith.subf %290, %284 : vector<2x32xf32>
    %292 = arith.mulf %291, %289 : vector<2x32xf32>
    %293 = arith.mulf %284, %265 : vector<2x32xf32>
    %294 = arith.addf %292, %293 : vector<2x32xf32>
    %c0_115 = arith.constant 0 : index
    %295 = arith.index_cast %260 : i32 to index
    %c0_116 = arith.constant 0 : index
    %c0_117 = arith.constant 0 : index
    %296 = vector.load %arg2[%c0_115, %295, %c0_116, %c0_117] : memref<1x4x2x96xf32, #tpu.memory_space<vmem>>, vector<1x1x2x96xf32>
    %297 = vector.shape_cast %296 : vector<1x1x2x96xf32> to vector<2x96xf32>
    %c1_118 = arith.constant 1 : index
    %c0_119 = arith.constant 0 : index
    %c0_120 = arith.constant 0 : index
    %298 = vector.load %arg7[%c1_118, %c0_119, %c0_120] : memref<2x2x32xf32, #tpu.memory_space<vmem>>, vector<1x2x32xf32>
    %299 = vector.shape_cast %298 : vector<1x2x32xf32> to vector<2x32xf32>
    %cst_121 = arith.constant dense<0.000000e+00> : vector<2x96xf32>
    %300 = tpu.matmul %299, %6, %cst_121 {dimension_numbers = #tpu.dot_dimension_numbers<[1], [0], [0], [1], [0, 0, 1, 1], [], []>} : vector<2x32xf32>, vector<32x96xf32>, vector<2x96xf32> -> vector<2x96xf32>
    %301 = vector.broadcast %10 : vector<1x96xf32> to vector<2x96xf32>
    %302 = arith.addf %300, %301 : vector<2x96xf32>
    %303 = vector.extract_strided_slice %297 {offsets = [0, 0], sizes = [2, 32], strides = [1, 1]} : vector<2x96xf32> to vector<2x32xf32>
    %304 = vector.extract_strided_slice %302 {offsets = [0, 0], sizes = [2, 32], strides = [1, 1]} : vector<2x96xf32> to vector<2x32xf32>
    %305 = arith.addf %303, %304 : vector<2x32xf32>
    %306 = arith.negf %305 : vector<2x32xf32>
    %307 = math.exp %306 : vector<2x32xf32>
    %cst_122 = arith.constant 1.000000e+00 : f32
    %308 = vector.broadcast %cst_122 : f32 to vector<2x32xf32>
    %309 = arith.addf %308, %307 : vector<2x32xf32>
    %310 = arith.divf %308, %309 : vector<2x32xf32>
    %311 = vector.extract_strided_slice %297 {offsets = [0, 32], sizes = [2, 32], strides = [1, 1]} : vector<2x96xf32> to vector<2x32xf32>
    %312 = vector.extract_strided_slice %302 {offsets = [0, 32], sizes = [2, 32], strides = [1, 1]} : vector<2x96xf32> to vector<2x32xf32>
    %313 = arith.addf %311, %312 : vector<2x32xf32>
    %314 = arith.negf %313 : vector<2x32xf32>
    %315 = math.exp %314 : vector<2x32xf32>
    %cst_123 = arith.constant 1.000000e+00 : f32
    %316 = vector.broadcast %cst_123 : f32 to vector<2x32xf32>
    %317 = arith.addf %316, %315 : vector<2x32xf32>
    %318 = arith.divf %316, %317 : vector<2x32xf32>
    %319 = vector.extract_strided_slice %297 {offsets = [0, 64], sizes = [2, 32], strides = [1, 1]} : vector<2x96xf32> to vector<2x32xf32>
    %320 = vector.extract_strided_slice %302 {offsets = [0, 64], sizes = [2, 32], strides = [1, 1]} : vector<2x96xf32> to vector<2x32xf32>
    %321 = arith.mulf %310, %320 : vector<2x32xf32>
    %322 = arith.addf %319, %321 : vector<2x32xf32>
    %323 = math.tanh %322 : vector<2x32xf32>
    %cst_124 = arith.constant 1.000000e+00 : f32
    %324 = vector.broadcast %cst_124 : f32 to vector<2x32xf32>
    %325 = arith.subf %324, %318 : vector<2x32xf32>
    %326 = arith.mulf %325, %323 : vector<2x32xf32>
    %327 = arith.mulf %318, %299 : vector<2x32xf32>
    %328 = arith.addf %326, %327 : vector<2x32xf32>
    %c0_125 = arith.constant 0 : index
    %c0_126 = arith.constant 0 : index
    %c0_127 = arith.constant 0 : index
    %329 = vector.load %arg7[%c0_125, %c0_126, %c0_127] : memref<2x2x32xf32, #tpu.memory_space<vmem>>, vector<1x2x32xf32>
    %330 = vector.shape_cast %329 : vector<1x2x32xf32> to vector<2x32xf32>
    %331 = vector.shape_cast %294 : vector<2x32xf32> to vector<1x2x32xf32>
    tpu.vector_store %arg7[%c0_125, %c0_126, %c0_127], %331 {strides = array<i32>} : memref<2x2x32xf32, #tpu.memory_space<vmem>>, vector<1x2x32xf32>,
    %c1_128 = arith.constant 1 : index
    %c0_129 = arith.constant 0 : index
    %c0_130 = arith.constant 0 : index
    %332 = vector.load %arg7[%c1_128, %c0_129, %c0_130] : memref<2x2x32xf32, #tpu.memory_space<vmem>>, vector<1x2x32xf32>
    %333 = vector.shape_cast %332 : vector<1x2x32xf32> to vector<2x32xf32>
    %334 = vector.shape_cast %328 : vector<2x32xf32> to vector<1x2x32xf32>
    tpu.vector_store %arg7[%c1_128, %c0_129, %c0_130], %334 {strides = array<i32>} : memref<2x2x32xf32, #tpu.memory_space<vmem>>, vector<1x2x32xf32>,
    %335 = arith.index_cast %c3_i32_103 : i32 to index
    %c0_131 = arith.constant 0 : index
    %c0_132 = arith.constant 0 : index
    %336 = vector.load %arg5[%335, %c0_131, %c0_132] : memref<4x2x32xf32, #tpu.memory_space<vmem>>, vector<1x2x32xf32>
    %337 = vector.shape_cast %336 : vector<1x2x32xf32> to vector<2x32xf32>
    %338 = vector.shape_cast %294 : vector<2x32xf32> to vector<1x2x32xf32>
    tpu.vector_store %arg5[%335, %c0_131, %c0_132], %338 {strides = array<i32>} : memref<4x2x32xf32, #tpu.memory_space<vmem>>, vector<1x2x32xf32>,
    %339 = arith.index_cast %260 : i32 to index
    %c0_133 = arith.constant 0 : index
    %c0_134 = arith.constant 0 : index
    %340 = vector.load %arg6[%339, %c0_133, %c0_134] : memref<4x2x32xf32, #tpu.memory_space<vmem>>, vector<1x2x32xf32>
    %341 = vector.shape_cast %340 : vector<1x2x32xf32> to vector<2x32xf32>
    %342 = vector.shape_cast %328 : vector<2x32xf32> to vector<1x2x32xf32>
    tpu.vector_store %arg6[%339, %c0_133, %c0_134], %342 {strides = array<i32>} : memref<4x2x32xf32, #tpu.memory_space<vmem>>, vector<1x2x32xf32>,
    %c4_i32 = arith.constant 4 : i32
    return
  }
  func.func @transform_0(%arg0: i32) -> (i32, i32, i32, i32) {
    %c0_i32 = arith.constant 0 : i32
    %c0_i32_0 = arith.constant 0 : i32
    %c0_i32_1 = arith.constant 0 : i32
    %c0_i32_2 = arith.constant 0 : i32
    return %c0_i32, %arg0, %c0_i32_0, %c0_i32_1 : i32, i32, i32, i32
  }
  func.func @transform_1(%arg0: i32) -> (i32, i32, i32, i32) {
    %c0_i32 = arith.constant 0 : i32
    %0 = arith.subi %c0_i32, %arg0 : i32
    %c1_i32 = arith.constant 1 : i32
    %c0_i32_0 = arith.constant 0 : i32
    %c0_i32_1 = arith.constant 0 : i32
    %c0_i32_2 = arith.constant 0 : i32
    return %c1_i32, %0, %c0_i32_0, %c0_i32_1 : i32, i32, i32, i32
  }
  func.func @transform_2(%arg0: i32) -> (i32, i32, i32) {
    %c0_i32 = arith.constant 0 : i32
    %c0_i32_0 = arith.constant 0 : i32
    %c0_i32_1 = arith.constant 0 : i32
    %c0_i32_2 = arith.constant 0 : i32
    return %c0_i32, %c0_i32_0, %c0_i32_1 : i32, i32, i32
  }
  func.func @transform_3(%arg0: i32) -> (i32, i32, i32) {
    %c0_i32 = arith.constant 0 : i32
    %c0_i32_0 = arith.constant 0 : i32
    %c0_i32_1 = arith.constant 0 : i32
    %c0_i32_2 = arith.constant 0 : i32
    return %c0_i32, %c0_i32_0, %c0_i32_1 : i32, i32, i32
  }
  func.func @transform_4(%arg0: i32) -> (i32, i32, i32) {
    %c0_i32 = arith.constant 0 : i32
    %c0_i32_0 = arith.constant 0 : i32
    %c0_i32_1 = arith.constant 0 : i32
    return %arg0, %c0_i32, %c0_i32_0 : i32, i32, i32
  }
  func.func @transform_5(%arg0: i32) -> (i32, i32, i32) {
    %c0_i32 = arith.constant 0 : i32
    %0 = arith.subi %c0_i32, %arg0 : i32
    %c0_i32_0 = arith.constant 0 : i32
    %c0_i32_1 = arith.constant 0 : i32
    %c0_i32_2 = arith.constant 0 : i32
    return %0, %c0_i32_0, %c0_i32_1 : i32, i32, i32
  }
}

module attributes {stable_mosaic.version = 11 : i64} {
  func.func @_proj_kernel(%arg0: i32, %arg1: i32, %arg2: memref<4x128xf32, #tpu.memory_space<vmem>>, %arg3: memref<1x128x96xbf16, #tpu.memory_space<vmem>>, %arg4: memref<1x1x96xf32, #tpu.memory_space<vmem>>, %arg5: memref<1x4x96xf32, #tpu.memory_space<vmem>>) attributes {dimension_semantics = [#tpu.dimension_semantics<parallel>, #tpu.dimension_semantics<parallel>], iteration_bounds = array<i64: 2, 1>, scalar_prefetch = 0 : i64, scratch_operands = 0 : i64, tpu.core_type = #tpu.core_type<tc>, window_params = [{transform_indices = @transform_0, window_bounds = array<i64: 4, 128>}, {transform_indices = @transform_1, window_bounds = array<i64: 1, 128, 96>}, {transform_indices = @transform_2, window_bounds = array<i64: 1, 1, 96>}, {transform_indices = @transform_3, window_bounds = array<i64: 1, 4, 96>}]} {
    %c0 = arith.constant 0 : index
    %c0_0 = arith.constant 0 : index
    %0 = vector.load %arg2[%c0, %c0_0] : memref<4x128xf32, #tpu.memory_space<vmem>>, vector<4x128xf32>
    %1 = arith.truncf %0 : vector<4x128xf32> to vector<4x128xbf16>
    %c0_1 = arith.constant 0 : index
    %c0_2 = arith.constant 0 : index
    %c0_3 = arith.constant 0 : index
    %2 = vector.load %arg3[%c0_1, %c0_2, %c0_3] : memref<1x128x96xbf16, #tpu.memory_space<vmem>>, vector<1x128x96xbf16>
    %3 = vector.shape_cast %2 : vector<1x128x96xbf16> to vector<128x96xbf16>
    %cst = arith.constant dense<0.000000e+00> : vector<4x96xf32>
    %4 = tpu.matmul %1, %3, %cst {dimension_numbers = #tpu.dot_dimension_numbers<[1], [0], [0], [1], [0, 0, 1, 1], [], []>} : vector<4x128xbf16>, vector<128x96xbf16>, vector<4x96xf32> -> vector<4x96xf32>
    %c0_4 = arith.constant 0 : index
    %c0_5 = arith.constant 0 : index
    %c0_6 = arith.constant 0 : index
    %5 = vector.load %arg4[%c0_4, %c0_5, %c0_6] : memref<1x1x96xf32, #tpu.memory_space<vmem>>, vector<1x1x96xf32>
    %6 = vector.shape_cast %5 : vector<1x1x96xf32> to vector<1x96xf32>
    %7 = vector.broadcast %6 : vector<1x96xf32> to vector<4x96xf32>
    %8 = arith.addf %4, %7 : vector<4x96xf32>
    %c0_7 = arith.constant 0 : index
    %c0_8 = arith.constant 0 : index
    %c0_9 = arith.constant 0 : index
    %9 = vector.load %arg5[%c0_7, %c0_8, %c0_9] : memref<1x4x96xf32, #tpu.memory_space<vmem>>, vector<1x4x96xf32>
    %10 = vector.shape_cast %9 : vector<1x4x96xf32> to vector<4x96xf32>
    %11 = vector.shape_cast %8 : vector<4x96xf32> to vector<1x4x96xf32>
    tpu.vector_store %arg5[%c0_7, %c0_8, %c0_9], %11 {strides = array<i32>} : memref<1x4x96xf32, #tpu.memory_space<vmem>>, vector<1x4x96xf32>,
    return
  }
  func.func @transform_0(%arg0: i32, %arg1: i32) -> (i32, i32) {
    %c0_i32 = arith.constant 0 : i32
    %c0_i32_0 = arith.constant 0 : i32
    return %arg1, %c0_i32 : i32, i32
  }
  func.func @transform_1(%arg0: i32, %arg1: i32) -> (i32, i32, i32) {
    %c0_i32 = arith.constant 0 : i32
    %c0_i32_0 = arith.constant 0 : i32
    %c0_i32_1 = arith.constant 0 : i32
    return %arg0, %c0_i32, %c0_i32_0 : i32, i32, i32
  }
  func.func @transform_2(%arg0: i32, %arg1: i32) -> (i32, i32, i32) {
    %c0_i32 = arith.constant 0 : i32
    %c0_i32_0 = arith.constant 0 : i32
    %c0_i32_1 = arith.constant 0 : i32
    return %arg0, %c0_i32, %c0_i32_0 : i32, i32, i32
  }
  func.func @transform_3(%arg0: i32, %arg1: i32) -> (i32, i32, i32) {
    %c0_i32 = arith.constant 0 : i32
    %c0_i32_0 = arith.constant 0 : i32
    return %arg0, %arg1, %c0_i32 : i32, i32, i32
  }
}

module attributes {stable_mosaic.version = 11 : i64} {
  func.func @_bigru_rec_kernel(%arg0: i32, %arg1: memref<1x2x2x96xf32, #tpu.memory_space<vmem>>, %arg2: memref<1x2x2x96xf32, #tpu.memory_space<vmem>>, %arg3: memref<2x32x96xf32, #tpu.memory_space<vmem>>, %arg4: memref<2x1x96xf32, #tpu.memory_space<vmem>>, %arg5: memref<2x2x32xf32, #tpu.memory_space<vmem>>, %arg6: memref<2x2x32xf32, #tpu.memory_space<vmem>>, %arg7: memref<2x2x32xf32, #tpu.memory_space<vmem>>) attributes {dimension_semantics = [#tpu.dimension_semantics<arbitrary>], iteration_bounds = array<i64: 1>, scalar_prefetch = 0 : i64, scratch_operands = 1 : i64, tpu.core_type = #tpu.core_type<tc>, window_params = [{transform_indices = @transform_0, window_bounds = array<i64: 1, 2, 2, 96>}, {transform_indices = @transform_1, window_bounds = array<i64: 1, 2, 2, 96>}, {pipeline_mode = #tpu.pipeline_mode<synchronous>, transform_indices = @transform_2, window_bounds = array<i64: 2, 32, 96>}, {pipeline_mode = #tpu.pipeline_mode<synchronous>, transform_indices = @transform_3, window_bounds = array<i64: 2, 1, 96>}, {transform_indices = @transform_4, window_bounds = array<i64: 2, 2, 32>}, {transform_indices = @transform_5, window_bounds = array<i64: 2, 2, 32>}]} {
    %c0_i32 = arith.constant 0 : i32
    %0 = arith.cmpi eq, %arg0, %c0_i32 : i32
    %1 = arith.extui %0 : i1 to i32
    %c0_i32_0 = arith.constant 0 : i32
    %2 = arith.cmpi ne, %1, %c0_i32_0 : i32
    scf.if %2 {
      %cst_73 = arith.constant 0.000000e+00 : f32
      %177 = vector.broadcast %cst_73 : f32 to vector<2x2x32xf32>
      %c0_74 = arith.constant 0 : index
      %c0_75 = arith.constant 0 : index
      %c0_76 = arith.constant 0 : index
      %178 = vector.load %arg7[%c0_74, %c0_75, %c0_76] : memref<2x2x32xf32, #tpu.memory_space<vmem>>, vector<2x2x32xf32>
      tpu.vector_store %arg7[%c0_74, %c0_75, %c0_76], %177 {strides = array<i32>} : memref<2x2x32xf32, #tpu.memory_space<vmem>>, vector<2x2x32xf32>,
    } else {
    }
    %c0 = arith.constant 0 : index
    %c0_1 = arith.constant 0 : index
    %c0_2 = arith.constant 0 : index
    %3 = vector.load %arg3[%c0, %c0_1, %c0_2] : memref<2x32x96xf32, #tpu.memory_space<vmem>>, vector<1x32x96xf32>
    %4 = vector.shape_cast %3 : vector<1x32x96xf32> to vector<32x96xf32>
    %c1 = arith.constant 1 : index
    %c0_3 = arith.constant 0 : index
    %c0_4 = arith.constant 0 : index
    %5 = vector.load %arg3[%c1, %c0_3, %c0_4] : memref<2x32x96xf32, #tpu.memory_space<vmem>>, vector<1x32x96xf32>
    %6 = vector.shape_cast %5 : vector<1x32x96xf32> to vector<32x96xf32>
    %c0_5 = arith.constant 0 : index
    %c0_6 = arith.constant 0 : index
    %c0_7 = arith.constant 0 : index
    %7 = vector.load %arg4[%c0_5, %c0_6, %c0_7] : memref<2x1x96xf32, #tpu.memory_space<vmem>>, vector<1x1x96xf32>
    %8 = vector.shape_cast %7 : vector<1x1x96xf32> to vector<1x96xf32>
    %c1_8 = arith.constant 1 : index
    %c0_9 = arith.constant 0 : index
    %c0_10 = arith.constant 0 : index
    %9 = vector.load %arg4[%c1_8, %c0_9, %c0_10] : memref<2x1x96xf32, #tpu.memory_space<vmem>>, vector<1x1x96xf32>
    %10 = vector.shape_cast %9 : vector<1x1x96xf32> to vector<1x96xf32>
    %c0_i32_11 = arith.constant 0 : i32
    %c1_i32 = arith.constant 1 : i32
    %11 = arith.subi %c1_i32, %c0_i32_11 : i32
    %c0_12 = arith.constant 0 : index
    %12 = arith.index_cast %c0_i32_11 : i32 to index
    %c0_13 = arith.constant 0 : index
    %c0_14 = arith.constant 0 : index
    %13 = vector.load %arg1[%c0_12, %12, %c0_13, %c0_14] : memref<1x2x2x96xf32, #tpu.memory_space<vmem>>, vector<1x1x2x96xf32>
    %14 = vector.shape_cast %13 : vector<1x1x2x96xf32> to vector<2x96xf32>
    %c0_15 = arith.constant 0 : index
    %c0_16 = arith.constant 0 : index
    %c0_17 = arith.constant 0 : index
    %15 = vector.load %arg7[%c0_15, %c0_16, %c0_17] : memref<2x2x32xf32, #tpu.memory_space<vmem>>, vector<1x2x32xf32>
    %16 = vector.shape_cast %15 : vector<1x2x32xf32> to vector<2x32xf32>
    %cst = arith.constant dense<0.000000e+00> : vector<2x96xf32>
    %17 = tpu.matmul %16, %4, %cst {dimension_numbers = #tpu.dot_dimension_numbers<[1], [0], [0], [1], [0, 0, 1, 1], [], []>} : vector<2x32xf32>, vector<32x96xf32>, vector<2x96xf32> -> vector<2x96xf32>
    %18 = vector.broadcast %8 : vector<1x96xf32> to vector<2x96xf32>
    %19 = arith.addf %17, %18 : vector<2x96xf32>
    %20 = vector.extract_strided_slice %14 {offsets = [0, 0], sizes = [2, 32], strides = [1, 1]} : vector<2x96xf32> to vector<2x32xf32>
    %21 = vector.extract_strided_slice %19 {offsets = [0, 0], sizes = [2, 32], strides = [1, 1]} : vector<2x96xf32> to vector<2x32xf32>
    %22 = arith.addf %20, %21 : vector<2x32xf32>
    %23 = arith.negf %22 : vector<2x32xf32>
    %24 = math.exp %23 : vector<2x32xf32>
    %cst_18 = arith.constant 1.000000e+00 : f32
    %25 = vector.broadcast %cst_18 : f32 to vector<2x32xf32>
    %26 = arith.addf %25, %24 : vector<2x32xf32>
    %27 = arith.divf %25, %26 : vector<2x32xf32>
    %28 = vector.extract_strided_slice %14 {offsets = [0, 32], sizes = [2, 32], strides = [1, 1]} : vector<2x96xf32> to vector<2x32xf32>
    %29 = vector.extract_strided_slice %19 {offsets = [0, 32], sizes = [2, 32], strides = [1, 1]} : vector<2x96xf32> to vector<2x32xf32>
    %30 = arith.addf %28, %29 : vector<2x32xf32>
    %31 = arith.negf %30 : vector<2x32xf32>
    %32 = math.exp %31 : vector<2x32xf32>
    %cst_19 = arith.constant 1.000000e+00 : f32
    %33 = vector.broadcast %cst_19 : f32 to vector<2x32xf32>
    %34 = arith.addf %33, %32 : vector<2x32xf32>
    %35 = arith.divf %33, %34 : vector<2x32xf32>
    %36 = vector.extract_strided_slice %14 {offsets = [0, 64], sizes = [2, 32], strides = [1, 1]} : vector<2x96xf32> to vector<2x32xf32>
    %37 = vector.extract_strided_slice %19 {offsets = [0, 64], sizes = [2, 32], strides = [1, 1]} : vector<2x96xf32> to vector<2x32xf32>
    %38 = arith.mulf %27, %37 : vector<2x32xf32>
    %39 = arith.addf %36, %38 : vector<2x32xf32>
    %40 = math.tanh %39 : vector<2x32xf32>
    %cst_20 = arith.constant 1.000000e+00 : f32
    %41 = vector.broadcast %cst_20 : f32 to vector<2x32xf32>
    %42 = arith.subf %41, %35 : vector<2x32xf32>
    %43 = arith.mulf %42, %40 : vector<2x32xf32>
    %44 = arith.mulf %35, %16 : vector<2x32xf32>
    %45 = arith.addf %43, %44 : vector<2x32xf32>
    %c0_21 = arith.constant 0 : index
    %46 = arith.index_cast %11 : i32 to index
    %c0_22 = arith.constant 0 : index
    %c0_23 = arith.constant 0 : index
    %47 = vector.load %arg2[%c0_21, %46, %c0_22, %c0_23] : memref<1x2x2x96xf32, #tpu.memory_space<vmem>>, vector<1x1x2x96xf32>
    %48 = vector.shape_cast %47 : vector<1x1x2x96xf32> to vector<2x96xf32>
    %c1_24 = arith.constant 1 : index
    %c0_25 = arith.constant 0 : index
    %c0_26 = arith.constant 0 : index
    %49 = vector.load %arg7[%c1_24, %c0_25, %c0_26] : memref<2x2x32xf32, #tpu.memory_space<vmem>>, vector<1x2x32xf32>
    %50 = vector.shape_cast %49 : vector<1x2x32xf32> to vector<2x32xf32>
    %cst_27 = arith.constant dense<0.000000e+00> : vector<2x96xf32>
    %51 = tpu.matmul %50, %6, %cst_27 {dimension_numbers = #tpu.dot_dimension_numbers<[1], [0], [0], [1], [0, 0, 1, 1], [], []>} : vector<2x32xf32>, vector<32x96xf32>, vector<2x96xf32> -> vector<2x96xf32>
    %52 = vector.broadcast %10 : vector<1x96xf32> to vector<2x96xf32>
    %53 = arith.addf %51, %52 : vector<2x96xf32>
    %54 = vector.extract_strided_slice %48 {offsets = [0, 0], sizes = [2, 32], strides = [1, 1]} : vector<2x96xf32> to vector<2x32xf32>
    %55 = vector.extract_strided_slice %53 {offsets = [0, 0], sizes = [2, 32], strides = [1, 1]} : vector<2x96xf32> to vector<2x32xf32>
    %56 = arith.addf %54, %55 : vector<2x32xf32>
    %57 = arith.negf %56 : vector<2x32xf32>
    %58 = math.exp %57 : vector<2x32xf32>
    %cst_28 = arith.constant 1.000000e+00 : f32
    %59 = vector.broadcast %cst_28 : f32 to vector<2x32xf32>
    %60 = arith.addf %59, %58 : vector<2x32xf32>
    %61 = arith.divf %59, %60 : vector<2x32xf32>
    %62 = vector.extract_strided_slice %48 {offsets = [0, 32], sizes = [2, 32], strides = [1, 1]} : vector<2x96xf32> to vector<2x32xf32>
    %63 = vector.extract_strided_slice %53 {offsets = [0, 32], sizes = [2, 32], strides = [1, 1]} : vector<2x96xf32> to vector<2x32xf32>
    %64 = arith.addf %62, %63 : vector<2x32xf32>
    %65 = arith.negf %64 : vector<2x32xf32>
    %66 = math.exp %65 : vector<2x32xf32>
    %cst_29 = arith.constant 1.000000e+00 : f32
    %67 = vector.broadcast %cst_29 : f32 to vector<2x32xf32>
    %68 = arith.addf %67, %66 : vector<2x32xf32>
    %69 = arith.divf %67, %68 : vector<2x32xf32>
    %70 = vector.extract_strided_slice %48 {offsets = [0, 64], sizes = [2, 32], strides = [1, 1]} : vector<2x96xf32> to vector<2x32xf32>
    %71 = vector.extract_strided_slice %53 {offsets = [0, 64], sizes = [2, 32], strides = [1, 1]} : vector<2x96xf32> to vector<2x32xf32>
    %72 = arith.mulf %61, %71 : vector<2x32xf32>
    %73 = arith.addf %70, %72 : vector<2x32xf32>
    %74 = math.tanh %73 : vector<2x32xf32>
    %cst_30 = arith.constant 1.000000e+00 : f32
    %75 = vector.broadcast %cst_30 : f32 to vector<2x32xf32>
    %76 = arith.subf %75, %69 : vector<2x32xf32>
    %77 = arith.mulf %76, %74 : vector<2x32xf32>
    %78 = arith.mulf %69, %50 : vector<2x32xf32>
    %79 = arith.addf %77, %78 : vector<2x32xf32>
    %c0_31 = arith.constant 0 : index
    %c0_32 = arith.constant 0 : index
    %c0_33 = arith.constant 0 : index
    %80 = vector.load %arg7[%c0_31, %c0_32, %c0_33] : memref<2x2x32xf32, #tpu.memory_space<vmem>>, vector<1x2x32xf32>
    %81 = vector.shape_cast %80 : vector<1x2x32xf32> to vector<2x32xf32>
    %82 = vector.shape_cast %45 : vector<2x32xf32> to vector<1x2x32xf32>
    tpu.vector_store %arg7[%c0_31, %c0_32, %c0_33], %82 {strides = array<i32>} : memref<2x2x32xf32, #tpu.memory_space<vmem>>, vector<1x2x32xf32>,
    %c1_34 = arith.constant 1 : index
    %c0_35 = arith.constant 0 : index
    %c0_36 = arith.constant 0 : index
    %83 = vector.load %arg7[%c1_34, %c0_35, %c0_36] : memref<2x2x32xf32, #tpu.memory_space<vmem>>, vector<1x2x32xf32>
    %84 = vector.shape_cast %83 : vector<1x2x32xf32> to vector<2x32xf32>
    %85 = vector.shape_cast %79 : vector<2x32xf32> to vector<1x2x32xf32>
    tpu.vector_store %arg7[%c1_34, %c0_35, %c0_36], %85 {strides = array<i32>} : memref<2x2x32xf32, #tpu.memory_space<vmem>>, vector<1x2x32xf32>,
    %86 = arith.index_cast %c0_i32_11 : i32 to index
    %c0_37 = arith.constant 0 : index
    %c0_38 = arith.constant 0 : index
    %87 = vector.load %arg5[%86, %c0_37, %c0_38] : memref<2x2x32xf32, #tpu.memory_space<vmem>>, vector<1x2x32xf32>
    %88 = vector.shape_cast %87 : vector<1x2x32xf32> to vector<2x32xf32>
    %89 = vector.shape_cast %45 : vector<2x32xf32> to vector<1x2x32xf32>
    tpu.vector_store %arg5[%86, %c0_37, %c0_38], %89 {strides = array<i32>} : memref<2x2x32xf32, #tpu.memory_space<vmem>>, vector<1x2x32xf32>,
    %90 = arith.index_cast %11 : i32 to index
    %c0_39 = arith.constant 0 : index
    %c0_40 = arith.constant 0 : index
    %91 = vector.load %arg6[%90, %c0_39, %c0_40] : memref<2x2x32xf32, #tpu.memory_space<vmem>>, vector<1x2x32xf32>
    %92 = vector.shape_cast %91 : vector<1x2x32xf32> to vector<2x32xf32>
    %93 = vector.shape_cast %79 : vector<2x32xf32> to vector<1x2x32xf32>
    tpu.vector_store %arg6[%90, %c0_39, %c0_40], %93 {strides = array<i32>} : memref<2x2x32xf32, #tpu.memory_space<vmem>>, vector<1x2x32xf32>,
    %c1_i32_41 = arith.constant 1 : i32
    %c1_i32_42 = arith.constant 1 : i32
    %94 = arith.subi %c1_i32_42, %c1_i32_41 : i32
    %c0_43 = arith.constant 0 : index
    %95 = arith.index_cast %c1_i32_41 : i32 to index
    %c0_44 = arith.constant 0 : index
    %c0_45 = arith.constant 0 : index
    %96 = vector.load %arg1[%c0_43, %95, %c0_44, %c0_45] : memref<1x2x2x96xf32, #tpu.memory_space<vmem>>, vector<1x1x2x96xf32>
    %97 = vector.shape_cast %96 : vector<1x1x2x96xf32> to vector<2x96xf32>
    %c0_46 = arith.constant 0 : index
    %c0_47 = arith.constant 0 : index
    %c0_48 = arith.constant 0 : index
    %98 = vector.load %arg7[%c0_46, %c0_47, %c0_48] : memref<2x2x32xf32, #tpu.memory_space<vmem>>, vector<1x2x32xf32>
    %99 = vector.shape_cast %98 : vector<1x2x32xf32> to vector<2x32xf32>
    %cst_49 = arith.constant dense<0.000000e+00> : vector<2x96xf32>
    %100 = tpu.matmul %99, %4, %cst_49 {dimension_numbers = #tpu.dot_dimension_numbers<[1], [0], [0], [1], [0, 0, 1, 1], [], []>} : vector<2x32xf32>, vector<32x96xf32>, vector<2x96xf32> -> vector<2x96xf32>
    %101 = vector.broadcast %8 : vector<1x96xf32> to vector<2x96xf32>
    %102 = arith.addf %100, %101 : vector<2x96xf32>
    %103 = vector.extract_strided_slice %97 {offsets = [0, 0], sizes = [2, 32], strides = [1, 1]} : vector<2x96xf32> to vector<2x32xf32>
    %104 = vector.extract_strided_slice %102 {offsets = [0, 0], sizes = [2, 32], strides = [1, 1]} : vector<2x96xf32> to vector<2x32xf32>
    %105 = arith.addf %103, %104 : vector<2x32xf32>
    %106 = arith.negf %105 : vector<2x32xf32>
    %107 = math.exp %106 : vector<2x32xf32>
    %cst_50 = arith.constant 1.000000e+00 : f32
    %108 = vector.broadcast %cst_50 : f32 to vector<2x32xf32>
    %109 = arith.addf %108, %107 : vector<2x32xf32>
    %110 = arith.divf %108, %109 : vector<2x32xf32>
    %111 = vector.extract_strided_slice %97 {offsets = [0, 32], sizes = [2, 32], strides = [1, 1]} : vector<2x96xf32> to vector<2x32xf32>
    %112 = vector.extract_strided_slice %102 {offsets = [0, 32], sizes = [2, 32], strides = [1, 1]} : vector<2x96xf32> to vector<2x32xf32>
    %113 = arith.addf %111, %112 : vector<2x32xf32>
    %114 = arith.negf %113 : vector<2x32xf32>
    %115 = math.exp %114 : vector<2x32xf32>
    %cst_51 = arith.constant 1.000000e+00 : f32
    %116 = vector.broadcast %cst_51 : f32 to vector<2x32xf32>
    %117 = arith.addf %116, %115 : vector<2x32xf32>
    %118 = arith.divf %116, %117 : vector<2x32xf32>
    %119 = vector.extract_strided_slice %97 {offsets = [0, 64], sizes = [2, 32], strides = [1, 1]} : vector<2x96xf32> to vector<2x32xf32>
    %120 = vector.extract_strided_slice %102 {offsets = [0, 64], sizes = [2, 32], strides = [1, 1]} : vector<2x96xf32> to vector<2x32xf32>
    %121 = arith.mulf %110, %120 : vector<2x32xf32>
    %122 = arith.addf %119, %121 : vector<2x32xf32>
    %123 = math.tanh %122 : vector<2x32xf32>
    %cst_52 = arith.constant 1.000000e+00 : f32
    %124 = vector.broadcast %cst_52 : f32 to vector<2x32xf32>
    %125 = arith.subf %124, %118 : vector<2x32xf32>
    %126 = arith.mulf %125, %123 : vector<2x32xf32>
    %127 = arith.mulf %118, %99 : vector<2x32xf32>
    %128 = arith.addf %126, %127 : vector<2x32xf32>
    %c0_53 = arith.constant 0 : index
    %129 = arith.index_cast %94 : i32 to index
    %c0_54 = arith.constant 0 : index
    %c0_55 = arith.constant 0 : index
    %130 = vector.load %arg2[%c0_53, %129, %c0_54, %c0_55] : memref<1x2x2x96xf32, #tpu.memory_space<vmem>>, vector<1x1x2x96xf32>
    %131 = vector.shape_cast %130 : vector<1x1x2x96xf32> to vector<2x96xf32>
    %c1_56 = arith.constant 1 : index
    %c0_57 = arith.constant 0 : index
    %c0_58 = arith.constant 0 : index
    %132 = vector.load %arg7[%c1_56, %c0_57, %c0_58] : memref<2x2x32xf32, #tpu.memory_space<vmem>>, vector<1x2x32xf32>
    %133 = vector.shape_cast %132 : vector<1x2x32xf32> to vector<2x32xf32>
    %cst_59 = arith.constant dense<0.000000e+00> : vector<2x96xf32>
    %134 = tpu.matmul %133, %6, %cst_59 {dimension_numbers = #tpu.dot_dimension_numbers<[1], [0], [0], [1], [0, 0, 1, 1], [], []>} : vector<2x32xf32>, vector<32x96xf32>, vector<2x96xf32> -> vector<2x96xf32>
    %135 = vector.broadcast %10 : vector<1x96xf32> to vector<2x96xf32>
    %136 = arith.addf %134, %135 : vector<2x96xf32>
    %137 = vector.extract_strided_slice %131 {offsets = [0, 0], sizes = [2, 32], strides = [1, 1]} : vector<2x96xf32> to vector<2x32xf32>
    %138 = vector.extract_strided_slice %136 {offsets = [0, 0], sizes = [2, 32], strides = [1, 1]} : vector<2x96xf32> to vector<2x32xf32>
    %139 = arith.addf %137, %138 : vector<2x32xf32>
    %140 = arith.negf %139 : vector<2x32xf32>
    %141 = math.exp %140 : vector<2x32xf32>
    %cst_60 = arith.constant 1.000000e+00 : f32
    %142 = vector.broadcast %cst_60 : f32 to vector<2x32xf32>
    %143 = arith.addf %142, %141 : vector<2x32xf32>
    %144 = arith.divf %142, %143 : vector<2x32xf32>
    %145 = vector.extract_strided_slice %131 {offsets = [0, 32], sizes = [2, 32], strides = [1, 1]} : vector<2x96xf32> to vector<2x32xf32>
    %146 = vector.extract_strided_slice %136 {offsets = [0, 32], sizes = [2, 32], strides = [1, 1]} : vector<2x96xf32> to vector<2x32xf32>
    %147 = arith.addf %145, %146 : vector<2x32xf32>
    %148 = arith.negf %147 : vector<2x32xf32>
    %149 = math.exp %148 : vector<2x32xf32>
    %cst_61 = arith.constant 1.000000e+00 : f32
    %150 = vector.broadcast %cst_61 : f32 to vector<2x32xf32>
    %151 = arith.addf %150, %149 : vector<2x32xf32>
    %152 = arith.divf %150, %151 : vector<2x32xf32>
    %153 = vector.extract_strided_slice %131 {offsets = [0, 64], sizes = [2, 32], strides = [1, 1]} : vector<2x96xf32> to vector<2x32xf32>
    %154 = vector.extract_strided_slice %136 {offsets = [0, 64], sizes = [2, 32], strides = [1, 1]} : vector<2x96xf32> to vector<2x32xf32>
    %155 = arith.mulf %144, %154 : vector<2x32xf32>
    %156 = arith.addf %153, %155 : vector<2x32xf32>
    %157 = math.tanh %156 : vector<2x32xf32>
    %cst_62 = arith.constant 1.000000e+00 : f32
    %158 = vector.broadcast %cst_62 : f32 to vector<2x32xf32>
    %159 = arith.subf %158, %152 : vector<2x32xf32>
    %160 = arith.mulf %159, %157 : vector<2x32xf32>
    %161 = arith.mulf %152, %133 : vector<2x32xf32>
    %162 = arith.addf %160, %161 : vector<2x32xf32>
    %c0_63 = arith.constant 0 : index
    %c0_64 = arith.constant 0 : index
    %c0_65 = arith.constant 0 : index
    %163 = vector.load %arg7[%c0_63, %c0_64, %c0_65] : memref<2x2x32xf32, #tpu.memory_space<vmem>>, vector<1x2x32xf32>
    %164 = vector.shape_cast %163 : vector<1x2x32xf32> to vector<2x32xf32>
    %165 = vector.shape_cast %128 : vector<2x32xf32> to vector<1x2x32xf32>
    tpu.vector_store %arg7[%c0_63, %c0_64, %c0_65], %165 {strides = array<i32>} : memref<2x2x32xf32, #tpu.memory_space<vmem>>, vector<1x2x32xf32>,
    %c1_66 = arith.constant 1 : index
    %c0_67 = arith.constant 0 : index
    %c0_68 = arith.constant 0 : index
    %166 = vector.load %arg7[%c1_66, %c0_67, %c0_68] : memref<2x2x32xf32, #tpu.memory_space<vmem>>, vector<1x2x32xf32>
    %167 = vector.shape_cast %166 : vector<1x2x32xf32> to vector<2x32xf32>
    %168 = vector.shape_cast %162 : vector<2x32xf32> to vector<1x2x32xf32>
    tpu.vector_store %arg7[%c1_66, %c0_67, %c0_68], %168 {strides = array<i32>} : memref<2x2x32xf32, #tpu.memory_space<vmem>>, vector<1x2x32xf32>,
    %169 = arith.index_cast %c1_i32_41 : i32 to index
    %c0_69 = arith.constant 0 : index
    %c0_70 = arith.constant 0 : index
    %170 = vector.load %arg5[%169, %c0_69, %c0_70] : memref<2x2x32xf32, #tpu.memory_space<vmem>>, vector<1x2x32xf32>
    %171 = vector.shape_cast %170 : vector<1x2x32xf32> to vector<2x32xf32>
    %172 = vector.shape_cast %128 : vector<2x32xf32> to vector<1x2x32xf32>
    tpu.vector_store %arg5[%169, %c0_69, %c0_70], %172 {strides = array<i32>} : memref<2x2x32xf32, #tpu.memory_space<vmem>>, vector<1x2x32xf32>,
    %173 = arith.index_cast %94 : i32 to index
    %c0_71 = arith.constant 0 : index
    %c0_72 = arith.constant 0 : index
    %174 = vector.load %arg6[%173, %c0_71, %c0_72] : memref<2x2x32xf32, #tpu.memory_space<vmem>>, vector<1x2x32xf32>
    %175 = vector.shape_cast %174 : vector<1x2x32xf32> to vector<2x32xf32>
    %176 = vector.shape_cast %162 : vector<2x32xf32> to vector<1x2x32xf32>
    tpu.vector_store %arg6[%173, %c0_71, %c0_72], %176 {strides = array<i32>} : memref<2x2x32xf32, #tpu.memory_space<vmem>>, vector<1x2x32xf32>,
    %c2_i32 = arith.constant 2 : i32
    return
  }
  func.func @transform_0(%arg0: i32) -> (i32, i32, i32, i32) {
    %c0_i32 = arith.constant 0 : i32
    %c0_i32_0 = arith.constant 0 : i32
    %c0_i32_1 = arith.constant 0 : i32
    %c0_i32_2 = arith.constant 0 : i32
    return %c0_i32, %arg0, %c0_i32_0, %c0_i32_1 : i32, i32, i32, i32
  }
  func.func @transform_1(%arg0: i32) -> (i32, i32, i32, i32) {
    %c0_i32 = arith.constant 0 : i32
    %0 = arith.subi %c0_i32, %arg0 : i32
    %c1_i32 = arith.constant 1 : i32
    %c0_i32_0 = arith.constant 0 : i32
    %c0_i32_1 = arith.constant 0 : i32
    %c0_i32_2 = arith.constant 0 : i32
    return %c1_i32, %0, %c0_i32_0, %c0_i32_1 : i32, i32, i32, i32
  }
  func.func @transform_2(%arg0: i32) -> (i32, i32, i32) {
    %c0_i32 = arith.constant 0 : i32
    %c0_i32_0 = arith.constant 0 : i32
    %c0_i32_1 = arith.constant 0 : i32
    %c0_i32_2 = arith.constant 0 : i32
    return %c0_i32, %c0_i32_0, %c0_i32_1 : i32, i32, i32
  }
  func.func @transform_3(%arg0: i32) -> (i32, i32, i32) {
    %c0_i32 = arith.constant 0 : i32
    %c0_i32_0 = arith.constant 0 : i32
    %c0_i32_1 = arith.constant 0 : i32
    %c0_i32_2 = arith.constant 0 : i32
    return %c0_i32, %c0_i32_0, %c0_i32_1 : i32, i32, i32
  }
  func.func @transform_4(%arg0: i32) -> (i32, i32, i32) {
    %c0_i32 = arith.constant 0 : i32
    %c0_i32_0 = arith.constant 0 : i32
    %c0_i32_1 = arith.constant 0 : i32
    return %arg0, %c0_i32, %c0_i32_0 : i32, i32, i32
  }
  func.func @transform_5(%arg0: i32) -> (i32, i32, i32) {
    %c0_i32 = arith.constant 0 : i32
    %0 = arith.subi %c0_i32, %arg0 : i32
    %c0_i32_0 = arith.constant 0 : i32
    %c0_i32_1 = arith.constant 0 : i32
    %c0_i32_2 = arith.constant 0 : i32
    return %0, %c0_i32_0, %c0_i32_1 : i32, i32, i32
  }
}

module attributes {stable_mosaic.version = 11 : i64} {
  func.func @_bigru_rec_kernel(%arg0: i32, %arg1: memref<1x1x2x96xf32, #tpu.memory_space<vmem>>, %arg2: memref<1x1x2x96xf32, #tpu.memory_space<vmem>>, %arg3: memref<2x32x96xf32, #tpu.memory_space<vmem>>, %arg4: memref<2x1x96xf32, #tpu.memory_space<vmem>>, %arg5: memref<1x2x32xf32, #tpu.memory_space<vmem>>, %arg6: memref<1x2x32xf32, #tpu.memory_space<vmem>>, %arg7: memref<2x2x32xf32, #tpu.memory_space<vmem>>) attributes {dimension_semantics = [#tpu.dimension_semantics<arbitrary>], iteration_bounds = array<i64: 1>, scalar_prefetch = 0 : i64, scratch_operands = 1 : i64, tpu.core_type = #tpu.core_type<tc>, window_params = [{transform_indices = @transform_0, window_bounds = array<i64: 1, 1, 2, 96>}, {transform_indices = @transform_1, window_bounds = array<i64: 1, 1, 2, 96>}, {pipeline_mode = #tpu.pipeline_mode<synchronous>, transform_indices = @transform_2, window_bounds = array<i64: 2, 32, 96>}, {pipeline_mode = #tpu.pipeline_mode<synchronous>, transform_indices = @transform_3, window_bounds = array<i64: 2, 1, 96>}, {transform_indices = @transform_4, window_bounds = array<i64: 1, 2, 32>}, {transform_indices = @transform_5, window_bounds = array<i64: 1, 2, 32>}]} {
    %c0_i32 = arith.constant 0 : i32
    %0 = arith.cmpi eq, %arg0, %c0_i32 : i32
    %1 = arith.extui %0 : i1 to i32
    %c0_i32_0 = arith.constant 0 : i32
    %2 = arith.cmpi ne, %1, %c0_i32_0 : i32
    scf.if %2 {
      %cst_42 = arith.constant 0.000000e+00 : f32
      %94 = vector.broadcast %cst_42 : f32 to vector<2x2x32xf32>
      %c0_43 = arith.constant 0 : index
      %c0_44 = arith.constant 0 : index
      %c0_45 = arith.constant 0 : index
      %95 = vector.load %arg7[%c0_43, %c0_44, %c0_45] : memref<2x2x32xf32, #tpu.memory_space<vmem>>, vector<2x2x32xf32>
      tpu.vector_store %arg7[%c0_43, %c0_44, %c0_45], %94 {strides = array<i32>} : memref<2x2x32xf32, #tpu.memory_space<vmem>>, vector<2x2x32xf32>,
    } else {
    }
    %c0 = arith.constant 0 : index
    %c0_1 = arith.constant 0 : index
    %c0_2 = arith.constant 0 : index
    %3 = vector.load %arg3[%c0, %c0_1, %c0_2] : memref<2x32x96xf32, #tpu.memory_space<vmem>>, vector<1x32x96xf32>
    %4 = vector.shape_cast %3 : vector<1x32x96xf32> to vector<32x96xf32>
    %c1 = arith.constant 1 : index
    %c0_3 = arith.constant 0 : index
    %c0_4 = arith.constant 0 : index
    %5 = vector.load %arg3[%c1, %c0_3, %c0_4] : memref<2x32x96xf32, #tpu.memory_space<vmem>>, vector<1x32x96xf32>
    %6 = vector.shape_cast %5 : vector<1x32x96xf32> to vector<32x96xf32>
    %c0_5 = arith.constant 0 : index
    %c0_6 = arith.constant 0 : index
    %c0_7 = arith.constant 0 : index
    %7 = vector.load %arg4[%c0_5, %c0_6, %c0_7] : memref<2x1x96xf32, #tpu.memory_space<vmem>>, vector<1x1x96xf32>
    %8 = vector.shape_cast %7 : vector<1x1x96xf32> to vector<1x96xf32>
    %c1_8 = arith.constant 1 : index
    %c0_9 = arith.constant 0 : index
    %c0_10 = arith.constant 0 : index
    %9 = vector.load %arg4[%c1_8, %c0_9, %c0_10] : memref<2x1x96xf32, #tpu.memory_space<vmem>>, vector<1x1x96xf32>
    %10 = vector.shape_cast %9 : vector<1x1x96xf32> to vector<1x96xf32>
    %c0_i32_11 = arith.constant 0 : i32
    %c0_i32_12 = arith.constant 0 : i32
    %11 = arith.subi %c0_i32_12, %c0_i32_11 : i32
    %c0_13 = arith.constant 0 : index
    %12 = arith.index_cast %c0_i32_11 : i32 to index
    %c0_14 = arith.constant 0 : index
    %c0_15 = arith.constant 0 : index
    %13 = vector.load %arg1[%c0_13, %12, %c0_14, %c0_15] : memref<1x1x2x96xf32, #tpu.memory_space<vmem>>, vector<1x1x2x96xf32>
    %14 = vector.shape_cast %13 : vector<1x1x2x96xf32> to vector<2x96xf32>
    %c0_16 = arith.constant 0 : index
    %c0_17 = arith.constant 0 : index
    %c0_18 = arith.constant 0 : index
    %15 = vector.load %arg7[%c0_16, %c0_17, %c0_18] : memref<2x2x32xf32, #tpu.memory_space<vmem>>, vector<1x2x32xf32>
    %16 = vector.shape_cast %15 : vector<1x2x32xf32> to vector<2x32xf32>
    %cst = arith.constant dense<0.000000e+00> : vector<2x96xf32>
    %17 = tpu.matmul %16, %4, %cst {dimension_numbers = #tpu.dot_dimension_numbers<[1], [0], [0], [1], [0, 0, 1, 1], [], []>} : vector<2x32xf32>, vector<32x96xf32>, vector<2x96xf32> -> vector<2x96xf32>
    %18 = vector.broadcast %8 : vector<1x96xf32> to vector<2x96xf32>
    %19 = arith.addf %17, %18 : vector<2x96xf32>
    %20 = vector.extract_strided_slice %14 {offsets = [0, 0], sizes = [2, 32], strides = [1, 1]} : vector<2x96xf32> to vector<2x32xf32>
    %21 = vector.extract_strided_slice %19 {offsets = [0, 0], sizes = [2, 32], strides = [1, 1]} : vector<2x96xf32> to vector<2x32xf32>
    %22 = arith.addf %20, %21 : vector<2x32xf32>
    %23 = arith.negf %22 : vector<2x32xf32>
    %24 = math.exp %23 : vector<2x32xf32>
    %cst_19 = arith.constant 1.000000e+00 : f32
    %25 = vector.broadcast %cst_19 : f32 to vector<2x32xf32>
    %26 = arith.addf %25, %24 : vector<2x32xf32>
    %27 = arith.divf %25, %26 : vector<2x32xf32>
    %28 = vector.extract_strided_slice %14 {offsets = [0, 32], sizes = [2, 32], strides = [1, 1]} : vector<2x96xf32> to vector<2x32xf32>
    %29 = vector.extract_strided_slice %19 {offsets = [0, 32], sizes = [2, 32], strides = [1, 1]} : vector<2x96xf32> to vector<2x32xf32>
    %30 = arith.addf %28, %29 : vector<2x32xf32>
    %31 = arith.negf %30 : vector<2x32xf32>
    %32 = math.exp %31 : vector<2x32xf32>
    %cst_20 = arith.constant 1.000000e+00 : f32
    %33 = vector.broadcast %cst_20 : f32 to vector<2x32xf32>
    %34 = arith.addf %33, %32 : vector<2x32xf32>
    %35 = arith.divf %33, %34 : vector<2x32xf32>
    %36 = vector.extract_strided_slice %14 {offsets = [0, 64], sizes = [2, 32], strides = [1, 1]} : vector<2x96xf32> to vector<2x32xf32>
    %37 = vector.extract_strided_slice %19 {offsets = [0, 64], sizes = [2, 32], strides = [1, 1]} : vector<2x96xf32> to vector<2x32xf32>
    %38 = arith.mulf %27, %37 : vector<2x32xf32>
    %39 = arith.addf %36, %38 : vector<2x32xf32>
    %40 = math.tanh %39 : vector<2x32xf32>
    %cst_21 = arith.constant 1.000000e+00 : f32
    %41 = vector.broadcast %cst_21 : f32 to vector<2x32xf32>
    %42 = arith.subf %41, %35 : vector<2x32xf32>
    %43 = arith.mulf %42, %40 : vector<2x32xf32>
    %44 = arith.mulf %35, %16 : vector<2x32xf32>
    %45 = arith.addf %43, %44 : vector<2x32xf32>
    %c0_22 = arith.constant 0 : index
    %46 = arith.index_cast %11 : i32 to index
    %c0_23 = arith.constant 0 : index
    %c0_24 = arith.constant 0 : index
    %47 = vector.load %arg2[%c0_22, %46, %c0_23, %c0_24] : memref<1x1x2x96xf32, #tpu.memory_space<vmem>>, vector<1x1x2x96xf32>
    %48 = vector.shape_cast %47 : vector<1x1x2x96xf32> to vector<2x96xf32>
    %c1_25 = arith.constant 1 : index
    %c0_26 = arith.constant 0 : index
    %c0_27 = arith.constant 0 : index
    %49 = vector.load %arg7[%c1_25, %c0_26, %c0_27] : memref<2x2x32xf32, #tpu.memory_space<vmem>>, vector<1x2x32xf32>
    %50 = vector.shape_cast %49 : vector<1x2x32xf32> to vector<2x32xf32>
    %cst_28 = arith.constant dense<0.000000e+00> : vector<2x96xf32>
    %51 = tpu.matmul %50, %6, %cst_28 {dimension_numbers = #tpu.dot_dimension_numbers<[1], [0], [0], [1], [0, 0, 1, 1], [], []>} : vector<2x32xf32>, vector<32x96xf32>, vector<2x96xf32> -> vector<2x96xf32>
    %52 = vector.broadcast %10 : vector<1x96xf32> to vector<2x96xf32>
    %53 = arith.addf %51, %52 : vector<2x96xf32>
    %54 = vector.extract_strided_slice %48 {offsets = [0, 0], sizes = [2, 32], strides = [1, 1]} : vector<2x96xf32> to vector<2x32xf32>
    %55 = vector.extract_strided_slice %53 {offsets = [0, 0], sizes = [2, 32], strides = [1, 1]} : vector<2x96xf32> to vector<2x32xf32>
    %56 = arith.addf %54, %55 : vector<2x32xf32>
    %57 = arith.negf %56 : vector<2x32xf32>
    %58 = math.exp %57 : vector<2x32xf32>
    %cst_29 = arith.constant 1.000000e+00 : f32
    %59 = vector.broadcast %cst_29 : f32 to vector<2x32xf32>
    %60 = arith.addf %59, %58 : vector<2x32xf32>
    %61 = arith.divf %59, %60 : vector<2x32xf32>
    %62 = vector.extract_strided_slice %48 {offsets = [0, 32], sizes = [2, 32], strides = [1, 1]} : vector<2x96xf32> to vector<2x32xf32>
    %63 = vector.extract_strided_slice %53 {offsets = [0, 32], sizes = [2, 32], strides = [1, 1]} : vector<2x96xf32> to vector<2x32xf32>
    %64 = arith.addf %62, %63 : vector<2x32xf32>
    %65 = arith.negf %64 : vector<2x32xf32>
    %66 = math.exp %65 : vector<2x32xf32>
    %cst_30 = arith.constant 1.000000e+00 : f32
    %67 = vector.broadcast %cst_30 : f32 to vector<2x32xf32>
    %68 = arith.addf %67, %66 : vector<2x32xf32>
    %69 = arith.divf %67, %68 : vector<2x32xf32>
    %70 = vector.extract_strided_slice %48 {offsets = [0, 64], sizes = [2, 32], strides = [1, 1]} : vector<2x96xf32> to vector<2x32xf32>
    %71 = vector.extract_strided_slice %53 {offsets = [0, 64], sizes = [2, 32], strides = [1, 1]} : vector<2x96xf32> to vector<2x32xf32>
    %72 = arith.mulf %61, %71 : vector<2x32xf32>
    %73 = arith.addf %70, %72 : vector<2x32xf32>
    %74 = math.tanh %73 : vector<2x32xf32>
    %cst_31 = arith.constant 1.000000e+00 : f32
    %75 = vector.broadcast %cst_31 : f32 to vector<2x32xf32>
    %76 = arith.subf %75, %69 : vector<2x32xf32>
    %77 = arith.mulf %76, %74 : vector<2x32xf32>
    %78 = arith.mulf %69, %50 : vector<2x32xf32>
    %79 = arith.addf %77, %78 : vector<2x32xf32>
    %c0_32 = arith.constant 0 : index
    %c0_33 = arith.constant 0 : index
    %c0_34 = arith.constant 0 : index
    %80 = vector.load %arg7[%c0_32, %c0_33, %c0_34] : memref<2x2x32xf32, #tpu.memory_space<vmem>>, vector<1x2x32xf32>
    %81 = vector.shape_cast %80 : vector<1x2x32xf32> to vector<2x32xf32>
    %82 = vector.shape_cast %45 : vector<2x32xf32> to vector<1x2x32xf32>
    tpu.vector_store %arg7[%c0_32, %c0_33, %c0_34], %82 {strides = array<i32>} : memref<2x2x32xf32, #tpu.memory_space<vmem>>, vector<1x2x32xf32>,
    %c1_35 = arith.constant 1 : index
    %c0_36 = arith.constant 0 : index
    %c0_37 = arith.constant 0 : index
    %83 = vector.load %arg7[%c1_35, %c0_36, %c0_37] : memref<2x2x32xf32, #tpu.memory_space<vmem>>, vector<1x2x32xf32>
    %84 = vector.shape_cast %83 : vector<1x2x32xf32> to vector<2x32xf32>
    %85 = vector.shape_cast %79 : vector<2x32xf32> to vector<1x2x32xf32>
    tpu.vector_store %arg7[%c1_35, %c0_36, %c0_37], %85 {strides = array<i32>} : memref<2x2x32xf32, #tpu.memory_space<vmem>>, vector<1x2x32xf32>,
    %86 = arith.index_cast %c0_i32_11 : i32 to index
    %c0_38 = arith.constant 0 : index
    %c0_39 = arith.constant 0 : index
    %87 = vector.load %arg5[%86, %c0_38, %c0_39] : memref<1x2x32xf32, #tpu.memory_space<vmem>>, vector<1x2x32xf32>
    %88 = vector.shape_cast %87 : vector<1x2x32xf32> to vector<2x32xf32>
    %89 = vector.shape_cast %45 : vector<2x32xf32> to vector<1x2x32xf32>
    tpu.vector_store %arg5[%86, %c0_38, %c0_39], %89 {strides = array<i32>} : memref<1x2x32xf32, #tpu.memory_space<vmem>>, vector<1x2x32xf32>,
    %90 = arith.index_cast %11 : i32 to index
    %c0_40 = arith.constant 0 : index
    %c0_41 = arith.constant 0 : index
    %91 = vector.load %arg6[%90, %c0_40, %c0_41] : memref<1x2x32xf32, #tpu.memory_space<vmem>>, vector<1x2x32xf32>
    %92 = vector.shape_cast %91 : vector<1x2x32xf32> to vector<2x32xf32>
    %93 = vector.shape_cast %79 : vector<2x32xf32> to vector<1x2x32xf32>
    tpu.vector_store %arg6[%90, %c0_40, %c0_41], %93 {strides = array<i32>} : memref<1x2x32xf32, #tpu.memory_space<vmem>>, vector<1x2x32xf32>,
    %c1_i32 = arith.constant 1 : i32
    return
  }
  func.func @transform_0(%arg0: i32) -> (i32, i32, i32, i32) {
    %c0_i32 = arith.constant 0 : i32
    %c0_i32_0 = arith.constant 0 : i32
    %c0_i32_1 = arith.constant 0 : i32
    %c0_i32_2 = arith.constant 0 : i32
    return %c0_i32, %arg0, %c0_i32_0, %c0_i32_1 : i32, i32, i32, i32
  }
  func.func @transform_1(%arg0: i32) -> (i32, i32, i32, i32) {
    %c0_i32 = arith.constant 0 : i32
    %0 = arith.subi %c0_i32, %arg0 : i32
    %c1_i32 = arith.constant 1 : i32
    %c0_i32_0 = arith.constant 0 : i32
    %c0_i32_1 = arith.constant 0 : i32
    %c0_i32_2 = arith.constant 0 : i32
    return %c1_i32, %0, %c0_i32_0, %c0_i32_1 : i32, i32, i32, i32
  }
  func.func @transform_2(%arg0: i32) -> (i32, i32, i32) {
    %c0_i32 = arith.constant 0 : i32
    %c0_i32_0 = arith.constant 0 : i32
    %c0_i32_1 = arith.constant 0 : i32
    %c0_i32_2 = arith.constant 0 : i32
    return %c0_i32, %c0_i32_0, %c0_i32_1 : i32, i32, i32
  }
  func.func @transform_3(%arg0: i32) -> (i32, i32, i32) {
    %c0_i32 = arith.constant 0 : i32
    %c0_i32_0 = arith.constant 0 : i32
    %c0_i32_1 = arith.constant 0 : i32
    %c0_i32_2 = arith.constant 0 : i32
    return %c0_i32, %c0_i32_0, %c0_i32_1 : i32, i32, i32
  }
  func.func @transform_4(%arg0: i32) -> (i32, i32, i32) {
    %c0_i32 = arith.constant 0 : i32
    %c0_i32_0 = arith.constant 0 : i32
    %c0_i32_1 = arith.constant 0 : i32
    return %arg0, %c0_i32, %c0_i32_0 : i32, i32, i32
  }
  func.func @transform_5(%arg0: i32) -> (i32, i32, i32) {
    %c0_i32 = arith.constant 0 : i32
    %0 = arith.subi %c0_i32, %arg0 : i32
    %c0_i32_0 = arith.constant 0 : i32
    %c0_i32_1 = arith.constant 0 : i32
    %c0_i32_2 = arith.constant 0 : i32
    return %0, %c0_i32_0, %c0_i32_1 : i32, i32, i32
  }
}

module attributes {stable_mosaic.version = 11 : i64} {
  func.func @_proj_kernel(%arg0: i32, %arg1: i32, %arg2: memref<4x64xf32, #tpu.memory_space<vmem>>, %arg3: memref<1x64x96xbf16, #tpu.memory_space<vmem>>, %arg4: memref<1x1x96xf32, #tpu.memory_space<vmem>>, %arg5: memref<1x4x96xf32, #tpu.memory_space<vmem>>) attributes {dimension_semantics = [#tpu.dimension_semantics<parallel>, #tpu.dimension_semantics<parallel>], iteration_bounds = array<i64: 2, 1>, scalar_prefetch = 0 : i64, scratch_operands = 0 : i64, tpu.core_type = #tpu.core_type<tc>, window_params = [{transform_indices = @transform_0, window_bounds = array<i64: 4, 64>}, {transform_indices = @transform_1, window_bounds = array<i64: 1, 64, 96>}, {transform_indices = @transform_2, window_bounds = array<i64: 1, 1, 96>}, {transform_indices = @transform_3, window_bounds = array<i64: 1, 4, 96>}]} {
    %c0 = arith.constant 0 : index
    %c0_0 = arith.constant 0 : index
    %0 = vector.load %arg2[%c0, %c0_0] : memref<4x64xf32, #tpu.memory_space<vmem>>, vector<4x64xf32>
    %1 = arith.truncf %0 : vector<4x64xf32> to vector<4x64xbf16>
    %c0_1 = arith.constant 0 : index
    %c0_2 = arith.constant 0 : index
    %c0_3 = arith.constant 0 : index
    %2 = vector.load %arg3[%c0_1, %c0_2, %c0_3] : memref<1x64x96xbf16, #tpu.memory_space<vmem>>, vector<1x64x96xbf16>
    %3 = vector.shape_cast %2 : vector<1x64x96xbf16> to vector<64x96xbf16>
    %cst = arith.constant dense<0.000000e+00> : vector<4x96xf32>
    %4 = tpu.matmul %1, %3, %cst {dimension_numbers = #tpu.dot_dimension_numbers<[1], [0], [0], [1], [0, 0, 1, 1], [], []>} : vector<4x64xbf16>, vector<64x96xbf16>, vector<4x96xf32> -> vector<4x96xf32>
    %c0_4 = arith.constant 0 : index
    %c0_5 = arith.constant 0 : index
    %c0_6 = arith.constant 0 : index
    %5 = vector.load %arg4[%c0_4, %c0_5, %c0_6] : memref<1x1x96xf32, #tpu.memory_space<vmem>>, vector<1x1x96xf32>
    %6 = vector.shape_cast %5 : vector<1x1x96xf32> to vector<1x96xf32>
    %7 = vector.broadcast %6 : vector<1x96xf32> to vector<4x96xf32>
    %8 = arith.addf %4, %7 : vector<4x96xf32>
    %c0_7 = arith.constant 0 : index
    %c0_8 = arith.constant 0 : index
    %c0_9 = arith.constant 0 : index
    %9 = vector.load %arg5[%c0_7, %c0_8, %c0_9] : memref<1x4x96xf32, #tpu.memory_space<vmem>>, vector<1x4x96xf32>
    %10 = vector.shape_cast %9 : vector<1x4x96xf32> to vector<4x96xf32>
    %11 = vector.shape_cast %8 : vector<4x96xf32> to vector<1x4x96xf32>
    tpu.vector_store %arg5[%c0_7, %c0_8, %c0_9], %11 {strides = array<i32>} : memref<1x4x96xf32, #tpu.memory_space<vmem>>, vector<1x4x96xf32>,
    return
  }
  func.func @transform_0(%arg0: i32, %arg1: i32) -> (i32, i32) {
    %c0_i32 = arith.constant 0 : i32
    %c0_i32_0 = arith.constant 0 : i32
    return %arg1, %c0_i32 : i32, i32
  }
  func.func @transform_1(%arg0: i32, %arg1: i32) -> (i32, i32, i32) {
    %c0_i32 = arith.constant 0 : i32
    %c0_i32_0 = arith.constant 0 : i32
    %c0_i32_1 = arith.constant 0 : i32
    return %arg0, %c0_i32, %c0_i32_0 : i32, i32, i32
  }
  func.func @transform_2(%arg0: i32, %arg1: i32) -> (i32, i32, i32) {
    %c0_i32 = arith.constant 0 : i32
    %c0_i32_0 = arith.constant 0 : i32
    %c0_i32_1 = arith.constant 0 : i32
    return %arg0, %c0_i32, %c0_i32_0 : i32, i32, i32
  }
  func.func @transform_3(%arg0: i32, %arg1: i32) -> (i32, i32, i32) {
    %c0_i32 = arith.constant 0 : i32
    %c0_i32_0 = arith.constant 0 : i32
    return %arg0, %arg1, %c0_i32 : i32, i32, i32
  }
}

module attributes {stable_mosaic.version = 11 : i64} {
  func.func @_proj_kernel(%arg0: i32, %arg1: i32, %arg2: memref<2x128xf32, #tpu.memory_space<vmem>>, %arg3: memref<1x128x96xbf16, #tpu.memory_space<vmem>>, %arg4: memref<1x1x96xf32, #tpu.memory_space<vmem>>, %arg5: memref<1x2x96xf32, #tpu.memory_space<vmem>>) attributes {dimension_semantics = [#tpu.dimension_semantics<parallel>, #tpu.dimension_semantics<parallel>], iteration_bounds = array<i64: 2, 1>, scalar_prefetch = 0 : i64, scratch_operands = 0 : i64, tpu.core_type = #tpu.core_type<tc>, window_params = [{transform_indices = @transform_0, window_bounds = array<i64: 2, 128>}, {transform_indices = @transform_1, window_bounds = array<i64: 1, 128, 96>}, {transform_indices = @transform_2, window_bounds = array<i64: 1, 1, 96>}, {transform_indices = @transform_3, window_bounds = array<i64: 1, 2, 96>}]} {
    %c0 = arith.constant 0 : index
    %c0_0 = arith.constant 0 : index
    %0 = vector.load %arg2[%c0, %c0_0] : memref<2x128xf32, #tpu.memory_space<vmem>>, vector<2x128xf32>
    %1 = arith.truncf %0 : vector<2x128xf32> to vector<2x128xbf16>
    %c0_1 = arith.constant 0 : index
    %c0_2 = arith.constant 0 : index
    %c0_3 = arith.constant 0 : index
    %2 = vector.load %arg3[%c0_1, %c0_2, %c0_3] : memref<1x128x96xbf16, #tpu.memory_space<vmem>>, vector<1x128x96xbf16>
    %3 = vector.shape_cast %2 : vector<1x128x96xbf16> to vector<128x96xbf16>
    %cst = arith.constant dense<0.000000e+00> : vector<2x96xf32>
    %4 = tpu.matmul %1, %3, %cst {dimension_numbers = #tpu.dot_dimension_numbers<[1], [0], [0], [1], [0, 0, 1, 1], [], []>} : vector<2x128xbf16>, vector<128x96xbf16>, vector<2x96xf32> -> vector<2x96xf32>
    %c0_4 = arith.constant 0 : index
    %c0_5 = arith.constant 0 : index
    %c0_6 = arith.constant 0 : index
    %5 = vector.load %arg4[%c0_4, %c0_5, %c0_6] : memref<1x1x96xf32, #tpu.memory_space<vmem>>, vector<1x1x96xf32>
    %6 = vector.shape_cast %5 : vector<1x1x96xf32> to vector<1x96xf32>
    %7 = vector.broadcast %6 : vector<1x96xf32> to vector<2x96xf32>
    %8 = arith.addf %4, %7 : vector<2x96xf32>
    %c0_7 = arith.constant 0 : index
    %c0_8 = arith.constant 0 : index
    %c0_9 = arith.constant 0 : index
    %9 = vector.load %arg5[%c0_7, %c0_8, %c0_9] : memref<1x2x96xf32, #tpu.memory_space<vmem>>, vector<1x2x96xf32>
    %10 = vector.shape_cast %9 : vector<1x2x96xf32> to vector<2x96xf32>
    %11 = vector.shape_cast %8 : vector<2x96xf32> to vector<1x2x96xf32>
    tpu.vector_store %arg5[%c0_7, %c0_8, %c0_9], %11 {strides = array<i32>} : memref<1x2x96xf32, #tpu.memory_space<vmem>>, vector<1x2x96xf32>,
    return
  }
  func.func @transform_0(%arg0: i32, %arg1: i32) -> (i32, i32) {
    %c0_i32 = arith.constant 0 : i32
    %c0_i32_0 = arith.constant 0 : i32
    return %arg1, %c0_i32 : i32, i32
  }
  func.func @transform_1(%arg0: i32, %arg1: i32) -> (i32, i32, i32) {
    %c0_i32 = arith.constant 0 : i32
    %c0_i32_0 = arith.constant 0 : i32
    %c0_i32_1 = arith.constant 0 : i32
    return %arg0, %c0_i32, %c0_i32_0 : i32, i32, i32
  }
  func.func @transform_2(%arg0: i32, %arg1: i32) -> (i32, i32, i32) {
    %c0_i32 = arith.constant 0 : i32
    %c0_i32_0 = arith.constant 0 : i32
    %c0_i32_1 = arith.constant 0 : i32
    return %arg0, %c0_i32, %c0_i32_0 : i32, i32, i32
  }
  func.func @transform_3(%arg0: i32, %arg1: i32) -> (i32, i32, i32) {
    %c0_i32 = arith.constant 0 : i32
    %c0_i32_0 = arith.constant 0 : i32
    return %arg0, %arg1, %c0_i32 : i32, i32, i32
  }
}

module attributes {stable_mosaic.version = 11 : i64} {
  func.func @_proj_kernel(%arg0: i32, %arg1: i32, %arg2: memref<2x64xf32, #tpu.memory_space<vmem>>, %arg3: memref<1x64x96xbf16, #tpu.memory_space<vmem>>, %arg4: memref<1x1x96xf32, #tpu.memory_space<vmem>>, %arg5: memref<1x2x96xf32, #tpu.memory_space<vmem>>) attributes {dimension_semantics = [#tpu.dimension_semantics<parallel>, #tpu.dimension_semantics<parallel>], iteration_bounds = array<i64: 2, 1>, scalar_prefetch = 0 : i64, scratch_operands = 0 : i64, tpu.core_type = #tpu.core_type<tc>, window_params = [{transform_indices = @transform_0, window_bounds = array<i64: 2, 64>}, {transform_indices = @transform_1, window_bounds = array<i64: 1, 64, 96>}, {transform_indices = @transform_2, window_bounds = array<i64: 1, 1, 96>}, {transform_indices = @transform_3, window_bounds = array<i64: 1, 2, 96>}]} {
    %c0 = arith.constant 0 : index
    %c0_0 = arith.constant 0 : index
    %0 = vector.load %arg2[%c0, %c0_0] : memref<2x64xf32, #tpu.memory_space<vmem>>, vector<2x64xf32>
    %1 = arith.truncf %0 : vector<2x64xf32> to vector<2x64xbf16>
    %c0_1 = arith.constant 0 : index
    %c0_2 = arith.constant 0 : index
    %c0_3 = arith.constant 0 : index
    %2 = vector.load %arg3[%c0_1, %c0_2, %c0_3] : memref<1x64x96xbf16, #tpu.memory_space<vmem>>, vector<1x64x96xbf16>
    %3 = vector.shape_cast %2 : vector<1x64x96xbf16> to vector<64x96xbf16>
    %cst = arith.constant dense<0.000000e+00> : vector<2x96xf32>
    %4 = tpu.matmul %1, %3, %cst {dimension_numbers = #tpu.dot_dimension_numbers<[1], [0], [0], [1], [0, 0, 1, 1], [], []>} : vector<2x64xbf16>, vector<64x96xbf16>, vector<2x96xf32> -> vector<2x96xf32>
    %c0_4 = arith.constant 0 : index
    %c0_5 = arith.constant 0 : index
    %c0_6 = arith.constant 0 : index
    %5 = vector.load %arg4[%c0_4, %c0_5, %c0_6] : memref<1x1x96xf32, #tpu.memory_space<vmem>>, vector<1x1x96xf32>
    %6 = vector.shape_cast %5 : vector<1x1x96xf32> to vector<1x96xf32>
    %7 = vector.broadcast %6 : vector<1x96xf32> to vector<2x96xf32>
    %8 = arith.addf %4, %7 : vector<2x96xf32>
    %c0_7 = arith.constant 0 : index
    %c0_8 = arith.constant 0 : index
    %c0_9 = arith.constant 0 : index
    %9 = vector.load %arg5[%c0_7, %c0_8, %c0_9] : memref<1x2x96xf32, #tpu.memory_space<vmem>>, vector<1x2x96xf32>
    %10 = vector.shape_cast %9 : vector<1x2x96xf32> to vector<2x96xf32>
    %11 = vector.shape_cast %8 : vector<2x96xf32> to vector<1x2x96xf32>
    tpu.vector_store %arg5[%c0_7, %c0_8, %c0_9], %11 {strides = array<i32>} : memref<1x2x96xf32, #tpu.memory_space<vmem>>, vector<1x2x96xf32>,
    return
  }
  func.func @transform_0(%arg0: i32, %arg1: i32) -> (i32, i32) {
    %c0_i32 = arith.constant 0 : i32
    %c0_i32_0 = arith.constant 0 : i32
    return %arg1, %c0_i32 : i32, i32
  }
  func.func @transform_1(%arg0: i32, %arg1: i32) -> (i32, i32, i32) {
    %c0_i32 = arith.constant 0 : i32
    %c0_i32_0 = arith.constant 0 : i32
    %c0_i32_1 = arith.constant 0 : i32
    return %arg0, %c0_i32, %c0_i32_0 : i32, i32, i32
  }
  func.func @transform_2(%arg0: i32, %arg1: i32) -> (i32, i32, i32) {
    %c0_i32 = arith.constant 0 : i32
    %c0_i32_0 = arith.constant 0 : i32
    %c0_i32_1 = arith.constant 0 : i32
    return %arg0, %c0_i32, %c0_i32_0 : i32, i32, i32
  }
  func.func @transform_3(%arg0: i32, %arg1: i32) -> (i32, i32, i32) {
    %c0_i32 = arith.constant 0 : i32
    %c0_i32_0 = arith.constant 0 : i32
    return %arg0, %arg1, %c0_i32 : i32, i32, i32
  }
}

</mosaic_0001>

<llo_original>
// kernel: listener_forward.15
$region0: #{listener_forward.15}
  #allocation0 [shape = 'u32[]', space=smem, size = 0x4, offset = 0x4, fixed_abs, tag = 'smem constant byte address 0x4 - core index']
  #allocation1 [shape = 'u32[72,128]{1,0:T(1,128)}', space=vmem, size = 0x9000, scoped, tag = 'internal scratch']
  %s0 = inlined_call_operand.vmem [shape: f32[2,18,18,1], index: 0, kind: input, shape index: {}]
  %s1 = inlined_call_operand.vmem [shape: f32[9,1,64], index: 1, kind: input, shape index: {}]
  %s2 = inlined_call_operand.vmem [shape: f32[1,64], index: 2, kind: input, shape index: {}]
  %s3 = inlined_call_operand.vmem [shape: f32[1,64], index: 3, kind: input, shape index: {}]
  %s4 = inlined_call_operand.vmem [shape: f32[1,64], index: 4, kind: input, shape index: {}]
  %s5 = inlined_call_operand.vmem [shape: f32[2,16,16,64], index: 5, kind: output, shape index: {}]
  %s6 = sld [smem:[#allocation0]]
  $region60: #{listener_forward.15} parent=0
    _
  %s8 = ssub.s32 1, %s6
  %s9 = scalar_select 0, %s8, %s6
  loop: start=0, step=1, limit=4
  $region2: #{listener_forward.15} parent=0 // loop_pre_header
    _
  $region3: #{listener_forward.15} parent=0 // loop_header
    %s11 = sphi 0, %s15
    %p12 = scmp.ge.s32.totalorder %s11, 4
    %s21 = sphi 0, %s23
    %s24 = sphi 0, %s21
    %s25 = sphi 0, %s24
    %s41 = sphi 0, %s25
    %s45 = sphi 0, %s45
    %s47 = sphi 0, %s45
    %s48 = sphi 0, %s47
    %s62 = sphi 0, %s48
    %s66 = sphi 0, %s66
    %s68 = sphi 0, %s66
    %s69 = sphi 0, %s68
    %s83 = sphi 0, %s69
    %s87 = sphi 0, %s87
    %s89 = sphi 0, %s87
    %s90 = sphi 0, %s89
    %s104 = sphi 0, %s90
    %s108 = sphi 0, %s108
    %s110 = sphi 0, %s108
    %s111 = sphi 0, %s110
    %s125 = sphi 0, %s111
    %s131 = sphi 0, %s133
    %s134 = sphi 0, %s131
    %s135 = sphi 0, %s134
    %s151 = sphi 0, %s135
  $region4: #{listener_forward.15} parent=0 // loop_header_branch
    %14 = sbr.rel (%p12) target = $region8
  $region5: #{listener_forward.15} parent=0 // loop_body
    %s16 = ssub.s32 %s11, 1
    %s17 = ssub.s32 %s11, 2
    %s18 = sadd.s32 %s11, 1
    %s19 = ssub.s32 %s11, %s18
    %p20 = scmp.eq.s32.totalorder %s19, 0
    %s22 = sadd.s32 %s21, 1
    %s23 = scalar_select %p20, %s21, %s22
    %p26 = pneg %p20
    %p27 = scmp.eq.s32.totalorder %s11, 1
    %p28 = por %p26, %p27
    %p29 = scmp.ne.s32.totalorder %s21, %s24
    %p30 = scmp.eq.s32.totalorder %s11, 0
    %p31 = por %p29, %p30
    %p32 = scmp.ne.s32.totalorder %s21, %s24
    %p33 = scmp.eq.s32.totalorder %s16, 1
    %p34 = por %p32, %p33
    %p35 = scmp.ne.s32.totalorder %s24, %s25
    %p36 = scmp.eq.s32.totalorder %s16, 0
    %p37 = por %p35, %p36
    %p38 = scmp.ne.s32.totalorder %s24, %s25
    %p39 = scmp.eq.s32.totalorder %s17, 1
    %p40 = por %p38, %p39
    %p42 = scmp.ne.s32.totalorder %s25, %s41
    %p43 = scmp.eq.s32.totalorder %s17, 0
    %p44 = por %p42, %p43
    %s46 = sadd.s32 %s45, 1
    %p49 = scmp.eq.s32.totalorder %s11, 1
    %p50 = scmp.ne.s32.totalorder %s45, %s47
    %p51 = scmp.eq.s32.totalorder %s11, 0
    %p52 = por %p50, %p51
    %p53 = scmp.ne.s32.totalorder %s45, %s47
    %p54 = scmp.eq.s32.totalorder %s16, 1
    %p55 = por %p53, %p54
    %p56 = scmp.ne.s32.totalorder %s47, %s48
    %p57 = scmp.eq.s32.totalorder %s16, 0
    %p58 = por %p56, %p57
    %p59 = scmp.ne.s32.totalorder %s47, %s48
    %p60 = scmp.eq.s32.totalorder %s17, 1
    %p61 = por %p59, %p60
    %p63 = scmp.ne.s32.totalorder %s48, %s62
    %p64 = scmp.eq.s32.totalorder %s17, 0
    %p65 = por %p63, %p64
    %s67 = sadd.s32 %s66, 1
    %p70 = scmp.eq.s32.totalorder %s11, 1
    %p71 = scmp.ne.s32.totalorder %s66, %s68
    %p72 = scmp.eq.s32.totalorder %s11, 0
    %p73 = por %p71, %p72
    %p74 = scmp.ne.s32.totalorder %s66, %s68
    %p75 = scmp.eq.s32.totalorder %s16, 1
    %p76 = por %p74, %p75
    %p77 = scmp.ne.s32.totalorder %s68, %s69
    %p78 = scmp.eq.s32.totalorder %s16, 0
    %p79 = por %p77, %p78
    %p80 = scmp.ne.s32.totalorder %s68, %s69
    %p81 = scmp.eq.s32.totalorder %s17, 1
    %p82 = por %p80, %p81
    %p84 = scmp.ne.s32.totalorder %s69, %s83
    %p85 = scmp.eq.s32.totalorder %s17, 0
    %p86 = por %p84, %p85
    %s88 = sadd.s32 %s87, 1
    %p91 = scmp.eq.s32.totalorder %s11, 1
    %p92 = scmp.ne.s32.totalorder %s87, %s89
    %p93 = scmp.eq.s32.totalorder %s11, 0
    %p94 = por %p92, %p93
    %p95 = scmp.ne.s32.totalorder %s87, %s89
    %p96 = scmp.eq.s32.totalorder %s16, 1
    %p97 = por %p95, %p96
    %p98 = scmp.ne.s32.totalorder %s89, %s90
    %p99 = scmp.eq.s32.totalorder %s16, 0
    %p100 = por %p98, %p99
    %p101 = scmp.ne.s32.totalorder %s89, %s90
    %p102 = scmp.eq.s32.totalorder %s17, 1
    %p103 = por %p101, %p102
    %p105 = scmp.ne.s32.totalorder %s90, %s104
    %p106 = scmp.eq.s32.totalorder %s17, 0
    %p107 = por %p105, %p106
    %s109 = sadd.s32 %s108, 1
    %p112 = scmp.eq.s32.totalorder %s11, 1
    %p113 = scmp.ne.s32.totalorder %s108, %s110
    %p114 = scmp.eq.s32.totalorder %s11, 0
    %p115 = por %p113, %p114
    %p116 = scmp.ne.s32.totalorder %s108, %s110
    %p117 = scmp.eq.s32.totalorder %s16, 1
    %p118 = por %p116, %p117
    %p119 = scmp.ne.s32.totalorder %s110, %s111
    %p120 = scmp.eq.s32.totalorder %s16, 0
    %p121 = por %p119, %p120
    %p122 = scmp.ne.s32.totalorder %s110, %s111
    %p123 = scmp.eq.s32.totalorder %s17, 1
    %p124 = por %p122, %p123
    %p126 = scmp.ne.s32.totalorder %s111, %s125
    %p127 = scmp.eq.s32.totalorder %s17, 0
    %p128 = por %p126, %p127
    %s129 = ssub.s32 %s11, %s18
    %p130 = scmp.eq.s32.totalorder %s129, 0
    %s132 = sadd.s32 %s131, 1
    %s133 = scalar_select %p130, %s131, %s132
    %p136 = pneg %p130
    %p137 = scmp.eq.s32.totalorder %s11, 1
    %p138 = por %p136, %p137
    %p139 = scmp.ne.s32.totalorder %s131, %s134
    %p140 = scmp.eq.s32.totalorder %s11, 0
    %p141 = por %p139, %p140
    %p142 = scmp.ne.s32.totalorder %s131, %s134
    %p143 = scmp.eq.s32.totalorder %s16, 1
    %p144 = por %p142, %p143
    %p145 = scmp.ne.s32.totalorder %s134, %s135
    %p146 = scmp.eq.s32.totalorder %s16, 0
    %p147 = por %p145, %p146
    %p148 = scmp.ne.s32.totalorder %s134, %s135
    %p149 = scmp.eq.s32.totalorder %s17, 1
    %p150 = por %p148, %p149
    %p152 = scmp.ne.s32.totalorder %s135, %s151
    %p153 = scmp.eq.s32.totalorder %s17, 0
    %p154 = por %p152, %p153
    %p155 = scmp.le.s32.totalorder 1, %s11
    %p156 = scmp.lt.s32.totalorder %s11, 3
    %p157 = pnand %p155, %p156
    %p158 = pneg %p157
    // Predicated region
    $region9: #{listener_forward.15} parent=5 // pred_check
      _
    $region10: #{listener_forward.15} parent=5 // pred_check_branch
      %160 = sbr.rel (%p157) target = $region12
    $region11: #{listener_forward.15} parent=5 // pred_region
      %s161 = ssub.s32 %s11, 1
      // Predicated region
      $region13: #{listener_forward.15} parent=11 // pred_check
        %p162 = pneg %p58
      $region14: #{listener_forward.15} parent=11 // pred_check_branch
        %164 = sbr.rel (%p162) target = $region16
      $region15: #{listener_forward.15} parent=11 // pred_region
        _
      $region16: #{listener_forward.15} parent=11 // pred_fallthru
        _
      // Predicated region
      $region17: #{listener_forward.15} parent=11 // pred_check
        %p165 = pneg %p79
      $region18: #{listener_forward.15} parent=11 // pred_check_branch
        %167 = sbr.rel (%p165) target = $region20
      $region19: #{listener_forward.15} parent=11 // pred_region
        _
      $region20: #{listener_forward.15} parent=11 // pred_fallthru
        _
      // Predicated region
      $region21: #{listener_forward.15} parent=11 // pred_check
        %p168 = pneg %p100
      $region22: #{listener_forward.15} parent=11 // pred_check_branch
        %170 = sbr.rel (%p168) target = $region24
      $region23: #{listener_forward.15} parent=11 // pred_region
        _
      $region24: #{listener_forward.15} parent=11 // pred_fallthru
        _
      // Predicated region
      $region25: #{listener_forward.15} parent=11 // pred_check
        %p171 = pneg %p121
      $region26: #{listener_forward.15} parent=11 // pred_check_branch
        %173 = sbr.rel (%p171) target = $region28
      $region27: #{listener_forward.15} parent=11 // pred_region
        _
      $region28: #{listener_forward.15} parent=11 // pred_fallthru
        _
    $region12: #{listener_forward.15} parent=5 // pred_fallthru
      _
    %p174 = scmp.lt.s32.totalorder %s11, 2
    // Predicated region
    $region29: #{listener_forward.15} parent=5 // pred_check
      %p175 = pneg %p174
    $region30: #{listener_forward.15} parent=5 // pred_check_branch
      %177 = sbr.rel (%p175) target = $region32
    $region31: #{listener_forward.15} parent=5 // pred_region
      // Predicated region
      $region33: #{listener_forward.15} parent=31 // pred_check
        %p178 = pneg %p31
      $region34: #{listener_forward.15} parent=31 // pred_check_branch
        %180 = sbr.rel (%p178) target = $region36
      $region35: #{listener_forward.15} parent=31 // pred_region
        %p181 = scmp.lt.s32.totalorder %s11, 1
        %s182 = scalar_select %p181, %s11, 1
        %s183 = smul.addr %s182, 54
        %s184 = smul.addr %s183, 8
        %s185 = scalar_lea.vmem %s0, %s184
      $region36: #{listener_forward.15} parent=31 // pred_fallthru
        _
    $region32: #{listener_forward.15} parent=5 // pred_fallthru
      _
    %p186 = scmp.le.s32.totalorder 1, %s11
    %p187 = scmp.lt.s32.totalorder %s11, 3
    %p188 = pnand %p186, %p187
    %p189 = pneg %p188
    // Predicated region
    $region37: #{listener_forward.15} parent=5 // pred_check
      _
    $region38: #{listener_forward.15} parent=5 // pred_check_branch
      %191 = sbr.rel (%p188) target = $region40
    $region39: #{listener_forward.15} parent=5 // pred_region
      %s192 = ssub.s32 %s11, 1
      %p193 = scmp.lt.s32.totalorder %s16, 1
      %s194 = scalar_select %p193, %s16, 1
      %s195 = smul.addr %s194, 54
      %s196 = smul.addr %s195, 8
      %s197 = scalar_lea.vmem %s0, %s196
      %p198 = pneg %p37
      %p199 = pneg %p34
      %p200 = pneg %p58
      %p201 = pneg %p55
      %p202 = pneg %p79
      %p203 = pneg %p76
      %p204 = pneg %p100
      %p205 = pneg %p97
      %p206 = pneg %p121
      %p207 = pneg %p118
      %p208 = pneg %p147
      %p209 = pneg %p144
      %p210 = scmp.lt.s32.totalorder %s16, 1
      %s211 = scalar_select %p210, %s16, 1
      %s212 = smul.addr %s211, 32
      %s213 = smul.addr %s212, 8
      %s214 = scalar_lea.vmem %s5, %s213
      %p215 = scmp.lt.s32.totalorder %s16, 1
      %s216 = scalar_select %p215, %s16, 1
      %s217 = smul.addr %s216, 54
      %s218 = smul.addr %s217, 8
      %s219 = scalar_lea.vmem %s0, %s218
      %p220 = scmp.lt.s32.totalorder %s16, 1
      %s221 = scalar_select %p220, %s16, 1
      %s222 = smul.addr %s221, 32
      %s223 = smul.addr %s222, 8
      %s224 = scalar_lea.vmem %s5, %s223
      %v225 = vld [vmem:[%s2] sm:$0x1]
      %v226 = vld [vmem:[%s3] sm:$0x1]
      %v227 = vld [vmem:[%s4] sm:$0x1]
      %v228 = vld [vmem:[%s1] sm:$0x1]
      %v229 = vld [vmem:[%s1 + $0x1] sm:$0x1]
      %v230 = vld [vmem:[%s1 + $0x2] sm:$0x1]
      %v231 = vld [vmem:[%s1 + $0x3] sm:$0x1]
      %v232 = vld [vmem:[%s1 + $0x4] sm:$0x1]
      %v233 = vld [vmem:[%s1 + $0x5] sm:$0x1]
      %v234 = vld [vmem:[%s1 + $0x6] sm:$0x1]
      %v235 = vld [vmem:[%s1 + $0x7] sm:$0x1]
      %v236 = vld [vmem:[%s1 + $0x8] sm:$0x1]
      loop: start=0, step=1, limit=16
      $region41: #{listener_forward.15} parent=39 // loop_pre_header
        _
      $region42: #{listener_forward.15} parent=39 // loop_header
        %s238 = sphi 0, %s242
        %p239 = scmp.ge.s32.totalorder %s238, 16
      $region43: #{listener_forward.15} parent=39 // loop_header_branch
        %241 = sbr.rel (%p239) target = $region47
      $region44: #{listener_forward.15} parent=39 // loop_body
        %s243 = smul.u32 %s238, 24
        %s244 = scalar_lea.vmem %s219, %s243
        %v245 = vld [vmem:[%s244] sm:$0xff]
        %v246 = vld [vmem:[%s244 + $0x8] sm:$0xff]
        %v247 = vld [vmem:[%s244 + $0x10] sm:$0x3]
        %249 = vset.pattern.permute.xlu0 0
        %250 = vperm.xlu0 %249, %v245
        %v251 = vpop.permute.xlu0 %250
        %254 = vset.pattern.permute.xlu0 0
        %255 = vperm.xlu0 %254, %v246
        %v256 = vpop.permute.xlu0 %255
        %v259 = vperm.slane %v228, 0
        %v261 = vmul.f32 %v251, %v259
        %v262 = vmul.f32 %v256, %v259
        %v263 = vadd.f32 %v261, 0.0
        %v264 = vadd.f32 %v262, 0.0
        %266 = vset.pattern.permute.xlu0 0
        %267 = vperm.xlu0 %266, %v247
        %v268 = vpop.permute.xlu0 %267
        %v271 = vperm.slane %v229, 0
        %v273 = vmul.f32 %v251, %v271
        %v274 = vmul.f32 %v256, %v271
        %v275 = vmul.f32 %v268, %v271
        %vm279 = vcmask 1046528
        %v280 = vrot.slane %v273, 1
        %v281 = vrot.slane %v274, 1
        %v282 = vsel %vm279, %v280, %v281
        %v283 = vrot.slane %v275, 1
        %v284 = vsel %vm279, %v281, %v283
        %v287 = vadd.f32 %v263, %v282
        %v288 = vadd.f32 %v264, %v284
        %v290 = vperm.slane %v230, 0
        %v292 = vmul.f32 %v251, %v290
        %v293 = vmul.f32 %v256, %v290
        %v294 = vmul.f32 %v268, %v290
        %vm298 = vcmask 1045504
        %v299 = vrot.slane %v292, 2
        %v300 = vrot.slane %v293, 2
        %v301 = vsel %vm298, %v299, %v300
        %v302 = vrot.slane %v294, 2
        %v303 = vsel %vm298, %v300, %v302
        %v306 = vadd.f32 %v287, %v301
        %v307 = vadd.f32 %v288, %v303
        %s308 = sadd.s32 %s238, 1
        %s309 = smul.u32 %s308, 24
        %s310 = scalar_lea.vmem %s219, %s309
        %v311 = vld [vmem:[%s310] sm:$0xff]
        %v312 = vld [vmem:[%s310 + $0x8] sm:$0xff]
        %v313 = vld [vmem:[%s310 + $0x10] sm:$0x3]
        %315 = vset.pattern.permute.xlu0 0
        %316 = vperm.xlu0 %315, %v311
        %v317 = vpop.permute.xlu0 %316
        %320 = vset.pattern.permute.xlu0 0
        %321 = vperm.xlu0 %320, %v312
        %v322 = vpop.permute.xlu0 %321
        %v325 = vperm.slane %v231, 0
        %v327 = vmul.f32 %v317, %v325
        %v328 = vmul.f32 %v322, %v325
        %v329 = vadd.f32 %v306, %v327
        %v330 = vadd.f32 %v307, %v328
        %332 = vset.pattern.permute.xlu0 0
        %333 = vperm.xlu0 %332, %v313
        %v334 = vpop.permute.xlu0 %333
        %v337 = vperm.slane %v232, 0
        %v339 = vmul.f32 %v317, %v337
        %v340 = vmul.f32 %v322, %v337
        %v341 = vmul.f32 %v334, %v337
        %v345 = vrot.slane %v339, 1
        %v346 = vrot.slane %v340, 1
        %v347 = vsel %vm279, %v345, %v346
        %v348 = vrot.slane %v341, 1
        %v349 = vsel %vm279, %v346, %v348
        %v352 = vadd.f32 %v329, %v347
        %v353 = vadd.f32 %v330, %v349
        %v355 = vperm.slane %v233, 0
        %v357 = vmul.f32 %v317, %v355
        %v358 = vmul.f32 %v322, %v355
        %v359 = vmul.f32 %v334, %v355
        %v363 = vrot.slane %v357, 2
        %v364 = vrot.slane %v358, 2
        %v365 = vsel %vm298, %v363, %v364
        %v366 = vrot.slane %v359, 2
        %v367 = vsel %vm298, %v364, %v366
        %v370 = vadd.f32 %v352, %v365
        %v371 = vadd.f32 %v353, %v367
        %s372 = sadd.s32 %s238, 2
        %s373 = smul.u32 %s372, 24
        %s374 = scalar_lea.vmem %s219, %s373
        %v375 = vld [vmem:[%s374] sm:$0xff]
        %v376 = vld [vmem:[%s374 + $0x8] sm:$0xff]
        %v377 = vld [vmem:[%s374 + $0x10] sm:$0x3]
        %379 = vset.pattern.permute.xlu0 0
        %380 = vperm.xlu0 %379, %v375
        %v381 = vpop.permute.xlu0 %380
        %384 = vset.pattern.permute.xlu0 0
        %385 = vperm.xlu0 %384, %v376
        %v386 = vpop.permute.xlu0 %385
        %v389 = vperm.slane %v234, 0
        %v391 = vmul.f32 %v381, %v389
        %v392 = vmul.f32 %v386, %v389
        %v393 = vadd.f32 %v370, %v391
        %v394 = vadd.f32 %v371, %v392
        %396 = vset.pattern.permute.xlu0 0
        %397 = vperm.xlu0 %396, %v377
        %v398 = vpop.permute.xlu0 %397
        %v401 = vperm.slane %v235, 0
        %v403 = vmul.f32 %v381, %v401
        %v404 = vmul.f32 %v386, %v401
        %v405 = vmul.f32 %v398, %v401
        %v409 = vrot.slane %v403, 1
        %v410 = vrot.slane %v404, 1
        %v411 = vsel %vm279, %v409, %v410
        %v412 = vrot.slane %v405, 1
        %v413 = vsel %vm279, %v410, %v412
        %v416 = vadd.f32 %v393, %v411
        %v417 = vadd.f32 %v394, %v413
        %v419 = vperm.slane %v236, 0
        %v421 = vmul.f32 %v381, %v419
        %v422 = vmul.f32 %v386, %v419
        %v423 = vmul.f32 %v398, %v419
        %v427 = vrot.slane %v421, 2
        %v428 = vrot.slane %v422, 2
        %v429 = vsel %vm298, %v427, %v428
        %v430 = vrot.slane %v423, 2
        %v431 = vsel %vm298, %v428, %v430
        %v434 = vadd.f32 %v416, %v429
        %v435 = vadd.f32 %v417, %v431
        %v437 = vperm.slane %v225, 0
        %v439 = vadd.f32 %v434, %v437
        %v440 = vadd.f32 %v435, %v437
        %v441 = vmax.f32 %v439, 0.0
        %v442 = vmax.f32 %v440, 0.0
        %v443 = vmin.f32 %v441, 20.0
        %v444 = vmin.f32 %v442, 20.0
        %v446 = vperm.slane %v226, 0
        %v448 = vmul.f32 %v443, %v446
        %v449 = vmul.f32 %v444, %v446
        %v451 = vperm.slane %v227, 0
        %v453 = vadd.f32 %v448, %v451
        %v454 = vadd.f32 %v449, %v451
        %s455 = smul.u32 %s238, 16
        %s456 = scalar_lea.vmem %s224, %s455
        %vm457 = vcmask 523264
        %458 = vst.msk [vmem:[%s456] sm:$0xff] %vm457, %v453
        %459 = vst.msk [vmem:[%s456 + $0x8] sm:$0xff] %vm457, %v454
      $region45: #{listener_forward.15} parent=39 // loop_footer
        %s242 = sadd.s32 1, %s238
      $region46: #{listener_forward.15} parent=39 // loop_footer_branch
        %237 = sbr.rel target = $region42
      $region47: #{listener_forward.15} parent=39 // loop_exit
        _
      %p460 = scmp.lt.s32.totalorder %s16, 1
      %s461 = scalar_select %p460, %s16, 1
      %s462 = smul.addr %s461, 32
      %s463 = smul.addr %s462, 8
      %s464 = scalar_lea.vmem %s5, %s463
      // Predicated region
      $region48: #{listener_forward.15} parent=39 // pred_check
        %p465 = pneg %p144
      $region49: #{listener_forward.15} parent=39 // pred_check_branch
        %467 = sbr.rel (%p465) target = $region51
      $region50: #{listener_forward.15} parent=39 // pred_region
        _
      $region51: #{listener_forward.15} parent=39 // pred_fallthru
        _
    $region40: #{listener_forward.15} parent=5 // pred_fallthru
      _
    %p468 = scmp.le.s32.totalorder 2, %s11
    // Predicated region
    $region52: #{listener_forward.15} parent=5 // pred_check
      %p469 = pneg %p468
    $region53: #{listener_forward.15} parent=5 // pred_check_branch
      %471 = sbr.rel (%p469) target = $region55
    $region54: #{listener_forward.15} parent=5 // pred_region
      %s472 = ssub.s32 %s11, 2
      // Predicated region
      $region56: #{listener_forward.15} parent=54 // pred_check
        %p473 = pneg %p150
      $region57: #{listener_forward.15} parent=54 // pred_check_branch
        %475 = sbr.rel (%p473) target = $region59
      $region58: #{listener_forward.15} parent=54 // pred_region
        %p476 = scmp.lt.s32.totalorder %s17, 1
        %s477 = scalar_select %p476, %s17, 1
        %s478 = smul.addr %s477, 32
        %s479 = smul.addr %s478, 8
        %s480 = scalar_lea.vmem %s5, %s479
      $region59: #{listener_forward.15} parent=54 // pred_fallthru
        _
    $region55: #{listener_forward.15} parent=5 // pred_fallthru
      _
  $region6: #{listener_forward.15} parent=0 // loop_footer
    %s15 = sadd.s32 1, %s11
  $region7: #{listener_forward.15} parent=0 // loop_footer_branch
    %10 = sbr.rel target = $region3
  $region8: #{listener_forward.15} parent=0 // loop_exit
    _

// kernel: listener_forward.16
$region0: #{listener_forward.16}
  #allocation0 [shape = 'u32[]', space=smem, size = 0x4, offset = 0x4, fixed_abs, tag = 'smem constant byte address 0x4 - core index']
  #allocation1 [shape = 'u32[72,128]{1,0:T(1,128)}', space=vmem, size = 0x9000, scoped, tag = 'internal scratch']
  %s0 = inlined_call_operand.vmem [shape: f32[2,18,18,64], index: 0, kind: input, shape index: {}]
  %s1 = inlined_call_operand.vmem [shape: bf16[9,64,64], index: 1, kind: input, shape index: {}]
  %s2 = inlined_call_operand.vmem [shape: f32[1,64], index: 2, kind: input, shape index: {}]
  %s3 = inlined_call_operand.vmem [shape: f32[1,64], index: 3, kind: input, shape index: {}]
  %s4 = inlined_call_operand.vmem [shape: f32[1,64], index: 4, kind: input, shape index: {}]
  %s5 = inlined_call_operand.vmem [shape: f32[2,16,16,64], index: 5, kind: output, shape index: {}]
  %s6 = sld [smem:[#allocation0]]
  $region60: #{listener_forward.16} parent=0
    _
  %s8 = ssub.s32 1, %s6
  %s9 = scalar_select 0, %s8, %s6
  loop: start=0, step=1, limit=4
  $region2: #{listener_forward.16} parent=0 // loop_pre_header
    _
  $region3: #{listener_forward.16} parent=0 // loop_header
    %s11 = sphi 0, %s15
    %p12 = scmp.ge.s32.totalorder %s11, 4
    %s21 = sphi 0, %s23
    %s24 = sphi 0, %s21
    %s25 = sphi 0, %s24
    %s41 = sphi 0, %s25
    %s45 = sphi 0, %s45
    %s47 = sphi 0, %s45
    %s48 = sphi 0, %s47
    %s62 = sphi 0, %s48
    %s66 = sphi 0, %s66
    %s68 = sphi 0, %s66
    %s69 = sphi 0, %s68
    %s83 = sphi 0, %s69
    %s87 = sphi 0, %s87
    %s89 = sphi 0, %s87
    %s90 = sphi 0, %s89
    %s104 = sphi 0, %s90
    %s108 = sphi 0, %s108
    %s110 = sphi 0, %s108
    %s111 = sphi 0, %s110
    %s125 = sphi 0, %s111
    %s131 = sphi 0, %s133
    %s134 = sphi 0, %s131
    %s135 = sphi 0, %s134
    %s151 = sphi 0, %s135
  $region4: #{listener_forward.16} parent=0 // loop_header_branch
    %14 = sbr.rel (%p12) target = $region8
  $region5: #{listener_forward.16} parent=0 // loop_body
    %s16 = ssub.s32 %s11, 1
    %s17 = ssub.s32 %s11, 2
    %s18 = sadd.s32 %s11, 1
    %s19 = ssub.s32 %s11, %s18
    %p20 = scmp.eq.s32.totalorder %s19, 0
    %s22 = sadd.s32 %s21, 1
    %s23 = scalar_select %p20, %s21, %s22
    %p26 = pneg %p20
    %p27 = scmp.eq.s32.totalorder %s11, 1
    %p28 = por %p26, %p27
    %p29 = scmp.ne.s32.totalorder %s21, %s24
    %p30 = scmp.eq.s32.totalorder %s11, 0
    %p31 = por %p29, %p30
    %p32 = scmp.ne.s32.totalorder %s21, %s24
    %p33 = scmp.eq.s32.totalorder %s16, 1
    %p34 = por %p32, %p33
    %p35 = scmp.ne.s32.totalorder %s24, %s25
    %p36 = scmp.eq.s32.totalorder %s16, 0
    %p37 = por %p35, %p36
    %p38 = scmp.ne.s32.totalorder %s24, %s25
    %p39 = scmp.eq.s32.totalorder %s17, 1
    %p40 = por %p38, %p39
    %p42 = scmp.ne.s32.totalorder %s25, %s41
    %p43 = scmp.eq.s32.totalorder %s17, 0
    %p44 = por %p42, %p43
    %s46 = sadd.s32 %s45, 1
    %p49 = scmp.eq.s32.totalorder %s11, 1
    %p50 = scmp.ne.s32.totalorder %s45, %s47
    %p51 = scmp.eq.s32.totalorder %s11, 0
    %p52 = por %p50, %p51
    %p53 = scmp.ne.s32.totalorder %s45, %s47
    %p54 = scmp.eq.s32.totalorder %s16, 1
    %p55 = por %p53, %p54
    %p56 = scmp.ne.s32.totalorder %s47, %s48
    %p57 = scmp.eq.s32.totalorder %s16, 0
    %p58 = por %p56, %p57
    %p59 = scmp.ne.s32.totalorder %s47, %s48
    %p60 = scmp.eq.s32.totalorder %s17, 1
    %p61 = por %p59, %p60
    %p63 = scmp.ne.s32.totalorder %s48, %s62
    %p64 = scmp.eq.s32.totalorder %s17, 0
    %p65 = por %p63, %p64
    %s67 = sadd.s32 %s66, 1
    %p70 = scmp.eq.s32.totalorder %s11, 1
    %p71 = scmp.ne.s32.totalorder %s66, %s68
    %p72 = scmp.eq.s32.totalorder %s11, 0
    %p73 = por %p71, %p72
    %p74 = scmp.ne.s32.totalorder %s66, %s68
    %p75 = scmp.eq.s32.totalorder %s16, 1
    %p76 = por %p74, %p75
    %p77 = scmp.ne.s32.totalorder %s68, %s69
    %p78 = scmp.eq.s32.totalorder %s16, 0
    %p79 = por %p77, %p78
    %p80 = scmp.ne.s32.totalorder %s68, %s69
    %p81 = scmp.eq.s32.totalorder %s17, 1
    %p82 = por %p80, %p81
    %p84 = scmp.ne.s32.totalorder %s69, %s83
    %p85 = scmp.eq.s32.totalorder %s17, 0
    %p86 = por %p84, %p85
    %s88 = sadd.s32 %s87, 1
    %p91 = scmp.eq.s32.totalorder %s11, 1
    %p92 = scmp.ne.s32.totalorder %s87, %s89
    %p93 = scmp.eq.s32.totalorder %s11, 0
    %p94 = por %p92, %p93
    %p95 = scmp.ne.s32.totalorder %s87, %s89
    %p96 = scmp.eq.s32.totalorder %s16, 1
    %p97 = por %p95, %p96
    %p98 = scmp.ne.s32.totalorder %s89, %s90
    %p99 = scmp.eq.s32.totalorder %s16, 0
    %p100 = por %p98, %p99
    %p101 = scmp.ne.s32.totalorder %s89, %s90
    %p102 = scmp.eq.s32.totalorder %s17, 1
    %p103 = por %p101, %p102
    %p105 = scmp.ne.s32.totalorder %s90, %s104
    %p106 = scmp.eq.s32.totalorder %s17, 0
    %p107 = por %p105, %p106
    %s109 = sadd.s32 %s108, 1
    %p112 = scmp.eq.s32.totalorder %s11, 1
    %p113 = scmp.ne.s32.totalorder %s108, %s110
    %p114 = scmp.eq.s32.totalorder %s11, 0
    %p115 = por %p113, %p114
    %p116 = scmp.ne.s32.totalorder %s108, %s110
    %p117 = scmp.eq.s32.totalorder %s16, 1
    %p118 = por %p116, %p117
    %p119 = scmp.ne.s32.totalorder %s110, %s111
    %p120 = scmp.eq.s32.totalorder %s16, 0
    %p121 = por %p119, %p120
    %p122 = scmp.ne.s32.totalorder %s110, %s111
    %p123 = scmp.eq.s32.totalorder %s17, 1
    %p124 = por %p122, %p123
    %p126 = scmp.ne.s32.totalorder %s111, %s125
    %p127 = scmp.eq.s32.totalorder %s17, 0
    %p128 = por %p126, %p127
    %s129 = ssub.s32 %s11, %s18
    %p130 = scmp.eq.s32.totalorder %s129, 0
    %s132 = sadd.s32 %s131, 1
    %s133 = scalar_select %p130, %s131, %s132
    %p136 = pneg %p130
    %p137 = scmp.eq.s32.totalorder %s11, 1
    %p138 = por %p136, %p137
    %p139 = scmp.ne.s32.totalorder %s131, %s134
    %p140 = scmp.eq.s32.totalorder %s11, 0
    %p141 = por %p139, %p140
    %p142 = scmp.ne.s32.totalorder %s131, %s134
    %p143 = scmp.eq.s32.totalorder %s16, 1
    %p144 = por %p142, %p143
    %p145 = scmp.ne.s32.totalorder %s134, %s135
    %p146 = scmp.eq.s32.totalorder %s16, 0
    %p147 = por %p145, %p146
    %p148 = scmp.ne.s32.totalorder %s134, %s135
    %p149 = scmp.eq.s32.totalorder %s17, 1
    %p150 = por %p148, %p149
    %p152 = scmp.ne.s32.totalorder %s135, %s151
    %p153 = scmp.eq.s32.totalorder %s17, 0
    %p154 = por %p152, %p153
    %p155 = scmp.le.s32.totalorder 1, %s11
    %p156 = scmp.lt.s32.totalorder %s11, 3
    %p157 = pnand %p155, %p156
    %p158 = pneg %p157
    // Predicated region
    $region9: #{listener_forward.16} parent=5 // pred_check
      _
    $region10: #{listener_forward.16} parent=5 // pred_check_branch
      %160 = sbr.rel (%p157) target = $region12
    $region11: #{listener_forward.16} parent=5 // pred_region
      %s161 = ssub.s32 %s11, 1
      // Predicated region
      $region13: #{listener_forward.16} parent=11 // pred_check
        %p162 = pneg %p58
      $region14: #{listener_forward.16} parent=11 // pred_check_branch
        %164 = sbr.rel (%p162) target = $region16
      $region15: #{listener_forward.16} parent=11 // pred_region
        _
      $region16: #{listener_forward.16} parent=11 // pred_fallthru
        _
      // Predicated region
      $region17: #{listener_forward.16} parent=11 // pred_check
        %p165 = pneg %p79
      $region18: #{listener_forward.16} parent=11 // pred_check_branch
        %167 = sbr.rel (%p165) target = $region20
      $region19: #{listener_forward.16} parent=11 // pred_region
        _
      $region20: #{listener_forward.16} parent=11 // pred_fallthru
        _
      // Predicated region
      $region21: #{listener_forward.16} parent=11 // pred_check
        %p168 = pneg %p100
      $region22: #{listener_forward.16} parent=11 // pred_check_branch
        %170 = sbr.rel (%p168) target = $region24
      $region23: #{listener_forward.16} parent=11 // pred_region
        _
      $region24: #{listener_forward.16} parent=11 // pred_fallthru
        _
      // Predicated region
      $region25: #{listener_forward.16} parent=11 // pred_check
        %p171 = pneg %p121
      $region26: #{listener_forward.16} parent=11 // pred_check_branch
        %173 = sbr.rel (%p171) target = $region28
      $region27: #{listener_forward.16} parent=11 // pred_region
        _
      $region28: #{listener_forward.16} parent=11 // pred_fallthru
        _
    $region12: #{listener_forward.16} parent=5 // pred_fallthru
      _
    %p174 = scmp.lt.s32.totalorder %s11, 2
    // Predicated region
    $region29: #{listener_forward.16} parent=5 // pred_check
      %p175 = pneg %p174
    $region30: #{listener_forward.16} parent=5 // pred_check_branch
      %177 = sbr.rel (%p175) target = $region32
    $region31: #{listener_forward.16} parent=5 // pred_region
      // Predicated region
      $region33: #{listener_forward.16} parent=31 // pred_check
        %p178 = pneg %p31
      $region34: #{listener_forward.16} parent=31 // pred_check_branch
        %180 = sbr.rel (%p178) target = $region36
      $region35: #{listener_forward.16} parent=31 // pred_region
        %p181 = scmp.lt.s32.totalorder %s11, 1
        %s182 = scalar_select %p181, %s11, 1
        %s183 = smul.addr %s182, 54
        %s184 = smul.addr %s183, 8
        %s185 = scalar_lea.vmem %s0, %s184
      $region36: #{listener_forward.16} parent=31 // pred_fallthru
        _
    $region32: #{listener_forward.16} parent=5 // pred_fallthru
      _
    %p186 = scmp.le.s32.totalorder 1, %s11
    %p187 = scmp.lt.s32.totalorder %s11, 3
    %p188 = pnand %p186, %p187
    %p189 = pneg %p188
    // Predicated region
    $region37: #{listener_forward.16} parent=5 // pred_check
      _
    $region38: #{listener_forward.16} parent=5 // pred_check_branch
      %191 = sbr.rel (%p188) target = $region40
    $region39: #{listener_forward.16} parent=5 // pred_region
      %s192 = ssub.s32 %s11, 1
      %p193 = scmp.lt.s32.totalorder %s16, 1
      %s194 = scalar_select %p193, %s16, 1
      %s195 = smul.addr %s194, 54
      %s196 = smul.addr %s195, 8
      %s197 = scalar_lea.vmem %s0, %s196
      %p198 = pneg %p37
      %p199 = pneg %p34
      %p200 = pneg %p58
      %p201 = pneg %p55
      %p202 = pneg %p79
      %p203 = pneg %p76
      %p204 = pneg %p100
      %p205 = pneg %p97
      %p206 = pneg %p121
      %p207 = pneg %p118
      %p208 = pneg %p147
      %p209 = pneg %p144
      %p210 = scmp.lt.s32.totalorder %s16, 1
      %s211 = scalar_select %p210, %s16, 1
      %s212 = smul.addr %s211, 32
      %s213 = smul.addr %s212, 8
      %s214 = scalar_lea.vmem %s5, %s213
      %p215 = scmp.lt.s32.totalorder %s16, 1
      %s216 = scalar_select %p215, %s16, 1
      %s217 = smul.addr %s216, 54
      %s218 = smul.addr %s217, 8
      %s219 = scalar_lea.vmem %s0, %s218
      %p220 = scmp.lt.s32.totalorder %s16, 1
      %s221 = scalar_select %p220, %s16, 1
      %s222 = smul.addr %s221, 32
      %s223 = smul.addr %s222, 8
      %s224 = scalar_lea.vmem %s5, %s223
      %v226 = vld [vmem:[%s2] sm:$0x1]
      %v227 = vld [vmem:[%s3] sm:$0x1]
      %v228 = vld [vmem:[%s4] sm:$0x1]
      loop: start=0, step=1, limit=16
      $region41: #{listener_forward.16} parent=39 // loop_pre_header
        _
      $region42: #{listener_forward.16} parent=39 // loop_header
        %s230 = sphi 0, %s234
        %p231 = scmp.ge.s32.totalorder %s230, 16
      $region43: #{listener_forward.16} parent=39 // loop_header_branch
        %233 = sbr.rel (%p231) target = $region47
      $region44: #{listener_forward.16} parent=39 // loop_body
        %s235 = smul.u32 %s230, 24
        %s236 = scalar_lea.vmem %s219, %s235
        %v237 = vld [vmem:[%s236] sm:$0xff]
        %v238 = vld [vmem:[%s236 + $0x8] sm:$0xff]
        %v239 = vld [vmem:[%s236 + $0x10] sm:$0x3]
        %v240 = vpack.c.bf16 %v238, %v237
        %v241 = vld [vmem:[%s1] sm:$0xf]
        %v242 = vld [vmem:[%s1 + $0x4] sm:$0xf]
        %v243 = vld [vmem:[%s1 + $0x8] sm:$0xf]
        %v244 = vld [vmem:[%s1 + $0xc] sm:$0xf]
        %v245 = vld [vmem:[%s1 + $0x10] sm:$0xf]
        %v246 = vld [vmem:[%s1 + $0x14] sm:$0xf]
        %v247 = vld [vmem:[%s1 + $0x18] sm:$0xf]
        %v248 = vld [vmem:[%s1 + $0x1c] sm:$0xf]
        %v249 = vpack.c.bf16 %v239, %v239
        %s250 = scalar_lea.vmem %s1, 32
        %v251 = vld [vmem:[%s250] sm:$0xf]
        %v252 = vld [vmem:[%s250 + $0x4] sm:$0xf]
        %v253 = vld [vmem:[%s250 + $0x8] sm:$0xf]
        %v254 = vld [vmem:[%s250 + $0xc] sm:$0xf]
        %v255 = vld [vmem:[%s250 + $0x10] sm:$0xf]
        %v256 = vld [vmem:[%s250 + $0x14] sm:$0xf]
        %v257 = vld [vmem:[%s250 + $0x18] sm:$0xf]
        %v258 = vld [vmem:[%s250 + $0x1c] sm:$0xf]
        %vm259 = vsmask.f32 7424
        %v261 = vshrl.u32 %v240, 16
        %v263 = vshll.u32 %v240, 16
        %v265 = vrot.slane %v263, 1
        %v266 = vor.u32 %v261, %v265
        %v268 = vshll.u32 %v249, 16
        %v270 = vrot.slane %v268, 1
        %v271 = vsel %vm259, %v266, %v270
        %v280 = vunpack.c.l.b16 %v251
        %v281 = vunpack.c.l.b16 %v252
        %v282 = vunpack.c.l.b16 %v253
        %v283 = vunpack.c.l.b16 %v254
        %v284 = vunpack.c.l.b16 %v255
        %v285 = vunpack.c.l.b16 %v256
        %v286 = vunpack.c.l.b16 %v257
        %v287 = vunpack.c.l.b16 %v258
        %v288 = vpack.c.b16 %v281, %v280
        %v289 = vpack.c.b16 %v283, %v282
        %v290 = vpack.c.b16 %v285, %v284
        %v291 = vpack.c.b16 %v287, %v286
        %vm296 = vcmask 523264
        %v298 = vsel %vm296, %v271, 0
        %300 = vmatpush.bf16.msra.mxu0 0
        %301 = vmatpush.bf16.msra.mxu0 0
        %302 = vmatpush.bf16.msra.mxu0 0
        %303 = vmatpush.bf16.msra.mxu0 0
        %304 = vmatpush.bf16.msra.mxu0 %v291
        %305 = vmatpush.bf16.msra.mxu0 %v290
        %306 = vmatpush.bf16.msra.mxu0 %v289
        %307 = vmatpush.bf16.msra.mxu0 %v288
        %308 = vmatmul.bf16.gmra.mxu0 %v298
        %v309 = vpop.f32.mrf.mxu0
        %v310 = vadd.f32 0.0, %v309
        %v311 = vpop.f32.mrf.mxu0
        %v312 = vadd.f32 0.0, %v311
        %313 = vdwg.mxu0
        %v322 = vunpack.c.l.b16 %v241
        %v323 = vunpack.c.l.b16 %v242
        %v324 = vunpack.c.l.b16 %v243
        %v325 = vunpack.c.l.b16 %v244
        %v326 = vunpack.c.l.b16 %v245
        %v327 = vunpack.c.l.b16 %v246
        %v328 = vunpack.c.l.b16 %v247
        %v329 = vunpack.c.l.b16 %v248
        %v330 = vpack.c.b16 %v323, %v322
        %v331 = vpack.c.b16 %v325, %v324
        %v332 = vpack.c.b16 %v327, %v326
        %v333 = vpack.c.b16 %v329, %v328
        %v338 = vsel %vm296, %v240, 0
        %340 = vmatpush.bf16.msra.mxu0 0
        %341 = vmatpush.bf16.msra.mxu0 0
        %342 = vmatpush.bf16.msra.mxu0 0
        %343 = vmatpush.bf16.msra.mxu0 0
        %344 = vmatpush.bf16.msra.mxu0 %v333
        %345 = vmatpush.bf16.msra.mxu0 %v332
        %346 = vmatpush.bf16.msra.mxu0 %v331
        %347 = vmatpush.bf16.msra.mxu0 %v330
        %348 = vmatmul.bf16.gmra.mxu0 %v338
        %v349 = vpop.f32.mrf.mxu0
        %v350 = vadd.f32 %v310, %v349
        %v351 = vpop.f32.mrf.mxu0
        %v352 = vadd.f32 %v312, %v351
        %353 = vdwg.mxu0
        %s354 = scalar_lea.vmem %s1, 64
        %v355 = vld [vmem:[%s354] sm:$0xf]
        %v356 = vld [vmem:[%s354 + $0x4] sm:$0xf]
        %v357 = vld [vmem:[%s354 + $0x8] sm:$0xf]
        %v358 = vld [vmem:[%s354 + $0xc] sm:$0xf]
        %v359 = vld [vmem:[%s354 + $0x10] sm:$0xf]
        %v360 = vld [vmem:[%s354 + $0x14] sm:$0xf]
        %v361 = vld [vmem:[%s354 + $0x18] sm:$0xf]
        %v362 = vld [vmem:[%s354 + $0x1c] sm:$0xf]
        %vm365 = vcmask 1046528
        %v366 = vrot.slane %v240, 1
        %v367 = vrot.slane %v249, 1
        %v368 = vsel %vm365, %v366, %v367
        %v377 = vunpack.c.l.b16 %v355
        %v378 = vunpack.c.l.b16 %v356
        %v379 = vunpack.c.l.b16 %v357
        %v380 = vunpack.c.l.b16 %v358
        %v381 = vunpack.c.l.b16 %v359
        %v382 = vunpack.c.l.b16 %v360
        %v383 = vunpack.c.l.b16 %v361
        %v384 = vunpack.c.l.b16 %v362
        %v385 = vpack.c.b16 %v378, %v377
        %v386 = vpack.c.b16 %v380, %v379
        %v387 = vpack.c.b16 %v382, %v381
        %v388 = vpack.c.b16 %v384, %v383
        %v394 = vsel %vm296, %v368, 0
        %396 = vmatpush.bf16.msra.mxu0 0
        %397 = vmatpush.bf16.msra.mxu0 0
        %398 = vmatpush.bf16.msra.mxu0 0
        %399 = vmatpush.bf16.msra.mxu0 0
        %400 = vmatpush.bf16.msra.mxu0 %v388
        %401 = vmatpush.bf16.msra.mxu0 %v387
        %402 = vmatpush.bf16.msra.mxu0 %v386
        %403 = vmatpush.bf16.msra.mxu0 %v385
        %404 = vmatmul.bf16.gmra.mxu0 %v394
        %v405 = vpop.f32.mrf.mxu0
        %v406 = vadd.f32 0.0, %v405
        %v407 = vpop.f32.mrf.mxu0
        %v408 = vadd.f32 0.0, %v407
        %409 = vdwg.mxu0
        %v410 = vadd.f32 %v350, %v406
        %v411 = vadd.f32 %v352, %v408
        %s412 = sadd.s32 %s230, 1
        %s413 = smul.u32 %s412, 24
        %s414 = scalar_lea.vmem %s219, %s413
        %v415 = vld [vmem:[%s414] sm:$0xff]
        %v416 = vld [vmem:[%s414 + $0x8] sm:$0xff]
        %v417 = vld [vmem:[%s414 + $0x10] sm:$0x3]
        %v418 = vpack.c.bf16 %v416, %v415
        %s419 = scalar_lea.vmem %s1, 96
        %v420 = vld [vmem:[%s419] sm:$0xf]
        %v421 = vld [vmem:[%s419 + $0x4] sm:$0xf]
        %v422 = vld [vmem:[%s419 + $0x8] sm:$0xf]
        %v423 = vld [vmem:[%s419 + $0xc] sm:$0xf]
        %v424 = vld [vmem:[%s419 + $0x10] sm:$0xf]
        %v425 = vld [vmem:[%s419 + $0x14] sm:$0xf]
        %v426 = vld [vmem:[%s419 + $0x18] sm:$0xf]
        %v427 = vld [vmem:[%s419 + $0x1c] sm:$0xf]
        %v436 = vunpack.c.l.b16 %v420
        %v437 = vunpack.c.l.b16 %v421
        %v438 = vunpack.c.l.b16 %v422
        %v439 = vunpack.c.l.b16 %v423
        %v440 = vunpack.c.l.b16 %v424
        %v441 = vunpack.c.l.b16 %v425
        %v442 = vunpack.c.l.b16 %v426
        %v443 = vunpack.c.l.b16 %v427
        %v444 = vpack.c.b16 %v437, %v436
        %v445 = vpack.c.b16 %v439, %v438
        %v446 = vpack.c.b16 %v441, %v440
        %v447 = vpack.c.b16 %v443, %v442
        %v453 = vsel %vm296, %v418, 0
        %455 = vmatpush.bf16.msra.mxu0 0
        %456 = vmatpush.bf16.msra.mxu0 0
        %457 = vmatpush.bf16.msra.mxu0 0
        %458 = vmatpush.bf16.msra.mxu0 0
        %459 = vmatpush.bf16.msra.mxu0 %v447
        %460 = vmatpush.bf16.msra.mxu0 %v446
        %461 = vmatpush.bf16.msra.mxu0 %v445
        %462 = vmatpush.bf16.msra.mxu0 %v444
        %463 = vmatmul.bf16.gmra.mxu0 %v453
        %v464 = vpop.f32.mrf.mxu0
        %v465 = vadd.f32 0.0, %v464
        %v466 = vpop.f32.mrf.mxu0
        %v467 = vadd.f32 0.0, %v466
        %468 = vdwg.mxu0
        %v469 = vadd.f32 %v410, %v465
        %v470 = vadd.f32 %v411, %v467
        %v471 = vpack.c.bf16 %v417, %v417
        %s472 = scalar_lea.vmem %s1, 128
        %v473 = vld [vmem:[%s472] sm:$0xf]
        %v474 = vld [vmem:[%s472 + $0x4] sm:$0xf]
        %v475 = vld [vmem:[%s472 + $0x8] sm:$0xf]
        %v476 = vld [vmem:[%s472 + $0xc] sm:$0xf]
        %v477 = vld [vmem:[%s472 + $0x10] sm:$0xf]
        %v478 = vld [vmem:[%s472 + $0x14] sm:$0xf]
        %v479 = vld [vmem:[%s472 + $0x18] sm:$0xf]
        %v480 = vld [vmem:[%s472 + $0x1c] sm:$0xf]
        %v481 = vshrl.u32 %v418, 16
        %v483 = vshll.u32 %v418, 16
        %v485 = vrot.slane %v483, 1
        %v486 = vor.u32 %v481, %v485
        %v488 = vshll.u32 %v471, 16
        %v490 = vrot.slane %v488, 1
        %v491 = vsel %vm259, %v486, %v490
        %v500 = vunpack.c.l.b16 %v473
        %v501 = vunpack.c.l.b16 %v474
        %v502 = vunpack.c.l.b16 %v475
        %v503 = vunpack.c.l.b16 %v476
        %v504 = vunpack.c.l.b16 %v477
        %v505 = vunpack.c.l.b16 %v478
        %v506 = vunpack.c.l.b16 %v479
        %v507 = vunpack.c.l.b16 %v480
        %v508 = vpack.c.b16 %v501, %v500
        %v509 = vpack.c.b16 %v503, %v502
        %v510 = vpack.c.b16 %v505, %v504
        %v511 = vpack.c.b16 %v507, %v506
        %v517 = vsel %vm296, %v491, 0
        %519 = vmatpush.bf16.msra.mxu0 0
        %520 = vmatpush.bf16.msra.mxu0 0
        %521 = vmatpush.bf16.msra.mxu0 0
        %522 = vmatpush.bf16.msra.mxu0 0
        %523 = vmatpush.bf16.msra.mxu0 %v511
        %524 = vmatpush.bf16.msra.mxu0 %v510
        %525 = vmatpush.bf16.msra.mxu0 %v509
        %526 = vmatpush.bf16.msra.mxu0 %v508
        %527 = vmatmul.bf16.gmra.mxu0 %v517
        %v528 = vpop.f32.mrf.mxu0
        %v529 = vadd.f32 0.0, %v528
        %v530 = vpop.f32.mrf.mxu0
        %v531 = vadd.f32 0.0, %v530
        %532 = vdwg.mxu0
        %v533 = vadd.f32 %v469, %v529
        %v534 = vadd.f32 %v470, %v531
        %s535 = scalar_lea.vmem %s1, 160
        %v536 = vld [vmem:[%s535] sm:$0xf]
        %v537 = vld [vmem:[%s535 + $0x4] sm:$0xf]
        %v538 = vld [vmem:[%s535 + $0x8] sm:$0xf]
        %v539 = vld [vmem:[%s535 + $0xc] sm:$0xf]
        %v540 = vld [vmem:[%s535 + $0x10] sm:$0xf]
        %v541 = vld [vmem:[%s535 + $0x14] sm:$0xf]
        %v542 = vld [vmem:[%s535 + $0x18] sm:$0xf]
        %v543 = vld [vmem:[%s535 + $0x1c] sm:$0xf]
        %v546 = vrot.slane %v418, 1
        %v547 = vrot.slane %v471, 1
        %v548 = vsel %vm365, %v546, %v547
        %v557 = vunpack.c.l.b16 %v536
        %v558 = vunpack.c.l.b16 %v537
        %v559 = vunpack.c.l.b16 %v538
        %v560 = vunpack.c.l.b16 %v539
        %v561 = vunpack.c.l.b16 %v540
        %v562 = vunpack.c.l.b16 %v541
        %v563 = vunpack.c.l.b16 %v542
        %v564 = vunpack.c.l.b16 %v543
        %v565 = vpack.c.b16 %v558, %v557
        %v566 = vpack.c.b16 %v560, %v559
        %v567 = vpack.c.b16 %v562, %v561
        %v568 = vpack.c.b16 %v564, %v563
        %v574 = vsel %vm296, %v548, 0
        %576 = vmatpush.bf16.msra.mxu0 0
        %577 = vmatpush.bf16.msra.mxu0 0
        %578 = vmatpush.bf16.msra.mxu0 0
        %579 = vmatpush.bf16.msra.mxu0 0
        %580 = vmatpush.bf16.msra.mxu0 %v568
        %581 = vmatpush.bf16.msra.mxu0 %v567
        %582 = vmatpush.bf16.msra.mxu0 %v566
        %583 = vmatpush.bf16.msra.mxu0 %v565
        %584 = vmatmul.bf16.gmra.mxu0 %v574
        %v585 = vpop.f32.mrf.mxu0
        %v586 = vadd.f32 0.0, %v585
        %v587 = vpop.f32.mrf.mxu0
        %v588 = vadd.f32 0.0, %v587
        %589 = vdwg.mxu0
        %v590 = vadd.f32 %v533, %v586
        %v591 = vadd.f32 %v534, %v588
        %s592 = sadd.s32 %s230, 2
        %s593 = smul.u32 %s592, 24
        %s594 = scalar_lea.vmem %s219, %s593
        %v595 = vld [vmem:[%s594] sm:$0xff]
        %v596 = vld [vmem:[%s594 + $0x8] sm:$0xff]
        %v597 = vld [vmem:[%s594 + $0x10] sm:$0x3]
        %v598 = vpack.c.bf16 %v596, %v595
        %s599 = scalar_lea.vmem %s1, 192
        %v600 = vld [vmem:[%s599] sm:$0xf]
        %v601 = vld [vmem:[%s599 + $0x4] sm:$0xf]
        %v602 = vld [vmem:[%s599 + $0x8] sm:$0xf]
        %v603 = vld [vmem:[%s599 + $0xc] sm:$0xf]
        %v604 = vld [vmem:[%s599 + $0x10] sm:$0xf]
        %v605 = vld [vmem:[%s599 + $0x14] sm:$0xf]
        %v606 = vld [vmem:[%s599 + $0x18] sm:$0xf]
        %v607 = vld [vmem:[%s599 + $0x1c] sm:$0xf]
        %v616 = vunpack.c.l.b16 %v600
        %v617 = vunpack.c.l.b16 %v601
        %v618 = vunpack.c.l.b16 %v602
        %v619 = vunpack.c.l.b16 %v603
        %v620 = vunpack.c.l.b16 %v604
        %v621 = vunpack.c.l.b16 %v605
        %v622 = vunpack.c.l.b16 %v606
        %v623 = vunpack.c.l.b16 %v607
        %v624 = vpack.c.b16 %v617, %v616
        %v625 = vpack.c.b16 %v619, %v618
        %v626 = vpack.c.b16 %v621, %v620
        %v627 = vpack.c.b16 %v623, %v622
        %v633 = vsel %vm296, %v598, 0
        %635 = vmatpush.bf16.msra.mxu0 0
        %636 = vmatpush.bf16.msra.mxu0 0
        %637 = vmatpush.bf16.msra.mxu0 0
        %638 = vmatpush.bf16.msra.mxu0 0
        %639 = vmatpush.bf16.msra.mxu0 %v627
        %640 = vmatpush.bf16.msra.mxu0 %v626
        %641 = vmatpush.bf16.msra.mxu0 %v625
        %642 = vmatpush.bf16.msra.mxu0 %v624
        %643 = vmatmul.bf16.gmra.mxu0 %v633
        %v644 = vpop.f32.mrf.mxu0
        %v645 = vadd.f32 0.0, %v644
        %v646 = vpop.f32.mrf.mxu0
        %v647 = vadd.f32 0.0, %v646
        %648 = vdwg.mxu0
        %v649 = vadd.f32 %v590, %v645
        %v650 = vadd.f32 %v591, %v647
        %v651 = vpack.c.bf16 %v597, %v597
        %s652 = scalar_lea.vmem %s1, 224
        %v653 = vld [vmem:[%s652] sm:$0xf]
        %v654 = vld [vmem:[%s652 + $0x4] sm:$0xf]
        %v655 = vld [vmem:[%s652 + $0x8] sm:$0xf]
        %v656 = vld [vmem:[%s652 + $0xc] sm:$0xf]
        %v657 = vld [vmem:[%s652 + $0x10] sm:$0xf]
        %v658 = vld [vmem:[%s652 + $0x14] sm:$0xf]
        %v659 = vld [vmem:[%s652 + $0x18] sm:$0xf]
        %v660 = vld [vmem:[%s652 + $0x1c] sm:$0xf]
        %v661 = vshrl.u32 %v598, 16
        %v663 = vshll.u32 %v598, 16
        %v665 = vrot.slane %v663, 1
        %v666 = vor.u32 %v661, %v665
        %v668 = vshll.u32 %v651, 16
        %v670 = vrot.slane %v668, 1
        %v671 = vsel %vm259, %v666, %v670
        %v680 = vunpack.c.l.b16 %v653
        %v681 = vunpack.c.l.b16 %v654
        %v682 = vunpack.c.l.b16 %v655
        %v683 = vunpack.c.l.b16 %v656
        %v684 = vunpack.c.l.b16 %v657
        %v685 = vunpack.c.l.b16 %v658
        %v686 = vunpack.c.l.b16 %v659
        %v687 = vunpack.c.l.b16 %v660
        %v688 = vpack.c.b16 %v681, %v680
        %v689 = vpack.c.b16 %v683, %v682
        %v690 = vpack.c.b16 %v685, %v684
        %v691 = vpack.c.b16 %v687, %v686
        %v697 = vsel %vm296, %v671, 0
        %699 = vmatpush.bf16.msra.mxu0 0
        %700 = vmatpush.bf16.msra.mxu0 0
        %701 = vmatpush.bf16.msra.mxu0 0
        %702 = vmatpush.bf16.msra.mxu0 0
        %703 = vmatpush.bf16.msra.mxu0 %v691
        %704 = vmatpush.bf16.msra.mxu0 %v690
        %705 = vmatpush.bf16.msra.mxu0 %v689
        %706 = vmatpush.bf16.msra.mxu0 %v688
        %707 = vmatmul.bf16.gmra.mxu0 %v697
        %v708 = vpop.f32.mrf.mxu0
        %v709 = vadd.f32 0.0, %v708
        %v710 = vpop.f32.mrf.mxu0
        %v711 = vadd.f32 0.0, %v710
        %712 = vdwg.mxu0
        %v713 = vadd.f32 %v649, %v709
        %v714 = vadd.f32 %v650, %v711
        %s715 = scalar_lea.vmem %s1, 256
        %v716 = vld [vmem:[%s715] sm:$0xf]
        %v717 = vld [vmem:[%s715 + $0x4] sm:$0xf]
        %v718 = vld [vmem:[%s715 + $0x8] sm:$0xf]
        %v719 = vld [vmem:[%s715 + $0xc] sm:$0xf]
        %v720 = vld [vmem:[%s715 + $0x10] sm:$0xf]
        %v721 = vld [vmem:[%s715 + $0x14] sm:$0xf]
        %v722 = vld [vmem:[%s715 + $0x18] sm:$0xf]
        %v723 = vld [vmem:[%s715 + $0x1c] sm:$0xf]
        %v726 = vrot.slane %v598, 1
        %v727 = vrot.slane %v651, 1
        %v728 = vsel %vm365, %v726, %v727
        %v737 = vunpack.c.l.b16 %v716
        %v738 = vunpack.c.l.b16 %v717
        %v739 = vunpack.c.l.b16 %v718
        %v740 = vunpack.c.l.b16 %v719
        %v741 = vunpack.c.l.b16 %v720
        %v742 = vunpack.c.l.b16 %v721
        %v743 = vunpack.c.l.b16 %v722
        %v744 = vunpack.c.l.b16 %v723
        %v745 = vpack.c.b16 %v738, %v737
        %v746 = vpack.c.b16 %v740, %v739
        %v747 = vpack.c.b16 %v742, %v741
        %v748 = vpack.c.b16 %v744, %v743
        %v754 = vsel %vm296, %v728, 0
        %756 = vmatpush.bf16.msra.mxu0 0
        %757 = vmatpush.bf16.msra.mxu0 0
        %758 = vmatpush.bf16.msra.mxu0 0
        %759 = vmatpush.bf16.msra.mxu0 0
        %760 = vmatpush.bf16.msra.mxu0 %v748
        %761 = vmatpush.bf16.msra.mxu0 %v747
        %762 = vmatpush.bf16.msra.mxu0 %v746
        %763 = vmatpush.bf16.msra.mxu0 %v745
        %764 = vmatmul.bf16.gmra.mxu0 %v754
        %v765 = vpop.f32.mrf.mxu0
        %v766 = vadd.f32 0.0, %v765
        %v767 = vpop.f32.mrf.mxu0
        %v768 = vadd.f32 0.0, %v767
        %769 = vdwg.mxu0
        %v770 = vadd.f32 %v713, %v766
        %v771 = vadd.f32 %v714, %v768
        %v773 = vperm.slane %v226, 0
        %v775 = vadd.f32 %v770, %v773
        %v776 = vadd.f32 %v771, %v773
        %v777 = vmax.f32 %v775, 0.0
        %v778 = vmax.f32 %v776, 0.0
        %v779 = vmin.f32 %v777, 20.0
        %v780 = vmin.f32 %v778, 20.0
        %v782 = vperm.slane %v227, 0
        %v784 = vmul.f32 %v779, %v782
        %v785 = vmul.f32 %v780, %v782
        %v787 = vperm.slane %v228, 0
        %v789 = vadd.f32 %v784, %v787
        %v790 = vadd.f32 %v785, %v787
        %s791 = smul.u32 %s230, 16
        %s792 = scalar_lea.vmem %s224, %s791
        %793 = vst.msk [vmem:[%s792] sm:$0xff] %vm296, %v789
        %794 = vst.msk [vmem:[%s792 + $0x8] sm:$0xff] %vm296, %v790
      $region45: #{listener_forward.16} parent=39 // loop_footer
        %s234 = sadd.s32 1, %s230
      $region46: #{listener_forward.16} parent=39 // loop_footer_branch
        %229 = sbr.rel target = $region42
      $region47: #{listener_forward.16} parent=39 // loop_exit
        _
      %p795 = scmp.lt.s32.totalorder %s16, 1
      %s796 = scalar_select %p795, %s16, 1
      %s797 = smul.addr %s796, 32
      %s798 = smul.addr %s797, 8
      %s799 = scalar_lea.vmem %s5, %s798
      // Predicated region
      $region48: #{listener_forward.16} parent=39 // pred_check
        %p800 = pneg %p144
      $region49: #{listener_forward.16} parent=39 // pred_check_branch
        %802 = sbr.rel (%p800) target = $region51
      $region50: #{listener_forward.16} parent=39 // pred_region
        _
      $region51: #{listener_forward.16} parent=39 // pred_fallthru
        _
    $region40: #{listener_forward.16} parent=5 // pred_fallthru
      _
    %p803 = scmp.le.s32.totalorder 2, %s11
    // Predicated region
    $region52: #{listener_forward.16} parent=5 // pred_check
      %p804 = pneg %p803
    $region53: #{listener_forward.16} parent=5 // pred_check_branch
      %806 = sbr.rel (%p804) target = $region55
    $region54: #{listener_forward.16} parent=5 // pred_region
      %s807 = ssub.s32 %s11, 2
      // Predicated region
      $region56: #{listener_forward.16} parent=54 // pred_check
        %p808 = pneg %p150
      $region57: #{listener_forward.16} parent=54 // pred_check_branch
        %810 = sbr.rel (%p808) target = $region59
      $region58: #{listener_forward.16} parent=54 // pred_region
        %p811 = scmp.lt.s32.totalorder %s17, 1
        %s812 = scalar_select %p811, %s17, 1
        %s813 = smul.addr %s812, 32
        %s814 = smul.addr %s813, 8
        %s815 = scalar_lea.vmem %s5, %s814
      $region59: #{listener_forward.16} parent=54 // pred_fallthru
        _
    $region55: #{listener_forward.16} parent=5 // pred_fallthru
      _
  $region6: #{listener_forward.16} parent=0 // loop_footer
    %s15 = sadd.s32 1, %s11
  $region7: #{listener_forward.16} parent=0 // loop_footer_branch
    %10 = sbr.rel target = $region3
  $region8: #{listener_forward.16} parent=0 // loop_exit
    _

// kernel: listener_forward.17
$region0: #{listener_forward.17}
  #allocation0 [shape = 'u32[]', space=smem, size = 0x4, offset = 0x4, fixed_abs, tag = 'smem constant byte address 0x4 - core index']
  #allocation1 [shape = 'u32[72,128]{1,0:T(1,128)}', space=vmem, size = 0x9000, scoped, tag = 'internal scratch']
  %s0 = inlined_call_operand.vmem [shape: f32[2,10,10,64], index: 0, kind: input, shape index: {}]
  %s1 = inlined_call_operand.vmem [shape: bf16[9,64,128], index: 1, kind: input, shape index: {}]
  %s2 = inlined_call_operand.vmem [shape: f32[1,128], index: 2, kind: input, shape index: {}]
  %s3 = inlined_call_operand.vmem [shape: f32[1,128], index: 3, kind: input, shape index: {}]
  %s4 = inlined_call_operand.vmem [shape: f32[1,128], index: 4, kind: input, shape index: {}]
  %s5 = inlined_call_operand.vmem [shape: f32[2,8,8,128], index: 5, kind: output, shape index: {}]
  %s6 = sld [smem:[#allocation0]]
  $region60: #{listener_forward.17} parent=0
    _
  %s8 = ssub.s32 1, %s6
  %s9 = scalar_select 0, %s8, %s6
  loop: start=0, step=1, limit=4
  $region2: #{listener_forward.17} parent=0 // loop_pre_header
    _
  $region3: #{listener_forward.17} parent=0 // loop_header
    %s11 = sphi 0, %s15
    %p12 = scmp.ge.s32.totalorder %s11, 4
    %s21 = sphi 0, %s23
    %s24 = sphi 0, %s21
    %s25 = sphi 0, %s24
    %s41 = sphi 0, %s25
    %s45 = sphi 0, %s45
    %s47 = sphi 0, %s45
    %s48 = sphi 0, %s47
    %s62 = sphi 0, %s48
    %s66 = sphi 0, %s66
    %s68 = sphi 0, %s66
    %s69 = sphi 0, %s68
    %s83 = sphi 0, %s69
    %s87 = sphi 0, %s87
    %s89 = sphi 0, %s87
    %s90 = sphi 0, %s89
    %s104 = sphi 0, %s90
    %s108 = sphi 0, %s108
    %s110 = sphi 0, %s108
    %s111 = sphi 0, %s110
    %s125 = sphi 0, %s111
    %s131 = sphi 0, %s133
    %s134 = sphi 0, %s131
    %s135 = sphi 0, %s134
    %s151 = sphi 0, %s135
  $region4: #{listener_forward.17} parent=0 // loop_header_branch
    %14 = sbr.rel (%p12) target = $region8
  $region5: #{listener_forward.17} parent=0 // loop_body
    %s16 = ssub.s32 %s11, 1
    %s17 = ssub.s32 %s11, 2
    %s18 = sadd.s32 %s11, 1
    %s19 = ssub.s32 %s11, %s18
    %p20 = scmp.eq.s32.totalorder %s19, 0
    %s22 = sadd.s32 %s21, 1
    %s23 = scalar_select %p20, %s21, %s22
    %p26 = pneg %p20
    %p27 = scmp.eq.s32.totalorder %s11, 1
    %p28 = por %p26, %p27
    %p29 = scmp.ne.s32.totalorder %s21, %s24
    %p30 = scmp.eq.s32.totalorder %s11, 0
    %p31 = por %p29, %p30
    %p32 = scmp.ne.s32.totalorder %s21, %s24
    %p33 = scmp.eq.s32.totalorder %s16, 1
    %p34 = por %p32, %p33
    %p35 = scmp.ne.s32.totalorder %s24, %s25
    %p36 = scmp.eq.s32.totalorder %s16, 0
    %p37 = por %p35, %p36
    %p38 = scmp.ne.s32.totalorder %s24, %s25
    %p39 = scmp.eq.s32.totalorder %s17, 1
    %p40 = por %p38, %p39
    %p42 = scmp.ne.s32.totalorder %s25, %s41
    %p43 = scmp.eq.s32.totalorder %s17, 0
    %p44 = por %p42, %p43
    %s46 = sadd.s32 %s45, 1
    %p49 = scmp.eq.s32.totalorder %s11, 1
    %p50 = scmp.ne.s32.totalorder %s45, %s47
    %p51 = scmp.eq.s32.totalorder %s11, 0
    %p52 = por %p50, %p51
    %p53 = scmp.ne.s32.totalorder %s45, %s47
    %p54 = scmp.eq.s32.totalorder %s16, 1
    %p55 = por %p53, %p54
    %p56 = scmp.ne.s32.totalorder %s47, %s48
    %p57 = scmp.eq.s32.totalorder %s16, 0
    %p58 = por %p56, %p57
    %p59 = scmp.ne.s32.totalorder %s47, %s48
    %p60 = scmp.eq.s32.totalorder %s17, 1
    %p61 = por %p59, %p60
    %p63 = scmp.ne.s32.totalorder %s48, %s62
    %p64 = scmp.eq.s32.totalorder %s17, 0
    %p65 = por %p63, %p64
    %s67 = sadd.s32 %s66, 1
    %p70 = scmp.eq.s32.totalorder %s11, 1
    %p71 = scmp.ne.s32.totalorder %s66, %s68
    %p72 = scmp.eq.s32.totalorder %s11, 0
    %p73 = por %p71, %p72
    %p74 = scmp.ne.s32.totalorder %s66, %s68
    %p75 = scmp.eq.s32.totalorder %s16, 1
    %p76 = por %p74, %p75
    %p77 = scmp.ne.s32.totalorder %s68, %s69
    %p78 = scmp.eq.s32.totalorder %s16, 0
    %p79 = por %p77, %p78
    %p80 = scmp.ne.s32.totalorder %s68, %s69
    %p81 = scmp.eq.s32.totalorder %s17, 1
    %p82 = por %p80, %p81
    %p84 = scmp.ne.s32.totalorder %s69, %s83
    %p85 = scmp.eq.s32.totalorder %s17, 0
    %p86 = por %p84, %p85
    %s88 = sadd.s32 %s87, 1
    %p91 = scmp.eq.s32.totalorder %s11, 1
    %p92 = scmp.ne.s32.totalorder %s87, %s89
    %p93 = scmp.eq.s32.totalorder %s11, 0
    %p94 = por %p92, %p93
    %p95 = scmp.ne.s32.totalorder %s87, %s89
    %p96 = scmp.eq.s32.totalorder %s16, 1
    %p97 = por %p95, %p96
    %p98 = scmp.ne.s32.totalorder %s89, %s90
    %p99 = scmp.eq.s32.totalorder %s16, 0
    %p100 = por %p98, %p99
    %p101 = scmp.ne.s32.totalorder %s89, %s90
    %p102 = scmp.eq.s32.totalorder %s17, 1
    %p103 = por %p101, %p102
    %p105 = scmp.ne.s32.totalorder %s90, %s104
    %p106 = scmp.eq.s32.totalorder %s17, 0
    %p107 = por %p105, %p106
    %s109 = sadd.s32 %s108, 1
    %p112 = scmp.eq.s32.totalorder %s11, 1
    %p113 = scmp.ne.s32.totalorder %s108, %s110
    %p114 = scmp.eq.s32.totalorder %s11, 0
    %p115 = por %p113, %p114
    %p116 = scmp.ne.s32.totalorder %s108, %s110
    %p117 = scmp.eq.s32.totalorder %s16, 1
    %p118 = por %p116, %p117
    %p119 = scmp.ne.s32.totalorder %s110, %s111
    %p120 = scmp.eq.s32.totalorder %s16, 0
    %p121 = por %p119, %p120
    %p122 = scmp.ne.s32.totalorder %s110, %s111
    %p123 = scmp.eq.s32.totalorder %s17, 1
    %p124 = por %p122, %p123
    %p126 = scmp.ne.s32.totalorder %s111, %s125
    %p127 = scmp.eq.s32.totalorder %s17, 0
    %p128 = por %p126, %p127
    %s129 = ssub.s32 %s11, %s18
    %p130 = scmp.eq.s32.totalorder %s129, 0
    %s132 = sadd.s32 %s131, 1
    %s133 = scalar_select %p130, %s131, %s132
    %p136 = pneg %p130
    %p137 = scmp.eq.s32.totalorder %s11, 1
    %p138 = por %p136, %p137
    %p139 = scmp.ne.s32.totalorder %s131, %s134
    %p140 = scmp.eq.s32.totalorder %s11, 0
    %p141 = por %p139, %p140
    %p142 = scmp.ne.s32.totalorder %s131, %s134
    %p143 = scmp.eq.s32.totalorder %s16, 1
    %p144 = por %p142, %p143
    %p145 = scmp.ne.s32.totalorder %s134, %s135
    %p146 = scmp.eq.s32.totalorder %s16, 0
    %p147 = por %p145, %p146
    %p148 = scmp.ne.s32.totalorder %s134, %s135
    %p149 = scmp.eq.s32.totalorder %s17, 1
    %p150 = por %p148, %p149
    %p152 = scmp.ne.s32.totalorder %s135, %s151
    %p153 = scmp.eq.s32.totalorder %s17, 0
    %p154 = por %p152, %p153
    %p155 = scmp.le.s32.totalorder 1, %s11
    %p156 = scmp.lt.s32.totalorder %s11, 3
    %p157 = pnand %p155, %p156
    %p158 = pneg %p157
    // Predicated region
    $region9: #{listener_forward.17} parent=5 // pred_check
      _
    $region10: #{listener_forward.17} parent=5 // pred_check_branch
      %160 = sbr.rel (%p157) target = $region12
    $region11: #{listener_forward.17} parent=5 // pred_region
      %s161 = ssub.s32 %s11, 1
      // Predicated region
      $region13: #{listener_forward.17} parent=11 // pred_check
        %p162 = pneg %p58
      $region14: #{listener_forward.17} parent=11 // pred_check_branch
        %164 = sbr.rel (%p162) target = $region16
      $region15: #{listener_forward.17} parent=11 // pred_region
        _
      $region16: #{listener_forward.17} parent=11 // pred_fallthru
        _
      // Predicated region
      $region17: #{listener_forward.17} parent=11 // pred_check
        %p165 = pneg %p79
      $region18: #{listener_forward.17} parent=11 // pred_check_branch
        %167 = sbr.rel (%p165) target = $region20
      $region19: #{listener_forward.17} parent=11 // pred_region
        _
      $region20: #{listener_forward.17} parent=11 // pred_fallthru
        _
      // Predicated region
      $region21: #{listener_forward.17} parent=11 // pred_check
        %p168 = pneg %p100
      $region22: #{listener_forward.17} parent=11 // pred_check_branch
        %170 = sbr.rel (%p168) target = $region24
      $region23: #{listener_forward.17} parent=11 // pred_region
        _
      $region24: #{listener_forward.17} parent=11 // pred_fallthru
        _
      // Predicated region
      $region25: #{listener_forward.17} parent=11 // pred_check
        %p171 = pneg %p121
      $region26: #{listener_forward.17} parent=11 // pred_check_branch
        %173 = sbr.rel (%p171) target = $region28
      $region27: #{listener_forward.17} parent=11 // pred_region
        _
      $region28: #{listener_forward.17} parent=11 // pred_fallthru
        _
    $region12: #{listener_forward.17} parent=5 // pred_fallthru
      _
    %p174 = scmp.lt.s32.totalorder %s11, 2
    // Predicated region
    $region29: #{listener_forward.17} parent=5 // pred_check
      %p175 = pneg %p174
    $region30: #{listener_forward.17} parent=5 // pred_check_branch
      %177 = sbr.rel (%p175) target = $region32
    $region31: #{listener_forward.17} parent=5 // pred_region
      // Predicated region
      $region33: #{listener_forward.17} parent=31 // pred_check
        %p178 = pneg %p31
      $region34: #{listener_forward.17} parent=31 // pred_check_branch
        %180 = sbr.rel (%p178) target = $region36
      $region35: #{listener_forward.17} parent=31 // pred_region
        %p181 = scmp.lt.s32.totalorder %s11, 1
        %s182 = scalar_select %p181, %s11, 1
        %s183 = smul.addr %s182, 20
        %s184 = smul.addr %s183, 8
        %s185 = scalar_lea.vmem %s0, %s184
      $region36: #{listener_forward.17} parent=31 // pred_fallthru
        _
    $region32: #{listener_forward.17} parent=5 // pred_fallthru
      _
    %p186 = scmp.le.s32.totalorder 1, %s11
    %p187 = scmp.lt.s32.totalorder %s11, 3
    %p188 = pnand %p186, %p187
    %p189 = pneg %p188
    // Predicated region
    $region37: #{listener_forward.17} parent=5 // pred_check
      _
    $region38: #{listener_forward.17} parent=5 // pred_check_branch
      %191 = sbr.rel (%p188) target = $region40
    $region39: #{listener_forward.17} parent=5 // pred_region
      %s192 = ssub.s32 %s11, 1
      %p193 = scmp.lt.s32.totalorder %s16, 1
      %s194 = scalar_select %p193, %s16, 1
      %s195 = smul.addr %s194, 20
      %s196 = smul.addr %s195, 8
      %s197 = scalar_lea.vmem %s0, %s196
      %p198 = pneg %p37
      %p199 = pneg %p34
      %p200 = pneg %p58
      %p201 = pneg %p55
      %p202 = pneg %p79
      %p203 = pneg %p76
      %p204 = pneg %p100
      %p205 = pneg %p97
      %p206 = pneg %p121
      %p207 = pneg %p118
      %p208 = pneg %p147
      %p209 = pneg %p144
      %p210 = scmp.lt.s32.totalorder %s16, 1
      %s211 = scalar_select %p210, %s16, 1
      %s212 = smul.addr %s211, 8
      %s213 = smul.addr %s212, 8
      %s214 = scalar_lea.vmem %s5, %s213
      %p215 = scmp.lt.s32.totalorder %s16, 1
      %s216 = scalar_select %p215, %s16, 1
      %s217 = smul.addr %s216, 20
      %s218 = smul.addr %s217, 8
      %s219 = scalar_lea.vmem %s0, %s218
      %p220 = scmp.lt.s32.totalorder %s16, 1
      %s221 = scalar_select %p220, %s16, 1
      %s222 = smul.addr %s221, 8
      %s223 = smul.addr %s222, 8
      %s224 = scalar_lea.vmem %s5, %s223
      %v226 = vld [vmem:[%s2] sm:$0x1]
      %v227 = vld [vmem:[%s3] sm:$0x1]
      %v228 = vld [vmem:[%s4] sm:$0x1]
      loop: start=0, step=1, limit=8
      $region41: #{listener_forward.17} parent=39 // loop_pre_header
        _
      $region42: #{listener_forward.17} parent=39 // loop_header
        %s230 = sphi 0, %s234
        %p231 = scmp.ge.s32.totalorder %s230, 8
      $region43: #{listener_forward.17} parent=39 // loop_header_branch
        %233 = sbr.rel (%p231) target = $region47
      $region44: #{listener_forward.17} parent=39 // loop_body
        %s235 = smul.u32 %s230, 16
        %s236 = scalar_lea.vmem %s219, %s235
        %v237 = vld [vmem:[%s236] sm:$0xff]
        %v238 = vld [vmem:[%s236 + $0x8] sm:$0x3]
        %v239 = vpack.c.bf16 %v237, %v237
        %v240 = vld [vmem:[%s1] sm:$0xf]
        %v241 = vld [vmem:[%s1 + $0x4] sm:$0xf]
        %v242 = vld [vmem:[%s1 + $0x8] sm:$0xf]
        %v243 = vld [vmem:[%s1 + $0xc] sm:$0xf]
        %v244 = vld [vmem:[%s1 + $0x10] sm:$0xf]
        %v245 = vld [vmem:[%s1 + $0x14] sm:$0xf]
        %v246 = vld [vmem:[%s1 + $0x18] sm:$0xf]
        %v247 = vld [vmem:[%s1 + $0x1c] sm:$0xf]
        %v248 = vpack.c.bf16 %v238, %v237
        %s249 = scalar_lea.vmem %s1, 32
        %v250 = vld [vmem:[%s249] sm:$0xf]
        %v251 = vld [vmem:[%s249 + $0x4] sm:$0xf]
        %v252 = vld [vmem:[%s249 + $0x8] sm:$0xf]
        %v253 = vld [vmem:[%s249 + $0xc] sm:$0xf]
        %v254 = vld [vmem:[%s249 + $0x10] sm:$0xf]
        %v255 = vld [vmem:[%s249 + $0x14] sm:$0xf]
        %v256 = vld [vmem:[%s249 + $0x18] sm:$0xf]
        %v257 = vld [vmem:[%s249 + $0x1c] sm:$0xf]
        %v259 = vshrl.u32 %v248, 16
        %v261 = vshll.u32 %v248, 16
        %v263 = vrot.slane %v261, 1
        %v264 = vor.u32 %v259, %v263
        %v273 = vunpack.c.l.b16 %v250
        %v274 = vunpack.c.l.b16 %v251
        %v275 = vunpack.c.l.b16 %v252
        %v276 = vunpack.c.l.b16 %v253
        %v277 = vunpack.c.l.b16 %v254
        %v278 = vunpack.c.l.b16 %v255
        %v279 = vunpack.c.l.b16 %v256
        %v280 = vunpack.c.l.b16 %v257
        %v281 = vpack.c.b16 %v274, %v273
        %v282 = vpack.c.b16 %v276, %v275
        %v283 = vpack.c.b16 %v278, %v277
        %v284 = vpack.c.b16 %v280, %v279
        %vm289 = vcmask 523264
        %v291 = vsel %vm289, %v264, 0
        %293 = vmatpush.bf16.msra.mxu0 0
        %294 = vmatpush.bf16.msra.mxu0 0
        %295 = vmatpush.bf16.msra.mxu0 0
        %296 = vmatpush.bf16.msra.mxu0 0
        %297 = vmatpush.bf16.msra.mxu0 %v284
        %298 = vmatpush.bf16.msra.mxu0 %v283
        %299 = vmatpush.bf16.msra.mxu0 %v282
        %300 = vmatpush.bf16.msra.mxu0 %v281
        %301 = vmatmul.bf16.gmra.mxu0 %v291
        %v302 = vpop.f32.mrf.mxu0
        %v303 = vadd.f32 0.0, %v302
        %v304 = vpop.f32.mrf.mxu0
        %305 = vdwg.mxu0
        %v314 = vunpack.c.l.b16 %v240
        %v315 = vunpack.c.l.b16 %v241
        %v316 = vunpack.c.l.b16 %v242
        %v317 = vunpack.c.l.b16 %v243
        %v318 = vunpack.c.l.b16 %v244
        %v319 = vunpack.c.l.b16 %v245
        %v320 = vunpack.c.l.b16 %v246
        %v321 = vunpack.c.l.b16 %v247
        %v322 = vpack.c.b16 %v315, %v314
        %v323 = vpack.c.b16 %v317, %v316
        %v324 = vpack.c.b16 %v319, %v318
        %v325 = vpack.c.b16 %v321, %v320
        %v331 = vsel %vm289, %v239, 0
        %333 = vmatpush.bf16.msra.mxu0 0
        %334 = vmatpush.bf16.msra.mxu0 0
        %335 = vmatpush.bf16.msra.mxu0 0
        %336 = vmatpush.bf16.msra.mxu0 0
        %337 = vmatpush.bf16.msra.mxu0 %v325
        %338 = vmatpush.bf16.msra.mxu0 %v324
        %339 = vmatpush.bf16.msra.mxu0 %v323
        %340 = vmatpush.bf16.msra.mxu0 %v322
        %341 = vmatmul.bf16.gmra.mxu0 %v331
        %v342 = vpop.f32.mrf.mxu0
        %v343 = vadd.f32 %v303, %v342
        %v344 = vpop.f32.mrf.mxu0
        %345 = vdwg.mxu0
        %s346 = scalar_lea.vmem %s1, 64
        %v347 = vld [vmem:[%s346] sm:$0xf]
        %v348 = vld [vmem:[%s346 + $0x4] sm:$0xf]
        %v349 = vld [vmem:[%s346 + $0x8] sm:$0xf]
        %v350 = vld [vmem:[%s346 + $0xc] sm:$0xf]
        %v351 = vld [vmem:[%s346 + $0x10] sm:$0xf]
        %v352 = vld [vmem:[%s346 + $0x14] sm:$0xf]
        %v353 = vld [vmem:[%s346 + $0x18] sm:$0xf]
        %v354 = vld [vmem:[%s346 + $0x1c] sm:$0xf]
        %v356 = vrot.slane %v248, 1
        %v365 = vunpack.c.l.b16 %v347
        %v366 = vunpack.c.l.b16 %v348
        %v367 = vunpack.c.l.b16 %v349
        %v368 = vunpack.c.l.b16 %v350
        %v369 = vunpack.c.l.b16 %v351
        %v370 = vunpack.c.l.b16 %v352
        %v371 = vunpack.c.l.b16 %v353
        %v372 = vunpack.c.l.b16 %v354
        %v373 = vpack.c.b16 %v366, %v365
        %v374 = vpack.c.b16 %v368, %v367
        %v375 = vpack.c.b16 %v370, %v369
        %v376 = vpack.c.b16 %v372, %v371
        %v382 = vsel %vm289, %v356, 0
        %384 = vmatpush.bf16.msra.mxu0 0
        %385 = vmatpush.bf16.msra.mxu0 0
        %386 = vmatpush.bf16.msra.mxu0 0
        %387 = vmatpush.bf16.msra.mxu0 0
        %388 = vmatpush.bf16.msra.mxu0 %v376
        %389 = vmatpush.bf16.msra.mxu0 %v375
        %390 = vmatpush.bf16.msra.mxu0 %v374
        %391 = vmatpush.bf16.msra.mxu0 %v373
        %392 = vmatmul.bf16.gmra.mxu0 %v382
        %v393 = vpop.f32.mrf.mxu0
        %v394 = vadd.f32 0.0, %v393
        %v395 = vpop.f32.mrf.mxu0
        %396 = vdwg.mxu0
        %v397 = vadd.f32 %v343, %v394
        %s398 = sadd.s32 %s230, 1
        %s399 = smul.u32 %s398, 16
        %s400 = scalar_lea.vmem %s219, %s399
        %v401 = vld [vmem:[%s400] sm:$0xff]
        %v402 = vld [vmem:[%s400 + $0x8] sm:$0x3]
        %v403 = vpack.c.bf16 %v401, %v401
        %s404 = scalar_lea.vmem %s1, 96
        %v405 = vld [vmem:[%s404] sm:$0xf]
        %v406 = vld [vmem:[%s404 + $0x4] sm:$0xf]
        %v407 = vld [vmem:[%s404 + $0x8] sm:$0xf]
        %v408 = vld [vmem:[%s404 + $0xc] sm:$0xf]
        %v409 = vld [vmem:[%s404 + $0x10] sm:$0xf]
        %v410 = vld [vmem:[%s404 + $0x14] sm:$0xf]
        %v411 = vld [vmem:[%s404 + $0x18] sm:$0xf]
        %v412 = vld [vmem:[%s404 + $0x1c] sm:$0xf]
        %v421 = vunpack.c.l.b16 %v405
        %v422 = vunpack.c.l.b16 %v406
        %v423 = vunpack.c.l.b16 %v407
        %v424 = vunpack.c.l.b16 %v408
        %v425 = vunpack.c.l.b16 %v409
        %v426 = vunpack.c.l.b16 %v410
        %v427 = vunpack.c.l.b16 %v411
        %v428 = vunpack.c.l.b16 %v412
        %v429 = vpack.c.b16 %v422, %v421
        %v430 = vpack.c.b16 %v424, %v423
        %v431 = vpack.c.b16 %v426, %v425
        %v432 = vpack.c.b16 %v428, %v427
        %v438 = vsel %vm289, %v403, 0
        %440 = vmatpush.bf16.msra.mxu0 0
        %441 = vmatpush.bf16.msra.mxu0 0
        %442 = vmatpush.bf16.msra.mxu0 0
        %443 = vmatpush.bf16.msra.mxu0 0
        %444 = vmatpush.bf16.msra.mxu0 %v432
        %445 = vmatpush.bf16.msra.mxu0 %v431
        %446 = vmatpush.bf16.msra.mxu0 %v430
        %447 = vmatpush.bf16.msra.mxu0 %v429
        %448 = vmatmul.bf16.gmra.mxu0 %v438
        %v449 = vpop.f32.mrf.mxu0
        %v450 = vadd.f32 0.0, %v449
        %v451 = vpop.f32.mrf.mxu0
        %452 = vdwg.mxu0
        %v453 = vadd.f32 %v397, %v450
        %v454 = vpack.c.bf16 %v402, %v401
        %s455 = scalar_lea.vmem %s1, 128
        %v456 = vld [vmem:[%s455] sm:$0xf]
        %v457 = vld [vmem:[%s455 + $0x4] sm:$0xf]
        %v458 = vld [vmem:[%s455 + $0x8] sm:$0xf]
        %v459 = vld [vmem:[%s455 + $0xc] sm:$0xf]
        %v460 = vld [vmem:[%s455 + $0x10] sm:$0xf]
        %v461 = vld [vmem:[%s455 + $0x14] sm:$0xf]
        %v462 = vld [vmem:[%s455 + $0x18] sm:$0xf]
        %v463 = vld [vmem:[%s455 + $0x1c] sm:$0xf]
        %v465 = vshrl.u32 %v454, 16
        %v467 = vshll.u32 %v454, 16
        %v469 = vrot.slane %v467, 1
        %v470 = vor.u32 %v465, %v469
        %v479 = vunpack.c.l.b16 %v456
        %v480 = vunpack.c.l.b16 %v457
        %v481 = vunpack.c.l.b16 %v458
        %v482 = vunpack.c.l.b16 %v459
        %v483 = vunpack.c.l.b16 %v460
        %v484 = vunpack.c.l.b16 %v461
        %v485 = vunpack.c.l.b16 %v462
        %v486 = vunpack.c.l.b16 %v463
        %v487 = vpack.c.b16 %v480, %v479
        %v488 = vpack.c.b16 %v482, %v481
        %v489 = vpack.c.b16 %v484, %v483
        %v490 = vpack.c.b16 %v486, %v485
        %v496 = vsel %vm289, %v470, 0
        %498 = vmatpush.bf16.msra.mxu0 0
        %499 = vmatpush.bf16.msra.mxu0 0
        %500 = vmatpush.bf16.msra.mxu0 0
        %501 = vmatpush.bf16.msra.mxu0 0
        %502 = vmatpush.bf16.msra.mxu0 %v490
        %503 = vmatpush.bf16.msra.mxu0 %v489
        %504 = vmatpush.bf16.msra.mxu0 %v488
        %505 = vmatpush.bf16.msra.mxu0 %v487
        %506 = vmatmul.bf16.gmra.mxu0 %v496
        %v507 = vpop.f32.mrf.mxu0
        %v508 = vadd.f32 0.0, %v507
        %v509 = vpop.f32.mrf.mxu0
        %510 = vdwg.mxu0
        %v511 = vadd.f32 %v453, %v508
        %s512 = scalar_lea.vmem %s1, 160
        %v513 = vld [vmem:[%s512] sm:$0xf]
        %v514 = vld [vmem:[%s512 + $0x4] sm:$0xf]
        %v515 = vld [vmem:[%s512 + $0x8] sm:$0xf]
        %v516 = vld [vmem:[%s512 + $0xc] sm:$0xf]
        %v517 = vld [vmem:[%s512 + $0x10] sm:$0xf]
        %v518 = vld [vmem:[%s512 + $0x14] sm:$0xf]
        %v519 = vld [vmem:[%s512 + $0x18] sm:$0xf]
        %v520 = vld [vmem:[%s512 + $0x1c] sm:$0xf]
        %v522 = vrot.slane %v454, 1
        %v531 = vunpack.c.l.b16 %v513
        %v532 = vunpack.c.l.b16 %v514
        %v533 = vunpack.c.l.b16 %v515
        %v534 = vunpack.c.l.b16 %v516
        %v535 = vunpack.c.l.b16 %v517
        %v536 = vunpack.c.l.b16 %v518
        %v537 = vunpack.c.l.b16 %v519
        %v538 = vunpack.c.l.b16 %v520
        %v539 = vpack.c.b16 %v532, %v531
        %v540 = vpack.c.b16 %v534, %v533
        %v541 = vpack.c.b16 %v536, %v535
        %v542 = vpack.c.b16 %v538, %v537
        %v548 = vsel %vm289, %v522, 0
        %550 = vmatpush.bf16.msra.mxu0 0
        %551 = vmatpush.bf16.msra.mxu0 0
        %552 = vmatpush.bf16.msra.mxu0 0
        %553 = vmatpush.bf16.msra.mxu0 0
        %554 = vmatpush.bf16.msra.mxu0 %v542
        %555 = vmatpush.bf16.msra.mxu0 %v541
        %556 = vmatpush.bf16.msra.mxu0 %v540
        %557 = vmatpush.bf16.msra.mxu0 %v539
        %558 = vmatmul.bf16.gmra.mxu0 %v548
        %v559 = vpop.f32.mrf.mxu0
        %v560 = vadd.f32 0.0, %v559
        %v561 = vpop.f32.mrf.mxu0
        %562 = vdwg.mxu0
        %v563 = vadd.f32 %v511, %v560
        %s564 = sadd.s32 %s230, 2
        %s565 = smul.u32 %s564, 16
        %s566 = scalar_lea.vmem %s219, %s565
        %v567 = vld [vmem:[%s566] sm:$0xff]
        %v568 = vld [vmem:[%s566 + $0x8] sm:$0x3]
        %v569 = vpack.c.bf16 %v567, %v567
        %s570 = scalar_lea.vmem %s1, 192
        %v571 = vld [vmem:[%s570] sm:$0xf]
        %v572 = vld [vmem:[%s570 + $0x4] sm:$0xf]
        %v573 = vld [vmem:[%s570 + $0x8] sm:$0xf]
        %v574 = vld [vmem:[%s570 + $0xc] sm:$0xf]
        %v575 = vld [vmem:[%s570 + $0x10] sm:$0xf]
        %v576 = vld [vmem:[%s570 + $0x14] sm:$0xf]
        %v577 = vld [vmem:[%s570 + $0x18] sm:$0xf]
        %v578 = vld [vmem:[%s570 + $0x1c] sm:$0xf]
        %v587 = vunpack.c.l.b16 %v571
        %v588 = vunpack.c.l.b16 %v572
        %v589 = vunpack.c.l.b16 %v573
        %v590 = vunpack.c.l.b16 %v574
        %v591 = vunpack.c.l.b16 %v575
        %v592 = vunpack.c.l.b16 %v576
        %v593 = vunpack.c.l.b16 %v577
        %v594 = vunpack.c.l.b16 %v578
        %v595 = vpack.c.b16 %v588, %v587
        %v596 = vpack.c.b16 %v590, %v589
        %v597 = vpack.c.b16 %v592, %v591
        %v598 = vpack.c.b16 %v594, %v593
        %v604 = vsel %vm289, %v569, 0
        %606 = vmatpush.bf16.msra.mxu0 0
        %607 = vmatpush.bf16.msra.mxu0 0
        %608 = vmatpush.bf16.msra.mxu0 0
        %609 = vmatpush.bf16.msra.mxu0 0
        %610 = vmatpush.bf16.msra.mxu0 %v598
        %611 = vmatpush.bf16.msra.mxu0 %v597
        %612 = vmatpush.bf16.msra.mxu0 %v596
        %613 = vmatpush.bf16.msra.mxu0 %v595
        %614 = vmatmul.bf16.gmra.mxu0 %v604
        %v615 = vpop.f32.mrf.mxu0
        %v616 = vadd.f32 0.0, %v615
        %v617 = vpop.f32.mrf.mxu0
        %618 = vdwg.mxu0
        %v619 = vadd.f32 %v563, %v616
        %v620 = vpack.c.bf16 %v568, %v567
        %s621 = scalar_lea.vmem %s1, 224
        %v622 = vld [vmem:[%s621] sm:$0xf]
        %v623 = vld [vmem:[%s621 + $0x4] sm:$0xf]
        %v624 = vld [vmem:[%s621 + $0x8] sm:$0xf]
        %v625 = vld [vmem:[%s621 + $0xc] sm:$0xf]
        %v626 = vld [vmem:[%s621 + $0x10] sm:$0xf]
        %v627 = vld [vmem:[%s621 + $0x14] sm:$0xf]
        %v628 = vld [vmem:[%s621 + $0x18] sm:$0xf]
        %v629 = vld [vmem:[%s621 + $0x1c] sm:$0xf]
        %v631 = vshrl.u32 %v620, 16
        %v633 = vshll.u32 %v620, 16
        %v635 = vrot.slane %v633, 1
        %v636 = vor.u32 %v631, %v635
        %v645 = vunpack.c.l.b16 %v622
        %v646 = vunpack.c.l.b16 %v623
        %v647 = vunpack.c.l.b16 %v624
        %v648 = vunpack.c.l.b16 %v625
        %v649 = vunpack.c.l.b16 %v626
        %v650 = vunpack.c.l.b16 %v627
        %v651 = vunpack.c.l.b16 %v628
        %v652 = vunpack.c.l.b16 %v629
        %v653 = vpack.c.b16 %v646, %v645
        %v654 = vpack.c.b16 %v648, %v647
        %v655 = vpack.c.b16 %v650, %v649
        %v656 = vpack.c.b16 %v652, %v651
        %v662 = vsel %vm289, %v636, 0
        %664 = vmatpush.bf16.msra.mxu0 0
        %665 = vmatpush.bf16.msra.mxu0 0
        %666 = vmatpush.bf16.msra.mxu0 0
        %667 = vmatpush.bf16.msra.mxu0 0
        %668 = vmatpush.bf16.msra.mxu0 %v656
        %669 = vmatpush.bf16.msra.mxu0 %v655
        %670 = vmatpush.bf16.msra.mxu0 %v654
        %671 = vmatpush.bf16.msra.mxu0 %v653
        %672 = vmatmul.bf16.gmra.mxu0 %v662
        %v673 = vpop.f32.mrf.mxu0
        %v674 = vadd.f32 0.0, %v673
        %v675 = vpop.f32.mrf.mxu0
        %676 = vdwg.mxu0
        %v677 = vadd.f32 %v619, %v674
        %s678 = scalar_lea.vmem %s1, 256
        %v679 = vld [vmem:[%s678] sm:$0xf]
        %v680 = vld [vmem:[%s678 + $0x4] sm:$0xf]
        %v681 = vld [vmem:[%s678 + $0x8] sm:$0xf]
        %v682 = vld [vmem:[%s678 + $0xc] sm:$0xf]
        %v683 = vld [vmem:[%s678 + $0x10] sm:$0xf]
        %v684 = vld [vmem:[%s678 + $0x14] sm:$0xf]
        %v685 = vld [vmem:[%s678 + $0x18] sm:$0xf]
        %v686 = vld [vmem:[%s678 + $0x1c] sm:$0xf]
        %v688 = vrot.slane %v620, 1
        %v697 = vunpack.c.l.b16 %v679
        %v698 = vunpack.c.l.b16 %v680
        %v699 = vunpack.c.l.b16 %v681
        %v700 = vunpack.c.l.b16 %v682
        %v701 = vunpack.c.l.b16 %v683
        %v702 = vunpack.c.l.b16 %v684
        %v703 = vunpack.c.l.b16 %v685
        %v704 = vunpack.c.l.b16 %v686
        %v705 = vpack.c.b16 %v698, %v697
        %v706 = vpack.c.b16 %v700, %v699
        %v707 = vpack.c.b16 %v702, %v701
        %v708 = vpack.c.b16 %v704, %v703
        %v714 = vsel %vm289, %v688, 0
        %716 = vmatpush.bf16.msra.mxu0 0
        %717 = vmatpush.bf16.msra.mxu0 0
        %718 = vmatpush.bf16.msra.mxu0 0
        %719 = vmatpush.bf16.msra.mxu0 0
        %720 = vmatpush.bf16.msra.mxu0 %v708
        %721 = vmatpush.bf16.msra.mxu0 %v707
        %722 = vmatpush.bf16.msra.mxu0 %v706
        %723 = vmatpush.bf16.msra.mxu0 %v705
        %724 = vmatmul.bf16.gmra.mxu0 %v714
        %v725 = vpop.f32.mrf.mxu0
        %v726 = vadd.f32 0.0, %v725
        %v727 = vpop.f32.mrf.mxu0
        %728 = vdwg.mxu0
        %v729 = vadd.f32 %v677, %v726
        %v731 = vperm.slane %v226, 0
        %v733 = vadd.f32 %v729, %v731
        %v734 = vmax.f32 %v733, 0.0
        %v735 = vmin.f32 %v734, 20.0
        %v737 = vperm.slane %v227, 0
        %v739 = vmul.f32 %v735, %v737
        %v741 = vperm.slane %v228, 0
        %v743 = vadd.f32 %v739, %v741
        %s744 = smul.u32 %s230, 8
        %s745 = scalar_lea.vmem %s224, %s744
        %746 = vst [vmem:[%s745] sm:$0xff] %v743
      $region45: #{listener_forward.17} parent=39 // loop_footer
        %s234 = sadd.s32 1, %s230
      $region46: #{listener_forward.17} parent=39 // loop_footer_branch
        %229 = sbr.rel target = $region42
      $region47: #{listener_forward.17} parent=39 // loop_exit
        _
      %p747 = scmp.lt.s32.totalorder %s16, 1
      %s748 = scalar_select %p747, %s16, 1
      %s749 = smul.addr %s748, 8
      %s750 = smul.addr %s749, 8
      %s751 = scalar_lea.vmem %s5, %s750
      // Predicated region
      $region48: #{listener_forward.17} parent=39 // pred_check
        %p752 = pneg %p144
      $region49: #{listener_forward.17} parent=39 // pred_check_branch
        %754 = sbr.rel (%p752) target = $region51
      $region50: #{listener_forward.17} parent=39 // pred_region
        _
      $region51: #{listener_forward.17} parent=39 // pred_fallthru
        _
    $region40: #{listener_forward.17} parent=5 // pred_fallthru
      _
    %p755 = scmp.le.s32.totalorder 2, %s11
    // Predicated region
    $region52: #{listener_forward.17} parent=5 // pred_check
      %p756 = pneg %p755
    $region53: #{listener_forward.17} parent=5 // pred_check_branch
      %758 = sbr.rel (%p756) target = $region55
    $region54: #{listener_forward.17} parent=5 // pred_region
      %s759 = ssub.s32 %s11, 2
      // Predicated region
      $region56: #{listener_forward.17} parent=54 // pred_check
        %p760 = pneg %p150
      $region57: #{listener_forward.17} parent=54 // pred_check_branch
        %762 = sbr.rel (%p760) target = $region59
      $region58: #{listener_forward.17} parent=54 // pred_region
        %p763 = scmp.lt.s32.totalorder %s17, 1
        %s764 = scalar_select %p763, %s17, 1
        %s765 = smul.addr %s764, 8
        %s766 = smul.addr %s765, 8
        %s767 = scalar_lea.vmem %s5, %s766
      $region59: #{listener_forward.17} parent=54 // pred_fallthru
        _
    $region55: #{listener_forward.17} parent=5 // pred_fallthru
      _
  $region6: #{listener_forward.17} parent=0 // loop_footer
    %s15 = sadd.s32 1, %s11
  $region7: #{listener_forward.17} parent=0 // loop_footer_branch
    %10 = sbr.rel target = $region3
  $region8: #{listener_forward.17} parent=0 // loop_exit
    _

// kernel: listener_forward.18
$region0: #{listener_forward.18}
  #allocation0 [shape = 'u32[]', space=smem, size = 0x4, offset = 0x4, fixed_abs, tag = 'smem constant byte address 0x4 - core index']
  #allocation1 [shape = 'u32[72,128]{1,0:T(1,128)}', space=vmem, size = 0x9000, scoped, tag = 'internal scratch']
  %s0 = inlined_call_operand.vmem [shape: f32[2,10,10,128], index: 0, kind: input, shape index: {}]
  %s1 = inlined_call_operand.vmem [shape: bf16[9,128,128], index: 1, kind: input, shape index: {}]
  %s2 = inlined_call_operand.vmem [shape: f32[1,128], index: 2, kind: input, shape index: {}]
  %s3 = inlined_call_operand.vmem [shape: f32[1,128], index: 3, kind: input, shape index: {}]
  %s4 = inlined_call_operand.vmem [shape: f32[1,128], index: 4, kind: input, shape index: {}]
  %s5 = inlined_call_operand.vmem [shape: f32[2,8,8,128], index: 5, kind: output, shape index: {}]
  %s6 = sld [smem:[#allocation0]]
  $region60: #{listener_forward.18} parent=0
    _
  %s8 = ssub.s32 1, %s6
  %s9 = scalar_select 0, %s8, %s6
  loop: start=0, step=1, limit=4
  $region2: #{listener_forward.18} parent=0 // loop_pre_header
    _
  $region3: #{listener_forward.18} parent=0 // loop_header
    %s11 = sphi 0, %s15
    %p12 = scmp.ge.s32.totalorder %s11, 4
    %s21 = sphi 0, %s23
    %s24 = sphi 0, %s21
    %s25 = sphi 0, %s24
    %s41 = sphi 0, %s25
    %s45 = sphi 0, %s45
    %s47 = sphi 0, %s45
    %s48 = sphi 0, %s47
    %s62 = sphi 0, %s48
    %s66 = sphi 0, %s66
    %s68 = sphi 0, %s66
    %s69 = sphi 0, %s68
    %s83 = sphi 0, %s69
    %s87 = sphi 0, %s87
    %s89 = sphi 0, %s87
    %s90 = sphi 0, %s89
    %s104 = sphi 0, %s90
    %s108 = sphi 0, %s108
    %s110 = sphi 0, %s108
    %s111 = sphi 0, %s110
    %s125 = sphi 0, %s111
    %s131 = sphi 0, %s133
    %s134 = sphi 0, %s131
    %s135 = sphi 0, %s134
    %s151 = sphi 0, %s135
  $region4: #{listener_forward.18} parent=0 // loop_header_branch
    %14 = sbr.rel (%p12) target = $region8
  $region5: #{listener_forward.18} parent=0 // loop_body
    %s16 = ssub.s32 %s11, 1
    %s17 = ssub.s32 %s11, 2
    %s18 = sadd.s32 %s11, 1
    %s19 = ssub.s32 %s11, %s18
    %p20 = scmp.eq.s32.totalorder %s19, 0
    %s22 = sadd.s32 %s21, 1
    %s23 = scalar_select %p20, %s21, %s22
    %p26 = pneg %p20
    %p27 = scmp.eq.s32.totalorder %s11, 1
    %p28 = por %p26, %p27
    %p29 = scmp.ne.s32.totalorder %s21, %s24
    %p30 = scmp.eq.s32.totalorder %s11, 0
    %p31 = por %p29, %p30
    %p32 = scmp.ne.s32.totalorder %s21, %s24
    %p33 = scmp.eq.s32.totalorder %s16, 1
    %p34 = por %p32, %p33
    %p35 = scmp.ne.s32.totalorder %s24, %s25
    %p36 = scmp.eq.s32.totalorder %s16, 0
    %p37 = por %p35, %p36
    %p38 = scmp.ne.s32.totalorder %s24, %s25
    %p39 = scmp.eq.s32.totalorder %s17, 1
    %p40 = por %p38, %p39
    %p42 = scmp.ne.s32.totalorder %s25, %s41
    %p43 = scmp.eq.s32.totalorder %s17, 0
    %p44 = por %p42, %p43
    %s46 = sadd.s32 %s45, 1
    %p49 = scmp.eq.s32.totalorder %s11, 1
    %p50 = scmp.ne.s32.totalorder %s45, %s47
    %p51 = scmp.eq.s32.totalorder %s11, 0
    %p52 = por %p50, %p51
    %p53 = scmp.ne.s32.totalorder %s45, %s47
    %p54 = scmp.eq.s32.totalorder %s16, 1
    %p55 = por %p53, %p54
    %p56 = scmp.ne.s32.totalorder %s47, %s48
    %p57 = scmp.eq.s32.totalorder %s16, 0
    %p58 = por %p56, %p57
    %p59 = scmp.ne.s32.totalorder %s47, %s48
    %p60 = scmp.eq.s32.totalorder %s17, 1
    %p61 = por %p59, %p60
    %p63 = scmp.ne.s32.totalorder %s48, %s62
    %p64 = scmp.eq.s32.totalorder %s17, 0
    %p65 = por %p63, %p64
    %s67 = sadd.s32 %s66, 1
    %p70 = scmp.eq.s32.totalorder %s11, 1
    %p71 = scmp.ne.s32.totalorder %s66, %s68
    %p72 = scmp.eq.s32.totalorder %s11, 0
    %p73 = por %p71, %p72
    %p74 = scmp.ne.s32.totalorder %s66, %s68
    %p75 = scmp.eq.s32.totalorder %s16, 1
    %p76 = por %p74, %p75
    %p77 = scmp.ne.s32.totalorder %s68, %s69
    %p78 = scmp.eq.s32.totalorder %s16, 0
    %p79 = por %p77, %p78
    %p80 = scmp.ne.s32.totalorder %s68, %s69
    %p81 = scmp.eq.s32.totalorder %s17, 1
    %p82 = por %p80, %p81
    %p84 = scmp.ne.s32.totalorder %s69, %s83
    %p85 = scmp.eq.s32.totalorder %s17, 0
    %p86 = por %p84, %p85
    %s88 = sadd.s32 %s87, 1
    %p91 = scmp.eq.s32.totalorder %s11, 1
    %p92 = scmp.ne.s32.totalorder %s87, %s89
    %p93 = scmp.eq.s32.totalorder %s11, 0
    %p94 = por %p92, %p93
    %p95 = scmp.ne.s32.totalorder %s87, %s89
    %p96 = scmp.eq.s32.totalorder %s16, 1
    %p97 = por %p95, %p96
    %p98 = scmp.ne.s32.totalorder %s89, %s90
    %p99 = scmp.eq.s32.totalorder %s16, 0
    %p100 = por %p98, %p99
    %p101 = scmp.ne.s32.totalorder %s89, %s90
    %p102 = scmp.eq.s32.totalorder %s17, 1
    %p103 = por %p101, %p102
    %p105 = scmp.ne.s32.totalorder %s90, %s104
    %p106 = scmp.eq.s32.totalorder %s17, 0
    %p107 = por %p105, %p106
    %s109 = sadd.s32 %s108, 1
    %p112 = scmp.eq.s32.totalorder %s11, 1
    %p113 = scmp.ne.s32.totalorder %s108, %s110
    %p114 = scmp.eq.s32.totalorder %s11, 0
    %p115 = por %p113, %p114
    %p116 = scmp.ne.s32.totalorder %s108, %s110
    %p117 = scmp.eq.s32.totalorder %s16, 1
    %p118 = por %p116, %p117
    %p119 = scmp.ne.s32.totalorder %s110, %s111
    %p120 = scmp.eq.s32.totalorder %s16, 0
    %p121 = por %p119, %p120
    %p122 = scmp.ne.s32.totalorder %s110, %s111
    %p123 = scmp.eq.s32.totalorder %s17, 1
    %p124 = por %p122, %p123
    %p126 = scmp.ne.s32.totalorder %s111, %s125
    %p127 = scmp.eq.s32.totalorder %s17, 0
    %p128 = por %p126, %p127
    %s129 = ssub.s32 %s11, %s18
    %p130 = scmp.eq.s32.totalorder %s129, 0
    %s132 = sadd.s32 %s131, 1
    %s133 = scalar_select %p130, %s131, %s132
    %p136 = pneg %p130
    %p137 = scmp.eq.s32.totalorder %s11, 1
    %p138 = por %p136, %p137
    %p139 = scmp.ne.s32.totalorder %s131, %s134
    %p140 = scmp.eq.s32.totalorder %s11, 0
    %p141 = por %p139, %p140
    %p142 = scmp.ne.s32.totalorder %s131, %s134
    %p143 = scmp.eq.s32.totalorder %s16, 1
    %p144 = por %p142, %p143
    %p145 = scmp.ne.s32.totalorder %s134, %s135
    %p146 = scmp.eq.s32.totalorder %s16, 0
    %p147 = por %p145, %p146
    %p148 = scmp.ne.s32.totalorder %s134, %s135
    %p149 = scmp.eq.s32.totalorder %s17, 1
    %p150 = por %p148, %p149
    %p152 = scmp.ne.s32.totalorder %s135, %s151
    %p153 = scmp.eq.s32.totalorder %s17, 0
    %p154 = por %p152, %p153
    %p155 = scmp.le.s32.totalorder 1, %s11
    %p156 = scmp.lt.s32.totalorder %s11, 3
    %p157 = pnand %p155, %p156
    %p158 = pneg %p157
    // Predicated region
    $region9: #{listener_forward.18} parent=5 // pred_check
      _
    $region10: #{listener_forward.18} parent=5 // pred_check_branch
      %160 = sbr.rel (%p157) target = $region12
    $region11: #{listener_forward.18} parent=5 // pred_region
      %s161 = ssub.s32 %s11, 1
      // Predicated region
      $region13: #{listener_forward.18} parent=11 // pred_check
        %p162 = pneg %p58
      $region14: #{listener_forward.18} parent=11 // pred_check_branch
        %164 = sbr.rel (%p162) target = $region16
      $region15: #{listener_forward.18} parent=11 // pred_region
        _
      $region16: #{listener_forward.18} parent=11 // pred_fallthru
        _
      // Predicated region
      $region17: #{listener_forward.18} parent=11 // pred_check
        %p165 = pneg %p79
      $region18: #{listener_forward.18} parent=11 // pred_check_branch
        %167 = sbr.rel (%p165) target = $region20
      $region19: #{listener_forward.18} parent=11 // pred_region
        _
      $region20: #{listener_forward.18} parent=11 // pred_fallthru
        _
      // Predicated region
      $region21: #{listener_forward.18} parent=11 // pred_check
        %p168 = pneg %p100
      $region22: #{listener_forward.18} parent=11 // pred_check_branch
        %170 = sbr.rel (%p168) target = $region24
      $region23: #{listener_forward.18} parent=11 // pred_region
        _
      $region24: #{listener_forward.18} parent=11 // pred_fallthru
        _
      // Predicated region
      $region25: #{listener_forward.18} parent=11 // pred_check
        %p171 = pneg %p121
      $region26: #{listener_forward.18} parent=11 // pred_check_branch
        %173 = sbr.rel (%p171) target = $region28
      $region27: #{listener_forward.18} parent=11 // pred_region
        _
      $region28: #{listener_forward.18} parent=11 // pred_fallthru
        _
    $region12: #{listener_forward.18} parent=5 // pred_fallthru
      _
    %p174 = scmp.lt.s32.totalorder %s11, 2
    // Predicated region
    $region29: #{listener_forward.18} parent=5 // pred_check
      %p175 = pneg %p174
    $region30: #{listener_forward.18} parent=5 // pred_check_branch
      %177 = sbr.rel (%p175) target = $region32
    $region31: #{listener_forward.18} parent=5 // pred_region
      // Predicated region
      $region33: #{listener_forward.18} parent=31 // pred_check
        %p178 = pneg %p31
      $region34: #{listener_forward.18} parent=31 // pred_check_branch
        %180 = sbr.rel (%p178) target = $region36
      $region35: #{listener_forward.18} parent=31 // pred_region
        %p181 = scmp.lt.s32.totalorder %s11, 1
        %s182 = scalar_select %p181, %s11, 1
        %s183 = smul.addr %s182, 20
        %s184 = smul.addr %s183, 8
        %s185 = scalar_lea.vmem %s0, %s184
      $region36: #{listener_forward.18} parent=31 // pred_fallthru
        _
    $region32: #{listener_forward.18} parent=5 // pred_fallthru
      _
    %p186 = scmp.le.s32.totalorder 1, %s11
    %p187 = scmp.lt.s32.totalorder %s11, 3
    %p188 = pnand %p186, %p187
    %p189 = pneg %p188
    // Predicated region
    $region37: #{listener_forward.18} parent=5 // pred_check
      _
    $region38: #{listener_forward.18} parent=5 // pred_check_branch
      %191 = sbr.rel (%p188) target = $region40
    $region39: #{listener_forward.18} parent=5 // pred_region
      %s192 = ssub.s32 %s11, 1
      %p193 = scmp.lt.s32.totalorder %s16, 1
      %s194 = scalar_select %p193, %s16, 1
      %s195 = smul.addr %s194, 20
      %s196 = smul.addr %s195, 8
      %s197 = scalar_lea.vmem %s0, %s196
      %p198 = pneg %p37
      %p199 = pneg %p34
      %p200 = pneg %p58
      %p201 = pneg %p55
      %p202 = pneg %p79
      %p203 = pneg %p76
      %p204 = pneg %p100
      %p205 = pneg %p97
      %p206 = pneg %p121
      %p207 = pneg %p118
      %p208 = pneg %p147
      %p209 = pneg %p144
      %p210 = scmp.lt.s32.totalorder %s16, 1
      %s211 = scalar_select %p210, %s16, 1
      %s212 = smul.addr %s211, 8
      %s213 = smul.addr %s212, 8
      %s214 = scalar_lea.vmem %s5, %s213
      %p215 = scmp.lt.s32.totalorder %s16, 1
      %s216 = scalar_select %p215, %s16, 1
      %s217 = smul.addr %s216, 20
      %s218 = smul.addr %s217, 8
      %s219 = scalar_lea.vmem %s0, %s218
      %p220 = scmp.lt.s32.totalorder %s16, 1
      %s221 = scalar_select %p220, %s16, 1
      %s222 = smul.addr %s221, 8
      %s223 = smul.addr %s222, 8
      %s224 = scalar_lea.vmem %s5, %s223
      %v225 = vld [vmem:[%s2] sm:$0x1]
      %v226 = vld [vmem:[%s3] sm:$0x1]
      %v227 = vld [vmem:[%s4] sm:$0x1]
      loop: start=0, step=1, limit=8
      $region41: #{listener_forward.18} parent=39 // loop_pre_header
        _
      $region42: #{listener_forward.18} parent=39 // loop_header
        %s229 = sphi 0, %s233
        %p230 = scmp.ge.s32.totalorder %s229, 8
      $region43: #{listener_forward.18} parent=39 // loop_header_branch
        %232 = sbr.rel (%p230) target = $region47
      $region44: #{listener_forward.18} parent=39 // loop_body
        %s234 = smul.u32 %s229, 16
        %s235 = scalar_lea.vmem %s219, %s234
        %v236 = vld [vmem:[%s235] sm:$0xff]
        %v237 = vld [vmem:[%s235 + $0x8] sm:$0x3]
        %v238 = vpack.c.bf16 %v236, %v236
        %v239 = vld [vmem:[%s1] sm:$0xf]
        %v240 = vld [vmem:[%s1 + $0x4] sm:$0xf]
        %v241 = vld [vmem:[%s1 + $0x8] sm:$0xf]
        %v242 = vld [vmem:[%s1 + $0xc] sm:$0xf]
        %v243 = vld [vmem:[%s1 + $0x10] sm:$0xf]
        %v244 = vld [vmem:[%s1 + $0x14] sm:$0xf]
        %v245 = vld [vmem:[%s1 + $0x18] sm:$0xf]
        %v246 = vld [vmem:[%s1 + $0x1c] sm:$0xf]
        %v247 = vld [vmem:[%s1 + $0x20] sm:$0xf]
        %v248 = vld [vmem:[%s1 + $0x24] sm:$0xf]
        %v249 = vld [vmem:[%s1 + $0x28] sm:$0xf]
        %v250 = vld [vmem:[%s1 + $0x2c] sm:$0xf]
        %v251 = vld [vmem:[%s1 + $0x30] sm:$0xf]
        %v252 = vld [vmem:[%s1 + $0x34] sm:$0xf]
        %v253 = vld [vmem:[%s1 + $0x38] sm:$0xf]
        %v254 = vld [vmem:[%s1 + $0x3c] sm:$0xf]
        %v255 = vpack.c.bf16 %v237, %v236
        %s256 = scalar_lea.vmem %s1, 64
        %v257 = vld [vmem:[%s256] sm:$0xf]
        %v258 = vld [vmem:[%s256 + $0x4] sm:$0xf]
        %v259 = vld [vmem:[%s256 + $0x8] sm:$0xf]
        %v260 = vld [vmem:[%s256 + $0xc] sm:$0xf]
        %v261 = vld [vmem:[%s256 + $0x10] sm:$0xf]
        %v262 = vld [vmem:[%s256 + $0x14] sm:$0xf]
        %v263 = vld [vmem:[%s256 + $0x18] sm:$0xf]
        %v264 = vld [vmem:[%s256 + $0x1c] sm:$0xf]
        %v265 = vld [vmem:[%s256 + $0x20] sm:$0xf]
        %v266 = vld [vmem:[%s256 + $0x24] sm:$0xf]
        %v267 = vld [vmem:[%s256 + $0x28] sm:$0xf]
        %v268 = vld [vmem:[%s256 + $0x2c] sm:$0xf]
        %v269 = vld [vmem:[%s256 + $0x30] sm:$0xf]
        %v270 = vld [vmem:[%s256 + $0x34] sm:$0xf]
        %v271 = vld [vmem:[%s256 + $0x38] sm:$0xf]
        %v272 = vld [vmem:[%s256 + $0x3c] sm:$0xf]
        %v274 = vshrl.u32 %v255, 16
        %v276 = vshll.u32 %v255, 16
        %v278 = vrot.slane %v276, 1
        %v279 = vor.u32 %v274, %v278
        %v297 = vunpack.c.l.b16 %v257
        %v298 = vunpack.c.l.b16 %v258
        %v299 = vunpack.c.l.b16 %v259
        %v300 = vunpack.c.l.b16 %v260
        %v301 = vunpack.c.l.b16 %v261
        %v302 = vunpack.c.l.b16 %v262
        %v303 = vunpack.c.l.b16 %v263
        %v304 = vunpack.c.l.b16 %v264
        %v305 = vunpack.c.l.b16 %v265
        %v306 = vunpack.c.l.b16 %v266
        %v307 = vunpack.c.l.b16 %v267
        %v308 = vunpack.c.l.b16 %v268
        %v309 = vunpack.c.l.b16 %v269
        %v310 = vunpack.c.l.b16 %v270
        %v311 = vunpack.c.l.b16 %v271
        %v312 = vunpack.c.l.b16 %v272
        %v313 = vpack.c.b16 %v298, %v297
        %v314 = vpack.c.b16 %v300, %v299
        %v315 = vpack.c.b16 %v302, %v301
        %v316 = vpack.c.b16 %v304, %v303
        %v317 = vpack.c.b16 %v306, %v305
        %v318 = vpack.c.b16 %v308, %v307
        %v319 = vpack.c.b16 %v310, %v309
        %v320 = vpack.c.b16 %v312, %v311
        %329 = vmatpush.bf16.msra.mxu0 %v320
        %330 = vmatpush.bf16.msra.mxu0 %v319
        %331 = vmatpush.bf16.msra.mxu0 %v318
        %332 = vmatpush.bf16.msra.mxu0 %v317
        %333 = vmatpush.bf16.msra.mxu0 %v316
        %334 = vmatpush.bf16.msra.mxu0 %v315
        %335 = vmatpush.bf16.msra.mxu0 %v314
        %336 = vmatpush.bf16.msra.mxu0 %v313
        %337 = vmatmul.bf16.gmra.mxu0 %v279
        %v338 = vpop.f32.mrf.mxu0
        %v339 = vadd.f32 0.0, %v338
        %v340 = vpop.f32.mrf.mxu0
        %341 = vdwg.mxu0
        %v358 = vunpack.c.l.b16 %v239
        %v359 = vunpack.c.l.b16 %v240
        %v360 = vunpack.c.l.b16 %v241
        %v361 = vunpack.c.l.b16 %v242
        %v362 = vunpack.c.l.b16 %v243
        %v363 = vunpack.c.l.b16 %v244
        %v364 = vunpack.c.l.b16 %v245
        %v365 = vunpack.c.l.b16 %v246
        %v366 = vunpack.c.l.b16 %v247
        %v367 = vunpack.c.l.b16 %v248
        %v368 = vunpack.c.l.b16 %v249
        %v369 = vunpack.c.l.b16 %v250
        %v370 = vunpack.c.l.b16 %v251
        %v371 = vunpack.c.l.b16 %v252
        %v372 = vunpack.c.l.b16 %v253
        %v373 = vunpack.c.l.b16 %v254
        %v374 = vpack.c.b16 %v359, %v358
        %v375 = vpack.c.b16 %v361, %v360
        %v376 = vpack.c.b16 %v363, %v362
        %v377 = vpack.c.b16 %v365, %v364
        %v378 = vpack.c.b16 %v367, %v366
        %v379 = vpack.c.b16 %v369, %v368
        %v380 = vpack.c.b16 %v371, %v370
        %v381 = vpack.c.b16 %v373, %v372
        %390 = vmatpush.bf16.msra.mxu0 %v381
        %391 = vmatpush.bf16.msra.mxu0 %v380
        %392 = vmatpush.bf16.msra.mxu0 %v379
        %393 = vmatpush.bf16.msra.mxu0 %v378
        %394 = vmatpush.bf16.msra.mxu0 %v377
        %395 = vmatpush.bf16.msra.mxu0 %v376
        %396 = vmatpush.bf16.msra.mxu0 %v375
        %397 = vmatpush.bf16.msra.mxu0 %v374
        %398 = vmatmul.bf16.gmra.mxu0 %v238
        %v399 = vpop.f32.mrf.mxu0
        %v400 = vadd.f32 %v339, %v399
        %v401 = vpop.f32.mrf.mxu0
        %402 = vdwg.mxu0
        %s403 = scalar_lea.vmem %s1, 128
        %v404 = vld [vmem:[%s403] sm:$0xf]
        %v405 = vld [vmem:[%s403 + $0x4] sm:$0xf]
        %v406 = vld [vmem:[%s403 + $0x8] sm:$0xf]
        %v407 = vld [vmem:[%s403 + $0xc] sm:$0xf]
        %v408 = vld [vmem:[%s403 + $0x10] sm:$0xf]
        %v409 = vld [vmem:[%s403 + $0x14] sm:$0xf]
        %v410 = vld [vmem:[%s403 + $0x18] sm:$0xf]
        %v411 = vld [vmem:[%s403 + $0x1c] sm:$0xf]
        %v412 = vld [vmem:[%s403 + $0x20] sm:$0xf]
        %v413 = vld [vmem:[%s403 + $0x24] sm:$0xf]
        %v414 = vld [vmem:[%s403 + $0x28] sm:$0xf]
        %v415 = vld [vmem:[%s403 + $0x2c] sm:$0xf]
        %v416 = vld [vmem:[%s403 + $0x30] sm:$0xf]
        %v417 = vld [vmem:[%s403 + $0x34] sm:$0xf]
        %v418 = vld [vmem:[%s403 + $0x38] sm:$0xf]
        %v419 = vld [vmem:[%s403 + $0x3c] sm:$0xf]
        %v421 = vrot.slane %v255, 1
        %v439 = vunpack.c.l.b16 %v404
        %v440 = vunpack.c.l.b16 %v405
        %v441 = vunpack.c.l.b16 %v406
        %v442 = vunpack.c.l.b16 %v407
        %v443 = vunpack.c.l.b16 %v408
        %v444 = vunpack.c.l.b16 %v409
        %v445 = vunpack.c.l.b16 %v410
        %v446 = vunpack.c.l.b16 %v411
        %v447 = vunpack.c.l.b16 %v412
        %v448 = vunpack.c.l.b16 %v413
        %v449 = vunpack.c.l.b16 %v414
        %v450 = vunpack.c.l.b16 %v415
        %v451 = vunpack.c.l.b16 %v416
        %v452 = vunpack.c.l.b16 %v417
        %v453 = vunpack.c.l.b16 %v418
        %v454 = vunpack.c.l.b16 %v419
        %v455 = vpack.c.b16 %v440, %v439
        %v456 = vpack.c.b16 %v442, %v441
        %v457 = vpack.c.b16 %v444, %v443
        %v458 = vpack.c.b16 %v446, %v445
        %v459 = vpack.c.b16 %v448, %v447
        %v460 = vpack.c.b16 %v450, %v449
        %v461 = vpack.c.b16 %v452, %v451
        %v462 = vpack.c.b16 %v454, %v453
        %471 = vmatpush.bf16.msra.mxu0 %v462
        %472 = vmatpush.bf16.msra.mxu0 %v461
        %473 = vmatpush.bf16.msra.mxu0 %v460
        %474 = vmatpush.bf16.msra.mxu0 %v459
        %475 = vmatpush.bf16.msra.mxu0 %v458
        %476 = vmatpush.bf16.msra.mxu0 %v457
        %477 = vmatpush.bf16.msra.mxu0 %v456
        %478 = vmatpush.bf16.msra.mxu0 %v455
        %479 = vmatmul.bf16.gmra.mxu0 %v421
        %v480 = vpop.f32.mrf.mxu0
        %v481 = vadd.f32 0.0, %v480
        %v482 = vpop.f32.mrf.mxu0
        %483 = vdwg.mxu0
        %v484 = vadd.f32 %v400, %v481
        %s485 = sadd.s32 %s229, 1
        %s486 = smul.u32 %s485, 16
        %s487 = scalar_lea.vmem %s219, %s486
        %v488 = vld [vmem:[%s487] sm:$0xff]
        %v489 = vld [vmem:[%s487 + $0x8] sm:$0x3]
        %v490 = vpack.c.bf16 %v488, %v488
        %s491 = scalar_lea.vmem %s1, 192
        %v492 = vld [vmem:[%s491] sm:$0xf]
        %v493 = vld [vmem:[%s491 + $0x4] sm:$0xf]
        %v494 = vld [vmem:[%s491 + $0x8] sm:$0xf]
        %v495 = vld [vmem:[%s491 + $0xc] sm:$0xf]
        %v496 = vld [vmem:[%s491 + $0x10] sm:$0xf]
        %v497 = vld [vmem:[%s491 + $0x14] sm:$0xf]
        %v498 = vld [vmem:[%s491 + $0x18] sm:$0xf]
        %v499 = vld [vmem:[%s491 + $0x1c] sm:$0xf]
        %v500 = vld [vmem:[%s491 + $0x20] sm:$0xf]
        %v501 = vld [vmem:[%s491 + $0x24] sm:$0xf]
        %v502 = vld [vmem:[%s491 + $0x28] sm:$0xf]
        %v503 = vld [vmem:[%s491 + $0x2c] sm:$0xf]
        %v504 = vld [vmem:[%s491 + $0x30] sm:$0xf]
        %v505 = vld [vmem:[%s491 + $0x34] sm:$0xf]
        %v506 = vld [vmem:[%s491 + $0x38] sm:$0xf]
        %v507 = vld [vmem:[%s491 + $0x3c] sm:$0xf]
        %v524 = vunpack.c.l.b16 %v492
        %v525 = vunpack.c.l.b16 %v493
        %v526 = vunpack.c.l.b16 %v494
        %v527 = vunpack.c.l.b16 %v495
        %v528 = vunpack.c.l.b16 %v496
        %v529 = vunpack.c.l.b16 %v497
        %v530 = vunpack.c.l.b16 %v498
        %v531 = vunpack.c.l.b16 %v499
        %v532 = vunpack.c.l.b16 %v500
        %v533 = vunpack.c.l.b16 %v501
        %v534 = vunpack.c.l.b16 %v502
        %v535 = vunpack.c.l.b16 %v503
        %v536 = vunpack.c.l.b16 %v504
        %v537 = vunpack.c.l.b16 %v505
        %v538 = vunpack.c.l.b16 %v506
        %v539 = vunpack.c.l.b16 %v507
        %v540 = vpack.c.b16 %v525, %v524
        %v541 = vpack.c.b16 %v527, %v526
        %v542 = vpack.c.b16 %v529, %v528
        %v543 = vpack.c.b16 %v531, %v530
        %v544 = vpack.c.b16 %v533, %v532
        %v545 = vpack.c.b16 %v535, %v534
        %v546 = vpack.c.b16 %v537, %v536
        %v547 = vpack.c.b16 %v539, %v538
        %556 = vmatpush.bf16.msra.mxu0 %v547
        %557 = vmatpush.bf16.msra.mxu0 %v546
        %558 = vmatpush.bf16.msra.mxu0 %v545
        %559 = vmatpush.bf16.msra.mxu0 %v544
        %560 = vmatpush.bf16.msra.mxu0 %v543
        %561 = vmatpush.bf16.msra.mxu0 %v542
        %562 = vmatpush.bf16.msra.mxu0 %v541
        %563 = vmatpush.bf16.msra.mxu0 %v540
        %564 = vmatmul.bf16.gmra.mxu0 %v490
        %v565 = vpop.f32.mrf.mxu0
        %v566 = vadd.f32 0.0, %v565
        %v567 = vpop.f32.mrf.mxu0
        %568 = vdwg.mxu0
        %v569 = vadd.f32 %v484, %v566
        %v570 = vpack.c.bf16 %v489, %v488
        %s571 = scalar_lea.vmem %s1, 256
        %v572 = vld [vmem:[%s571] sm:$0xf]
        %v573 = vld [vmem:[%s571 + $0x4] sm:$0xf]
        %v574 = vld [vmem:[%s571 + $0x8] sm:$0xf]
        %v575 = vld [vmem:[%s571 + $0xc] sm:$0xf]
        %v576 = vld [vmem:[%s571 + $0x10] sm:$0xf]
        %v577 = vld [vmem:[%s571 + $0x14] sm:$0xf]
        %v578 = vld [vmem:[%s571 + $0x18] sm:$0xf]
        %v579 = vld [vmem:[%s571 + $0x1c] sm:$0xf]
        %v580 = vld [vmem:[%s571 + $0x20] sm:$0xf]
        %v581 = vld [vmem:[%s571 + $0x24] sm:$0xf]
        %v582 = vld [vmem:[%s571 + $0x28] sm:$0xf]
        %v583 = vld [vmem:[%s571 + $0x2c] sm:$0xf]
        %v584 = vld [vmem:[%s571 + $0x30] sm:$0xf]
        %v585 = vld [vmem:[%s571 + $0x34] sm:$0xf]
        %v586 = vld [vmem:[%s571 + $0x38] sm:$0xf]
        %v587 = vld [vmem:[%s571 + $0x3c] sm:$0xf]
        %v589 = vshrl.u32 %v570, 16
        %v591 = vshll.u32 %v570, 16
        %v593 = vrot.slane %v591, 1
        %v594 = vor.u32 %v589, %v593
        %v612 = vunpack.c.l.b16 %v572
        %v613 = vunpack.c.l.b16 %v573
        %v614 = vunpack.c.l.b16 %v574
        %v615 = vunpack.c.l.b16 %v575
        %v616 = vunpack.c.l.b16 %v576
        %v617 = vunpack.c.l.b16 %v577
        %v618 = vunpack.c.l.b16 %v578
        %v619 = vunpack.c.l.b16 %v579
        %v620 = vunpack.c.l.b16 %v580
        %v621 = vunpack.c.l.b16 %v581
        %v622 = vunpack.c.l.b16 %v582
        %v623 = vunpack.c.l.b16 %v583
        %v624 = vunpack.c.l.b16 %v584
        %v625 = vunpack.c.l.b16 %v585
        %v626 = vunpack.c.l.b16 %v586
        %v627 = vunpack.c.l.b16 %v587
        %v628 = vpack.c.b16 %v613, %v612
        %v629 = vpack.c.b16 %v615, %v614
        %v630 = vpack.c.b16 %v617, %v616
        %v631 = vpack.c.b16 %v619, %v618
        %v632 = vpack.c.b16 %v621, %v620
        %v633 = vpack.c.b16 %v623, %v622
        %v634 = vpack.c.b16 %v625, %v624
        %v635 = vpack.c.b16 %v627, %v626
        %644 = vmatpush.bf16.msra.mxu0 %v635
        %645 = vmatpush.bf16.msra.mxu0 %v634
        %646 = vmatpush.bf16.msra.mxu0 %v633
        %647 = vmatpush.bf16.msra.mxu0 %v632
        %648 = vmatpush.bf16.msra.mxu0 %v631
        %649 = vmatpush.bf16.msra.mxu0 %v630
        %650 = vmatpush.bf16.msra.mxu0 %v629
        %651 = vmatpush.bf16.msra.mxu0 %v628
        %652 = vmatmul.bf16.gmra.mxu0 %v594
        %v653 = vpop.f32.mrf.mxu0
        %v654 = vadd.f32 0.0, %v653
        %v655 = vpop.f32.mrf.mxu0
        %656 = vdwg.mxu0
        %v657 = vadd.f32 %v569, %v654
        %s658 = scalar_lea.vmem %s1, 320
        %v659 = vld [vmem:[%s658] sm:$0xf]
        %v660 = vld [vmem:[%s658 + $0x4] sm:$0xf]
        %v661 = vld [vmem:[%s658 + $0x8] sm:$0xf]
        %v662 = vld [vmem:[%s658 + $0xc] sm:$0xf]
        %v663 = vld [vmem:[%s658 + $0x10] sm:$0xf]
        %v664 = vld [vmem:[%s658 + $0x14] sm:$0xf]
        %v665 = vld [vmem:[%s658 + $0x18] sm:$0xf]
        %v666 = vld [vmem:[%s658 + $0x1c] sm:$0xf]
        %v667 = vld [vmem:[%s658 + $0x20] sm:$0xf]
        %v668 = vld [vmem:[%s658 + $0x24] sm:$0xf]
        %v669 = vld [vmem:[%s658 + $0x28] sm:$0xf]
        %v670 = vld [vmem:[%s658 + $0x2c] sm:$0xf]
        %v671 = vld [vmem:[%s658 + $0x30] sm:$0xf]
        %v672 = vld [vmem:[%s658 + $0x34] sm:$0xf]
        %v673 = vld [vmem:[%s658 + $0x38] sm:$0xf]
        %v674 = vld [vmem:[%s658 + $0x3c] sm:$0xf]
        %v676 = vrot.slane %v570, 1
        %v694 = vunpack.c.l.b16 %v659
        %v695 = vunpack.c.l.b16 %v660
        %v696 = vunpack.c.l.b16 %v661
        %v697 = vunpack.c.l.b16 %v662
        %v698 = vunpack.c.l.b16 %v663
        %v699 = vunpack.c.l.b16 %v664
        %v700 = vunpack.c.l.b16 %v665
        %v701 = vunpack.c.l.b16 %v666
        %v702 = vunpack.c.l.b16 %v667
        %v703 = vunpack.c.l.b16 %v668
        %v704 = vunpack.c.l.b16 %v669
        %v705 = vunpack.c.l.b16 %v670
        %v706 = vunpack.c.l.b16 %v671
        %v707 = vunpack.c.l.b16 %v672
        %v708 = vunpack.c.l.b16 %v673
        %v709 = vunpack.c.l.b16 %v674
        %v710 = vpack.c.b16 %v695, %v694
        %v711 = vpack.c.b16 %v697, %v696
        %v712 = vpack.c.b16 %v699, %v698
        %v713 = vpack.c.b16 %v701, %v700
        %v714 = vpack.c.b16 %v703, %v702
        %v715 = vpack.c.b16 %v705, %v704
        %v716 = vpack.c.b16 %v707, %v706
        %v717 = vpack.c.b16 %v709, %v708
        %726 = vmatpush.bf16.msra.mxu0 %v717
        %727 = vmatpush.bf16.msra.mxu0 %v716
        %728 = vmatpush.bf16.msra.mxu0 %v715
        %729 = vmatpush.bf16.msra.mxu0 %v714
        %730 = vmatpush.bf16.msra.mxu0 %v713
        %731 = vmatpush.bf16.msra.mxu0 %v712
        %732 = vmatpush.bf16.msra.mxu0 %v711
        %733 = vmatpush.bf16.msra.mxu0 %v710
        %734 = vmatmul.bf16.gmra.mxu0 %v676
        %v735 = vpop.f32.mrf.mxu0
        %v736 = vadd.f32 0.0, %v735
        %v737 = vpop.f32.mrf.mxu0
        %738 = vdwg.mxu0
        %v739 = vadd.f32 %v657, %v736
        %s740 = sadd.s32 %s229, 2
        %s741 = smul.u32 %s740, 16
        %s742 = scalar_lea.vmem %s219, %s741
        %v743 = vld [vmem:[%s742] sm:$0xff]
        %v744 = vld [vmem:[%s742 + $0x8] sm:$0x3]
        %v745 = vpack.c.bf16 %v743, %v743
        %s746 = scalar_lea.vmem %s1, 384
        %v747 = vld [vmem:[%s746] sm:$0xf]
        %v748 = vld [vmem:[%s746 + $0x4] sm:$0xf]
        %v749 = vld [vmem:[%s746 + $0x8] sm:$0xf]
        %v750 = vld [vmem:[%s746 + $0xc] sm:$0xf]
        %v751 = vld [vmem:[%s746 + $0x10] sm:$0xf]
        %v752 = vld [vmem:[%s746 + $0x14] sm:$0xf]
        %v753 = vld [vmem:[%s746 + $0x18] sm:$0xf]
        %v754 = vld [vmem:[%s746 + $0x1c] sm:$0xf]
        %v755 = vld [vmem:[%s746 + $0x20] sm:$0xf]
        %v756 = vld [vmem:[%s746 + $0x24] sm:$0xf]
        %v757 = vld [vmem:[%s746 + $0x28] sm:$0xf]
        %v758 = vld [vmem:[%s746 + $0x2c] sm:$0xf]
        %v759 = vld [vmem:[%s746 + $0x30] sm:$0xf]
        %v760 = vld [vmem:[%s746 + $0x34] sm:$0xf]
        %v761 = vld [vmem:[%s746 + $0x38] sm:$0xf]
        %v762 = vld [vmem:[%s746 + $0x3c] sm:$0xf]
        %v779 = vunpack.c.l.b16 %v747
        %v780 = vunpack.c.l.b16 %v748
        %v781 = vunpack.c.l.b16 %v749
        %v782 = vunpack.c.l.b16 %v750
        %v783 = vunpack.c.l.b16 %v751
        %v784 = vunpack.c.l.b16 %v752
        %v785 = vunpack.c.l.b16 %v753
        %v786 = vunpack.c.l.b16 %v754
        %v787 = vunpack.c.l.b16 %v755
        %v788 = vunpack.c.l.b16 %v756
        %v789 = vunpack.c.l.b16 %v757
        %v790 = vunpack.c.l.b16 %v758
        %v791 = vunpack.c.l.b16 %v759
        %v792 = vunpack.c.l.b16 %v760
        %v793 = vunpack.c.l.b16 %v761
        %v794 = vunpack.c.l.b16 %v762
        %v795 = vpack.c.b16 %v780, %v779
        %v796 = vpack.c.b16 %v782, %v781
        %v797 = vpack.c.b16 %v784, %v783
        %v798 = vpack.c.b16 %v786, %v785
        %v799 = vpack.c.b16 %v788, %v787
        %v800 = vpack.c.b16 %v790, %v789
        %v801 = vpack.c.b16 %v792, %v791
        %v802 = vpack.c.b16 %v794, %v793
        %811 = vmatpush.bf16.msra.mxu0 %v802
        %812 = vmatpush.bf16.msra.mxu0 %v801
        %813 = vmatpush.bf16.msra.mxu0 %v800
        %814 = vmatpush.bf16.msra.mxu0 %v799
        %815 = vmatpush.bf16.msra.mxu0 %v798
        %816 = vmatpush.bf16.msra.mxu0 %v797
        %817 = vmatpush.bf16.msra.mxu0 %v796
        %818 = vmatpush.bf16.msra.mxu0 %v795
        %819 = vmatmul.bf16.gmra.mxu0 %v745
        %v820 = vpop.f32.mrf.mxu0
        %v821 = vadd.f32 0.0, %v820
        %v822 = vpop.f32.mrf.mxu0
        %823 = vdwg.mxu0
        %v824 = vadd.f32 %v739, %v821
        %v825 = vpack.c.bf16 %v744, %v743
        %s826 = scalar_lea.vmem %s1, 448
        %v827 = vld [vmem:[%s826] sm:$0xf]
        %v828 = vld [vmem:[%s826 + $0x4] sm:$0xf]
        %v829 = vld [vmem:[%s826 + $0x8] sm:$0xf]
        %v830 = vld [vmem:[%s826 + $0xc] sm:$0xf]
        %v831 = vld [vmem:[%s826 + $0x10] sm:$0xf]
        %v832 = vld [vmem:[%s826 + $0x14] sm:$0xf]
        %v833 = vld [vmem:[%s826 + $0x18] sm:$0xf]
        %v834 = vld [vmem:[%s826 + $0x1c] sm:$0xf]
        %v835 = vld [vmem:[%s826 + $0x20] sm:$0xf]
        %v836 = vld [vmem:[%s826 + $0x24] sm:$0xf]
        %v837 = vld [vmem:[%s826 + $0x28] sm:$0xf]
        %v838 = vld [vmem:[%s826 + $0x2c] sm:$0xf]
        %v839 = vld [vmem:[%s826 + $0x30] sm:$0xf]
        %v840 = vld [vmem:[%s826 + $0x34] sm:$0xf]
        %v841 = vld [vmem:[%s826 + $0x38] sm:$0xf]
        %v842 = vld [vmem:[%s826 + $0x3c] sm:$0xf]
        %v844 = vshrl.u32 %v825, 16
        %v846 = vshll.u32 %v825, 16
        %v848 = vrot.slane %v846, 1
        %v849 = vor.u32 %v844, %v848
        %v867 = vunpack.c.l.b16 %v827
        %v868 = vunpack.c.l.b16 %v828
        %v869 = vunpack.c.l.b16 %v829
        %v870 = vunpack.c.l.b16 %v830
        %v871 = vunpack.c.l.b16 %v831
        %v872 = vunpack.c.l.b16 %v832
        %v873 = vunpack.c.l.b16 %v833
        %v874 = vunpack.c.l.b16 %v834
        %v875 = vunpack.c.l.b16 %v835
        %v876 = vunpack.c.l.b16 %v836
        %v877 = vunpack.c.l.b16 %v837
        %v878 = vunpack.c.l.b16 %v838
        %v879 = vunpack.c.l.b16 %v839
        %v880 = vunpack.c.l.b16 %v840
        %v881 = vunpack.c.l.b16 %v841
        %v882 = vunpack.c.l.b16 %v842
        %v883 = vpack.c.b16 %v868, %v867
        %v884 = vpack.c.b16 %v870, %v869
        %v885 = vpack.c.b16 %v872, %v871
        %v886 = vpack.c.b16 %v874, %v873
        %v887 = vpack.c.b16 %v876, %v875
        %v888 = vpack.c.b16 %v878, %v877
        %v889 = vpack.c.b16 %v880, %v879
        %v890 = vpack.c.b16 %v882, %v881
        %899 = vmatpush.bf16.msra.mxu0 %v890
        %900 = vmatpush.bf16.msra.mxu0 %v889
        %901 = vmatpush.bf16.msra.mxu0 %v888
        %902 = vmatpush.bf16.msra.mxu0 %v887
        %903 = vmatpush.bf16.msra.mxu0 %v886
        %904 = vmatpush.bf16.msra.mxu0 %v885
        %905 = vmatpush.bf16.msra.mxu0 %v884
        %906 = vmatpush.bf16.msra.mxu0 %v883
        %907 = vmatmul.bf16.gmra.mxu0 %v849
        %v908 = vpop.f32.mrf.mxu0
        %v909 = vadd.f32 0.0, %v908
        %v910 = vpop.f32.mrf.mxu0
        %911 = vdwg.mxu0
        %v912 = vadd.f32 %v824, %v909
        %s913 = scalar_lea.vmem %s1, 512
        %v914 = vld [vmem:[%s913] sm:$0xf]
        %v915 = vld [vmem:[%s913 + $0x4] sm:$0xf]
        %v916 = vld [vmem:[%s913 + $0x8] sm:$0xf]
        %v917 = vld [vmem:[%s913 + $0xc] sm:$0xf]
        %v918 = vld [vmem:[%s913 + $0x10] sm:$0xf]
        %v919 = vld [vmem:[%s913 + $0x14] sm:$0xf]
        %v920 = vld [vmem:[%s913 + $0x18] sm:$0xf]
        %v921 = vld [vmem:[%s913 + $0x1c] sm:$0xf]
        %v922 = vld [vmem:[%s913 + $0x20] sm:$0xf]
        %v923 = vld [vmem:[%s913 + $0x24] sm:$0xf]
        %v924 = vld [vmem:[%s913 + $0x28] sm:$0xf]
        %v925 = vld [vmem:[%s913 + $0x2c] sm:$0xf]
        %v926 = vld [vmem:[%s913 + $0x30] sm:$0xf]
        %v927 = vld [vmem:[%s913 + $0x34] sm:$0xf]
        %v928 = vld [vmem:[%s913 + $0x38] sm:$0xf]
        %v929 = vld [vmem:[%s913 + $0x3c] sm:$0xf]
        %v931 = vrot.slane %v825, 1
        %v949 = vunpack.c.l.b16 %v914
        %v950 = vunpack.c.l.b16 %v915
        %v951 = vunpack.c.l.b16 %v916
        %v952 = vunpack.c.l.b16 %v917
        %v953 = vunpack.c.l.b16 %v918
        %v954 = vunpack.c.l.b16 %v919
        %v955 = vunpack.c.l.b16 %v920
        %v956 = vunpack.c.l.b16 %v921
        %v957 = vunpack.c.l.b16 %v922
        %v958 = vunpack.c.l.b16 %v923
        %v959 = vunpack.c.l.b16 %v924
        %v960 = vunpack.c.l.b16 %v925
        %v961 = vunpack.c.l.b16 %v926
        %v962 = vunpack.c.l.b16 %v927
        %v963 = vunpack.c.l.b16 %v928
        %v964 = vunpack.c.l.b16 %v929
        %v965 = vpack.c.b16 %v950, %v949
        %v966 = vpack.c.b16 %v952, %v951
        %v967 = vpack.c.b16 %v954, %v953
        %v968 = vpack.c.b16 %v956, %v955
        %v969 = vpack.c.b16 %v958, %v957
        %v970 = vpack.c.b16 %v960, %v959
        %v971 = vpack.c.b16 %v962, %v961
        %v972 = vpack.c.b16 %v964, %v963
        %981 = vmatpush.bf16.msra.mxu0 %v972
        %982 = vmatpush.bf16.msra.mxu0 %v971
        %983 = vmatpush.bf16.msra.mxu0 %v970
        %984 = vmatpush.bf16.msra.mxu0 %v969
        %985 = vmatpush.bf16.msra.mxu0 %v968
        %986 = vmatpush.bf16.msra.mxu0 %v967
        %987 = vmatpush.bf16.msra.mxu0 %v966
        %988 = vmatpush.bf16.msra.mxu0 %v965
        %989 = vmatmul.bf16.gmra.mxu0 %v931
        %v990 = vpop.f32.mrf.mxu0
        %v991 = vadd.f32 0.0, %v990
        %v992 = vpop.f32.mrf.mxu0
        %993 = vdwg.mxu0
        %v994 = vadd.f32 %v912, %v991
        %v996 = vperm.slane %v225, 0
        %v998 = vadd.f32 %v994, %v996
        %v999 = vmax.f32 %v998, 0.0
        %v1000 = vmin.f32 %v999, 20.0
        %v1002 = vperm.slane %v226, 0
        %v1004 = vmul.f32 %v1000, %v1002
        %v1006 = vperm.slane %v227, 0
        %v1008 = vadd.f32 %v1004, %v1006
        %s1009 = smul.u32 %s229, 8
        %s1010 = scalar_lea.vmem %s224, %s1009
        %1011 = vst [vmem:[%s1010] sm:$0xff] %v1008
      $region45: #{listener_forward.18} parent=39 // loop_footer
        %s233 = sadd.s32 1, %s229
      $region46: #{listener_forward.18} parent=39 // loop_footer_branch
        %228 = sbr.rel target = $region42
      $region47: #{listener_forward.18} parent=39 // loop_exit
        _
      %p1012 = scmp.lt.s32.totalorder %s16, 1
      %s1013 = scalar_select %p1012, %s16, 1
      %s1014 = smul.addr %s1013, 8
      %s1015 = smul.addr %s1014, 8
      %s1016 = scalar_lea.vmem %s5, %s1015
      // Predicated region
      $region48: #{listener_forward.18} parent=39 // pred_check
        %p1017 = pneg %p144
      $region49: #{listener_forward.18} parent=39 // pred_check_branch
        %1019 = sbr.rel (%p1017) target = $region51
      $region50: #{listener_forward.18} parent=39 // pred_region
        _
      $region51: #{listener_forward.18} parent=39 // pred_fallthru
        _
    $region40: #{listener_forward.18} parent=5 // pred_fallthru
      _
    %p1020 = scmp.le.s32.totalorder 2, %s11
    // Predicated region
    $region52: #{listener_forward.18} parent=5 // pred_check
      %p1021 = pneg %p1020
    $region53: #{listener_forward.18} parent=5 // pred_check_branch
      %1023 = sbr.rel (%p1021) target = $region55
    $region54: #{listener_forward.18} parent=5 // pred_region
      %s1024 = ssub.s32 %s11, 2
      // Predicated region
      $region56: #{listener_forward.18} parent=54 // pred_check
        %p1025 = pneg %p150
      $region57: #{listener_forward.18} parent=54 // pred_check_branch
        %1027 = sbr.rel (%p1025) target = $region59
      $region58: #{listener_forward.18} parent=54 // pred_region
        %p1028 = scmp.lt.s32.totalorder %s17, 1
        %s1029 = scalar_select %p1028, %s17, 1
        %s1030 = smul.addr %s1029, 8
        %s1031 = smul.addr %s1030, 8
        %s1032 = scalar_lea.vmem %s5, %s1031
      $region59: #{listener_forward.18} parent=54 // pred_fallthru
        _
    $region55: #{listener_forward.18} parent=5 // pred_fallthru
      _
  $region6: #{listener_forward.18} parent=0 // loop_footer
    %s15 = sadd.s32 1, %s11
  $region7: #{listener_forward.18} parent=0 // loop_footer_branch
    %10 = sbr.rel target = $region3
  $region8: #{listener_forward.18} parent=0 // loop_exit
    _

// kernel: listener_forward.20
$region0: #{listener_forward.20}
  #allocation0 [shape = 'u32[]', space=smem, size = 0x4, offset = 0x4, fixed_abs, tag = 'smem constant byte address 0x4 - core index']
  #allocation1 [shape = 'u32[72,128]{1,0:T(1,128)}', space=vmem, size = 0x9000, scoped, tag = 'internal scratch']
  %s0 = inlined_call_operand.vmem [shape: f32[8,512], index: 0, kind: input, shape index: {}]
  %s1 = inlined_call_operand.vmem [shape: bf16[2,512,96], index: 1, kind: input, shape index: {}]
  %s2 = inlined_call_operand.vmem [shape: f32[2,1,96], index: 2, kind: input, shape index: {}]
  %s3 = inlined_call_operand.vmem [shape: f32[2,8,96], index: 3, kind: output, shape index: {}]
  %s4 = sld [smem:[#allocation0]]
  $region45: #{listener_forward.20} parent=0
    _
  %s6 = ssub.s32 1, %s4
  %s7 = scalar_select 0, %s6, %s4
  loop: start=0, step=1, limit=4
  $region2: #{listener_forward.20} parent=0 // loop_pre_header
    _
  $region3: #{listener_forward.20} parent=0 // loop_header
    %s9 = sphi 0, %s13
    %p10 = scmp.ge.s32.totalorder %s9, 4
    %s16 = sphi 0, %s28
    %s17 = sphi 0, %s24
    %s18 = sphi 0, %s16
    %s19 = sphi 0, %s17
    %s20 = sphi 0, %s18
    %s21 = sphi 0, %s19
    %s31 = sphi 0, %s33
    %s34 = sphi 0, %s31
    %s35 = sphi 0, %s34
    %s51 = sphi 0, %s35
    %s57 = sphi 0, %s59
    %s60 = sphi 0, %s57
    %s61 = sphi 0, %s60
    %s77 = sphi 0, %s61
    %s83 = sphi 0, %s85
    %s86 = sphi 0, %s83
    %s87 = sphi 0, %s86
    %s103 = sphi 0, %s87
    %s111 = sphi 0, %s113
    %s114 = sphi 0, %s111
    %s115 = sphi 0, %s114
    %s131 = sphi 0, %s115
  $region4: #{listener_forward.20} parent=0 // loop_header_branch
    %12 = sbr.rel (%p10) target = $region8
  $region5: #{listener_forward.20} parent=0 // loop_body
    %s14 = ssub.s32 %s9, 1
    %s15 = ssub.s32 %s9, 2
    %s22 = sadd.s32 1, %s17
    %p23 = scmp.ge.s32.totalorder %s22, 1
    %s24 = scalar_select %p23, 0, %s22
    %s25 = sadd.s32 1, %s16
    %s26 = scalar_select %p23, %s25, %s16
    %p27 = scmp.ge.s32.totalorder %s26, 2
    %s28 = scalar_select %p27, 0, %s26
    %s29 = ssub.s32 %s17, %s24
    %p30 = scmp.eq.s32.totalorder %s29, 0
    %s32 = sadd.s32 %s31, 1
    %s33 = scalar_select %p30, %s31, %s32
    %p36 = pneg %p30
    %p37 = scmp.eq.s32.totalorder %s9, 1
    %p38 = por %p36, %p37
    %p39 = scmp.ne.s32.totalorder %s31, %s34
    %p40 = scmp.eq.s32.totalorder %s9, 0
    %p41 = por %p39, %p40
    %p42 = scmp.ne.s32.totalorder %s31, %s34
    %p43 = scmp.eq.s32.totalorder %s14, 1
    %p44 = por %p42, %p43
    %p45 = scmp.ne.s32.totalorder %s34, %s35
    %p46 = scmp.eq.s32.totalorder %s14, 0
    %p47 = por %p45, %p46
    %p48 = scmp.ne.s32.totalorder %s34, %s35
    %p49 = scmp.eq.s32.totalorder %s15, 1
    %p50 = por %p48, %p49
    %p52 = scmp.ne.s32.totalorder %s35, %s51
    %p53 = scmp.eq.s32.totalorder %s15, 0
    %p54 = por %p52, %p53
    %s55 = ssub.s32 %s16, %s28
    %p56 = scmp.eq.s32.totalorder %s55, 0
    %s58 = sadd.s32 %s57, 1
    %s59 = scalar_select %p56, %s57, %s58
    %p62 = pneg %p56
    %p63 = scmp.eq.s32.totalorder %s9, 1
    %p64 = por %p62, %p63
    %p65 = scmp.ne.s32.totalorder %s57, %s60
    %p66 = scmp.eq.s32.totalorder %s9, 0
    %p67 = por %p65, %p66
    %p68 = scmp.ne.s32.totalorder %s57, %s60
    %p69 = scmp.eq.s32.totalorder %s14, 1
    %p70 = por %p68, %p69
    %p71 = scmp.ne.s32.totalorder %s60, %s61
    %p72 = scmp.eq.s32.totalorder %s14, 0
    %p73 = por %p71, %p72
    %p74 = scmp.ne.s32.totalorder %s60, %s61
    %p75 = scmp.eq.s32.totalorder %s15, 1
    %p76 = por %p74, %p75
    %p78 = scmp.ne.s32.totalorder %s61, %s77
    %p79 = scmp.eq.s32.totalorder %s15, 0
    %p80 = por %p78, %p79
    %s81 = ssub.s32 %s16, %s28
    %p82 = scmp.eq.s32.totalorder %s81, 0
    %s84 = sadd.s32 %s83, 1
    %s85 = scalar_select %p82, %s83, %s84
    %p88 = pneg %p82
    %p89 = scmp.eq.s32.totalorder %s9, 1
    %p90 = por %p88, %p89
    %p91 = scmp.ne.s32.totalorder %s83, %s86
    %p92 = scmp.eq.s32.totalorder %s9, 0
    %p93 = por %p91, %p92
    %p94 = scmp.ne.s32.totalorder %s83, %s86
    %p95 = scmp.eq.s32.totalorder %s14, 1
    %p96 = por %p94, %p95
    %p97 = scmp.ne.s32.totalorder %s86, %s87
    %p98 = scmp.eq.s32.totalorder %s14, 0
    %p99 = por %p97, %p98
    %p100 = scmp.ne.s32.totalorder %s86, %s87
    %p101 = scmp.eq.s32.totalorder %s15, 1
    %p102 = por %p100, %p101
    %p104 = scmp.ne.s32.totalorder %s87, %s103
    %p105 = scmp.eq.s32.totalorder %s15, 0
    %p106 = por %p104, %p105
    %s107 = ssub.s32 %s16, %s28
    %s108 = ssub.s32 %s17, %s24
    %s109 = sor.u32 %s107, %s108
    %p110 = scmp.eq.s32.totalorder %s109, 0
    %s112 = sadd.s32 %s111, 1
    %s113 = scalar_select %p110, %s111, %s112
    %p116 = pneg %p110
    %p117 = scmp.eq.s32.totalorder %s9, 1
    %p118 = por %p116, %p117
    %p119 = scmp.ne.s32.totalorder %s111, %s114
    %p120 = scmp.eq.s32.totalorder %s9, 0
    %p121 = por %p119, %p120
    %p122 = scmp.ne.s32.totalorder %s111, %s114
    %p123 = scmp.eq.s32.totalorder %s14, 1
    %p124 = por %p122, %p123
    %p125 = scmp.ne.s32.totalorder %s114, %s115
    %p126 = scmp.eq.s32.totalorder %s14, 0
    %p127 = por %p125, %p126
    %p128 = scmp.ne.s32.totalorder %s114, %s115
    %p129 = scmp.eq.s32.totalorder %s15, 1
    %p130 = por %p128, %p129
    %p132 = scmp.ne.s32.totalorder %s115, %s131
    %p133 = scmp.eq.s32.totalorder %s15, 0
    %p134 = por %p132, %p133
    %p135 = scmp.le.s32.totalorder 1, %s9
    %p136 = scmp.lt.s32.totalorder %s9, 3
    %p137 = pnand %p135, %p136
    %p138 = pneg %p137
    // Predicated region
    $region9: #{listener_forward.20} parent=5 // pred_check
      _
    $region10: #{listener_forward.20} parent=5 // pred_check_branch
      %140 = sbr.rel (%p137) target = $region12
    $region11: #{listener_forward.20} parent=5 // pred_region
      %s141 = ssub.s32 %s9, 1
      // Predicated region
      $region13: #{listener_forward.20} parent=11 // pred_check
        %p142 = pneg %p47
      $region14: #{listener_forward.20} parent=11 // pred_check_branch
        %144 = sbr.rel (%p142) target = $region16
      $region15: #{listener_forward.20} parent=11 // pred_region
        %p145 = scmp.lt.s32.totalorder %s19, 0
        %s146 = scalar_select %p145, %s19, 0
        %s147 = smul.addr %s146, 4
        %s148 = smul.addr %s147, 8
        %s149 = scalar_lea.vmem %s0, %s148
      $region16: #{listener_forward.20} parent=11 // pred_fallthru
        _
    $region12: #{listener_forward.20} parent=5 // pred_fallthru
      _
    %p150 = scmp.lt.s32.totalorder %s9, 2
    // Predicated region
    $region17: #{listener_forward.20} parent=5 // pred_check
      %p151 = pneg %p150
    $region18: #{listener_forward.20} parent=5 // pred_check_branch
      %153 = sbr.rel (%p151) target = $region20
    $region19: #{listener_forward.20} parent=5 // pred_region
      // Predicated region
      $region21: #{listener_forward.20} parent=19 // pred_check
        %p154 = pneg %p67
      $region22: #{listener_forward.20} parent=19 // pred_check_branch
        %156 = sbr.rel (%p154) target = $region24
      $region23: #{listener_forward.20} parent=19 // pred_region
        %p157 = scmp.lt.s32.totalorder %s16, 1
        %s158 = scalar_select %p157, %s16, 1
        %s159 = smul.addr %s158, 64
        %s160 = smul.addr %s159, 4
        %s161 = scalar_lea.vmem %s1, %s160
      $region24: #{listener_forward.20} parent=19 // pred_fallthru
        _
      // Predicated region
      $region25: #{listener_forward.20} parent=19 // pred_check
        %p162 = pneg %p93
      $region26: #{listener_forward.20} parent=19 // pred_check_branch
        %164 = sbr.rel (%p162) target = $region28
      $region27: #{listener_forward.20} parent=19 // pred_region
        %p165 = scmp.lt.s32.totalorder %s16, 1
        %s166 = scalar_select %p165, %s16, 1
        %s167 = scalar_lea.vmem %s2, %s166
      $region28: #{listener_forward.20} parent=19 // pred_fallthru
        _
    $region20: #{listener_forward.20} parent=5 // pred_fallthru
      _
    %p168 = scmp.le.s32.totalorder 1, %s9
    %p169 = scmp.lt.s32.totalorder %s9, 3
    %p170 = pnand %p168, %p169
    %p171 = pneg %p170
    // Predicated region
    $region29: #{listener_forward.20} parent=5 // pred_check
      _
    $region30: #{listener_forward.20} parent=5 // pred_check_branch
      %173 = sbr.rel (%p170) target = $region32
    $region31: #{listener_forward.20} parent=5 // pred_region
      %s174 = ssub.s32 %s9, 1
      %p175 = scmp.lt.s32.totalorder %s19, 0
      %s176 = scalar_select %p175, %s19, 0
      %s177 = smul.addr %s176, 4
      %s178 = smul.addr %s177, 8
      %s179 = scalar_lea.vmem %s0, %s178
      %p180 = pneg %p47
      %p181 = pneg %p44
      %p182 = scmp.lt.s32.totalorder %s18, 1
      %s183 = scalar_select %p182, %s18, 1
      %s184 = smul.addr %s183, 64
      %s185 = smul.addr %s184, 4
      %s186 = scalar_lea.vmem %s1, %s185
      %p187 = pneg %p73
      %p188 = pneg %p70
      %p189 = scmp.lt.s32.totalorder %s18, 1
      %s190 = scalar_select %p189, %s18, 1
      %s191 = scalar_lea.vmem %s2, %s190
      %p192 = pneg %p99
      %p193 = pneg %p96
      %p194 = pneg %p127
      %p195 = pneg %p124
      %p196 = scmp.lt.s32.totalorder %s18, 1
      %s197 = scalar_select %p196, %s18, 1
      %p198 = scmp.lt.s32.totalorder %s19, 0
      %s199 = scalar_select %p198, %s19, 0
      %s200 = sadd.s32 %s199, %s197
      %s201 = smul.addr %s200, 8
      %s202 = scalar_lea.vmem %s3, %s201
      %p203 = scmp.lt.s32.totalorder %s19, 0
      %s204 = scalar_select %p203, %s19, 0
      %s205 = smul.addr %s204, 4
      %s206 = smul.addr %s205, 8
      %s207 = scalar_lea.vmem %s0, %s206
      %p208 = scmp.lt.s32.totalorder %s18, 1
      %s209 = scalar_select %p208, %s18, 1
      %s210 = smul.addr %s209, 64
      %s211 = smul.addr %s210, 4
      %s212 = scalar_lea.vmem %s1, %s211
      %p213 = scmp.lt.s32.totalorder %s18, 1
      %s214 = scalar_select %p213, %s18, 1
      %s215 = scalar_lea.vmem %s2, %s214
      %p216 = scmp.lt.s32.totalorder %s18, 1
      %s217 = scalar_select %p216, %s18, 1
      %p218 = scmp.lt.s32.totalorder %s19, 0
      %s219 = scalar_select %p218, %s19, 0
      %s220 = sadd.s32 %s219, %s217
      %s221 = smul.addr %s220, 8
      %s222 = scalar_lea.vmem %s3, %s221
      %v223 = vld [vmem:[%s207] sm:$0xff]
      %v224 = vld [vmem:[%s207 + $0x8] sm:$0xff]
      %v225 = vld [vmem:[%s207 + $0x10] sm:$0xff]
      %v226 = vld [vmem:[%s207 + $0x18] sm:$0xff]
      %v227 = vpack.c.bf16 %v223, %v223
      %v228 = vpack.c.bf16 %v224, %v224
      %v229 = vpack.c.bf16 %v225, %v225
      %v230 = vpack.c.bf16 %v226, %v226
      %v231 = vld [vmem:[%s212] sm:$0xf]
      %v232 = vld [vmem:[%s212 + $0x4] sm:$0xf]
      %v233 = vld [vmem:[%s212 + $0x8] sm:$0xf]
      %v234 = vld [vmem:[%s212 + $0xc] sm:$0xf]
      %v235 = vld [vmem:[%s212 + $0x10] sm:$0xf]
      %v236 = vld [vmem:[%s212 + $0x14] sm:$0xf]
      %v237 = vld [vmem:[%s212 + $0x18] sm:$0xf]
      %v238 = vld [vmem:[%s212 + $0x1c] sm:$0xf]
      %v239 = vld [vmem:[%s212 + $0x20] sm:$0xf]
      %v240 = vld [vmem:[%s212 + $0x24] sm:$0xf]
      %v241 = vld [vmem:[%s212 + $0x28] sm:$0xf]
      %v242 = vld [vmem:[%s212 + $0x2c] sm:$0xf]
      %v243 = vld [vmem:[%s212 + $0x30] sm:$0xf]
      %v244 = vld [vmem:[%s212 + $0x34] sm:$0xf]
      %v245 = vld [vmem:[%s212 + $0x38] sm:$0xf]
      %v246 = vld [vmem:[%s212 + $0x3c] sm:$0xf]
      %v247 = vld [vmem:[%s212 + $0x40] sm:$0xf]
      %v248 = vld [vmem:[%s212 + $0x44] sm:$0xf]
      %v249 = vld [vmem:[%s212 + $0x48] sm:$0xf]
      %v250 = vld [vmem:[%s212 + $0x4c] sm:$0xf]
      %v251 = vld [vmem:[%s212 + $0x50] sm:$0xf]
      %v252 = vld [vmem:[%s212 + $0x54] sm:$0xf]
      %v253 = vld [vmem:[%s212 + $0x58] sm:$0xf]
      %v254 = vld [vmem:[%s212 + $0x5c] sm:$0xf]
      %v255 = vld [vmem:[%s212 + $0x60] sm:$0xf]
      %v256 = vld [vmem:[%s212 + $0x64] sm:$0xf]
      %v257 = vld [vmem:[%s212 + $0x68] sm:$0xf]
      %v258 = vld [vmem:[%s212 + $0x6c] sm:$0xf]
      %v259 = vld [vmem:[%s212 + $0x70] sm:$0xf]
      %v260 = vld [vmem:[%s212 + $0x74] sm:$0xf]
      %v261 = vld [vmem:[%s212 + $0x78] sm:$0xf]
      %v262 = vld [vmem:[%s212 + $0x7c] sm:$0xf]
      %v263 = vld [vmem:[%s212 + $0x80] sm:$0xf]
      %v264 = vld [vmem:[%s212 + $0x84] sm:$0xf]
      %v265 = vld [vmem:[%s212 + $0x88] sm:$0xf]
      %v266 = vld [vmem:[%s212 + $0x8c] sm:$0xf]
      %v267 = vld [vmem:[%s212 + $0x90] sm:$0xf]
      %v268 = vld [vmem:[%s212 + $0x94] sm:$0xf]
      %v269 = vld [vmem:[%s212 + $0x98] sm:$0xf]
      %v270 = vld [vmem:[%s212 + $0x9c] sm:$0xf]
      %v271 = vld [vmem:[%s212 + $0xa0] sm:$0xf]
      %v272 = vld [vmem:[%s212 + $0xa4] sm:$0xf]
      %v273 = vld [vmem:[%s212 + $0xa8] sm:$0xf]
      %v274 = vld [vmem:[%s212 + $0xac] sm:$0xf]
      %v275 = vld [vmem:[%s212 + $0xb0] sm:$0xf]
      %v276 = vld [vmem:[%s212 + $0xb4] sm:$0xf]
      %v277 = vld [vmem:[%s212 + $0xb8] sm:$0xf]
      %v278 = vld [vmem:[%s212 + $0xbc] sm:$0xf]
      %v279 = vld [vmem:[%s212 + $0xc0] sm:$0xf]
      %v280 = vld [vmem:[%s212 + $0xc4] sm:$0xf]
      %v281 = vld [vmem:[%s212 + $0xc8] sm:$0xf]
      %v282 = vld [vmem:[%s212 + $0xcc] sm:$0xf]
      %v283 = vld [vmem:[%s212 + $0xd0] sm:$0xf]
      %v284 = vld [vmem:[%s212 + $0xd4] sm:$0xf]
      %v285 = vld [vmem:[%s212 + $0xd8] sm:$0xf]
      %v286 = vld [vmem:[%s212 + $0xdc] sm:$0xf]
      %v287 = vld [vmem:[%s212 + $0xe0] sm:$0xf]
      %v288 = vld [vmem:[%s212 + $0xe4] sm:$0xf]
      %v289 = vld [vmem:[%s212 + $0xe8] sm:$0xf]
      %v290 = vld [vmem:[%s212 + $0xec] sm:$0xf]
      %v291 = vld [vmem:[%s212 + $0xf0] sm:$0xf]
      %v292 = vld [vmem:[%s212 + $0xf4] sm:$0xf]
      %v293 = vld [vmem:[%s212 + $0xf8] sm:$0xf]
      %v294 = vld [vmem:[%s212 + $0xfc] sm:$0xf]
      %v295 = vld [vmem:[%s215] sm:$0x1]
      %v297 = vperm.slane %v295, 0
      %v363 = vunpack.c.l.b16 %v231
      %v364 = vunpack.c.l.b16 %v232
      %v365 = vunpack.c.l.b16 %v233
      %v366 = vunpack.c.l.b16 %v234
      %v367 = vunpack.c.l.b16 %v235
      %v368 = vunpack.c.l.b16 %v236
      %v369 = vunpack.c.l.b16 %v237
      %v370 = vunpack.c.l.b16 %v238
      %v371 = vunpack.c.l.b16 %v239
      %v372 = vunpack.c.l.b16 %v240
      %v373 = vunpack.c.l.b16 %v241
      %v374 = vunpack.c.l.b16 %v242
      %v375 = vunpack.c.l.b16 %v243
      %v376 = vunpack.c.l.b16 %v244
      %v377 = vunpack.c.l.b16 %v245
      %v378 = vunpack.c.l.b16 %v246
      %v379 = vunpack.c.l.b16 %v247
      %v380 = vunpack.c.l.b16 %v248
      %v381 = vunpack.c.l.b16 %v249
      %v382 = vunpack.c.l.b16 %v250
      %v383 = vunpack.c.l.b16 %v251
      %v384 = vunpack.c.l.b16 %v252
      %v385 = vunpack.c.l.b16 %v253
      %v386 = vunpack.c.l.b16 %v254
      %v387 = vunpack.c.l.b16 %v255
      %v388 = vunpack.c.l.b16 %v256
      %v389 = vunpack.c.l.b16 %v257
      %v390 = vunpack.c.l.b16 %v258
      %v391 = vunpack.c.l.b16 %v259
      %v392 = vunpack.c.l.b16 %v260
      %v393 = vunpack.c.l.b16 %v261
      %v394 = vunpack.c.l.b16 %v262
      %v395 = vunpack.c.l.b16 %v263
      %v396 = vunpack.c.l.b16 %v264
      %v397 = vunpack.c.l.b16 %v265
      %v398 = vunpack.c.l.b16 %v266
      %v399 = vunpack.c.l.b16 %v267
      %v400 = vunpack.c.l.b16 %v268
      %v401 = vunpack.c.l.b16 %v269
      %v402 = vunpack.c.l.b16 %v270
      %v403 = vunpack.c.l.b16 %v271
      %v404 = vunpack.c.l.b16 %v272
      %v405 = vunpack.c.l.b16 %v273
      %v406 = vunpack.c.l.b16 %v274
      %v407 = vunpack.c.l.b16 %v275
      %v408 = vunpack.c.l.b16 %v276
      %v409 = vunpack.c.l.b16 %v277
      %v410 = vunpack.c.l.b16 %v278
      %v411 = vunpack.c.l.b16 %v279
      %v412 = vunpack.c.l.b16 %v280
      %v413 = vunpack.c.l.b16 %v281
      %v414 = vunpack.c.l.b16 %v282
      %v415 = vunpack.c.l.b16 %v283
      %v416 = vunpack.c.l.b16 %v284
      %v417 = vunpack.c.l.b16 %v285
      %v418 = vunpack.c.l.b16 %v286
      %v419 = vunpack.c.l.b16 %v287
      %v420 = vunpack.c.l.b16 %v288
      %v421 = vunpack.c.l.b16 %v289
      %v422 = vunpack.c.l.b16 %v290
      %v423 = vunpack.c.l.b16 %v291
      %v424 = vunpack.c.l.b16 %v292
      %v425 = vunpack.c.l.b16 %v293
      %v426 = vunpack.c.l.b16 %v294
      %v427 = vpack.c.b16 %v364, %v363
      %v428 = vpack.c.b16 %v366, %v365
      %v429 = vpack.c.b16 %v368, %v367
      %v430 = vpack.c.b16 %v370, %v369
      %v431 = vpack.c.b16 %v372, %v371
      %v432 = vpack.c.b16 %v374, %v373
      %v433 = vpack.c.b16 %v376, %v375
      %v434 = vpack.c.b16 %v378, %v377
      %v435 = vpack.c.b16 %v380, %v379
      %v436 = vpack.c.b16 %v382, %v381
      %v437 = vpack.c.b16 %v384, %v383
      %v438 = vpack.c.b16 %v386, %v385
      %v439 = vpack.c.b16 %v388, %v387
      %v440 = vpack.c.b16 %v390, %v389
      %v441 = vpack.c.b16 %v392, %v391
      %v442 = vpack.c.b16 %v394, %v393
      %v443 = vpack.c.b16 %v396, %v395
      %v444 = vpack.c.b16 %v398, %v397
      %v445 = vpack.c.b16 %v400, %v399
      %v446 = vpack.c.b16 %v402, %v401
      %v447 = vpack.c.b16 %v404, %v403
      %v448 = vpack.c.b16 %v406, %v405
      %v449 = vpack.c.b16 %v408, %v407
      %v450 = vpack.c.b16 %v410, %v409
      %v451 = vpack.c.b16 %v412, %v411
      %v452 = vpack.c.b16 %v414, %v413
      %v453 = vpack.c.b16 %v416, %v415
      %v454 = vpack.c.b16 %v418, %v417
      %v455 = vpack.c.b16 %v420, %v419
      %v456 = vpack.c.b16 %v422, %v421
      %v457 = vpack.c.b16 %v424, %v423
      %v458 = vpack.c.b16 %v426, %v425
      %491 = vmatpush.bf16.msra.mxu0 %v434
      %492 = vmatpush.bf16.msra.mxu0 %v433
      %493 = vmatpush.bf16.msra.mxu0 %v432
      %494 = vmatpush.bf16.msra.mxu0 %v431
      %495 = vmatpush.bf16.msra.mxu0 %v430
      %496 = vmatpush.bf16.msra.mxu0 %v429
      %497 = vmatpush.bf16.msra.mxu0 %v428
      %498 = vmatpush.bf16.msra.mxu0 %v427
      %499 = vmatmul.bf16.gmra.mxu0 %v227
      %v500 = vpop.f32.mrf.mxu0
      %v501 = vadd.f32 %v297, %v500
      %v502 = vpop.f32.mrf.mxu0
      %503 = vdwg.mxu0
      %504 = vmatpush.bf16.msra.mxu0 %v442
      %505 = vmatpush.bf16.msra.mxu0 %v441
      %506 = vmatpush.bf16.msra.mxu0 %v440
      %507 = vmatpush.bf16.msra.mxu0 %v439
      %508 = vmatpush.bf16.msra.mxu0 %v438
      %509 = vmatpush.bf16.msra.mxu0 %v437
      %510 = vmatpush.bf16.msra.mxu0 %v436
      %511 = vmatpush.bf16.msra.mxu0 %v435
      %512 = vmatmul.bf16.gmra.mxu0 %v228
      %v513 = vpop.f32.mrf.mxu0
      %v514 = vadd.f32 %v501, %v513
      %v515 = vpop.f32.mrf.mxu0
      %516 = vdwg.mxu0
      %517 = vmatpush.bf16.msra.mxu0 %v450
      %518 = vmatpush.bf16.msra.mxu0 %v449
      %519 = vmatpush.bf16.msra.mxu0 %v448
      %520 = vmatpush.bf16.msra.mxu0 %v447
      %521 = vmatpush.bf16.msra.mxu0 %v446
      %522 = vmatpush.bf16.msra.mxu0 %v445
      %523 = vmatpush.bf16.msra.mxu0 %v444
      %524 = vmatpush.bf16.msra.mxu0 %v443
      %525 = vmatmul.bf16.gmra.mxu0 %v229
      %v526 = vpop.f32.mrf.mxu0
      %v527 = vadd.f32 %v514, %v526
      %v528 = vpop.f32.mrf.mxu0
      %529 = vdwg.mxu0
      %530 = vmatpush.bf16.msra.mxu0 %v458
      %531 = vmatpush.bf16.msra.mxu0 %v457
      %532 = vmatpush.bf16.msra.mxu0 %v456
      %533 = vmatpush.bf16.msra.mxu0 %v455
      %534 = vmatpush.bf16.msra.mxu0 %v454
      %535 = vmatpush.bf16.msra.mxu0 %v453
      %536 = vmatpush.bf16.msra.mxu0 %v452
      %537 = vmatpush.bf16.msra.mxu0 %v451
      %538 = vmatmul.bf16.gmra.mxu0 %v230
      %v539 = vpop.f32.mrf.mxu0
      %v540 = vadd.f32 %v527, %v539
      %v541 = vpop.f32.mrf.mxu0
      %542 = vdwg.mxu0
      %vm543 = vcmask 785408
      %544 = vst.msk [vmem:[%s222] sm:$0xff] %vm543, %v540
      %p545 = scmp.lt.s32.totalorder %s18, 1
      %s546 = scalar_select %p545, %s18, 1
      %p547 = scmp.lt.s32.totalorder %s19, 0
      %s548 = scalar_select %p547, %s19, 0
      %s549 = sadd.s32 %s548, %s546
      %s550 = smul.addr %s549, 8
      %s551 = scalar_lea.vmem %s3, %s550
      // Predicated region
      $region33: #{listener_forward.20} parent=31 // pred_check
        %p552 = pneg %p124
      $region34: #{listener_forward.20} parent=31 // pred_check_branch
        %554 = sbr.rel (%p552) target = $region36
      $region35: #{listener_forward.20} parent=31 // pred_region
        _
      $region36: #{listener_forward.20} parent=31 // pred_fallthru
        _
    $region32: #{listener_forward.20} parent=5 // pred_fallthru
      _
    %p555 = scmp.le.s32.totalorder 2, %s9
    // Predicated region
    $region37: #{listener_forward.20} parent=5 // pred_check
      %p556 = pneg %p555
    $region38: #{listener_forward.20} parent=5 // pred_check_branch
      %558 = sbr.rel (%p556) target = $region40
    $region39: #{listener_forward.20} parent=5 // pred_region
      %s559 = ssub.s32 %s9, 2
      // Predicated region
      $region41: #{listener_forward.20} parent=39 // pred_check
        %p560 = pneg %p130
      $region42: #{listener_forward.20} parent=39 // pred_check_branch
        %562 = sbr.rel (%p560) target = $region44
      $region43: #{listener_forward.20} parent=39 // pred_region
        %p563 = scmp.lt.s32.totalorder %s20, 1
        %s564 = scalar_select %p563, %s20, 1
        %p565 = scmp.lt.s32.totalorder %s21, 0
        %s566 = scalar_select %p565, %s21, 0
        %s567 = sadd.s32 %s566, %s564
        %s568 = smul.addr %s567, 8
        %s569 = scalar_lea.vmem %s3, %s568
      $region44: #{listener_forward.20} parent=39 // pred_fallthru
        _
    $region40: #{listener_forward.20} parent=5 // pred_fallthru
      _
  $region6: #{listener_forward.20} parent=0 // loop_footer
    %s13 = sadd.s32 1, %s9
  $region7: #{listener_forward.20} parent=0 // loop_footer_branch
    %8 = sbr.rel target = $region3
  $region8: #{listener_forward.20} parent=0 // loop_exit
    _

// kernel: listener_forward.22
$region0: #{listener_forward.22}
  #allocation0 [shape = 'u32[]', space=smem, size = 0x4, offset = 0x4, fixed_abs, tag = 'smem constant byte address 0x4 - core index']
  #allocation1 [shape = 'u32[72,128]{1,0:T(1,128)}', space=vmem, size = 0x9000, scoped, tag = 'internal scratch']
  %s0 = inlined_call_operand.vmem [shape: f32[4,128], index: 0, kind: input, shape index: {}]
  %s1 = inlined_call_operand.vmem [shape: bf16[2,128,96], index: 1, kind: input, shape index: {}]
  %s2 = inlined_call_operand.vmem [shape: f32[2,1,96], index: 2, kind: input, shape index: {}]
  %s3 = inlined_call_operand.vmem [shape: f32[2,4,96], index: 3, kind: output, shape index: {}]
  %s4 = sld [smem:[#allocation0]]
  $region45: #{listener_forward.22} parent=0
    _
  %s6 = ssub.s32 1, %s4
  %s7 = scalar_select 0, %s6, %s4
  loop: start=0, step=1, limit=4
  $region2: #{listener_forward.22} parent=0 // loop_pre_header
    _
  $region3: #{listener_forward.22} parent=0 // loop_header
    %s9 = sphi 0, %s13
    %p10 = scmp.ge.s32.totalorder %s9, 4
    %s16 = sphi 0, %s28
    %s17 = sphi 0, %s24
    %s18 = sphi 0, %s16
    %s19 = sphi 0, %s17
    %s20 = sphi 0, %s18
    %s21 = sphi 0, %s19
    %s31 = sphi 0, %s33
    %s34 = sphi 0, %s31
    %s35 = sphi 0, %s34
    %s51 = sphi 0, %s35
    %s57 = sphi 0, %s59
    %s60 = sphi 0, %s57
    %s61 = sphi 0, %s60
    %s77 = sphi 0, %s61
    %s83 = sphi 0, %s85
    %s86 = sphi 0, %s83
    %s87 = sphi 0, %s86
    %s103 = sphi 0, %s87
    %s111 = sphi 0, %s113
    %s114 = sphi 0, %s111
    %s115 = sphi 0, %s114
    %s131 = sphi 0, %s115
  $region4: #{listener_forward.22} parent=0 // loop_header_branch
    %12 = sbr.rel (%p10) target = $region8
  $region5: #{listener_forward.22} parent=0 // loop_body
    %s14 = ssub.s32 %s9, 1
    %s15 = ssub.s32 %s9, 2
    %s22 = sadd.s32 1, %s17
    %p23 = scmp.ge.s32.totalorder %s22, 1
    %s24 = scalar_select %p23, 0, %s22
    %s25 = sadd.s32 1, %s16
    %s26 = scalar_select %p23, %s25, %s16
    %p27 = scmp.ge.s32.totalorder %s26, 2
    %s28 = scalar_select %p27, 0, %s26
    %s29 = ssub.s32 %s17, %s24
    %p30 = scmp.eq.s32.totalorder %s29, 0
    %s32 = sadd.s32 %s31, 1
    %s33 = scalar_select %p30, %s31, %s32
    %p36 = pneg %p30
    %p37 = scmp.eq.s32.totalorder %s9, 1
    %p38 = por %p36, %p37
    %p39 = scmp.ne.s32.totalorder %s31, %s34
    %p40 = scmp.eq.s32.totalorder %s9, 0
    %p41 = por %p39, %p40
    %p42 = scmp.ne.s32.totalorder %s31, %s34
    %p43 = scmp.eq.s32.totalorder %s14, 1
    %p44 = por %p42, %p43
    %p45 = scmp.ne.s32.totalorder %s34, %s35
    %p46 = scmp.eq.s32.totalorder %s14, 0
    %p47 = por %p45, %p46
    %p48 = scmp.ne.s32.totalorder %s34, %s35
    %p49 = scmp.eq.s32.totalorder %s15, 1
    %p50 = por %p48, %p49
    %p52 = scmp.ne.s32.totalorder %s35, %s51
    %p53 = scmp.eq.s32.totalorder %s15, 0
    %p54 = por %p52, %p53
    %s55 = ssub.s32 %s16, %s28
    %p56 = scmp.eq.s32.totalorder %s55, 0
    %s58 = sadd.s32 %s57, 1
    %s59 = scalar_select %p56, %s57, %s58
    %p62 = pneg %p56
    %p63 = scmp.eq.s32.totalorder %s9, 1
    %p64 = por %p62, %p63
    %p65 = scmp.ne.s32.totalorder %s57, %s60
    %p66 = scmp.eq.s32.totalorder %s9, 0
    %p67 = por %p65, %p66
    %p68 = scmp.ne.s32.totalorder %s57, %s60
    %p69 = scmp.eq.s32.totalorder %s14, 1
    %p70 = por %p68, %p69
    %p71 = scmp.ne.s32.totalorder %s60, %s61
    %p72 = scmp.eq.s32.totalorder %s14, 0
    %p73 = por %p71, %p72
    %p74 = scmp.ne.s32.totalorder %s60, %s61
    %p75 = scmp.eq.s32.totalorder %s15, 1
    %p76 = por %p74, %p75
    %p78 = scmp.ne.s32.totalorder %s61, %s77
    %p79 = scmp.eq.s32.totalorder %s15, 0
    %p80 = por %p78, %p79
    %s81 = ssub.s32 %s16, %s28
    %p82 = scmp.eq.s32.totalorder %s81, 0
    %s84 = sadd.s32 %s83, 1
    %s85 = scalar_select %p82, %s83, %s84
    %p88 = pneg %p82
    %p89 = scmp.eq.s32.totalorder %s9, 1
    %p90 = por %p88, %p89
    %p91 = scmp.ne.s32.totalorder %s83, %s86
    %p92 = scmp.eq.s32.totalorder %s9, 0
    %p93 = por %p91, %p92
    %p94 = scmp.ne.s32.totalorder %s83, %s86
    %p95 = scmp.eq.s32.totalorder %s14, 1
    %p96 = por %p94, %p95
    %p97 = scmp.ne.s32.totalorder %s86, %s87
    %p98 = scmp.eq.s32.totalorder %s14, 0
    %p99 = por %p97, %p98
    %p100 = scmp.ne.s32.totalorder %s86, %s87
    %p101 = scmp.eq.s32.totalorder %s15, 1
    %p102 = por %p100, %p101
    %p104 = scmp.ne.s32.totalorder %s87, %s103
    %p105 = scmp.eq.s32.totalorder %s15, 0
    %p106 = por %p104, %p105
    %s107 = ssub.s32 %s16, %s28
    %s108 = ssub.s32 %s17, %s24
    %s109 = sor.u32 %s107, %s108
    %p110 = scmp.eq.s32.totalorder %s109, 0
    %s112 = sadd.s32 %s111, 1
    %s113 = scalar_select %p110, %s111, %s112
    %p116 = pneg %p110
    %p117 = scmp.eq.s32.totalorder %s9, 1
    %p118 = por %p116, %p117
    %p119 = scmp.ne.s32.totalorder %s111, %s114
    %p120 = scmp.eq.s32.totalorder %s9, 0
    %p121 = por %p119, %p120
    %p122 = scmp.ne.s32.totalorder %s111, %s114
    %p123 = scmp.eq.s32.totalorder %s14, 1
    %p124 = por %p122, %p123
    %p125 = scmp.ne.s32.totalorder %s114, %s115
    %p126 = scmp.eq.s32.totalorder %s14, 0
    %p127 = por %p125, %p126
    %p128 = scmp.ne.s32.totalorder %s114, %s115
    %p129 = scmp.eq.s32.totalorder %s15, 1
    %p130 = por %p128, %p129
    %p132 = scmp.ne.s32.totalorder %s115, %s131
    %p133 = scmp.eq.s32.totalorder %s15, 0
    %p134 = por %p132, %p133
    %p135 = scmp.le.s32.totalorder 1, %s9
    %p136 = scmp.lt.s32.totalorder %s9, 3
    %p137 = pnand %p135, %p136
    %p138 = pneg %p137
    // Predicated region
    $region9: #{listener_forward.22} parent=5 // pred_check
      _
    $region10: #{listener_forward.22} parent=5 // pred_check_branch
      %140 = sbr.rel (%p137) target = $region12
    $region11: #{listener_forward.22} parent=5 // pred_region
      %s141 = ssub.s32 %s9, 1
      // Predicated region
      $region13: #{listener_forward.22} parent=11 // pred_check
        %p142 = pneg %p47
      $region14: #{listener_forward.22} parent=11 // pred_check_branch
        %144 = sbr.rel (%p142) target = $region16
      $region15: #{listener_forward.22} parent=11 // pred_region
        %p145 = scmp.lt.s32.totalorder %s19, 0
        %s146 = scalar_select %p145, %s19, 0
        %s147 = smul.addr %s146, 4
        %s148 = scalar_lea.vmem %s0, %s147
      $region16: #{listener_forward.22} parent=11 // pred_fallthru
        _
    $region12: #{listener_forward.22} parent=5 // pred_fallthru
      _
    %p149 = scmp.lt.s32.totalorder %s9, 2
    // Predicated region
    $region17: #{listener_forward.22} parent=5 // pred_check
      %p150 = pneg %p149
    $region18: #{listener_forward.22} parent=5 // pred_check_branch
      %152 = sbr.rel (%p150) target = $region20
    $region19: #{listener_forward.22} parent=5 // pred_region
      // Predicated region
      $region21: #{listener_forward.22} parent=19 // pred_check
        %p153 = pneg %p67
      $region22: #{listener_forward.22} parent=19 // pred_check_branch
        %155 = sbr.rel (%p153) target = $region24
      $region23: #{listener_forward.22} parent=19 // pred_region
        %p156 = scmp.lt.s32.totalorder %s16, 1
        %s157 = scalar_select %p156, %s16, 1
        %s158 = smul.addr %s157, 16
        %s159 = smul.addr %s158, 4
        %s160 = scalar_lea.vmem %s1, %s159
      $region24: #{listener_forward.22} parent=19 // pred_fallthru
        _
      // Predicated region
      $region25: #{listener_forward.22} parent=19 // pred_check
        %p161 = pneg %p93
      $region26: #{listener_forward.22} parent=19 // pred_check_branch
        %163 = sbr.rel (%p161) target = $region28
      $region27: #{listener_forward.22} parent=19 // pred_region
        %p164 = scmp.lt.s32.totalorder %s16, 1
        %s165 = scalar_select %p164, %s16, 1
        %s166 = scalar_lea.vmem %s2, %s165
      $region28: #{listener_forward.22} parent=19 // pred_fallthru
        _
    $region20: #{listener_forward.22} parent=5 // pred_fallthru
      _
    %p167 = scmp.le.s32.totalorder 1, %s9
    %p168 = scmp.lt.s32.totalorder %s9, 3
    %p169 = pnand %p167, %p168
    %p170 = pneg %p169
    // Predicated region
    $region29: #{listener_forward.22} parent=5 // pred_check
      _
    $region30: #{listener_forward.22} parent=5 // pred_check_branch
      %172 = sbr.rel (%p169) target = $region32
    $region31: #{listener_forward.22} parent=5 // pred_region
      %s173 = ssub.s32 %s9, 1
      %p174 = scmp.lt.s32.totalorder %s19, 0
      %s175 = scalar_select %p174, %s19, 0
      %s176 = smul.addr %s175, 4
      %s177 = scalar_lea.vmem %s0, %s176
      %p178 = pneg %p47
      %p179 = pneg %p44
      %p180 = scmp.lt.s32.totalorder %s18, 1
      %s181 = scalar_select %p180, %s18, 1
      %s182 = smul.addr %s181, 16
      %s183 = smul.addr %s182, 4
      %s184 = scalar_lea.vmem %s1, %s183
      %p185 = pneg %p73
      %p186 = pneg %p70
      %p187 = scmp.lt.s32.totalorder %s18, 1
      %s188 = scalar_select %p187, %s18, 1
      %s189 = scalar_lea.vmem %s2, %s188
      %p190 = pneg %p99
      %p191 = pneg %p96
      %p192 = pneg %p127
      %p193 = pneg %p124
      %p194 = scmp.lt.s32.totalorder %s18, 1
      %s195 = scalar_select %p194, %s18, 1
      %p196 = scmp.lt.s32.totalorder %s19, 0
      %s197 = scalar_select %p196, %s19, 0
      %s198 = sadd.s32 %s197, %s195
      %s199 = smul.addr %s198, 4
      %s200 = scalar_lea.vmem %s3, %s199
      %p201 = scmp.lt.s32.totalorder %s19, 0
      %s202 = scalar_select %p201, %s19, 0
      %s203 = smul.addr %s202, 4
      %s204 = scalar_lea.vmem %s0, %s203
      %p205 = scmp.lt.s32.totalorder %s18, 1
      %s206 = scalar_select %p205, %s18, 1
      %s207 = smul.addr %s206, 16
      %s208 = smul.addr %s207, 4
      %s209 = scalar_lea.vmem %s1, %s208
      %p210 = scmp.lt.s32.totalorder %s18, 1
      %s211 = scalar_select %p210, %s18, 1
      %s212 = scalar_lea.vmem %s2, %s211
      %p213 = scmp.lt.s32.totalorder %s18, 1
      %s214 = scalar_select %p213, %s18, 1
      %p215 = scmp.lt.s32.totalorder %s19, 0
      %s216 = scalar_select %p215, %s19, 0
      %s217 = sadd.s32 %s216, %s214
      %s218 = smul.addr %s217, 4
      %s219 = scalar_lea.vmem %s3, %s218
      %v220 = vld [vmem:[%s204] sm:$0xf]
      %v221 = vpack.c.bf16 %v220, %v220
      %v222 = vld [vmem:[%s209] sm:$0xf]
      %v223 = vld [vmem:[%s209 + $0x4] sm:$0xf]
      %v224 = vld [vmem:[%s209 + $0x8] sm:$0xf]
      %v225 = vld [vmem:[%s209 + $0xc] sm:$0xf]
      %v226 = vld [vmem:[%s209 + $0x10] sm:$0xf]
      %v227 = vld [vmem:[%s209 + $0x14] sm:$0xf]
      %v228 = vld [vmem:[%s209 + $0x18] sm:$0xf]
      %v229 = vld [vmem:[%s209 + $0x1c] sm:$0xf]
      %v230 = vld [vmem:[%s209 + $0x20] sm:$0xf]
      %v231 = vld [vmem:[%s209 + $0x24] sm:$0xf]
      %v232 = vld [vmem:[%s209 + $0x28] sm:$0xf]
      %v233 = vld [vmem:[%s209 + $0x2c] sm:$0xf]
      %v234 = vld [vmem:[%s209 + $0x30] sm:$0xf]
      %v235 = vld [vmem:[%s209 + $0x34] sm:$0xf]
      %v236 = vld [vmem:[%s209 + $0x38] sm:$0xf]
      %v237 = vld [vmem:[%s209 + $0x3c] sm:$0xf]
      %v238 = vld [vmem:[%s212] sm:$0x1]
      %v240 = vperm.slane %v238, 0
      %v258 = vunpack.c.l.b16 %v222
      %v259 = vunpack.c.l.b16 %v223
      %v260 = vunpack.c.l.b16 %v224
      %v261 = vunpack.c.l.b16 %v225
      %v262 = vunpack.c.l.b16 %v226
      %v263 = vunpack.c.l.b16 %v227
      %v264 = vunpack.c.l.b16 %v228
      %v265 = vunpack.c.l.b16 %v229
      %v266 = vunpack.c.l.b16 %v230
      %v267 = vunpack.c.l.b16 %v231
      %v268 = vunpack.c.l.b16 %v232
      %v269 = vunpack.c.l.b16 %v233
      %v270 = vunpack.c.l.b16 %v234
      %v271 = vunpack.c.l.b16 %v235
      %v272 = vunpack.c.l.b16 %v236
      %v273 = vunpack.c.l.b16 %v237
      %v274 = vpack.c.b16 %v259, %v258
      %v275 = vpack.c.b16 %v261, %v260
      %v276 = vpack.c.b16 %v263, %v262
      %v277 = vpack.c.b16 %v265, %v264
      %v278 = vpack.c.b16 %v267, %v266
      %v279 = vpack.c.b16 %v269, %v268
      %v280 = vpack.c.b16 %v271, %v270
      %v281 = vpack.c.b16 %v273, %v272
      %290 = vmatpush.bf16.msra.mxu0 %v281
      %291 = vmatpush.bf16.msra.mxu0 %v280
      %292 = vmatpush.bf16.msra.mxu0 %v279
      %293 = vmatpush.bf16.msra.mxu0 %v278
      %294 = vmatpush.bf16.msra.mxu0 %v277
      %295 = vmatpush.bf16.msra.mxu0 %v276
      %296 = vmatpush.bf16.msra.mxu0 %v275
      %297 = vmatpush.bf16.msra.mxu0 %v274
      %298 = vmatmul.bf16.gmra.mxu0 %v221
      %v299 = vpop.f32.mrf.mxu0
      %v300 = vadd.f32 %v240, %v299
      %v301 = vpop.f32.mrf.mxu0
      %302 = vdwg.mxu0
      %vm303 = vcmask 781312
      %304 = vst.msk [vmem:[%s219] sm:$0xf] %vm303, %v300
      %p305 = scmp.lt.s32.totalorder %s18, 1
      %s306 = scalar_select %p305, %s18, 1
      %p307 = scmp.lt.s32.totalorder %s19, 0
      %s308 = scalar_select %p307, %s19, 0
      %s309 = sadd.s32 %s308, %s306
      %s310 = smul.addr %s309, 4
      %s311 = scalar_lea.vmem %s3, %s310
      // Predicated region
      $region33: #{listener_forward.22} parent=31 // pred_check
        %p312 = pneg %p124
      $region34: #{listener_forward.22} parent=31 // pred_check_branch
        %314 = sbr.rel (%p312) target = $region36
      $region35: #{listener_forward.22} parent=31 // pred_region
        _
      $region36: #{listener_forward.22} parent=31 // pred_fallthru
        _
    $region32: #{listener_forward.22} parent=5 // pred_fallthru
      _
    %p315 = scmp.le.s32.totalorder 2, %s9
    // Predicated region
    $region37: #{listener_forward.22} parent=5 // pred_check
      %p316 = pneg %p315
    $region38: #{listener_forward.22} parent=5 // pred_check_branch
      %318 = sbr.rel (%p316) target = $region40
    $region39: #{listener_forward.22} parent=5 // pred_region
      %s319 = ssub.s32 %s9, 2
      // Predicated region
      $region41: #{listener_forward.22} parent=39 // pred_check
        %p320 = pneg %p130
      $region42: #{listener_forward.22} parent=39 // pred_check_branch
        %322 = sbr.rel (%p320) target = $region44
      $region43: #{listener_forward.22} parent=39 // pred_region
        %p323 = scmp.lt.s32.totalorder %s20, 1
        %s324 = scalar_select %p323, %s20, 1
        %p325 = scmp.lt.s32.totalorder %s21, 0
        %s326 = scalar_select %p325, %s21, 0
        %s327 = sadd.s32 %s326, %s324
        %s328 = smul.addr %s327, 4
        %s329 = scalar_lea.vmem %s3, %s328
      $region44: #{listener_forward.22} parent=39 // pred_fallthru
        _
    $region40: #{listener_forward.22} parent=5 // pred_fallthru
      _
  $region6: #{listener_forward.22} parent=0 // loop_footer
    %s13 = sadd.s32 1, %s9
  $region7: #{listener_forward.22} parent=0 // loop_footer_branch
    %8 = sbr.rel target = $region3
  $region8: #{listener_forward.22} parent=0 // loop_exit
    _

// kernel: listener_forward.21
$region0: #{listener_forward.21}
  #allocation0 [shape = 'u32[]', space=smem, size = 0x4, offset = 0x4, fixed_abs, tag = 'smem constant byte address 0x4 - core index']
  #allocation1 [shape = 'u32[72,128]{1,0:T(1,128)}', space=vmem, size = 0x9000, scoped, tag = 'internal scratch']
  #allocation2 [shape = 'f32[2,2,32]{2,1,0:T(2,128)}', space=vmem, size = 0x800, scoped, tag = 'scratch operand']
  %s0 = inlined_call_operand.vmem [shape: f32[2,4,2,96], index: 0, kind: input, shape index: {}, may-alias: {0,1}]
  %s1 = inlined_call_operand.vmem [shape: f32[2,4,2,96], index: 1, kind: input, shape index: {}, may-alias: {0,1}]
  %s2 = inlined_call_operand.vmem [shape: f32[2,32,96], index: 2, kind: input, shape index: {}]
  %s3 = inlined_call_operand.vmem [shape: f32[2,1,96], index: 3, kind: input, shape index: {}]
  %s4 = inlined_call_operand.vmem [shape: f32[4,2,32], index: 4, kind: output, shape index: {0}]
  %s5 = inlined_call_operand.vmem [shape: f32[4,2,32], index: 5, kind: output, shape index: {1}]
  %6 = xla_tuple %s4, %s5
  %s7 = sld [smem:[#allocation0]]
  $region38: #{listener_forward.21} parent=0
    _
  %s9 = ssub.s32 1, %s7
  %s10 = scalar_select 0, %s9, %s7
  // Predicated region
  $region2: #{listener_forward.21} parent=0 // pred_check
    _
  $region3: #{listener_forward.21} parent=0 // pred_check_branch
    %12 = sbr.rel (0) target = $region5
  $region4: #{listener_forward.21} parent=0 // pred_region
    _
  $region5: #{listener_forward.21} parent=0 // pred_fallthru
    _
  // Predicated region
  $region6: #{listener_forward.21} parent=0 // pred_check
    _
  $region7: #{listener_forward.21} parent=0 // pred_check_branch
    %14 = sbr.rel (0) target = $region9
  $region8: #{listener_forward.21} parent=0 // pred_region
    %s15 = ssub.s32 0, 0
    %s16 = smul.u32 4, %s15
    %p17 = scmp.lt.s32.totalorder %s16, 3
    %s18 = scalar_select %p17, %s16, 3
    %s19 = sadd.s32 %s18, 4
    %s20 = smul.addr %s19, 2
    %s21 = scalar_lea.vmem %s1, %s20
    %s22 = ssub.s32 0, 0
    %s23 = smul.u32 4, %s22
  $region9: #{listener_forward.21} parent=0 // pred_fallthru
    _
  // Predicated region
  $region10: #{listener_forward.21} parent=0 // pred_check
    _
  $region11: #{listener_forward.21} parent=0 // pred_check_branch
    %25 = sbr.rel (0) target = $region13
  $region12: #{listener_forward.21} parent=0 // pred_region
    _
  $region13: #{listener_forward.21} parent=0 // pred_fallthru
    _
  // Predicated region
  $region14: #{listener_forward.21} parent=0 // pred_check
    _
  $region15: #{listener_forward.21} parent=0 // pred_check_branch
    %27 = sbr.rel (0) target = $region17
  $region16: #{listener_forward.21} parent=0 // pred_region
    _
  $region17: #{listener_forward.21} parent=0 // pred_fallthru
    _
  %s28 = ssub.s32 0, 0
  %s29 = smul.u32 4, %s28
  %p30 = scmp.lt.s32.totalorder %s29, 3
  %s31 = scalar_select %p30, %s29, 3
  %s32 = sadd.s32 %s31, 4
  %s33 = smul.addr %s32, 2
  %s34 = scalar_lea.vmem %s1, %s33
  %s35 = ssub.s32 0, 0
  %s36 = smul.u32 4, %s35
  %p37 = scmp.lt.s32.totalorder %s36, 3
  %s38 = scalar_select %p37, %s36, 3
  %s39 = smul.addr %s38, 2
  %s40 = scalar_lea.vmem %s5, %s39
  %s41 = ssub.s32 0, 0
  %s42 = smul.u32 4, %s41
  %p43 = scmp.lt.s32.totalorder %s42, 3
  %s44 = scalar_select %p43, %s42, 3
  %s45 = sadd.s32 %s44, 4
  %s46 = smul.addr %s45, 2
  %s47 = scalar_lea.vmem %s1, %s46
  %s48 = ssub.s32 0, 0
  %s49 = smul.u32 4, %s48
  %s50 = ssub.s32 0, 0
  %s51 = smul.u32 4, %s50
  %p52 = scmp.lt.s32.totalorder %s51, 3
  %s53 = scalar_select %p52, %s51, 3
  %s54 = smul.addr %s53, 2
  %s55 = scalar_lea.vmem %s5, %s54
  %s56 = ssub.s32 0, 0
  %s57 = smul.u32 4, %s56
  %p58 = scmp.eq.s32.totalorder 0, 0
  // Predicated region
  $region18: #{listener_forward.21} parent=0 // pred_check
    %p59 = pneg %p58
  $region19: #{listener_forward.21} parent=0 // pred_check_branch
    %61 = sbr.rel (%p59) target = $region21
  $region20: #{listener_forward.21} parent=0 // pred_region
    %vm62 = vcmask 254976
    %63 = vst.msk [vmem:[#allocation2] sm:$0x3] %vm62, 0.0
    %64 = vst.msk [vmem:[#allocation2 + $0x2] sm:$0x3] %vm62, 0.0
  $region21: #{listener_forward.21} parent=0 // pred_fallthru
    _
  %v65 = vld [vmem:[%s2] sm:$0xff]
  %v66 = vld [vmem:[%s2 + $0x8] sm:$0xff]
  %v67 = vld [vmem:[%s2 + $0x10] sm:$0xff]
  %v68 = vld [vmem:[%s2 + $0x18] sm:$0xff]
  %s69 = scalar_lea.vmem %s2, 32
  %v70 = vld [vmem:[%s69] sm:$0xff]
  %v71 = vld [vmem:[%s69 + $0x8] sm:$0xff]
  %v72 = vld [vmem:[%s69 + $0x10] sm:$0xff]
  %v73 = vld [vmem:[%s69 + $0x18] sm:$0xff]
  %v74 = vld [vmem:[%s3] sm:$0x1]
  %s75 = scalar_lea.vmem %s3, 1
  %v76 = vld [vmem:[%s75] sm:$0x1]
  %v77 = vld [vmem:[%s0] sm:$0x3]
  %v78 = vld [vmem:[#allocation2] sm:$0x3]
  %v80 = vperm.slane %v74, 0
  %vm82 = vcmask 261120
  %v84 = vsel %vm82, %v78, 0
  %86 = vmatpush.msra.mxu0 0.0
  %87 = vmatpush.msra.mxu0 0.0
  %88 = vmatpush.msra.mxu0 0.0
  %89 = vmatpush.msra.mxu0 0.0
  %90 = vmatpush.msra.mxu0 0.0
  %91 = vmatpush.msra.mxu0 0.0
  %92 = vmatpush.msra.mxu0 0.0
  %93 = vmatpush.msra.mxu0 0.0
  %94 = vmatpush.msra.mxu0 0.0
  %95 = vmatpush.msra.mxu0 0.0
  %96 = vmatpush.msra.mxu0 0.0
  %97 = vmatpush.msra.mxu0 0.0
  %98 = vmatpush.msra.mxu0 %v68
  %99 = vmatpush.msra.mxu0 %v67
  %100 = vmatpush.msra.mxu0 %v66
  %101 = vmatpush.msra.mxu0 %v65
  %102 = vmatmul.f32.gmra.mxu0 %v84
  %v103 = vpop.f32.mrf.mxu0
  %v104 = vadd.f32 %v80, %v103
  %105 = vdwg.mxu0
  %v106 = vadd.f32 %v77, %v104
  %v107 = vxor.u32 %v106, 2147483648
  %v108 = vmul.f32 %v107, 1.442695
  %v109 = vpow.pop %v108
  %v110 = vadd.f32 %v109, 1.0
  %v111 = vrcp.pop %v110
  %v112 = vmul.f32 %v110, %v111
  %v113 = vsub.f32 1.0, %v112
  %v114 = vmul.f32 %v111, %v113
  %v115 = vadd.f32 %v111, %v114
  %vm116 = vweird.f32 %v110
  %vm117 = vweird.f32 %v111
  %vm118 = vmor %vm116, %vm117
  %v119 = vsel %vm118, %v111, %v115
  %v120 = vand.u32 2147483647, %v110
  %vm121 = vcmp.eq.f32.partialorder %v120, 8.507059e+37
  %v122 = vand.u32 %v110, 2147483648
  %v123 = vor.u32 1.1754944e-38, %v122
  %v124 = vsel %vm121, %v123, %v119
  %v125 = vmul.f32 1.0, %v124
  %127 = vrot.lane.b32.xlu0 %v104, 64
  %v128 = vpop.permute.xlu0 %127
  %v130 = vmul.f32 %v125, %v128
  %132 = vrot.lane.b32.xlu0 %v130, 64
  %v133 = vpop.permute.xlu0 %132
  %v135 = vadd.f32 %v77, %v133
  %v136 = vtanh.pop %v135
  %v137 = vsub.f32 1.0, %v125
  %139 = vrot.lane.b32.xlu0 %v136, 96
  %v140 = vpop.permute.xlu0 %139
  %v142 = vmul.f32 %v137, %v140
  %143 = vrot.lane.b32.xlu0 %v78, 32
  %v144 = vpop.permute.xlu0 %143
  %v146 = vmul.f32 %v125, %v144
  %v147 = vadd.f32 %v142, %v146
  %s148 = scalar_lea.vmem %s47, 6
  %v149 = vld [vmem:[%s148] sm:$0x3]
  %s150 = scalar_lea.vmem [#allocation2], 2
  %v151 = vld [vmem:[%s150] sm:$0x3]
  %v153 = vperm.slane %v76, 0
  %v156 = vsel %vm82, %v151, 0
  %158 = vmatpush.msra.mxu0 0.0
  %159 = vmatpush.msra.mxu0 0.0
  %160 = vmatpush.msra.mxu0 0.0
  %161 = vmatpush.msra.mxu0 0.0
  %162 = vmatpush.msra.mxu0 0.0
  %163 = vmatpush.msra.mxu0 0.0
  %164 = vmatpush.msra.mxu0 0.0
  %165 = vmatpush.msra.mxu0 0.0
  %166 = vmatpush.msra.mxu0 0.0
  %167 = vmatpush.msra.mxu0 0.0
  %168 = vmatpush.msra.mxu0 0.0
  %169 = vmatpush.msra.mxu0 0.0
  %170 = vmatpush.msra.mxu0 %v73
  %171 = vmatpush.msra.mxu0 %v72
  %172 = vmatpush.msra.mxu0 %v71
  %173 = vmatpush.msra.mxu0 %v70
  %174 = vmatmul.f32.gmra.mxu0 %v156
  %v175 = vpop.f32.mrf.mxu0
  %v176 = vadd.f32 %v153, %v175
  %177 = vdwg.mxu0
  %v178 = vadd.f32 %v149, %v176
  %v179 = vxor.u32 %v178, 2147483648
  %v180 = vmul.f32 %v179, 1.442695
  %v181 = vpow.pop %v180
  %v182 = vadd.f32 %v181, 1.0
  %v183 = vrcp.pop %v182
  %v184 = vmul.f32 %v182, %v183
  %v185 = vsub.f32 1.0, %v184
  %v186 = vmul.f32 %v183, %v185
  %v187 = vadd.f32 %v183, %v186
  %vm188 = vweird.f32 %v182
  %vm189 = vweird.f32 %v183
  %vm190 = vmor %vm188, %vm189
  %v191 = vsel %vm190, %v183, %v187
  %v192 = vand.u32 2147483647, %v182
  %vm193 = vcmp.eq.f32.partialorder %v192, 8.507059e+37
  %v194 = vand.u32 %v182, 2147483648
  %v195 = vor.u32 1.1754944e-38, %v194
  %v196 = vsel %vm193, %v195, %v191
  %v197 = vmul.f32 1.0, %v196
  %199 = vrot.lane.b32.xlu0 %v176, 64
  %v200 = vpop.permute.xlu0 %199
  %v202 = vmul.f32 %v197, %v200
  %204 = vrot.lane.b32.xlu0 %v202, 64
  %v205 = vpop.permute.xlu0 %204
  %v207 = vadd.f32 %v149, %v205
  %v208 = vtanh.pop %v207
  %v209 = vsub.f32 1.0, %v197
  %211 = vrot.lane.b32.xlu0 %v208, 96
  %v212 = vpop.permute.xlu0 %211
  %v214 = vmul.f32 %v209, %v212
  %215 = vrot.lane.b32.xlu0 %v151, 32
  %v216 = vpop.permute.xlu0 %215
  %v218 = vmul.f32 %v197, %v216
  %v219 = vadd.f32 %v214, %v218
  %221 = vrot.lane.b32.xlu0 %v147, 96
  %v222 = vpop.permute.xlu0 %221
  %vm224 = vcmask 254976
  %225 = vst.msk [vmem:[#allocation2] sm:$0x3] %vm224, %v222
  %227 = vrot.lane.b32.xlu0 %v219, 96
  %v228 = vpop.permute.xlu0 %227
  %230 = vst.msk [vmem:[%s150] sm:$0x3] %vm224, %v228
  %231 = vst.msk [vmem:[%s4] sm:$0x3] %vm224, %v222
  %s232 = scalar_lea.vmem %s55, 6
  %233 = vst.msk [vmem:[%s232] sm:$0x3] %vm224, %v228
  %s234 = scalar_lea.vmem %s0, 2
  %v235 = vld [vmem:[%s234] sm:$0x3]
  %v236 = vld [vmem:[#allocation2] sm:$0x3]
  %v238 = vsel %vm82, %v236, 0
  %240 = vmatpush.msra.mxu0 0.0
  %241 = vmatpush.msra.mxu0 0.0
  %242 = vmatpush.msra.mxu0 0.0
  %243 = vmatpush.msra.mxu0 0.0
  %244 = vmatpush.msra.mxu0 0.0
  %245 = vmatpush.msra.mxu0 0.0
  %246 = vmatpush.msra.mxu0 0.0
  %247 = vmatpush.msra.mxu0 0.0
  %248 = vmatpush.msra.mxu0 0.0
  %249 = vmatpush.msra.mxu0 0.0
  %250 = vmatpush.msra.mxu0 0.0
  %251 = vmatpush.msra.mxu0 0.0
  %252 = vmatpush.msra.mxu0 %v68
  %253 = vmatpush.msra.mxu0 %v67
  %254 = vmatpush.msra.mxu0 %v66
  %255 = vmatpush.msra.mxu0 %v65
  %256 = vmatmul.f32.gmra.mxu0 %v238
  %v257 = vpop.f32.mrf.mxu0
  %v258 = vadd.f32 %v80, %v257
  %259 = vdwg.mxu0
  %v260 = vadd.f32 %v235, %v258
  %v261 = vxor.u32 %v260, 2147483648
  %v262 = vmul.f32 %v261, 1.442695
  %v263 = vpow.pop %v262
  %v264 = vadd.f32 %v263, 1.0
  %v265 = vrcp.pop %v264
  %v266 = vmul.f32 %v264, %v265
  %v267 = vsub.f32 1.0, %v266
  %v268 = vmul.f32 %v265, %v267
  %v269 = vadd.f32 %v265, %v268
  %vm270 = vweird.f32 %v264
  %vm271 = vweird.f32 %v265
  %vm272 = vmor %vm270, %vm271
  %v273 = vsel %vm272, %v265, %v269
  %v274 = vand.u32 2147483647, %v264
  %vm275 = vcmp.eq.f32.partialorder %v274, 8.507059e+37
  %v276 = vand.u32 %v264, 2147483648
  %v277 = vor.u32 1.1754944e-38, %v276
  %v278 = vsel %vm275, %v277, %v273
  %v279 = vmul.f32 1.0, %v278
  %281 = vrot.lane.b32.xlu0 %v258, 64
  %v282 = vpop.permute.xlu0 %281
  %v284 = vmul.f32 %v279, %v282
  %286 = vrot.lane.b32.xlu0 %v284, 64
  %v287 = vpop.permute.xlu0 %286
  %v289 = vadd.f32 %v235, %v287
  %v290 = vtanh.pop %v289
  %v291 = vsub.f32 1.0, %v279
  %293 = vrot.lane.b32.xlu0 %v290, 96
  %v294 = vpop.permute.xlu0 %293
  %v296 = vmul.f32 %v291, %v294
  %297 = vrot.lane.b32.xlu0 %v236, 32
  %v298 = vpop.permute.xlu0 %297
  %v300 = vmul.f32 %v279, %v298
  %v301 = vadd.f32 %v296, %v300
  %s302 = scalar_lea.vmem %s47, 4
  %v303 = vld [vmem:[%s302] sm:$0x3]
  %v304 = vld [vmem:[%s150] sm:$0x3]
  %v306 = vsel %vm82, %v304, 0
  %308 = vmatpush.msra.mxu0 0.0
  %309 = vmatpush.msra.mxu0 0.0
  %310 = vmatpush.msra.mxu0 0.0
  %311 = vmatpush.msra.mxu0 0.0
  %312 = vmatpush.msra.mxu0 0.0
  %313 = vmatpush.msra.mxu0 0.0
  %314 = vmatpush.msra.mxu0 0.0
  %315 = vmatpush.msra.mxu0 0.0
  %316 = vmatpush.msra.mxu0 0.0
  %317 = vmatpush.msra.mxu0 0.0
  %318 = vmatpush.msra.mxu0 0.0
  %319 = vmatpush.msra.mxu0 0.0
  %320 = vmatpush.msra.mxu0 %v73
  %321 = vmatpush.msra.mxu0 %v72
  %322 = vmatpush.msra.mxu0 %v71
  %323 = vmatpush.msra.mxu0 %v70
  %324 = vmatmul.f32.gmra.mxu0 %v306
  %v325 = vpop.f32.mrf.mxu0
  %v326 = vadd.f32 %v153, %v325
  %327 = vdwg.mxu0
  %v328 = vadd.f32 %v303, %v326
  %v329 = vxor.u32 %v328, 2147483648
  %v330 = vmul.f32 %v329, 1.442695
  %v331 = vpow.pop %v330
  %v332 = vadd.f32 %v331, 1.0
  %v333 = vrcp.pop %v332
  %v334 = vmul.f32 %v332, %v333
  %v335 = vsub.f32 1.0, %v334
  %v336 = vmul.f32 %v333, %v335
  %v337 = vadd.f32 %v333, %v336
  %vm338 = vweird.f32 %v332
  %vm339 = vweird.f32 %v333
  %vm340 = vmor %vm338, %vm339
  %v341 = vsel %vm340, %v333, %v337
  %v342 = vand.u32 2147483647, %v332
  %vm343 = vcmp.eq.f32.partialorder %v342, 8.507059e+37
  %v344 = vand.u32 %v332, 2147483648
  %v345 = vor.u32 1.1754944e-38, %v344
  %v346 = vsel %vm343, %v345, %v341
  %v347 = vmul.f32 1.0, %v346
  %349 = vrot.lane.b32.xlu0 %v326, 64
  %v350 = vpop.permute.xlu0 %349
  %v352 = vmul.f32 %v347, %v350
  %354 = vrot.lane.b32.xlu0 %v352, 64
  %v355 = vpop.permute.xlu0 %354
  %v357 = vadd.f32 %v303, %v355
  %v358 = vtanh.pop %v357
  %v359 = vsub.f32 1.0, %v347
  %361 = vrot.lane.b32.xlu0 %v358, 96
  %v362 = vpop.permute.xlu0 %361
  %v364 = vmul.f32 %v359, %v362
  %365 = vrot.lane.b32.xlu0 %v304, 32
  %v366 = vpop.permute.xlu0 %365
  %v368 = vmul.f32 %v347, %v366
  %v369 = vadd.f32 %v364, %v368
  %371 = vrot.lane.b32.xlu0 %v301, 96
  %v372 = vpop.permute.xlu0 %371
  %374 = vst.msk [vmem:[#allocation2] sm:$0x3] %vm224, %v372
  %376 = vrot.lane.b32.xlu0 %v369, 96
  %v377 = vpop.permute.xlu0 %376
  %379 = vst.msk [vmem:[%s150] sm:$0x3] %vm224, %v377
  %s380 = scalar_lea.vmem %s4, 2
  %381 = vst.msk [vmem:[%s380] sm:$0x3] %vm224, %v372
  %s382 = scalar_lea.vmem %s55, 4
  %383 = vst.msk [vmem:[%s382] sm:$0x3] %vm224, %v377
  %s384 = scalar_lea.vmem %s0, 4
  %v385 = vld [vmem:[%s384] sm:$0x3]
  %v386 = vld [vmem:[#allocation2] sm:$0x3]
  %v388 = vsel %vm82, %v386, 0
  %390 = vmatpush.msra.mxu0 0.0
  %391 = vmatpush.msra.mxu0 0.0
  %392 = vmatpush.msra.mxu0 0.0
  %393 = vmatpush.msra.mxu0 0.0
  %394 = vmatpush.msra.mxu0 0.0
  %395 = vmatpush.msra.mxu0 0.0
  %396 = vmatpush.msra.mxu0 0.0
  %397 = vmatpush.msra.mxu0 0.0
  %398 = vmatpush.msra.mxu0 0.0
  %399 = vmatpush.msra.mxu0 0.0
  %400 = vmatpush.msra.mxu0 0.0
  %401 = vmatpush.msra.mxu0 0.0
  %402 = vmatpush.msra.mxu0 %v68
  %403 = vmatpush.msra.mxu0 %v67
  %404 = vmatpush.msra.mxu0 %v66
  %405 = vmatpush.msra.mxu0 %v65
  %406 = vmatmul.f32.gmra.mxu0 %v388
  %v407 = vpop.f32.mrf.mxu0
  %v408 = vadd.f32 %v80, %v407
  %409 = vdwg.mxu0
  %v410 = vadd.f32 %v385, %v408
  %v411 = vxor.u32 %v410, 2147483648
  %v412 = vmul.f32 %v411, 1.442695
  %v413 = vpow.pop %v412
  %v414 = vadd.f32 %v413, 1.0
  %v415 = vrcp.pop %v414
  %v416 = vmul.f32 %v414, %v415
  %v417 = vsub.f32 1.0, %v416
  %v418 = vmul.f32 %v415, %v417
  %v419 = vadd.f32 %v415, %v418
  %vm420 = vweird.f32 %v414
  %vm421 = vweird.f32 %v415
  %vm422 = vmor %vm420, %vm421
  %v423 = vsel %vm422, %v415, %v419
  %v424 = vand.u32 2147483647, %v414
  %vm425 = vcmp.eq.f32.partialorder %v424, 8.507059e+37
  %v426 = vand.u32 %v414, 2147483648
  %v427 = vor.u32 1.1754944e-38, %v426
  %v428 = vsel %vm425, %v427, %v423
  %v429 = vmul.f32 1.0, %v428
  %431 = vrot.lane.b32.xlu0 %v408, 64
  %v432 = vpop.permute.xlu0 %431
  %v434 = vmul.f32 %v429, %v432
  %436 = vrot.lane.b32.xlu0 %v434, 64
  %v437 = vpop.permute.xlu0 %436
  %v439 = vadd.f32 %v385, %v437
  %v440 = vtanh.pop %v439
  %v441 = vsub.f32 1.0, %v429
  %443 = vrot.lane.b32.xlu0 %v440, 96
  %v444 = vpop.permute.xlu0 %443
  %v446 = vmul.f32 %v441, %v444
  %447 = vrot.lane.b32.xlu0 %v386, 32
  %v448 = vpop.permute.xlu0 %447
  %v450 = vmul.f32 %v429, %v448
  %v451 = vadd.f32 %v446, %v450
  %s452 = scalar_lea.vmem %s47, 2
  %v453 = vld [vmem:[%s452] sm:$0x3]
  %v454 = vld [vmem:[%s150] sm:$0x3]
  %v456 = vsel %vm82, %v454, 0
  %458 = vmatpush.msra.mxu0 0.0
  %459 = vmatpush.msra.mxu0 0.0
  %460 = vmatpush.msra.mxu0 0.0
  %461 = vmatpush.msra.mxu0 0.0
  %462 = vmatpush.msra.mxu0 0.0
  %463 = vmatpush.msra.mxu0 0.0
  %464 = vmatpush.msra.mxu0 0.0
  %465 = vmatpush.msra.mxu0 0.0
  %466 = vmatpush.msra.mxu0 0.0
  %467 = vmatpush.msra.mxu0 0.0
  %468 = vmatpush.msra.mxu0 0.0
  %469 = vmatpush.msra.mxu0 0.0
  %470 = vmatpush.msra.mxu0 %v73
  %471 = vmatpush.msra.mxu0 %v72
  %472 = vmatpush.msra.mxu0 %v71
  %473 = vmatpush.msra.mxu0 %v70
  %474 = vmatmul.f32.gmra.mxu0 %v456
  %v475 = vpop.f32.mrf.mxu0
  %v476 = vadd.f32 %v153, %v475
  %477 = vdwg.mxu0
  %v478 = vadd.f32 %v453, %v476
  %v479 = vxor.u32 %v478, 2147483648
  %v480 = vmul.f32 %v479, 1.442695
  %v481 = vpow.pop %v480
  %v482 = vadd.f32 %v481, 1.0
  %v483 = vrcp.pop %v482
  %v484 = vmul.f32 %v482, %v483
  %v485 = vsub.f32 1.0, %v484
  %v486 = vmul.f32 %v483, %v485
  %v487 = vadd.f32 %v483, %v486
  %vm488 = vweird.f32 %v482
  %vm489 = vweird.f32 %v483
  %vm490 = vmor %vm488, %vm489
  %v491 = vsel %vm490, %v483, %v487
  %v492 = vand.u32 2147483647, %v482
  %vm493 = vcmp.eq.f32.partialorder %v492, 8.507059e+37
  %v494 = vand.u32 %v482, 2147483648
  %v495 = vor.u32 1.1754944e-38, %v494
  %v496 = vsel %vm493, %v495, %v491
  %v497 = vmul.f32 1.0, %v496
  %499 = vrot.lane.b32.xlu0 %v476, 64
  %v500 = vpop.permute.xlu0 %499
  %v502 = vmul.f32 %v497, %v500
  %504 = vrot.lane.b32.xlu0 %v502, 64
  %v505 = vpop.permute.xlu0 %504
  %v507 = vadd.f32 %v453, %v505
  %v508 = vtanh.pop %v507
  %v509 = vsub.f32 1.0, %v497
  %511 = vrot.lane.b32.xlu0 %v508, 96
  %v512 = vpop.permute.xlu0 %511
  %v514 = vmul.f32 %v509, %v512
  %515 = vrot.lane.b32.xlu0 %v454, 32
  %v516 = vpop.permute.xlu0 %515
  %v518 = vmul.f32 %v497, %v516
  %v519 = vadd.f32 %v514, %v518
  %521 = vrot.lane.b32.xlu0 %v451, 96
  %v522 = vpop.permute.xlu0 %521
  %524 = vst.msk [vmem:[#allocation2] sm:$0x3] %vm224, %v522
  %526 = vrot.lane.b32.xlu0 %v519, 96
  %v527 = vpop.permute.xlu0 %526
  %529 = vst.msk [vmem:[%s150] sm:$0x3] %vm224, %v527
  %s530 = scalar_lea.vmem %s4, 4
  %531 = vst.msk [vmem:[%s530] sm:$0x3] %vm224, %v522
  %s532 = scalar_lea.vmem %s55, 2
  %533 = vst.msk [vmem:[%s532] sm:$0x3] %vm224, %v527
  %s534 = scalar_lea.vmem %s0, 6
  %v535 = vld [vmem:[%s534] sm:$0x3]
  %v536 = vld [vmem:[#allocation2] sm:$0x3]
  %v538 = vsel %vm82, %v536, 0
  %540 = vmatpush.msra.mxu0 0.0
  %541 = vmatpush.msra.mxu0 0.0
  %542 = vmatpush.msra.mxu0 0.0
  %543 = vmatpush.msra.mxu0 0.0
  %544 = vmatpush.msra.mxu0 0.0
  %545 = vmatpush.msra.mxu0 0.0
  %546 = vmatpush.msra.mxu0 0.0
  %547 = vmatpush.msra.mxu0 0.0
  %548 = vmatpush.msra.mxu0 0.0
  %549 = vmatpush.msra.mxu0 0.0
  %550 = vmatpush.msra.mxu0 0.0
  %551 = vmatpush.msra.mxu0 0.0
  %552 = vmatpush.msra.mxu0 %v68
  %553 = vmatpush.msra.mxu0 %v67
  %554 = vmatpush.msra.mxu0 %v66
  %555 = vmatpush.msra.mxu0 %v65
  %556 = vmatmul.f32.gmra.mxu0 %v538
  %v557 = vpop.f32.mrf.mxu0
  %v558 = vadd.f32 %v80, %v557
  %559 = vdwg.mxu0
  %v560 = vadd.f32 %v535, %v558
  %v561 = vxor.u32 %v560, 2147483648
  %v562 = vmul.f32 %v561, 1.442695
  %v563 = vpow.pop %v562
  %v564 = vadd.f32 %v563, 1.0
  %v565 = vrcp.pop %v564
  %v566 = vmul.f32 %v564, %v565
  %v567 = vsub.f32 1.0, %v566
  %v568 = vmul.f32 %v565, %v567
  %v569 = vadd.f32 %v565, %v568
  %vm570 = vweird.f32 %v564
  %vm571 = vweird.f32 %v565
  %vm572 = vmor %vm570, %vm571
  %v573 = vsel %vm572, %v565, %v569
  %v574 = vand.u32 2147483647, %v564
  %vm575 = vcmp.eq.f32.partialorder %v574, 8.507059e+37
  %v576 = vand.u32 %v564, 2147483648
  %v577 = vor.u32 1.1754944e-38, %v576
  %v578 = vsel %vm575, %v577, %v573
  %v579 = vmul.f32 1.0, %v578
  %581 = vrot.lane.b32.xlu0 %v558, 64
  %v582 = vpop.permute.xlu0 %581
  %v584 = vmul.f32 %v579, %v582
  %586 = vrot.lane.b32.xlu0 %v584, 64
  %v587 = vpop.permute.xlu0 %586
  %v589 = vadd.f32 %v535, %v587
  %v590 = vtanh.pop %v589
  %v591 = vsub.f32 1.0, %v579
  %593 = vrot.lane.b32.xlu0 %v590, 96
  %v594 = vpop.permute.xlu0 %593
  %v596 = vmul.f32 %v591, %v594
  %597 = vrot.lane.b32.xlu0 %v536, 32
  %v598 = vpop.permute.xlu0 %597
  %v600 = vmul.f32 %v579, %v598
  %v601 = vadd.f32 %v596, %v600
  %v602 = vld [vmem:[%s47] sm:$0x3]
  %v603 = vld [vmem:[%s150] sm:$0x3]
  %v605 = vsel %vm82, %v603, 0
  %607 = vmatpush.msra.mxu0 0.0
  %608 = vmatpush.msra.mxu0 0.0
  %609 = vmatpush.msra.mxu0 0.0
  %610 = vmatpush.msra.mxu0 0.0
  %611 = vmatpush.msra.mxu0 0.0
  %612 = vmatpush.msra.mxu0 0.0
  %613 = vmatpush.msra.mxu0 0.0
  %614 = vmatpush.msra.mxu0 0.0
  %615 = vmatpush.msra.mxu0 0.0
  %616 = vmatpush.msra.mxu0 0.0
  %617 = vmatpush.msra.mxu0 0.0
  %618 = vmatpush.msra.mxu0 0.0
  %619 = vmatpush.msra.mxu0 %v73
  %620 = vmatpush.msra.mxu0 %v72
  %621 = vmatpush.msra.mxu0 %v71
  %622 = vmatpush.msra.mxu0 %v70
  %623 = vmatmul.f32.gmra.mxu0 %v605
  %v624 = vpop.f32.mrf.mxu0
  %v625 = vadd.f32 %v153, %v624
  %626 = vdwg.mxu0
  %v627 = vadd.f32 %v602, %v625
  %v628 = vxor.u32 %v627, 2147483648
  %v629 = vmul.f32 %v628, 1.442695
  %v630 = vpow.pop %v629
  %v631 = vadd.f32 %v630, 1.0
  %v632 = vrcp.pop %v631
  %v633 = vmul.f32 %v631, %v632
  %v634 = vsub.f32 1.0, %v633
  %v635 = vmul.f32 %v632, %v634
  %v636 = vadd.f32 %v632, %v635
  %vm637 = vweird.f32 %v631
  %vm638 = vweird.f32 %v632
  %vm639 = vmor %vm637, %vm638
  %v640 = vsel %vm639, %v632, %v636
  %v641 = vand.u32 2147483647, %v631
  %vm642 = vcmp.eq.f32.partialorder %v641, 8.507059e+37
  %v643 = vand.u32 %v631, 2147483648
  %v644 = vor.u32 1.1754944e-38, %v643
  %v645 = vsel %vm642, %v644, %v640
  %v646 = vmul.f32 1.0, %v645
  %648 = vrot.lane.b32.xlu0 %v625, 64
  %v649 = vpop.permute.xlu0 %648
  %v651 = vmul.f32 %v646, %v649
  %653 = vrot.lane.b32.xlu0 %v651, 64
  %v654 = vpop.permute.xlu0 %653
  %v656 = vadd.f32 %v602, %v654
  %v657 = vtanh.pop %v656
  %v658 = vsub.f32 1.0, %v646
  %660 = vrot.lane.b32.xlu0 %v657, 96
  %v661 = vpop.permute.xlu0 %660
  %v663 = vmul.f32 %v658, %v661
  %664 = vrot.lane.b32.xlu0 %v603, 32
  %v665 = vpop.permute.xlu0 %664
  %v667 = vmul.f32 %v646, %v665
  %v668 = vadd.f32 %v663, %v667
  %670 = vrot.lane.b32.xlu0 %v601, 96
  %v671 = vpop.permute.xlu0 %670
  %673 = vst.msk [vmem:[#allocation2] sm:$0x3] %vm224, %v671
  %675 = vrot.lane.b32.xlu0 %v668, 96
  %v676 = vpop.permute.xlu0 %675
  %678 = vst.msk [vmem:[%s150] sm:$0x3] %vm224, %v676
  %s679 = scalar_lea.vmem %s4, 6
  %680 = vst.msk [vmem:[%s679] sm:$0x3] %vm224, %v671
  %681 = vst.msk [vmem:[%s55] sm:$0x3] %vm224, %v676
  %s682 = ssub.s32 0, 0
  %s683 = smul.u32 4, %s682
  %p684 = scmp.lt.s32.totalorder %s683, 3
  %s685 = scalar_select %p684, %s683, 3
  %s686 = smul.addr %s685, 2
  %s687 = scalar_lea.vmem %s5, %s686
  // Predicated region
  $region22: #{listener_forward.21} parent=0 // pred_check
    _
  $region23: #{listener_forward.21} parent=0 // pred_check_branch
    %689 = sbr.rel (0) target = $region25
  $region24: #{listener_forward.21} parent=0 // pred_region
    _
  $region25: #{listener_forward.21} parent=0 // pred_fallthru
    _
  // Predicated region
  $region26: #{listener_forward.21} parent=0 // pred_check
    _
  $region27: #{listener_forward.21} parent=0 // pred_check_branch
    %691 = sbr.rel (0) target = $region29
  $region28: #{listener_forward.21} parent=0 // pred_region
    %s692 = ssub.s32 0, 0
    %s693 = smul.u32 4, %s692
  $region29: #{listener_forward.21} parent=0 // pred_fallthru
    _
  // Predicated region
  $region30: #{listener_forward.21} parent=0 // pred_check
    _
  $region31: #{listener_forward.21} parent=0 // pred_check_branch
    %695 = sbr.rel (0) target = $region33
  $region32: #{listener_forward.21} parent=0 // pred_region
    _
  $region33: #{listener_forward.21} parent=0 // pred_fallthru
    _
  // Predicated region
  $region34: #{listener_forward.21} parent=0 // pred_check
    _
  $region35: #{listener_forward.21} parent=0 // pred_check_branch
    %697 = sbr.rel (0) target = $region37
  $region36: #{listener_forward.21} parent=0 // pred_region
    %s698 = ssub.s32 0, 0
    %s699 = smul.u32 4, %s698
    %p700 = scmp.lt.s32.totalorder %s699, 3
    %s701 = scalar_select %p700, %s699, 3
    %s702 = smul.addr %s701, 2
    %s703 = scalar_lea.vmem %s5, %s702
  $region37: #{listener_forward.21} parent=0 // pred_fallthru
    _

// kernel: listener_forward.23
$region0: #{listener_forward.23}
  #allocation0 [shape = 'u32[]', space=smem, size = 0x4, offset = 0x4, fixed_abs, tag = 'smem constant byte address 0x4 - core index']
  #allocation1 [shape = 'u32[72,128]{1,0:T(1,128)}', space=vmem, size = 0x9000, scoped, tag = 'internal scratch']
  #allocation2 [shape = 'f32[2,2,32]{2,1,0:T(2,128)}', space=vmem, size = 0x800, scoped, tag = 'scratch operand']
  %s0 = inlined_call_operand.vmem [shape: f32[2,2,2,96], index: 0, kind: input, shape index: {}, may-alias: {0,1}]
  %s1 = inlined_call_operand.vmem [shape: f32[2,2,2,96], index: 1, kind: input, shape index: {}, may-alias: {0,1}]
  %s2 = inlined_call_operand.vmem [shape: f32[2,32,96], index: 2, kind: input, shape index: {}]
  %s3 = inlined_call_operand.vmem [shape: f32[2,1,96], index: 3, kind: input, shape index: {}]
  %s4 = inlined_call_operand.vmem [shape: f32[2,2,32], index: 4, kind: output, shape index: {0}]
  %s5 = inlined_call_operand.vmem [shape: f32[2,2,32], index: 5, kind: output, shape index: {1}]
  %6 = xla_tuple %s4, %s5
  %s7 = sld [smem:[#allocation0]]
  $region38: #{listener_forward.23} parent=0
    _
  %s9 = ssub.s32 1, %s7
  %s10 = scalar_select 0, %s9, %s7
  // Predicated region
  $region2: #{listener_forward.23} parent=0 // pred_check
    _
  $region3: #{listener_forward.23} parent=0 // pred_check_branch
    %12 = sbr.rel (0) target = $region5
  $region4: #{listener_forward.23} parent=0 // pred_region
    _
  $region5: #{listener_forward.23} parent=0 // pred_fallthru
    _
  // Predicated region
  $region6: #{listener_forward.23} parent=0 // pred_check
    _
  $region7: #{listener_forward.23} parent=0 // pred_check_branch
    %14 = sbr.rel (0) target = $region9
  $region8: #{listener_forward.23} parent=0 // pred_region
    %s15 = ssub.s32 0, 0
    %s16 = smul.u32 2, %s15
    %p17 = scmp.lt.s32.totalorder %s16, 1
    %s18 = scalar_select %p17, %s16, 1
    %s19 = sadd.s32 %s18, 2
    %s20 = smul.addr %s19, 2
    %s21 = scalar_lea.vmem %s1, %s20
    %s22 = ssub.s32 0, 0
    %s23 = smul.u32 2, %s22
  $region9: #{listener_forward.23} parent=0 // pred_fallthru
    _
  // Predicated region
  $region10: #{listener_forward.23} parent=0 // pred_check
    _
  $region11: #{listener_forward.23} parent=0 // pred_check_branch
    %25 = sbr.rel (0) target = $region13
  $region12: #{listener_forward.23} parent=0 // pred_region
    _
  $region13: #{listener_forward.23} parent=0 // pred_fallthru
    _
  // Predicated region
  $region14: #{listener_forward.23} parent=0 // pred_check
    _
  $region15: #{listener_forward.23} parent=0 // pred_check_branch
    %27 = sbr.rel (0) target = $region17
  $region16: #{listener_forward.23} parent=0 // pred_region
    _
  $region17: #{listener_forward.23} parent=0 // pred_fallthru
    _
  %s28 = ssub.s32 0, 0
  %s29 = smul.u32 2, %s28
  %p30 = scmp.lt.s32.totalorder %s29, 1
  %s31 = scalar_select %p30, %s29, 1
  %s32 = sadd.s32 %s31, 2
  %s33 = smul.addr %s32, 2
  %s34 = scalar_lea.vmem %s1, %s33
  %s35 = ssub.s32 0, 0
  %s36 = smul.u32 2, %s35
  %p37 = scmp.lt.s32.totalorder %s36, 1
  %s38 = scalar_select %p37, %s36, 1
  %s39 = smul.addr %s38, 2
  %s40 = scalar_lea.vmem %s5, %s39
  %s41 = ssub.s32 0, 0
  %s42 = smul.u32 2, %s41
  %p43 = scmp.lt.s32.totalorder %s42, 1
  %s44 = scalar_select %p43, %s42, 1
  %s45 = sadd.s32 %s44, 2
  %s46 = smul.addr %s45, 2
  %s47 = scalar_lea.vmem %s1, %s46
  %s48 = ssub.s32 0, 0
  %s49 = smul.u32 2, %s48
  %s50 = ssub.s32 0, 0
  %s51 = smul.u32 2, %s50
  %p52 = scmp.lt.s32.totalorder %s51, 1
  %s53 = scalar_select %p52, %s51, 1
  %s54 = smul.addr %s53, 2
  %s55 = scalar_lea.vmem %s5, %s54
  %s56 = ssub.s32 0, 0
  %s57 = smul.u32 2, %s56
  %p58 = scmp.eq.s32.totalorder 0, 0
  // Predicated region
  $region18: #{listener_forward.23} parent=0 // pred_check
    %p59 = pneg %p58
  $region19: #{listener_forward.23} parent=0 // pred_check_branch
    %61 = sbr.rel (%p59) target = $region21
  $region20: #{listener_forward.23} parent=0 // pred_region
    %vm62 = vcmask 254976
    %63 = vst.msk [vmem:[#allocation2] sm:$0x3] %vm62, 0.0
    %64 = vst.msk [vmem:[#allocation2 + $0x2] sm:$0x3] %vm62, 0.0
  $region21: #{listener_forward.23} parent=0 // pred_fallthru
    _
  %v65 = vld [vmem:[%s2] sm:$0xff]
  %v66 = vld [vmem:[%s2 + $0x8] sm:$0xff]
  %v67 = vld [vmem:[%s2 + $0x10] sm:$0xff]
  %v68 = vld [vmem:[%s2 + $0x18] sm:$0xff]
  %s69 = scalar_lea.vmem %s2, 32
  %v70 = vld [vmem:[%s69] sm:$0xff]
  %v71 = vld [vmem:[%s69 + $0x8] sm:$0xff]
  %v72 = vld [vmem:[%s69 + $0x10] sm:$0xff]
  %v73 = vld [vmem:[%s69 + $0x18] sm:$0xff]
  %v74 = vld [vmem:[%s3] sm:$0x1]
  %s75 = scalar_lea.vmem %s3, 1
  %v76 = vld [vmem:[%s75] sm:$0x1]
  %v77 = vld [vmem:[%s0] sm:$0x3]
  %v78 = vld [vmem:[#allocation2] sm:$0x3]
  %v80 = vperm.slane %v74, 0
  %vm82 = vcmask 261120
  %v84 = vsel %vm82, %v78, 0
  %86 = vmatpush.msra.mxu0 0.0
  %87 = vmatpush.msra.mxu0 0.0
  %88 = vmatpush.msra.mxu0 0.0
  %89 = vmatpush.msra.mxu0 0.0
  %90 = vmatpush.msra.mxu0 0.0
  %91 = vmatpush.msra.mxu0 0.0
  %92 = vmatpush.msra.mxu0 0.0
  %93 = vmatpush.msra.mxu0 0.0
  %94 = vmatpush.msra.mxu0 0.0
  %95 = vmatpush.msra.mxu0 0.0
  %96 = vmatpush.msra.mxu0 0.0
  %97 = vmatpush.msra.mxu0 0.0
  %98 = vmatpush.msra.mxu0 %v68
  %99 = vmatpush.msra.mxu0 %v67
  %100 = vmatpush.msra.mxu0 %v66
  %101 = vmatpush.msra.mxu0 %v65
  %102 = vmatmul.f32.gmra.mxu0 %v84
  %v103 = vpop.f32.mrf.mxu0
  %v104 = vadd.f32 %v80, %v103
  %105 = vdwg.mxu0
  %v106 = vadd.f32 %v77, %v104
  %v107 = vxor.u32 %v106, 2147483648
  %v108 = vmul.f32 %v107, 1.442695
  %v109 = vpow.pop %v108
  %v110 = vadd.f32 %v109, 1.0
  %v111 = vrcp.pop %v110
  %v112 = vmul.f32 %v110, %v111
  %v113 = vsub.f32 1.0, %v112
  %v114 = vmul.f32 %v111, %v113
  %v115 = vadd.f32 %v111, %v114
  %vm116 = vweird.f32 %v110
  %vm117 = vweird.f32 %v111
  %vm118 = vmor %vm116, %vm117
  %v119 = vsel %vm118, %v111, %v115
  %v120 = vand.u32 2147483647, %v110
  %vm121 = vcmp.eq.f32.partialorder %v120, 8.507059e+37
  %v122 = vand.u32 %v110, 2147483648
  %v123 = vor.u32 1.1754944e-38, %v122
  %v124 = vsel %vm121, %v123, %v119
  %v125 = vmul.f32 1.0, %v124
  %127 = vrot.lane.b32.xlu0 %v104, 64
  %v128 = vpop.permute.xlu0 %127
  %v130 = vmul.f32 %v125, %v128
  %132 = vrot.lane.b32.xlu0 %v130, 64
  %v133 = vpop.permute.xlu0 %132
  %v135 = vadd.f32 %v77, %v133
  %v136 = vtanh.pop %v135
  %v137 = vsub.f32 1.0, %v125
  %139 = vrot.lane.b32.xlu0 %v136, 96
  %v140 = vpop.permute.xlu0 %139
  %v142 = vmul.f32 %v137, %v140
  %143 = vrot.lane.b32.xlu0 %v78, 32
  %v144 = vpop.permute.xlu0 %143
  %v146 = vmul.f32 %v125, %v144
  %v147 = vadd.f32 %v142, %v146
  %s148 = scalar_lea.vmem %s47, 2
  %v149 = vld [vmem:[%s148] sm:$0x3]
  %s150 = scalar_lea.vmem [#allocation2], 2
  %v151 = vld [vmem:[%s150] sm:$0x3]
  %v153 = vperm.slane %v76, 0
  %v156 = vsel %vm82, %v151, 0
  %158 = vmatpush.msra.mxu0 0.0
  %159 = vmatpush.msra.mxu0 0.0
  %160 = vmatpush.msra.mxu0 0.0
  %161 = vmatpush.msra.mxu0 0.0
  %162 = vmatpush.msra.mxu0 0.0
  %163 = vmatpush.msra.mxu0 0.0
  %164 = vmatpush.msra.mxu0 0.0
  %165 = vmatpush.msra.mxu0 0.0
  %166 = vmatpush.msra.mxu0 0.0
  %167 = vmatpush.msra.mxu0 0.0
  %168 = vmatpush.msra.mxu0 0.0
  %169 = vmatpush.msra.mxu0 0.0
  %170 = vmatpush.msra.mxu0 %v73
  %171 = vmatpush.msra.mxu0 %v72
  %172 = vmatpush.msra.mxu0 %v71
  %173 = vmatpush.msra.mxu0 %v70
  %174 = vmatmul.f32.gmra.mxu0 %v156
  %v175 = vpop.f32.mrf.mxu0
  %v176 = vadd.f32 %v153, %v175
  %177 = vdwg.mxu0
  %v178 = vadd.f32 %v149, %v176
  %v179 = vxor.u32 %v178, 2147483648
  %v180 = vmul.f32 %v179, 1.442695
  %v181 = vpow.pop %v180
  %v182 = vadd.f32 %v181, 1.0
  %v183 = vrcp.pop %v182
  %v184 = vmul.f32 %v182, %v183
  %v185 = vsub.f32 1.0, %v184
  %v186 = vmul.f32 %v183, %v185
  %v187 = vadd.f32 %v183, %v186
  %vm188 = vweird.f32 %v182
  %vm189 = vweird.f32 %v183
  %vm190 = vmor %vm188, %vm189
  %v191 = vsel %vm190, %v183, %v187
  %v192 = vand.u32 2147483647, %v182
  %vm193 = vcmp.eq.f32.partialorder %v192, 8.507059e+37
  %v194 = vand.u32 %v182, 2147483648
  %v195 = vor.u32 1.1754944e-38, %v194
  %v196 = vsel %vm193, %v195, %v191
  %v197 = vmul.f32 1.0, %v196
  %199 = vrot.lane.b32.xlu0 %v176, 64
  %v200 = vpop.permute.xlu0 %199
  %v202 = vmul.f32 %v197, %v200
  %204 = vrot.lane.b32.xlu0 %v202, 64
  %v205 = vpop.permute.xlu0 %204
  %v207 = vadd.f32 %v149, %v205
  %v208 = vtanh.pop %v207
  %v209 = vsub.f32 1.0, %v197
  %211 = vrot.lane.b32.xlu0 %v208, 96
  %v212 = vpop.permute.xlu0 %211
  %v214 = vmul.f32 %v209, %v212
  %215 = vrot.lane.b32.xlu0 %v151, 32
  %v216 = vpop.permute.xlu0 %215
  %v218 = vmul.f32 %v197, %v216
  %v219 = vadd.f32 %v214, %v218
  %221 = vrot.lane.b32.xlu0 %v147, 96
  %v222 = vpop.permute.xlu0 %221
  %vm224 = vcmask 254976
  %225 = vst.msk [vmem:[#allocation2] sm:$0x3] %vm224, %v222
  %227 = vrot.lane.b32.xlu0 %v219, 96
  %v228 = vpop.permute.xlu0 %227
  %230 = vst.msk [vmem:[%s150] sm:$0x3] %vm224, %v228
  %231 = vst.msk [vmem:[%s4] sm:$0x3] %vm224, %v222
  %s232 = scalar_lea.vmem %s55, 2
  %233 = vst.msk [vmem:[%s232] sm:$0x3] %vm224, %v228
  %s234 = scalar_lea.vmem %s0, 2
  %v235 = vld [vmem:[%s234] sm:$0x3]
  %v236 = vld [vmem:[#allocation2] sm:$0x3]
  %v238 = vsel %vm82, %v236, 0
  %240 = vmatpush.msra.mxu0 0.0
  %241 = vmatpush.msra.mxu0 0.0
  %242 = vmatpush.msra.mxu0 0.0
  %243 = vmatpush.msra.mxu0 0.0
  %244 = vmatpush.msra.mxu0 0.0
  %245 = vmatpush.msra.mxu0 0.0
  %246 = vmatpush.msra.mxu0 0.0
  %247 = vmatpush.msra.mxu0 0.0
  %248 = vmatpush.msra.mxu0 0.0
  %249 = vmatpush.msra.mxu0 0.0
  %250 = vmatpush.msra.mxu0 0.0
  %251 = vmatpush.msra.mxu0 0.0
  %252 = vmatpush.msra.mxu0 %v68
  %253 = vmatpush.msra.mxu0 %v67
  %254 = vmatpush.msra.mxu0 %v66
  %255 = vmatpush.msra.mxu0 %v65
  %256 = vmatmul.f32.gmra.mxu0 %v238
  %v257 = vpop.f32.mrf.mxu0
  %v258 = vadd.f32 %v80, %v257
  %259 = vdwg.mxu0
  %v260 = vadd.f32 %v235, %v258
  %v261 = vxor.u32 %v260, 2147483648
  %v262 = vmul.f32 %v261, 1.442695
  %v263 = vpow.pop %v262
  %v264 = vadd.f32 %v263, 1.0
  %v265 = vrcp.pop %v264
  %v266 = vmul.f32 %v264, %v265
  %v267 = vsub.f32 1.0, %v266
  %v268 = vmul.f32 %v265, %v267
  %v269 = vadd.f32 %v265, %v268
  %vm270 = vweird.f32 %v264
  %vm271 = vweird.f32 %v265
  %vm272 = vmor %vm270, %vm271
  %v273 = vsel %vm272, %v265, %v269
  %v274 = vand.u32 2147483647, %v264
  %vm275 = vcmp.eq.f32.partialorder %v274, 8.507059e+37
  %v276 = vand.u32 %v264, 2147483648
  %v277 = vor.u32 1.1754944e-38, %v276
  %v278 = vsel %vm275, %v277, %v273
  %v279 = vmul.f32 1.0, %v278
  %281 = vrot.lane.b32.xlu0 %v258, 64
  %v282 = vpop.permute.xlu0 %281
  %v284 = vmul.f32 %v279, %v282
  %286 = vrot.lane.b32.xlu0 %v284, 64
  %v287 = vpop.permute.xlu0 %286
  %v289 = vadd.f32 %v235, %v287
  %v290 = vtanh.pop %v289
  %v291 = vsub.f32 1.0, %v279
  %293 = vrot.lane.b32.xlu0 %v290, 96
  %v294 = vpop.permute.xlu0 %293
  %v296 = vmul.f32 %v291, %v294
  %297 = vrot.lane.b32.xlu0 %v236, 32
  %v298 = vpop.permute.xlu0 %297
  %v300 = vmul.f32 %v279, %v298
  %v301 = vadd.f32 %v296, %v300
  %v302 = vld [vmem:[%s47] sm:$0x3]
  %v303 = vld [vmem:[%s150] sm:$0x3]
  %v305 = vsel %vm82, %v303, 0
  %307 = vmatpush.msra.mxu0 0.0
  %308 = vmatpush.msra.mxu0 0.0
  %309 = vmatpush.msra.mxu0 0.0
  %310 = vmatpush.msra.mxu0 0.0
  %311 = vmatpush.msra.mxu0 0.0
  %312 = vmatpush.msra.mxu0 0.0
  %313 = vmatpush.msra.mxu0 0.0
  %314 = vmatpush.msra.mxu0 0.0
  %315 = vmatpush.msra.mxu0 0.0
  %316 = vmatpush.msra.mxu0 0.0
  %317 = vmatpush.msra.mxu0 0.0
  %318 = vmatpush.msra.mxu0 0.0
  %319 = vmatpush.msra.mxu0 %v73
  %320 = vmatpush.msra.mxu0 %v72
  %321 = vmatpush.msra.mxu0 %v71
  %322 = vmatpush.msra.mxu0 %v70
  %323 = vmatmul.f32.gmra.mxu0 %v305
  %v324 = vpop.f32.mrf.mxu0
  %v325 = vadd.f32 %v153, %v324
  %326 = vdwg.mxu0
  %v327 = vadd.f32 %v302, %v325
  %v328 = vxor.u32 %v327, 2147483648
  %v329 = vmul.f32 %v328, 1.442695
  %v330 = vpow.pop %v329
  %v331 = vadd.f32 %v330, 1.0
  %v332 = vrcp.pop %v331
  %v333 = vmul.f32 %v331, %v332
  %v334 = vsub.f32 1.0, %v333
  %v335 = vmul.f32 %v332, %v334
  %v336 = vadd.f32 %v332, %v335
  %vm337 = vweird.f32 %v331
  %vm338 = vweird.f32 %v332
  %vm339 = vmor %vm337, %vm338
  %v340 = vsel %vm339, %v332, %v336
  %v341 = vand.u32 2147483647, %v331
  %vm342 = vcmp.eq.f32.partialorder %v341, 8.507059e+37
  %v343 = vand.u32 %v331, 2147483648
  %v344 = vor.u32 1.1754944e-38, %v343
  %v345 = vsel %vm342, %v344, %v340
  %v346 = vmul.f32 1.0, %v345
  %348 = vrot.lane.b32.xlu0 %v325, 64
  %v349 = vpop.permute.xlu0 %348
  %v351 = vmul.f32 %v346, %v349
  %353 = vrot.lane.b32.xlu0 %v351, 64
  %v354 = vpop.permute.xlu0 %353
  %v356 = vadd.f32 %v302, %v354
  %v357 = vtanh.pop %v356
  %v358 = vsub.f32 1.0, %v346
  %360 = vrot.lane.b32.xlu0 %v357, 96
  %v361 = vpop.permute.xlu0 %360
  %v363 = vmul.f32 %v358, %v361
  %364 = vrot.lane.b32.xlu0 %v303, 32
  %v365 = vpop.permute.xlu0 %364
  %v367 = vmul.f32 %v346, %v365
  %v368 = vadd.f32 %v363, %v367
  %370 = vrot.lane.b32.xlu0 %v301, 96
  %v371 = vpop.permute.xlu0 %370
  %373 = vst.msk [vmem:[#allocation2] sm:$0x3] %vm224, %v371
  %375 = vrot.lane.b32.xlu0 %v368, 96
  %v376 = vpop.permute.xlu0 %375
  %378 = vst.msk [vmem:[%s150] sm:$0x3] %vm224, %v376
  %s379 = scalar_lea.vmem %s4, 2
  %380 = vst.msk [vmem:[%s379] sm:$0x3] %vm224, %v371
  %381 = vst.msk [vmem:[%s55] sm:$0x3] %vm224, %v376
  %s382 = ssub.s32 0, 0
  %s383 = smul.u32 2, %s382
  %p384 = scmp.lt.s32.totalorder %s383, 1
  %s385 = scalar_select %p384, %s383, 1
  %s386 = smul.addr %s385, 2
  %s387 = scalar_lea.vmem %s5, %s386
  // Predicated region
  $region22: #{listener_forward.23} parent=0 // pred_check
    _
  $region23: #{listener_forward.23} parent=0 // pred_check_branch
    %389 = sbr.rel (0) target = $region25
  $region24: #{listener_forward.23} parent=0 // pred_region
    _
  $region25: #{listener_forward.23} parent=0 // pred_fallthru
    _
  // Predicated region
  $region26: #{listener_forward.23} parent=0 // pred_check
    _
  $region27: #{listener_forward.23} parent=0 // pred_check_branch
    %391 = sbr.rel (0) target = $region29
  $region28: #{listener_forward.23} parent=0 // pred_region
    %s392 = ssub.s32 0, 0
    %s393 = smul.u32 2, %s392
  $region29: #{listener_forward.23} parent=0 // pred_fallthru
    _
  // Predicated region
  $region30: #{listener_forward.23} parent=0 // pred_check
    _
  $region31: #{listener_forward.23} parent=0 // pred_check_branch
    %395 = sbr.rel (0) target = $region33
  $region32: #{listener_forward.23} parent=0 // pred_region
    _
  $region33: #{listener_forward.23} parent=0 // pred_fallthru
    _
  // Predicated region
  $region34: #{listener_forward.23} parent=0 // pred_check
    _
  $region35: #{listener_forward.23} parent=0 // pred_check_branch
    %397 = sbr.rel (0) target = $region37
  $region36: #{listener_forward.23} parent=0 // pred_region
    %s398 = ssub.s32 0, 0
    %s399 = smul.u32 2, %s398
    %p400 = scmp.lt.s32.totalorder %s399, 1
    %s401 = scalar_select %p400, %s399, 1
    %s402 = smul.addr %s401, 2
    %s403 = scalar_lea.vmem %s5, %s402
  $region37: #{listener_forward.23} parent=0 // pred_fallthru
    _

// kernel: listener_forward.27
$region0: #{listener_forward.27}
  #allocation0 [shape = 'u32[]', space=smem, size = 0x4, offset = 0x4, fixed_abs, tag = 'smem constant byte address 0x4 - core index']
  #allocation1 [shape = 'u32[72,128]{1,0:T(1,128)}', space=vmem, size = 0x9000, scoped, tag = 'internal scratch']
  #allocation2 [shape = 'f32[2,2,32]{2,1,0:T(2,128)}', space=vmem, size = 0x800, scoped, tag = 'scratch operand']
  %s0 = inlined_call_operand.vmem [shape: f32[2,1,2,96], index: 0, kind: input, shape index: {}, may-alias: {0,1}]
  %s1 = inlined_call_operand.vmem [shape: f32[2,1,2,96], index: 1, kind: input, shape index: {}, may-alias: {0,1}]
  %s2 = inlined_call_operand.vmem [shape: f32[2,32,96], index: 2, kind: input, shape index: {}]
  %s3 = inlined_call_operand.vmem [shape: f32[2,1,96], index: 3, kind: input, shape index: {}]
  %s4 = inlined_call_operand.vmem [shape: f32[1,2,32], index: 4, kind: output, shape index: {0}]
  %s5 = inlined_call_operand.vmem [shape: f32[1,2,32], index: 5, kind: output, shape index: {1}]
  %6 = xla_tuple %s4, %s5
  %s7 = sld [smem:[#allocation0]]
  $region38: #{listener_forward.27} parent=0
    _
  %s9 = ssub.s32 1, %s7
  %s10 = scalar_select 0, %s9, %s7
  // Predicated region
  $region2: #{listener_forward.27} parent=0 // pred_check
    _
  $region3: #{listener_forward.27} parent=0 // pred_check_branch
    %12 = sbr.rel (0) target = $region5
  $region4: #{listener_forward.27} parent=0 // pred_region
    _
  $region5: #{listener_forward.27} parent=0 // pred_fallthru
    _
  // Predicated region
  $region6: #{listener_forward.27} parent=0 // pred_check
    _
  $region7: #{listener_forward.27} parent=0 // pred_check_branch
    %14 = sbr.rel (0) target = $region9
  $region8: #{listener_forward.27} parent=0 // pred_region
    %s15 = ssub.s32 0, 0
    %p16 = scmp.lt.s32.totalorder %s15, 0
    %s17 = scalar_select %p16, %s15, 0
    %s18 = sadd.s32 %s17, 1
    %s19 = smul.addr %s18, 2
    %s20 = scalar_lea.vmem %s1, %s19
    %s21 = ssub.s32 0, 0
  $region9: #{listener_forward.27} parent=0 // pred_fallthru
    _
  // Predicated region
  $region10: #{listener_forward.27} parent=0 // pred_check
    _
  $region11: #{listener_forward.27} parent=0 // pred_check_branch
    %23 = sbr.rel (0) target = $region13
  $region12: #{listener_forward.27} parent=0 // pred_region
    _
  $region13: #{listener_forward.27} parent=0 // pred_fallthru
    _
  // Predicated region
  $region14: #{listener_forward.27} parent=0 // pred_check
    _
  $region15: #{listener_forward.27} parent=0 // pred_check_branch
    %25 = sbr.rel (0) target = $region17
  $region16: #{listener_forward.27} parent=0 // pred_region
    _
  $region17: #{listener_forward.27} parent=0 // pred_fallthru
    _
  %s26 = ssub.s32 0, 0
  %p27 = scmp.lt.s32.totalorder %s26, 0
  %s28 = scalar_select %p27, %s26, 0
  %s29 = sadd.s32 %s28, 1
  %s30 = smul.addr %s29, 2
  %s31 = scalar_lea.vmem %s1, %s30
  %s32 = ssub.s32 0, 0
  %p33 = scmp.lt.s32.totalorder %s32, 0
  %s34 = scalar_select %p33, %s32, 0
  %s35 = smul.addr %s34, 2
  %s36 = scalar_lea.vmem %s5, %s35
  %s37 = ssub.s32 0, 0
  %p38 = scmp.lt.s32.totalorder %s37, 0
  %s39 = scalar_select %p38, %s37, 0
  %s40 = sadd.s32 %s39, 1
  %s41 = smul.addr %s40, 2
  %s42 = scalar_lea.vmem %s1, %s41
  %s43 = ssub.s32 0, 0
  %s44 = ssub.s32 0, 0
  %p45 = scmp.lt.s32.totalorder %s44, 0
  %s46 = scalar_select %p45, %s44, 0
  %s47 = smul.addr %s46, 2
  %s48 = scalar_lea.vmem %s5, %s47
  %s49 = ssub.s32 0, 0
  %p50 = scmp.eq.s32.totalorder 0, 0
  // Predicated region
  $region18: #{listener_forward.27} parent=0 // pred_check
    %p51 = pneg %p50
  $region19: #{listener_forward.27} parent=0 // pred_check_branch
    %53 = sbr.rel (%p51) target = $region21
  $region20: #{listener_forward.27} parent=0 // pred_region
    %vm54 = vcmask 254976
    %55 = vst.msk [vmem:[#allocation2] sm:$0x3] %vm54, 0.0
    %56 = vst.msk [vmem:[#allocation2 + $0x2] sm:$0x3] %vm54, 0.0
  $region21: #{listener_forward.27} parent=0 // pred_fallthru
    _
  %v57 = vld [vmem:[%s2] sm:$0xff]
  %v58 = vld [vmem:[%s2 + $0x8] sm:$0xff]
  %v59 = vld [vmem:[%s2 + $0x10] sm:$0xff]
  %v60 = vld [vmem:[%s2 + $0x18] sm:$0xff]
  %s61 = scalar_lea.vmem %s2, 32
  %v62 = vld [vmem:[%s61] sm:$0xff]
  %v63 = vld [vmem:[%s61 + $0x8] sm:$0xff]
  %v64 = vld [vmem:[%s61 + $0x10] sm:$0xff]
  %v65 = vld [vmem:[%s61 + $0x18] sm:$0xff]
  %v66 = vld [vmem:[%s3] sm:$0x1]
  %s67 = scalar_lea.vmem %s3, 1
  %v68 = vld [vmem:[%s67] sm:$0x1]
  %v69 = vld [vmem:[%s0] sm:$0x3]
  %v70 = vld [vmem:[#allocation2] sm:$0x3]
  %v72 = vperm.slane %v66, 0
  %vm74 = vcmask 261120
  %v76 = vsel %vm74, %v70, 0
  %78 = vmatpush.msra.mxu0 0.0
  %79 = vmatpush.msra.mxu0 0.0
  %80 = vmatpush.msra.mxu0 0.0
  %81 = vmatpush.msra.mxu0 0.0
  %82 = vmatpush.msra.mxu0 0.0
  %83 = vmatpush.msra.mxu0 0.0
  %84 = vmatpush.msra.mxu0 0.0
  %85 = vmatpush.msra.mxu0 0.0
  %86 = vmatpush.msra.mxu0 0.0
  %87 = vmatpush.msra.mxu0 0.0
  %88 = vmatpush.msra.mxu0 0.0
  %89 = vmatpush.msra.mxu0 0.0
  %90 = vmatpush.msra.mxu0 %v60
  %91 = vmatpush.msra.mxu0 %v59
  %92 = vmatpush.msra.mxu0 %v58
  %93 = vmatpush.msra.mxu0 %v57
  %94 = vmatmul.f32.gmra.mxu0 %v76
  %v95 = vpop.f32.mrf.mxu0
  %v96 = vadd.f32 %v72, %v95
  %97 = vdwg.mxu0
  %v98 = vadd.f32 %v69, %v96
  %v99 = vxor.u32 %v98, 2147483648
  %v100 = vmul.f32 %v99, 1.442695
  %v101 = vpow.pop %v100
  %v102 = vadd.f32 %v101, 1.0
  %v103 = vrcp.pop %v102
  %v104 = vmul.f32 %v102, %v103
  %v105 = vsub.f32 1.0, %v104
  %v106 = vmul.f32 %v103, %v105
  %v107 = vadd.f32 %v103, %v106
  %vm108 = vweird.f32 %v102
  %vm109 = vweird.f32 %v103
  %vm110 = vmor %vm108, %vm109
  %v111 = vsel %vm110, %v103, %v107
  %v112 = vand.u32 2147483647, %v102
  %vm113 = vcmp.eq.f32.partialorder %v112, 8.507059e+37
  %v114 = vand.u32 %v102, 2147483648
  %v115 = vor.u32 1.1754944e-38, %v114
  %v116 = vsel %vm113, %v115, %v111
  %v117 = vmul.f32 1.0, %v116
  %119 = vrot.lane.b32.xlu0 %v96, 64
  %v120 = vpop.permute.xlu0 %119
  %v122 = vmul.f32 %v117, %v120
  %124 = vrot.lane.b32.xlu0 %v122, 64
  %v125 = vpop.permute.xlu0 %124
  %v127 = vadd.f32 %v69, %v125
  %v128 = vtanh.pop %v127
  %v129 = vsub.f32 1.0, %v117
  %131 = vrot.lane.b32.xlu0 %v128, 96
  %v132 = vpop.permute.xlu0 %131
  %v134 = vmul.f32 %v129, %v132
  %135 = vrot.lane.b32.xlu0 %v70, 32
  %v136 = vpop.permute.xlu0 %135
  %v138 = vmul.f32 %v117, %v136
  %v139 = vadd.f32 %v134, %v138
  %v140 = vld [vmem:[%s42] sm:$0x3]
  %s141 = scalar_lea.vmem [#allocation2], 2
  %v142 = vld [vmem:[%s141] sm:$0x3]
  %v144 = vperm.slane %v68, 0
  %v147 = vsel %vm74, %v142, 0
  %149 = vmatpush.msra.mxu0 0.0
  %150 = vmatpush.msra.mxu0 0.0
  %151 = vmatpush.msra.mxu0 0.0
  %152 = vmatpush.msra.mxu0 0.0
  %153 = vmatpush.msra.mxu0 0.0
  %154 = vmatpush.msra.mxu0 0.0
  %155 = vmatpush.msra.mxu0 0.0
  %156 = vmatpush.msra.mxu0 0.0
  %157 = vmatpush.msra.mxu0 0.0
  %158 = vmatpush.msra.mxu0 0.0
  %159 = vmatpush.msra.mxu0 0.0
  %160 = vmatpush.msra.mxu0 0.0
  %161 = vmatpush.msra.mxu0 %v65
  %162 = vmatpush.msra.mxu0 %v64
  %163 = vmatpush.msra.mxu0 %v63
  %164 = vmatpush.msra.mxu0 %v62
  %165 = vmatmul.f32.gmra.mxu0 %v147
  %v166 = vpop.f32.mrf.mxu0
  %v167 = vadd.f32 %v144, %v166
  %168 = vdwg.mxu0
  %v169 = vadd.f32 %v140, %v167
  %v170 = vxor.u32 %v169, 2147483648
  %v171 = vmul.f32 %v170, 1.442695
  %v172 = vpow.pop %v171
  %v173 = vadd.f32 %v172, 1.0
  %v174 = vrcp.pop %v173
  %v175 = vmul.f32 %v173, %v174
  %v176 = vsub.f32 1.0, %v175
  %v177 = vmul.f32 %v174, %v176
  %v178 = vadd.f32 %v174, %v177
  %vm179 = vweird.f32 %v173
  %vm180 = vweird.f32 %v174
  %vm181 = vmor %vm179, %vm180
  %v182 = vsel %vm181, %v174, %v178
  %v183 = vand.u32 2147483647, %v173
  %vm184 = vcmp.eq.f32.partialorder %v183, 8.507059e+37
  %v185 = vand.u32 %v173, 2147483648
  %v186 = vor.u32 1.1754944e-38, %v185
  %v187 = vsel %vm184, %v186, %v182
  %v188 = vmul.f32 1.0, %v187
  %190 = vrot.lane.b32.xlu0 %v167, 64
  %v191 = vpop.permute.xlu0 %190
  %v193 = vmul.f32 %v188, %v191
  %195 = vrot.lane.b32.xlu0 %v193, 64
  %v196 = vpop.permute.xlu0 %195
  %v198 = vadd.f32 %v140, %v196
  %v199 = vtanh.pop %v198
  %v200 = vsub.f32 1.0, %v188
  %202 = vrot.lane.b32.xlu0 %v199, 96
  %v203 = vpop.permute.xlu0 %202
  %v205 = vmul.f32 %v200, %v203
  %206 = vrot.lane.b32.xlu0 %v142, 32
  %v207 = vpop.permute.xlu0 %206
  %v209 = vmul.f32 %v188, %v207
  %v210 = vadd.f32 %v205, %v209
  %212 = vrot.lane.b32.xlu0 %v139, 96
  %v213 = vpop.permute.xlu0 %212
  %vm215 = vcmask 254976
  %216 = vst.msk [vmem:[#allocation2] sm:$0x3] %vm215, %v213
  %218 = vrot.lane.b32.xlu0 %v210, 96
  %v219 = vpop.permute.xlu0 %218
  %221 = vst.msk [vmem:[%s141] sm:$0x3] %vm215, %v219
  %222 = vst.msk [vmem:[%s4] sm:$0x3] %vm215, %v213
  %223 = vst.msk [vmem:[%s48] sm:$0x3] %vm215, %v219
  %s224 = ssub.s32 0, 0
  %p225 = scmp.lt.s32.totalorder %s224, 0
  %s226 = scalar_select %p225, %s224, 0
  %s227 = smul.addr %s226, 2
  %s228 = scalar_lea.vmem %s5, %s227
  // Predicated region
  $region22: #{listener_forward.27} parent=0 // pred_check
    _
  $region23: #{listener_forward.27} parent=0 // pred_check_branch
    %230 = sbr.rel (0) target = $region25
  $region24: #{listener_forward.27} parent=0 // pred_region
    _
  $region25: #{listener_forward.27} parent=0 // pred_fallthru
    _
  // Predicated region
  $region26: #{listener_forward.27} parent=0 // pred_check
    _
  $region27: #{listener_forward.27} parent=0 // pred_check_branch
    %232 = sbr.rel (0) target = $region29
  $region28: #{listener_forward.27} parent=0 // pred_region
    %s233 = ssub.s32 0, 0
  $region29: #{listener_forward.27} parent=0 // pred_fallthru
    _
  // Predicated region
  $region30: #{listener_forward.27} parent=0 // pred_check
    _
  $region31: #{listener_forward.27} parent=0 // pred_check_branch
    %235 = sbr.rel (0) target = $region33
  $region32: #{listener_forward.27} parent=0 // pred_region
    _
  $region33: #{listener_forward.27} parent=0 // pred_fallthru
    _
  // Predicated region
  $region34: #{listener_forward.27} parent=0 // pred_check
    _
  $region35: #{listener_forward.27} parent=0 // pred_check_branch
    %237 = sbr.rel (0) target = $region37
  $region36: #{listener_forward.27} parent=0 // pred_region
    %s238 = ssub.s32 0, 0
    %p239 = scmp.lt.s32.totalorder %s238, 0
    %s240 = scalar_select %p239, %s238, 0
    %s241 = smul.addr %s240, 2
    %s242 = scalar_lea.vmem %s5, %s241
  $region37: #{listener_forward.27} parent=0 // pred_fallthru
    _

// kernel: listener_forward.24
$region0: #{listener_forward.24}
  #allocation0 [shape = 'u32[]', space=smem, size = 0x4, offset = 0x4, fixed_abs, tag = 'smem constant byte address 0x4 - core index']
  #allocation1 [shape = 'u32[72,128]{1,0:T(1,128)}', space=vmem, size = 0x9000, scoped, tag = 'internal scratch']
  %s0 = inlined_call_operand.vmem [shape: f32[4,64], index: 0, kind: input, shape index: {}]
  %s1 = inlined_call_operand.vmem [shape: bf16[2,64,96], index: 1, kind: input, shape index: {}]
  %s2 = inlined_call_operand.vmem [shape: f32[2,1,96], index: 2, kind: input, shape index: {}]
  %s3 = inlined_call_operand.vmem [shape: f32[2,4,96], index: 3, kind: output, shape index: {}]
  %s4 = sld [smem:[#allocation0]]
  $region45: #{listener_forward.24} parent=0
    _
  %s6 = ssub.s32 1, %s4
  %s7 = scalar_select 0, %s6, %s4
  loop: start=0, step=1, limit=4
  $region2: #{listener_forward.24} parent=0 // loop_pre_header
    _
  $region3: #{listener_forward.24} parent=0 // loop_header
    %s9 = sphi 0, %s13
    %p10 = scmp.ge.s32.totalorder %s9, 4
    %s16 = sphi 0, %s28
    %s17 = sphi 0, %s24
    %s18 = sphi 0, %s16
    %s19 = sphi 0, %s17
    %s20 = sphi 0, %s18
    %s21 = sphi 0, %s19
    %s31 = sphi 0, %s33
    %s34 = sphi 0, %s31
    %s35 = sphi 0, %s34
    %s51 = sphi 0, %s35
    %s57 = sphi 0, %s59
    %s60 = sphi 0, %s57
    %s61 = sphi 0, %s60
    %s77 = sphi 0, %s61
    %s83 = sphi 0, %s85
    %s86 = sphi 0, %s83
    %s87 = sphi 0, %s86
    %s103 = sphi 0, %s87
    %s111 = sphi 0, %s113
    %s114 = sphi 0, %s111
    %s115 = sphi 0, %s114
    %s131 = sphi 0, %s115
  $region4: #{listener_forward.24} parent=0 // loop_header_branch
    %12 = sbr.rel (%p10) target = $region8
  $region5: #{listener_forward.24} parent=0 // loop_body
    %s14 = ssub.s32 %s9, 1
    %s15 = ssub.s32 %s9, 2
    %s22 = sadd.s32 1, %s17
    %p23 = scmp.ge.s32.totalorder %s22, 1
    %s24 = scalar_select %p23, 0, %s22
    %s25 = sadd.s32 1, %s16
    %s26 = scalar_select %p23, %s25, %s16
    %p27 = scmp.ge.s32.totalorder %s26, 2
    %s28 = scalar_select %p27, 0, %s26
    %s29 = ssub.s32 %s17, %s24
    %p30 = scmp.eq.s32.totalorder %s29, 0
    %s32 = sadd.s32 %s31, 1
    %s33 = scalar_select %p30, %s31, %s32
    %p36 = pneg %p30
    %p37 = scmp.eq.s32.totalorder %s9, 1
    %p38 = por %p36, %p37
    %p39 = scmp.ne.s32.totalorder %s31, %s34
    %p40 = scmp.eq.s32.totalorder %s9, 0
    %p41 = por %p39, %p40
    %p42 = scmp.ne.s32.totalorder %s31, %s34
    %p43 = scmp.eq.s32.totalorder %s14, 1
    %p44 = por %p42, %p43
    %p45 = scmp.ne.s32.totalorder %s34, %s35
    %p46 = scmp.eq.s32.totalorder %s14, 0
    %p47 = por %p45, %p46
    %p48 = scmp.ne.s32.totalorder %s34, %s35
    %p49 = scmp.eq.s32.totalorder %s15, 1
    %p50 = por %p48, %p49
    %p52 = scmp.ne.s32.totalorder %s35, %s51
    %p53 = scmp.eq.s32.totalorder %s15, 0
    %p54 = por %p52, %p53
    %s55 = ssub.s32 %s16, %s28
    %p56 = scmp.eq.s32.totalorder %s55, 0
    %s58 = sadd.s32 %s57, 1
    %s59 = scalar_select %p56, %s57, %s58
    %p62 = pneg %p56
    %p63 = scmp.eq.s32.totalorder %s9, 1
    %p64 = por %p62, %p63
    %p65 = scmp.ne.s32.totalorder %s57, %s60
    %p66 = scmp.eq.s32.totalorder %s9, 0
    %p67 = por %p65, %p66
    %p68 = scmp.ne.s32.totalorder %s57, %s60
    %p69 = scmp.eq.s32.totalorder %s14, 1
    %p70 = por %p68, %p69
    %p71 = scmp.ne.s32.totalorder %s60, %s61
    %p72 = scmp.eq.s32.totalorder %s14, 0
    %p73 = por %p71, %p72
    %p74 = scmp.ne.s32.totalorder %s60, %s61
    %p75 = scmp.eq.s32.totalorder %s15, 1
    %p76 = por %p74, %p75
    %p78 = scmp.ne.s32.totalorder %s61, %s77
    %p79 = scmp.eq.s32.totalorder %s15, 0
    %p80 = por %p78, %p79
    %s81 = ssub.s32 %s16, %s28
    %p82 = scmp.eq.s32.totalorder %s81, 0
    %s84 = sadd.s32 %s83, 1
    %s85 = scalar_select %p82, %s83, %s84
    %p88 = pneg %p82
    %p89 = scmp.eq.s32.totalorder %s9, 1
    %p90 = por %p88, %p89
    %p91 = scmp.ne.s32.totalorder %s83, %s86
    %p92 = scmp.eq.s32.totalorder %s9, 0
    %p93 = por %p91, %p92
    %p94 = scmp.ne.s32.totalorder %s83, %s86
    %p95 = scmp.eq.s32.totalorder %s14, 1
    %p96 = por %p94, %p95
    %p97 = scmp.ne.s32.totalorder %s86, %s87
    %p98 = scmp.eq.s32.totalorder %s14, 0
    %p99 = por %p97, %p98
    %p100 = scmp.ne.s32.totalorder %s86, %s87
    %p101 = scmp.eq.s32.totalorder %s15, 1
    %p102 = por %p100, %p101
    %p104 = scmp.ne.s32.totalorder %s87, %s103
    %p105 = scmp.eq.s32.totalorder %s15, 0
    %p106 = por %p104, %p105
    %s107 = ssub.s32 %s16, %s28
    %s108 = ssub.s32 %s17, %s24
    %s109 = sor.u32 %s107, %s108
    %p110 = scmp.eq.s32.totalorder %s109, 0
    %s112 = sadd.s32 %s111, 1
    %s113 = scalar_select %p110, %s111, %s112
    %p116 = pneg %p110
    %p117 = scmp.eq.s32.totalorder %s9, 1
    %p118 = por %p116, %p117
    %p119 = scmp.ne.s32.totalorder %s111, %s114
    %p120 = scmp.eq.s32.totalorder %s9, 0
    %p121 = por %p119, %p120
    %p122 = scmp.ne.s32.totalorder %s111, %s114
    %p123 = scmp.eq.s32.totalorder %s14, 1
    %p124 = por %p122, %p123
    %p125 = scmp.ne.s32.totalorder %s114, %s115
    %p126 = scmp.eq.s32.totalorder %s14, 0
    %p127 = por %p125, %p126
    %p128 = scmp.ne.s32.totalorder %s114, %s115
    %p129 = scmp.eq.s32.totalorder %s15, 1
    %p130 = por %p128, %p129
    %p132 = scmp.ne.s32.totalorder %s115, %s131
    %p133 = scmp.eq.s32.totalorder %s15, 0
    %p134 = por %p132, %p133
    %p135 = scmp.le.s32.totalorder 1, %s9
    %p136 = scmp.lt.s32.totalorder %s9, 3
    %p137 = pnand %p135, %p136
    %p138 = pneg %p137
    // Predicated region
    $region9: #{listener_forward.24} parent=5 // pred_check
      _
    $region10: #{listener_forward.24} parent=5 // pred_check_branch
      %140 = sbr.rel (%p137) target = $region12
    $region11: #{listener_forward.24} parent=5 // pred_region
      %s141 = ssub.s32 %s9, 1
      // Predicated region
      $region13: #{listener_forward.24} parent=11 // pred_check
        %p142 = pneg %p47
      $region14: #{listener_forward.24} parent=11 // pred_check_branch
        %144 = sbr.rel (%p142) target = $region16
      $region15: #{listener_forward.24} parent=11 // pred_region
        %p145 = scmp.lt.s32.totalorder %s19, 0
        %s146 = scalar_select %p145, %s19, 0
        %s147 = smul.addr %s146, 4
        %s148 = scalar_lea.vmem %s0, %s147
      $region16: #{listener_forward.24} parent=11 // pred_fallthru
        _
    $region12: #{listener_forward.24} parent=5 // pred_fallthru
      _
    %p149 = scmp.lt.s32.totalorder %s9, 2
    // Predicated region
    $region17: #{listener_forward.24} parent=5 // pred_check
      %p150 = pneg %p149
    $region18: #{listener_forward.24} parent=5 // pred_check_branch
      %152 = sbr.rel (%p150) target = $region20
    $region19: #{listener_forward.24} parent=5 // pred_region
      // Predicated region
      $region21: #{listener_forward.24} parent=19 // pred_check
        %p153 = pneg %p67
      $region22: #{listener_forward.24} parent=19 // pred_check_branch
        %155 = sbr.rel (%p153) target = $region24
      $region23: #{listener_forward.24} parent=19 // pred_region
        %p156 = scmp.lt.s32.totalorder %s16, 1
        %s157 = scalar_select %p156, %s16, 1
        %s158 = smul.addr %s157, 8
        %s159 = smul.addr %s158, 4
        %s160 = scalar_lea.vmem %s1, %s159
      $region24: #{listener_forward.24} parent=19 // pred_fallthru
        _
      // Predicated region
      $region25: #{listener_forward.24} parent=19 // pred_check
        %p161 = pneg %p93
      $region26: #{listener_forward.24} parent=19 // pred_check_branch
        %163 = sbr.rel (%p161) target = $region28
      $region27: #{listener_forward.24} parent=19 // pred_region
        %p164 = scmp.lt.s32.totalorder %s16, 1
        %s165 = scalar_select %p164, %s16, 1
        %s166 = scalar_lea.vmem %s2, %s165
      $region28: #{listener_forward.24} parent=19 // pred_fallthru
        _
    $region20: #{listener_forward.24} parent=5 // pred_fallthru
      _
    %p167 = scmp.le.s32.totalorder 1, %s9
    %p168 = scmp.lt.s32.totalorder %s9, 3
    %p169 = pnand %p167, %p168
    %p170 = pneg %p169
    // Predicated region
    $region29: #{listener_forward.24} parent=5 // pred_check
      _
    $region30: #{listener_forward.24} parent=5 // pred_check_branch
      %172 = sbr.rel (%p169) target = $region32
    $region31: #{listener_forward.24} parent=5 // pred_region
      %s173 = ssub.s32 %s9, 1
      %p174 = scmp.lt.s32.totalorder %s19, 0
      %s175 = scalar_select %p174, %s19, 0
      %s176 = smul.addr %s175, 4
      %s177 = scalar_lea.vmem %s0, %s176
      %p178 = pneg %p47
      %p179 = pneg %p44
      %p180 = scmp.lt.s32.totalorder %s18, 1
      %s181 = scalar_select %p180, %s18, 1
      %s182 = smul.addr %s181, 8
      %s183 = smul.addr %s182, 4
      %s184 = scalar_lea.vmem %s1, %s183
      %p185 = pneg %p73
      %p186 = pneg %p70
      %p187 = scmp.lt.s32.totalorder %s18, 1
      %s188 = scalar_select %p187, %s18, 1
      %s189 = scalar_lea.vmem %s2, %s188
      %p190 = pneg %p99
      %p191 = pneg %p96
      %p192 = pneg %p127
      %p193 = pneg %p124
      %p194 = scmp.lt.s32.totalorder %s18, 1
      %s195 = scalar_select %p194, %s18, 1
      %p196 = scmp.lt.s32.totalorder %s19, 0
      %s197 = scalar_select %p196, %s19, 0
      %s198 = sadd.s32 %s197, %s195
      %s199 = smul.addr %s198, 4
      %s200 = scalar_lea.vmem %s3, %s199
      %p201 = scmp.lt.s32.totalorder %s19, 0
      %s202 = scalar_select %p201, %s19, 0
      %s203 = smul.addr %s202, 4
      %s204 = scalar_lea.vmem %s0, %s203
      %p205 = scmp.lt.s32.totalorder %s18, 1
      %s206 = scalar_select %p205, %s18, 1
      %s207 = smul.addr %s206, 8
      %s208 = smul.addr %s207, 4
      %s209 = scalar_lea.vmem %s1, %s208
      %p210 = scmp.lt.s32.totalorder %s18, 1
      %s211 = scalar_select %p210, %s18, 1
      %s212 = scalar_lea.vmem %s2, %s211
      %p213 = scmp.lt.s32.totalorder %s18, 1
      %s214 = scalar_select %p213, %s18, 1
      %p215 = scmp.lt.s32.totalorder %s19, 0
      %s216 = scalar_select %p215, %s19, 0
      %s217 = sadd.s32 %s216, %s214
      %s218 = smul.addr %s217, 4
      %s219 = scalar_lea.vmem %s3, %s218
      %v221 = vld [vmem:[%s204] sm:$0xf]
      %v222 = vpack.c.bf16 %v221, %v221
      %v223 = vld [vmem:[%s209] sm:$0xf]
      %v224 = vld [vmem:[%s209 + $0x4] sm:$0xf]
      %v225 = vld [vmem:[%s209 + $0x8] sm:$0xf]
      %v226 = vld [vmem:[%s209 + $0xc] sm:$0xf]
      %v227 = vld [vmem:[%s209 + $0x10] sm:$0xf]
      %v228 = vld [vmem:[%s209 + $0x14] sm:$0xf]
      %v229 = vld [vmem:[%s209 + $0x18] sm:$0xf]
      %v230 = vld [vmem:[%s209 + $0x1c] sm:$0xf]
      %v231 = vld [vmem:[%s212] sm:$0x1]
      %v233 = vperm.slane %v231, 0
      %v243 = vunpack.c.l.b16 %v223
      %v244 = vunpack.c.l.b16 %v224
      %v245 = vunpack.c.l.b16 %v225
      %v246 = vunpack.c.l.b16 %v226
      %v247 = vunpack.c.l.b16 %v227
      %v248 = vunpack.c.l.b16 %v228
      %v249 = vunpack.c.l.b16 %v229
      %v250 = vunpack.c.l.b16 %v230
      %v251 = vpack.c.b16 %v244, %v243
      %v252 = vpack.c.b16 %v246, %v245
      %v253 = vpack.c.b16 %v248, %v247
      %v254 = vpack.c.b16 %v250, %v249
      %vm259 = vcmask 523264
      %v261 = vsel %vm259, %v222, 0
      %263 = vmatpush.bf16.msra.mxu0 0
      %264 = vmatpush.bf16.msra.mxu0 0
      %265 = vmatpush.bf16.msra.mxu0 0
      %266 = vmatpush.bf16.msra.mxu0 0
      %267 = vmatpush.bf16.msra.mxu0 %v254
      %268 = vmatpush.bf16.msra.mxu0 %v253
      %269 = vmatpush.bf16.msra.mxu0 %v252
      %270 = vmatpush.bf16.msra.mxu0 %v251
      %271 = vmatmul.bf16.gmra.mxu0 %v261
      %v272 = vpop.f32.mrf.mxu0
      %v273 = vadd.f32 %v233, %v272
      %v274 = vpop.f32.mrf.mxu0
      %275 = vdwg.mxu0
      %vm276 = vcmask 781312
      %277 = vst.msk [vmem:[%s219] sm:$0xf] %vm276, %v273
      %p278 = scmp.lt.s32.totalorder %s18, 1
      %s279 = scalar_select %p278, %s18, 1
      %p280 = scmp.lt.s32.totalorder %s19, 0
      %s281 = scalar_select %p280, %s19, 0
      %s282 = sadd.s32 %s281, %s279
      %s283 = smul.addr %s282, 4
      %s284 = scalar_lea.vmem %s3, %s283
      // Predicated region
      $region33: #{listener_forward.24} parent=31 // pred_check
        %p285 = pneg %p124
      $region34: #{listener_forward.24} parent=31 // pred_check_branch
        %287 = sbr.rel (%p285) target = $region36
      $region35: #{listener_forward.24} parent=31 // pred_region
        _
      $region36: #{listener_forward.24} parent=31 // pred_fallthru
        _
    $region32: #{listener_forward.24} parent=5 // pred_fallthru
      _
    %p288 = scmp.le.s32.totalorder 2, %s9
    // Predicated region
    $region37: #{listener_forward.24} parent=5 // pred_check
      %p289 = pneg %p288
    $region38: #{listener_forward.24} parent=5 // pred_check_branch
      %291 = sbr.rel (%p289) target = $region40
    $region39: #{listener_forward.24} parent=5 // pred_region
      %s292 = ssub.s32 %s9, 2
      // Predicated region
      $region41: #{listener_forward.24} parent=39 // pred_check
        %p293 = pneg %p130
      $region42: #{listener_forward.24} parent=39 // pred_check_branch
        %295 = sbr.rel (%p293) target = $region44
      $region43: #{listener_forward.24} parent=39 // pred_region
        %p296 = scmp.lt.s32.totalorder %s20, 1
        %s297 = scalar_select %p296, %s20, 1
        %p298 = scmp.lt.s32.totalorder %s21, 0
        %s299 = scalar_select %p298, %s21, 0
        %s300 = sadd.s32 %s299, %s297
        %s301 = smul.addr %s300, 4
        %s302 = scalar_lea.vmem %s3, %s301
      $region44: #{listener_forward.24} parent=39 // pred_fallthru
        _
    $region40: #{listener_forward.24} parent=5 // pred_fallthru
      _
  $region6: #{listener_forward.24} parent=0 // loop_footer
    %s13 = sadd.s32 1, %s9
  $region7: #{listener_forward.24} parent=0 // loop_footer_branch
    %8 = sbr.rel target = $region3
  $region8: #{listener_forward.24} parent=0 // loop_exit
    _

// kernel: listener_forward.26
$region0: #{listener_forward.26}
  #allocation0 [shape = 'u32[]', space=smem, size = 0x4, offset = 0x4, fixed_abs, tag = 'smem constant byte address 0x4 - core index']
  #allocation1 [shape = 'u32[72,128]{1,0:T(1,128)}', space=vmem, size = 0x9000, scoped, tag = 'internal scratch']
  %s0 = inlined_call_operand.vmem [shape: f32[2,128], index: 0, kind: input, shape index: {}]
  %s1 = inlined_call_operand.vmem [shape: bf16[2,128,96], index: 1, kind: input, shape index: {}]
  %s2 = inlined_call_operand.vmem [shape: f32[2,1,96], index: 2, kind: input, shape index: {}]
  %s3 = inlined_call_operand.vmem [shape: f32[2,2,96], index: 3, kind: output, shape index: {}]
  %s4 = sld [smem:[#allocation0]]
  $region45: #{listener_forward.26} parent=0
    _
  %s6 = ssub.s32 1, %s4
  %s7 = scalar_select 0, %s6, %s4
  loop: start=0, step=1, limit=4
  $region2: #{listener_forward.26} parent=0 // loop_pre_header
    _
  $region3: #{listener_forward.26} parent=0 // loop_header
    %s9 = sphi 0, %s13
    %p10 = scmp.ge.s32.totalorder %s9, 4
    %s16 = sphi 0, %s28
    %s17 = sphi 0, %s24
    %s18 = sphi 0, %s16
    %s19 = sphi 0, %s17
    %s20 = sphi 0, %s18
    %s21 = sphi 0, %s19
    %s31 = sphi 0, %s33
    %s34 = sphi 0, %s31
    %s35 = sphi 0, %s34
    %s51 = sphi 0, %s35
    %s57 = sphi 0, %s59
    %s60 = sphi 0, %s57
    %s61 = sphi 0, %s60
    %s77 = sphi 0, %s61
    %s83 = sphi 0, %s85
    %s86 = sphi 0, %s83
    %s87 = sphi 0, %s86
    %s103 = sphi 0, %s87
    %s111 = sphi 0, %s113
    %s114 = sphi 0, %s111
    %s115 = sphi 0, %s114
    %s131 = sphi 0, %s115
  $region4: #{listener_forward.26} parent=0 // loop_header_branch
    %12 = sbr.rel (%p10) target = $region8
  $region5: #{listener_forward.26} parent=0 // loop_body
    %s14 = ssub.s32 %s9, 1
    %s15 = ssub.s32 %s9, 2
    %s22 = sadd.s32 1, %s17
    %p23 = scmp.ge.s32.totalorder %s22, 1
    %s24 = scalar_select %p23, 0, %s22
    %s25 = sadd.s32 1, %s16
    %s26 = scalar_select %p23, %s25, %s16
    %p27 = scmp.ge.s32.totalorder %s26, 2
    %s28 = scalar_select %p27, 0, %s26
    %s29 = ssub.s32 %s17, %s24
    %p30 = scmp.eq.s32.totalorder %s29, 0
    %s32 = sadd.s32 %s31, 1
    %s33 = scalar_select %p30, %s31, %s32
    %p36 = pneg %p30
    %p37 = scmp.eq.s32.totalorder %s9, 1
    %p38 = por %p36, %p37
    %p39 = scmp.ne.s32.totalorder %s31, %s34
    %p40 = scmp.eq.s32.totalorder %s9, 0
    %p41 = por %p39, %p40
    %p42 = scmp.ne.s32.totalorder %s31, %s34
    %p43 = scmp.eq.s32.totalorder %s14, 1
    %p44 = por %p42, %p43
    %p45 = scmp.ne.s32.totalorder %s34, %s35
    %p46 = scmp.eq.s32.totalorder %s14, 0
    %p47 = por %p45, %p46
    %p48 = scmp.ne.s32.totalorder %s34, %s35
    %p49 = scmp.eq.s32.totalorder %s15, 1
    %p50 = por %p48, %p49
    %p52 = scmp.ne.s32.totalorder %s35, %s51
    %p53 = scmp.eq.s32.totalorder %s15, 0
    %p54 = por %p52, %p53
    %s55 = ssub.s32 %s16, %s28
    %p56 = scmp.eq.s32.totalorder %s55, 0
    %s58 = sadd.s32 %s57, 1
    %s59 = scalar_select %p56, %s57, %s58
    %p62 = pneg %p56
    %p63 = scmp.eq.s32.totalorder %s9, 1
    %p64 = por %p62, %p63
    %p65 = scmp.ne.s32.totalorder %s57, %s60
    %p66 = scmp.eq.s32.totalorder %s9, 0
    %p67 = por %p65, %p66
    %p68 = scmp.ne.s32.totalorder %s57, %s60
    %p69 = scmp.eq.s32.totalorder %s14, 1
    %p70 = por %p68, %p69
    %p71 = scmp.ne.s32.totalorder %s60, %s61
    %p72 = scmp.eq.s32.totalorder %s14, 0
    %p73 = por %p71, %p72
    %p74 = scmp.ne.s32.totalorder %s60, %s61
    %p75 = scmp.eq.s32.totalorder %s15, 1
    %p76 = por %p74, %p75
    %p78 = scmp.ne.s32.totalorder %s61, %s77
    %p79 = scmp.eq.s32.totalorder %s15, 0
    %p80 = por %p78, %p79
    %s81 = ssub.s32 %s16, %s28
    %p82 = scmp.eq.s32.totalorder %s81, 0
    %s84 = sadd.s32 %s83, 1
    %s85 = scalar_select %p82, %s83, %s84
    %p88 = pneg %p82
    %p89 = scmp.eq.s32.totalorder %s9, 1
    %p90 = por %p88, %p89
    %p91 = scmp.ne.s32.totalorder %s83, %s86
    %p92 = scmp.eq.s32.totalorder %s9, 0
    %p93 = por %p91, %p92
    %p94 = scmp.ne.s32.totalorder %s83, %s86
    %p95 = scmp.eq.s32.totalorder %s14, 1
    %p96 = por %p94, %p95
    %p97 = scmp.ne.s32.totalorder %s86, %s87
    %p98 = scmp.eq.s32.totalorder %s14, 0
    %p99 = por %p97, %p98
    %p100 = scmp.ne.s32.totalorder %s86, %s87
    %p101 = scmp.eq.s32.totalorder %s15, 1
    %p102 = por %p100, %p101
    %p104 = scmp.ne.s32.totalorder %s87, %s103
    %p105 = scmp.eq.s32.totalorder %s15, 0
    %p106 = por %p104, %p105
    %s107 = ssub.s32 %s16, %s28
    %s108 = ssub.s32 %s17, %s24
    %s109 = sor.u32 %s107, %s108
    %p110 = scmp.eq.s32.totalorder %s109, 0
    %s112 = sadd.s32 %s111, 1
    %s113 = scalar_select %p110, %s111, %s112
    %p116 = pneg %p110
    %p117 = scmp.eq.s32.totalorder %s9, 1
    %p118 = por %p116, %p117
    %p119 = scmp.ne.s32.totalorder %s111, %s114
    %p120 = scmp.eq.s32.totalorder %s9, 0
    %p121 = por %p119, %p120
    %p122 = scmp.ne.s32.totalorder %s111, %s114
    %p123 = scmp.eq.s32.totalorder %s14, 1
    %p124 = por %p122, %p123
    %p125 = scmp.ne.s32.totalorder %s114, %s115
    %p126 = scmp.eq.s32.totalorder %s14, 0
    %p127 = por %p125, %p126
    %p128 = scmp.ne.s32.totalorder %s114, %s115
    %p129 = scmp.eq.s32.totalorder %s15, 1
    %p130 = por %p128, %p129
    %p132 = scmp.ne.s32.totalorder %s115, %s131
    %p133 = scmp.eq.s32.totalorder %s15, 0
    %p134 = por %p132, %p133
    %p135 = scmp.le.s32.totalorder 1, %s9
    %p136 = scmp.lt.s32.totalorder %s9, 3
    %p137 = pnand %p135, %p136
    %p138 = pneg %p137
    // Predicated region
    $region9: #{listener_forward.26} parent=5 // pred_check
      _
    $region10: #{listener_forward.26} parent=5 // pred_check_branch
      %140 = sbr.rel (%p137) target = $region12
    $region11: #{listener_forward.26} parent=5 // pred_region
      %s141 = ssub.s32 %s9, 1
      // Predicated region
      $region13: #{listener_forward.26} parent=11 // pred_check
        %p142 = pneg %p47
      $region14: #{listener_forward.26} parent=11 // pred_check_branch
        %144 = sbr.rel (%p142) target = $region16
      $region15: #{listener_forward.26} parent=11 // pred_region
        %p145 = scmp.lt.s32.totalorder %s19, 0
        %s146 = scalar_select %p145, %s19, 0
        %s147 = smul.addr %s146, 2
        %s148 = scalar_lea.vmem %s0, %s147
      $region16: #{listener_forward.26} parent=11 // pred_fallthru
        _
    $region12: #{listener_forward.26} parent=5 // pred_fallthru
      _
    %p149 = scmp.lt.s32.totalorder %s9, 2
    // Predicated region
    $region17: #{listener_forward.26} parent=5 // pred_check
      %p150 = pneg %p149
    $region18: #{listener_forward.26} parent=5 // pred_check_branch
      %152 = sbr.rel (%p150) target = $region20
    $region19: #{listener_forward.26} parent=5 // pred_region
      // Predicated region
      $region21: #{listener_forward.26} parent=19 // pred_check
        %p153 = pneg %p67
      $region22: #{listener_forward.26} parent=19 // pred_check_branch
        %155 = sbr.rel (%p153) target = $region24
      $region23: #{listener_forward.26} parent=19 // pred_region
        %p156 = scmp.lt.s32.totalorder %s16, 1
        %s157 = scalar_select %p156, %s16, 1
        %s158 = smul.addr %s157, 16
        %s159 = smul.addr %s158, 4
        %s160 = scalar_lea.vmem %s1, %s159
      $region24: #{listener_forward.26} parent=19 // pred_fallthru
        _
      // Predicated region
      $region25: #{listener_forward.26} parent=19 // pred_check
        %p161 = pneg %p93
      $region26: #{listener_forward.26} parent=19 // pred_check_branch
        %163 = sbr.rel (%p161) target = $region28
      $region27: #{listener_forward.26} parent=19 // pred_region
        %p164 = scmp.lt.s32.totalorder %s16, 1
        %s165 = scalar_select %p164, %s16, 1
        %s166 = scalar_lea.vmem %s2, %s165
      $region28: #{listener_forward.26} parent=19 // pred_fallthru
        _
    $region20: #{listener_forward.26} parent=5 // pred_fallthru
      _
    %p167 = scmp.le.s32.totalorder 1, %s9
    %p168 = scmp.lt.s32.totalorder %s9, 3
    %p169 = pnand %p167, %p168
    %p170 = pneg %p169
    // Predicated region
    $region29: #{listener_forward.26} parent=5 // pred_check
      _
    $region30: #{listener_forward.26} parent=5 // pred_check_branch
      %172 = sbr.rel (%p169) target = $region32
    $region31: #{listener_forward.26} parent=5 // pred_region
      %s173 = ssub.s32 %s9, 1
      %p174 = scmp.lt.s32.totalorder %s19, 0
      %s175 = scalar_select %p174, %s19, 0
      %s176 = smul.addr %s175, 2
      %s177 = scalar_lea.vmem %s0, %s176
      %p178 = pneg %p47
      %p179 = pneg %p44
      %p180 = scmp.lt.s32.totalorder %s18, 1
      %s181 = scalar_select %p180, %s18, 1
      %s182 = smul.addr %s181, 16
      %s183 = smul.addr %s182, 4
      %s184 = scalar_lea.vmem %s1, %s183
      %p185 = pneg %p73
      %p186 = pneg %p70
      %p187 = scmp.lt.s32.totalorder %s18, 1
      %s188 = scalar_select %p187, %s18, 1
      %s189 = scalar_lea.vmem %s2, %s188
      %p190 = pneg %p99
      %p191 = pneg %p96
      %p192 = pneg %p127
      %p193 = pneg %p124
      %p194 = scmp.lt.s32.totalorder %s18, 1
      %s195 = scalar_select %p194, %s18, 1
      %p196 = scmp.lt.s32.totalorder %s19, 0
      %s197 = scalar_select %p196, %s19, 0
      %s198 = sadd.s32 %s197, %s195
      %s199 = smul.addr %s198, 2
      %s200 = scalar_lea.vmem %s3, %s199
      %p201 = scmp.lt.s32.totalorder %s19, 0
      %s202 = scalar_select %p201, %s19, 0
      %s203 = smul.addr %s202, 2
      %s204 = scalar_lea.vmem %s0, %s203
      %p205 = scmp.lt.s32.totalorder %s18, 1
      %s206 = scalar_select %p205, %s18, 1
      %s207 = smul.addr %s206, 16
      %s208 = smul.addr %s207, 4
      %s209 = scalar_lea.vmem %s1, %s208
      %p210 = scmp.lt.s32.totalorder %s18, 1
      %s211 = scalar_select %p210, %s18, 1
      %s212 = scalar_lea.vmem %s2, %s211
      %p213 = scmp.lt.s32.totalorder %s18, 1
      %s214 = scalar_select %p213, %s18, 1
      %p215 = scmp.lt.s32.totalorder %s19, 0
      %s216 = scalar_select %p215, %s19, 0
      %s217 = sadd.s32 %s216, %s214
      %s218 = smul.addr %s217, 2
      %s219 = scalar_lea.vmem %s3, %s218
      %v220 = vld [vmem:[%s204] sm:$0x3]
      %v221 = vpack.c.bf16 %v220, %v220
      %v222 = vld [vmem:[%s209] sm:$0xf]
      %v223 = vld [vmem:[%s209 + $0x4] sm:$0xf]
      %v224 = vld [vmem:[%s209 + $0x8] sm:$0xf]
      %v225 = vld [vmem:[%s209 + $0xc] sm:$0xf]
      %v226 = vld [vmem:[%s209 + $0x10] sm:$0xf]
      %v227 = vld [vmem:[%s209 + $0x14] sm:$0xf]
      %v228 = vld [vmem:[%s209 + $0x18] sm:$0xf]
      %v229 = vld [vmem:[%s209 + $0x1c] sm:$0xf]
      %v230 = vld [vmem:[%s209 + $0x20] sm:$0xf]
      %v231 = vld [vmem:[%s209 + $0x24] sm:$0xf]
      %v232 = vld [vmem:[%s209 + $0x28] sm:$0xf]
      %v233 = vld [vmem:[%s209 + $0x2c] sm:$0xf]
      %v234 = vld [vmem:[%s209 + $0x30] sm:$0xf]
      %v235 = vld [vmem:[%s209 + $0x34] sm:$0xf]
      %v236 = vld [vmem:[%s209 + $0x38] sm:$0xf]
      %v237 = vld [vmem:[%s209 + $0x3c] sm:$0xf]
      %v238 = vld [vmem:[%s212] sm:$0x1]
      %v240 = vperm.slane %v238, 0
      %v258 = vunpack.c.l.b16 %v222
      %v259 = vunpack.c.l.b16 %v223
      %v260 = vunpack.c.l.b16 %v224
      %v261 = vunpack.c.l.b16 %v225
      %v262 = vunpack.c.l.b16 %v226
      %v263 = vunpack.c.l.b16 %v227
      %v264 = vunpack.c.l.b16 %v228
      %v265 = vunpack.c.l.b16 %v229
      %v266 = vunpack.c.l.b16 %v230
      %v267 = vunpack.c.l.b16 %v231
      %v268 = vunpack.c.l.b16 %v232
      %v269 = vunpack.c.l.b16 %v233
      %v270 = vunpack.c.l.b16 %v234
      %v271 = vunpack.c.l.b16 %v235
      %v272 = vunpack.c.l.b16 %v236
      %v273 = vunpack.c.l.b16 %v237
      %v274 = vpack.c.b16 %v259, %v258
      %v275 = vpack.c.b16 %v261, %v260
      %v276 = vpack.c.b16 %v263, %v262
      %v277 = vpack.c.b16 %v265, %v264
      %v278 = vpack.c.b16 %v267, %v266
      %v279 = vpack.c.b16 %v269, %v268
      %v280 = vpack.c.b16 %v271, %v270
      %v281 = vpack.c.b16 %v273, %v272
      %290 = vmatpush.bf16.msra.mxu0 %v281
      %291 = vmatpush.bf16.msra.mxu0 %v280
      %292 = vmatpush.bf16.msra.mxu0 %v279
      %293 = vmatpush.bf16.msra.mxu0 %v278
      %294 = vmatpush.bf16.msra.mxu0 %v277
      %295 = vmatpush.bf16.msra.mxu0 %v276
      %296 = vmatpush.bf16.msra.mxu0 %v275
      %297 = vmatpush.bf16.msra.mxu0 %v274
      %298 = vmatmul.bf16.gmra.mxu0 %v221
      %v299 = vpop.f32.mrf.mxu0
      %v300 = vadd.f32 %v240, %v299
      %v301 = vpop.f32.mrf.mxu0
      %302 = vdwg.mxu0
      %vm303 = vcmask 779264
      %304 = vst.msk [vmem:[%s219] sm:$0x3] %vm303, %v300
      %p305 = scmp.lt.s32.totalorder %s18, 1
      %s306 = scalar_select %p305, %s18, 1
      %p307 = scmp.lt.s32.totalorder %s19, 0
      %s308 = scalar_select %p307, %s19, 0
      %s309 = sadd.s32 %s308, %s306
      %s310 = smul.addr %s309, 2
      %s311 = scalar_lea.vmem %s3, %s310
      // Predicated region
      $region33: #{listener_forward.26} parent=31 // pred_check
        %p312 = pneg %p124
      $region34: #{listener_forward.26} parent=31 // pred_check_branch
        %314 = sbr.rel (%p312) target = $region36
      $region35: #{listener_forward.26} parent=31 // pred_region
        _
      $region36: #{listener_forward.26} parent=31 // pred_fallthru
        _
    $region32: #{listener_forward.26} parent=5 // pred_fallthru
      _
    %p315 = scmp.le.s32.totalorder 2, %s9
    // Predicated region
    $region37: #{listener_forward.26} parent=5 // pred_check
      %p316 = pneg %p315
    $region38: #{listener_forward.26} parent=5 // pred_check_branch
      %318 = sbr.rel (%p316) target = $region40
    $region39: #{listener_forward.26} parent=5 // pred_region
      %s319 = ssub.s32 %s9, 2
      // Predicated region
      $region41: #{listener_forward.26} parent=39 // pred_check
        %p320 = pneg %p130
      $region42: #{listener_forward.26} parent=39 // pred_check_branch
        %322 = sbr.rel (%p320) target = $region44
      $region43: #{listener_forward.26} parent=39 // pred_region
        %p323 = scmp.lt.s32.totalorder %s20, 1
        %s324 = scalar_select %p323, %s20, 1
        %p325 = scmp.lt.s32.totalorder %s21, 0
        %s326 = scalar_select %p325, %s21, 0
        %s327 = sadd.s32 %s326, %s324
        %s328 = smul.addr %s327, 2
        %s329 = scalar_lea.vmem %s3, %s328
      $region44: #{listener_forward.26} parent=39 // pred_fallthru
        _
    $region40: #{listener_forward.26} parent=5 // pred_fallthru
      _
  $region6: #{listener_forward.26} parent=0 // loop_footer
    %s13 = sadd.s32 1, %s9
  $region7: #{listener_forward.26} parent=0 // loop_footer_branch
    %8 = sbr.rel target = $region3
  $region8: #{listener_forward.26} parent=0 // loop_exit
    _

// kernel: listener_forward.28
$region0: #{listener_forward.28}
  #allocation0 [shape = 'u32[]', space=smem, size = 0x4, offset = 0x4, fixed_abs, tag = 'smem constant byte address 0x4 - core index']
  #allocation1 [shape = 'u32[72,128]{1,0:T(1,128)}', space=vmem, size = 0x9000, scoped, tag = 'internal scratch']
  %s0 = inlined_call_operand.vmem [shape: f32[2,64], index: 0, kind: input, shape index: {}]
  %s1 = inlined_call_operand.vmem [shape: bf16[2,64,96], index: 1, kind: input, shape index: {}]
  %s2 = inlined_call_operand.vmem [shape: f32[2,1,96], index: 2, kind: input, shape index: {}]
  %s3 = inlined_call_operand.vmem [shape: f32[2,2,96], index: 3, kind: output, shape index: {}]
  %s4 = sld [smem:[#allocation0]]
  $region45: #{listener_forward.28} parent=0
    _
  %s6 = ssub.s32 1, %s4
  %s7 = scalar_select 0, %s6, %s4
  loop: start=0, step=1, limit=4
  $region2: #{listener_forward.28} parent=0 // loop_pre_header
    _
  $region3: #{listener_forward.28} parent=0 // loop_header
    %s9 = sphi 0, %s13
    %p10 = scmp.ge.s32.totalorder %s9, 4
    %s16 = sphi 0, %s28
    %s17 = sphi 0, %s24
    %s18 = sphi 0, %s16
    %s19 = sphi 0, %s17
    %s20 = sphi 0, %s18
    %s21 = sphi 0, %s19
    %s31 = sphi 0, %s33
    %s34 = sphi 0, %s31
    %s35 = sphi 0, %s34
    %s51 = sphi 0, %s35
    %s57 = sphi 0, %s59
    %s60 = sphi 0, %s57
    %s61 = sphi 0, %s60
    %s77 = sphi 0, %s61
    %s83 = sphi 0, %s85
    %s86 = sphi 0, %s83
    %s87 = sphi 0, %s86
    %s103 = sphi 0, %s87
    %s111 = sphi 0, %s113
    %s114 = sphi 0, %s111
    %s115 = sphi 0, %s114
    %s131 = sphi 0, %s115
  $region4: #{listener_forward.28} parent=0 // loop_header_branch
    %12 = sbr.rel (%p10) target = $region8
  $region5: #{listener_forward.28} parent=0 // loop_body
    %s14 = ssub.s32 %s9, 1
    %s15 = ssub.s32 %s9, 2
    %s22 = sadd.s32 1, %s17
    %p23 = scmp.ge.s32.totalorder %s22, 1
    %s24 = scalar_select %p23, 0, %s22
    %s25 = sadd.s32 1, %s16
    %s26 = scalar_select %p23, %s25, %s16
    %p27 = scmp.ge.s32.totalorder %s26, 2
    %s28 = scalar_select %p27, 0, %s26
    %s29 = ssub.s32 %s17, %s24
    %p30 = scmp.eq.s32.totalorder %s29, 0
    %s32 = sadd.s32 %s31, 1
    %s33 = scalar_select %p30, %s31, %s32
    %p36 = pneg %p30
    %p37 = scmp.eq.s32.totalorder %s9, 1
    %p38 = por %p36, %p37
    %p39 = scmp.ne.s32.totalorder %s31, %s34
    %p40 = scmp.eq.s32.totalorder %s9, 0
    %p41 = por %p39, %p40
    %p42 = scmp.ne.s32.totalorder %s31, %s34
    %p43 = scmp.eq.s32.totalorder %s14, 1
    %p44 = por %p42, %p43
    %p45 = scmp.ne.s32.totalorder %s34, %s35
    %p46 = scmp.eq.s32.totalorder %s14, 0
    %p47 = por %p45, %p46
    %p48 = scmp.ne.s32.totalorder %s34, %s35
    %p49 = scmp.eq.s32.totalorder %s15, 1
    %p50 = por %p48, %p49
    %p52 = scmp.ne.s32.totalorder %s35, %s51
    %p53 = scmp.eq.s32.totalorder %s15, 0
    %p54 = por %p52, %p53
    %s55 = ssub.s32 %s16, %s28
    %p56 = scmp.eq.s32.totalorder %s55, 0
    %s58 = sadd.s32 %s57, 1
    %s59 = scalar_select %p56, %s57, %s58
    %p62 = pneg %p56
    %p63 = scmp.eq.s32.totalorder %s9, 1
    %p64 = por %p62, %p63
    %p65 = scmp.ne.s32.totalorder %s57, %s60
    %p66 = scmp.eq.s32.totalorder %s9, 0
    %p67 = por %p65, %p66
    %p68 = scmp.ne.s32.totalorder %s57, %s60
    %p69 = scmp.eq.s32.totalorder %s14, 1
    %p70 = por %p68, %p69
    %p71 = scmp.ne.s32.totalorder %s60, %s61
    %p72 = scmp.eq.s32.totalorder %s14, 0
    %p73 = por %p71, %p72
    %p74 = scmp.ne.s32.totalorder %s60, %s61
    %p75 = scmp.eq.s32.totalorder %s15, 1
    %p76 = por %p74, %p75
    %p78 = scmp.ne.s32.totalorder %s61, %s77
    %p79 = scmp.eq.s32.totalorder %s15, 0
    %p80 = por %p78, %p79
    %s81 = ssub.s32 %s16, %s28
    %p82 = scmp.eq.s32.totalorder %s81, 0
    %s84 = sadd.s32 %s83, 1
    %s85 = scalar_select %p82, %s83, %s84
    %p88 = pneg %p82
    %p89 = scmp.eq.s32.totalorder %s9, 1
    %p90 = por %p88, %p89
    %p91 = scmp.ne.s32.totalorder %s83, %s86
    %p92 = scmp.eq.s32.totalorder %s9, 0
    %p93 = por %p91, %p92
    %p94 = scmp.ne.s32.totalorder %s83, %s86
    %p95 = scmp.eq.s32.totalorder %s14, 1
    %p96 = por %p94, %p95
    %p97 = scmp.ne.s32.totalorder %s86, %s87
    %p98 = scmp.eq.s32.totalorder %s14, 0
    %p99 = por %p97, %p98
    %p100 = scmp.ne.s32.totalorder %s86, %s87
    %p101 = scmp.eq.s32.totalorder %s15, 1
    %p102 = por %p100, %p101
    %p104 = scmp.ne.s32.totalorder %s87, %s103
    %p105 = scmp.eq.s32.totalorder %s15, 0
    %p106 = por %p104, %p105
    %s107 = ssub.s32 %s16, %s28
    %s108 = ssub.s32 %s17, %s24
    %s109 = sor.u32 %s107, %s108
    %p110 = scmp.eq.s32.totalorder %s109, 0
    %s112 = sadd.s32 %s111, 1
    %s113 = scalar_select %p110, %s111, %s112
    %p116 = pneg %p110
    %p117 = scmp.eq.s32.totalorder %s9, 1
    %p118 = por %p116, %p117
    %p119 = scmp.ne.s32.totalorder %s111, %s114
    %p120 = scmp.eq.s32.totalorder %s9, 0
    %p121 = por %p119, %p120
    %p122 = scmp.ne.s32.totalorder %s111, %s114
    %p123 = scmp.eq.s32.totalorder %s14, 1
    %p124 = por %p122, %p123
    %p125 = scmp.ne.s32.totalorder %s114, %s115
    %p126 = scmp.eq.s32.totalorder %s14, 0
    %p127 = por %p125, %p126
    %p128 = scmp.ne.s32.totalorder %s114, %s115
    %p129 = scmp.eq.s32.totalorder %s15, 1
    %p130 = por %p128, %p129
    %p132 = scmp.ne.s32.totalorder %s115, %s131
    %p133 = scmp.eq.s32.totalorder %s15, 0
    %p134 = por %p132, %p133
    %p135 = scmp.le.s32.totalorder 1, %s9
    %p136 = scmp.lt.s32.totalorder %s9, 3
    %p137 = pnand %p135, %p136
    %p138 = pneg %p137
    // Predicated region
    $region9: #{listener_forward.28} parent=5 // pred_check
      _
    $region10: #{listener_forward.28} parent=5 // pred_check_branch
      %140 = sbr.rel (%p137) target = $region12
    $region11: #{listener_forward.28} parent=5 // pred_region
      %s141 = ssub.s32 %s9, 1
      // Predicated region
      $region13: #{listener_forward.28} parent=11 // pred_check
        %p142 = pneg %p47
      $region14: #{listener_forward.28} parent=11 // pred_check_branch
        %144 = sbr.rel (%p142) target = $region16
      $region15: #{listener_forward.28} parent=11 // pred_region
        %p145 = scmp.lt.s32.totalorder %s19, 0
        %s146 = scalar_select %p145, %s19, 0
        %s147 = smul.addr %s146, 2
        %s148 = scalar_lea.vmem %s0, %s147
      $region16: #{listener_forward.28} parent=11 // pred_fallthru
        _
    $region12: #{listener_forward.28} parent=5 // pred_fallthru
      _
    %p149 = scmp.lt.s32.totalorder %s9, 2
    // Predicated region
    $region17: #{listener_forward.28} parent=5 // pred_check
      %p150 = pneg %p149
    $region18: #{listener_forward.28} parent=5 // pred_check_branch
      %152 = sbr.rel (%p150) target = $region20
    $region19: #{listener_forward.28} parent=5 // pred_region
      // Predicated region
      $region21: #{listener_forward.28} parent=19 // pred_check
        %p153 = pneg %p67
      $region22: #{listener_forward.28} parent=19 // pred_check_branch
        %155 = sbr.rel (%p153) target = $region24
      $region23: #{listener_forward.28} parent=19 // pred_region
        %p156 = scmp.lt.s32.totalorder %s16, 1
        %s157 = scalar_select %p156, %s16, 1
        %s158 = smul.addr %s157, 8
        %s159 = smul.addr %s158, 4
        %s160 = scalar_lea.vmem %s1, %s159
      $region24: #{listener_forward.28} parent=19 // pred_fallthru
        _
      // Predicated region
      $region25: #{listener_forward.28} parent=19 // pred_check
        %p161 = pneg %p93
      $region26: #{listener_forward.28} parent=19 // pred_check_branch
        %163 = sbr.rel (%p161) target = $region28
      $region27: #{listener_forward.28} parent=19 // pred_region
        %p164 = scmp.lt.s32.totalorder %s16, 1
        %s165 = scalar_select %p164, %s16, 1
        %s166 = scalar_lea.vmem %s2, %s165
      $region28: #{listener_forward.28} parent=19 // pred_fallthru
        _
    $region20: #{listener_forward.28} parent=5 // pred_fallthru
      _
    %p167 = scmp.le.s32.totalorder 1, %s9
    %p168 = scmp.lt.s32.totalorder %s9, 3
    %p169 = pnand %p167, %p168
    %p170 = pneg %p169
    // Predicated region
    $region29: #{listener_forward.28} parent=5 // pred_check
      _
    $region30: #{listener_forward.28} parent=5 // pred_check_branch
      %172 = sbr.rel (%p169) target = $region32
    $region31: #{listener_forward.28} parent=5 // pred_region
      %s173 = ssub.s32 %s9, 1
      %p174 = scmp.lt.s32.totalorder %s19, 0
      %s175 = scalar_select %p174, %s19, 0
      %s176 = smul.addr %s175, 2
      %s177 = scalar_lea.vmem %s0, %s176
      %p178 = pneg %p47
      %p179 = pneg %p44
      %p180 = scmp.lt.s32.totalorder %s18, 1
      %s181 = scalar_select %p180, %s18, 1
      %s182 = smul.addr %s181, 8
      %s183 = smul.addr %s182, 4
      %s184 = scalar_lea.vmem %s1, %s183
      %p185 = pneg %p73
      %p186 = pneg %p70
      %p187 = scmp.lt.s32.totalorder %s18, 1
      %s188 = scalar_select %p187, %s18, 1
      %s189 = scalar_lea.vmem %s2, %s188
      %p190 = pneg %p99
      %p191 = pneg %p96
      %p192 = pneg %p127
      %p193 = pneg %p124
      %p194 = scmp.lt.s32.totalorder %s18, 1
      %s195 = scalar_select %p194, %s18, 1
      %p196 = scmp.lt.s32.totalorder %s19, 0
      %s197 = scalar_select %p196, %s19, 0
      %s198 = sadd.s32 %s197, %s195
      %s199 = smul.addr %s198, 2
      %s200 = scalar_lea.vmem %s3, %s199
      %p201 = scmp.lt.s32.totalorder %s19, 0
      %s202 = scalar_select %p201, %s19, 0
      %s203 = smul.addr %s202, 2
      %s204 = scalar_lea.vmem %s0, %s203
      %p205 = scmp.lt.s32.totalorder %s18, 1
      %s206 = scalar_select %p205, %s18, 1
      %s207 = smul.addr %s206, 8
      %s208 = smul.addr %s207, 4
      %s209 = scalar_lea.vmem %s1, %s208
      %p210 = scmp.lt.s32.totalorder %s18, 1
      %s211 = scalar_select %p210, %s18, 1
      %s212 = scalar_lea.vmem %s2, %s211
      %p213 = scmp.lt.s32.totalorder %s18, 1
      %s214 = scalar_select %p213, %s18, 1
      %p215 = scmp.lt.s32.totalorder %s19, 0
      %s216 = scalar_select %p215, %s19, 0
      %s217 = sadd.s32 %s216, %s214
      %s218 = smul.addr %s217, 2
      %s219 = scalar_lea.vmem %s3, %s218
      %v221 = vld [vmem:[%s204] sm:$0x3]
      %v222 = vpack.c.bf16 %v221, %v221
      %v223 = vld [vmem:[%s209] sm:$0xf]
      %v224 = vld [vmem:[%s209 + $0x4] sm:$0xf]
      %v225 = vld [vmem:[%s209 + $0x8] sm:$0xf]
      %v226 = vld [vmem:[%s209 + $0xc] sm:$0xf]
      %v227 = vld [vmem:[%s209 + $0x10] sm:$0xf]
      %v228 = vld [vmem:[%s209 + $0x14] sm:$0xf]
      %v229 = vld [vmem:[%s209 + $0x18] sm:$0xf]
      %v230 = vld [vmem:[%s209 + $0x1c] sm:$0xf]
      %v231 = vld [vmem:[%s212] sm:$0x1]
      %v233 = vperm.slane %v231, 0
      %v243 = vunpack.c.l.b16 %v223
      %v244 = vunpack.c.l.b16 %v224
      %v245 = vunpack.c.l.b16 %v225
      %v246 = vunpack.c.l.b16 %v226
      %v247 = vunpack.c.l.b16 %v227
      %v248 = vunpack.c.l.b16 %v228
      %v249 = vunpack.c.l.b16 %v229
      %v250 = vunpack.c.l.b16 %v230
      %v251 = vpack.c.b16 %v244, %v243
      %v252 = vpack.c.b16 %v246, %v245
      %v253 = vpack.c.b16 %v248, %v247
      %v254 = vpack.c.b16 %v250, %v249
      %vm259 = vcmask 523264
      %v261 = vsel %vm259, %v222, 0
      %263 = vmatpush.bf16.msra.mxu0 0
      %264 = vmatpush.bf16.msra.mxu0 0
      %265 = vmatpush.bf16.msra.mxu0 0
      %266 = vmatpush.bf16.msra.mxu0 0
      %267 = vmatpush.bf16.msra.mxu0 %v254
      %268 = vmatpush.bf16.msra.mxu0 %v253
      %269 = vmatpush.bf16.msra.mxu0 %v252
      %270 = vmatpush.bf16.msra.mxu0 %v251
      %271 = vmatmul.bf16.gmra.mxu0 %v261
      %v272 = vpop.f32.mrf.mxu0
      %v273 = vadd.f32 %v233, %v272
      %v274 = vpop.f32.mrf.mxu0
      %275 = vdwg.mxu0
      %vm276 = vcmask 779264
      %277 = vst.msk [vmem:[%s219] sm:$0x3] %vm276, %v273
      %p278 = scmp.lt.s32.totalorder %s18, 1
      %s279 = scalar_select %p278, %s18, 1
      %p280 = scmp.lt.s32.totalorder %s19, 0
      %s281 = scalar_select %p280, %s19, 0
      %s282 = sadd.s32 %s281, %s279
      %s283 = smul.addr %s282, 2
      %s284 = scalar_lea.vmem %s3, %s283
      // Predicated region
      $region33: #{listener_forward.28} parent=31 // pred_check
        %p285 = pneg %p124
      $region34: #{listener_forward.28} parent=31 // pred_check_branch
        %287 = sbr.rel (%p285) target = $region36
      $region35: #{listener_forward.28} parent=31 // pred_region
        _
      $region36: #{listener_forward.28} parent=31 // pred_fallthru
        _
    $region32: #{listener_forward.28} parent=5 // pred_fallthru
      _
    %p288 = scmp.le.s32.totalorder 2, %s9
    // Predicated region
    $region37: #{listener_forward.28} parent=5 // pred_check
      %p289 = pneg %p288
    $region38: #{listener_forward.28} parent=5 // pred_check_branch
      %291 = sbr.rel (%p289) target = $region40
    $region39: #{listener_forward.28} parent=5 // pred_region
      %s292 = ssub.s32 %s9, 2
      // Predicated region
      $region41: #{listener_forward.28} parent=39 // pred_check
        %p293 = pneg %p130
      $region42: #{listener_forward.28} parent=39 // pred_check_branch
        %295 = sbr.rel (%p293) target = $region44
      $region43: #{listener_forward.28} parent=39 // pred_region
        %p296 = scmp.lt.s32.totalorder %s20, 1
        %s297 = scalar_select %p296, %s20, 1
        %p298 = scmp.lt.s32.totalorder %s21, 0
        %s299 = scalar_select %p298, %s21, 0
        %s300 = sadd.s32 %s299, %s297
        %s301 = smul.addr %s300, 2
        %s302 = scalar_lea.vmem %s3, %s301
      $region44: #{listener_forward.28} parent=39 // pred_fallthru
        _
    $region40: #{listener_forward.28} parent=5 // pred_fallthru
      _
  $region6: #{listener_forward.28} parent=0 // loop_footer
    %s13 = sadd.s32 1, %s9
  $region7: #{listener_forward.28} parent=0 // loop_footer_branch
    %8 = sbr.rel target = $region3
  $region8: #{listener_forward.28} parent=0 // loop_exit
    _

</llo_original>
